<compile_context>
chip_gen: v6e
topology: v6e:2x2x1
jax: 0.10.0
libtpu: 0.0.40
codegen_flags: <defaults>
</compile_context>

<pallas_src>
import jax
import jax.numpy as jnp
from jax import lax
from jax.experimental import pallas as pl
from jax.experimental.pallas import tpu as pltpu

HIDDEN = 128
INPUT_SIZE = 1
NUM_LAYERS = 2
OUTPUT_SIZE = 1
FC_PAD = 128  # lane-dense padded width of the final Linear output


# ---------------------------------------------------------------------------
# Kernel
# ---------------------------------------------------------------------------
def _lstm_kernel(x_ref, wih0_ref, b0_ref, whh0_ref, w1_ref, b1_ref,
                 wfc_ref, bfc_ref, out_ref, h01_ref):
    # x_ref   : (T, Bp, 1) f32   input sequence (time-major, padded batch)
    # wih0    : (1, 4H)    f32   layer-0 input weights (transposed, gate-permuted)
    # b0      : (1, 4H)    f32   b_ih0 + b_hh0 (permuted)
    # whh0    : (H, 4H)    bf16  layer-0 recurrent weights (transposed, permuted)
    # w1      : (2H, 4H)   bf16  fused [W_ih1^T ; W_hh1^T] (permuted)
    # b1      : (1, 4H)    f32   b_ih1 + b_hh1 (permuted)
    # wfc     : (H, FC_PAD) bf16 fc weight, zero-padded lanes
    # bfc     : (1, FC_PAD) f32  fc bias, zero-padded lanes
    # out     : (Bp, FC_PAD) f32
    # h01_ref : (Bp, 2H)   bf16  VMEM scratch holding [h0 | h1] for the MXU LHS
    T, Bp, _ = x_ref.shape
    H = whh0_ref.shape[0]

    def cell_update(gates, c):
        # Gate layout is (i, f, o, g): sigmoid(x) = 0.5*tanh(0.5*x) + 0.5 ->
        # one EUP tanh over the contiguous 3H block, one tanh over g.
        sig = 0.5 * jnp.tanh(0.5 * gates[:, : 3 * H]) + 0.5
        i = sig[:, :H]
        f = sig[:, H:2 * H]
        o = sig[:, 2 * H:3 * H]
        g = jnp.tanh(gates[:, 3 * H:])
        c_new = f * c + i * g
        h_new = o * jnp.tanh(c_new)
        return h_new, c_new

    # Initial hidden state (h0 = h1 = 0), kept as the bf16 MXU LHS scratch.
    h01_ref[...] = jnp.zeros_like(h01_ref)

    # Hoist loop-invariant broadcasts (not CSE'd across loop iterations).
    wih0_b = jnp.broadcast_to(wih0_ref[...], (Bp, 4 * H))
    b0_b = jnp.broadcast_to(b0_ref[...], (Bp, 4 * H))
    b1_b = jnp.broadcast_to(b1_ref[...], (Bp, 4 * H))

    def step(t, carry):
        c0, c1, _ = carry

        # Layer 0: in-kernel input projection (VPU broadcast mul+add) plus the
        # bf16 recurrent matmul (f32 accumulate).  The recurrent weights are
        # re-read from VMEM each step to keep vreg pressure low.
        gates0 = (x_ref[t] * wih0_b + b0_b
                  + jnp.dot(h01_ref[:, :H], whh0_ref[...],
                            preferred_element_type=jnp.float32))
        h0, c0 = cell_update(gates0, c0)
        h01_ref[:, :H] = h0.astype(jnp.bfloat16)

        # Layer 1: single fused K=2H matmul over [h0 | h1] straight from the
        # VMEM scratch (no per-step concatenate/relayout on the serial chain).
        gates1 = jnp.dot(h01_ref[...], w1_ref[...],
                         preferred_element_type=jnp.float32) + b1_b
        h1, c1 = cell_update(gates1, c1)
        h01_ref[:, H:] = h1.astype(jnp.bfloat16)
        return c0, c1, h1

    zeros = jnp.zeros((Bp, H), jnp.float32)
    # T is static -> fully unroll so the scheduler sees the whole recurrence.
    _, _, h1_final = lax.fori_loop(0, T, step, (zeros, zeros, zeros),
                                   unroll=True)

    # fc(out[:, -1, :]) -- lane-padded to FC_PAD columns (unmasked stores);
    # the wrapper slices column 0.
    out_ref[...] = (jnp.dot(h1_final.astype(jnp.bfloat16), wfc_ref[...],
                            preferred_element_type=jnp.float32)
                    + bfc_ref[...])


# ---------------------------------------------------------------------------
# Wrapper
# ---------------------------------------------------------------------------
def lstm_forward(x, kparams):
    """x: (B, T, 1) float32, batch_first like nn.LSTM(batch_first=True)."""
    B, T, I = x.shape
    assert I == INPUT_SIZE
    # Pad batch to a sublane multiple; bump to 16-multiples when B grows so
    # bf16 packed (16,128) tiles stay full.
    Bp = 8 if B <= 8 else ((B + 15) // 16) * 16

    x_tb = jnp.transpose(x, (1, 0, 2)).astype(jnp.float32)      # (T, B, 1)
    if Bp != B:
        x_tb = jnp.pad(x_tb, ((0, 0), (0, Bp - B), (0, 0)))     # (T, Bp, 1)

    vmem = pltpu.MemorySpace.VMEM
    args = (x_tb, kparams["wih0"], kparams["b0"], kparams["whh0"],
            kparams["w1"], kparams["b1"], kparams["wfc"], kparams["bfc"])

    out = pl.pallas_call(
        _lstm_kernel,
        out_shape=jax.ShapeDtypeStruct((Bp, FC_PAD), jnp.float32),
        in_specs=[pl.BlockSpec(memory_space=vmem) for _ in args],
        out_specs=pl.BlockSpec(memory_space=vmem),
        scratch_shapes=[pltpu.VMEM((Bp, 2 * HIDDEN), jnp.bfloat16)],
        # NOTE: no grid needed -- the whole problem (<1 MiB VMEM) runs on one
        # TensorCore.  For v7x with B >= 16 add a leading batch-tile grid axis
        # with dimension_semantics=("parallel",) to use both cores; for large
        # T*Bp stream x with a time-chunked BlockSpec.
    )(*args)
    return out[:B, :OUTPUT_SIZE]


# ---------------------------------------------------------------------------
# Parameters: raw PyTorch-style init + kernel-layout prep
# ---------------------------------------------------------------------------
def init_params(key):
    """PyTorch-shaped params, U(-1/sqrt(H), 1/sqrt(H)) like nn.LSTM / nn.Linear."""
    scale = 1.0 / float(jnp.sqrt(HIDDEN))
    keys = jax.random.split(key, 10)

    def u(k_, shape):
        return jax.random.uniform(k_, shape, jnp.float32, -scale, scale)

    return {
        "w_ih0": u(keys[0], (4 * HIDDEN, INPUT_SIZE)),
        "w_hh0": u(keys[1], (4 * HIDDEN, HIDDEN)),
        "b_ih0": u(keys[2], (4 * HIDDEN,)),
        "b_hh0": u(keys[3], (4 * HIDDEN,)),
        "w_ih1": u(keys[4], (4 * HIDDEN, HIDDEN)),
        "w_hh1": u(keys[5], (4 * HIDDEN, HIDDEN)),
        "b_ih1": u(keys[6], (4 * HIDDEN,)),
        "b_hh1": u(keys[7], (4 * HIDDEN,)),
        "w_fc":  u(keys[8], (OUTPUT_SIZE, HIDDEN)),
        "b_fc":  u(keys[9], (OUTPUT_SIZE,)),
    }


def _permute_gates(a):
    """Reorder the 4H axis (axis 0) from PyTorch (i,f,g,o) to (i,f,o,g)."""
    H = HIDDEN
    return jnp.concatenate([a[:H], a[H:2 * H], a[3 * H:], a[2 * H:3 * H]], axis=0)


def prep_kernel_params(raw):
    """Pre-transpose, permute gates, fuse layer-1 weights, cast MXU operands."""
    p = _permute_gates
    wih0 = p(raw["w_ih0"]).T.astype(jnp.float32)                   # (1, 4H)
    b0 = p(raw["b_ih0"] + raw["b_hh0"])[None, :].astype(jnp.float32)   # (1, 4H)
    whh0 = p(raw["w_hh0"]).T.astype(jnp.bfloat16)                  # (H, 4H)
    w1 = jnp.concatenate([p(raw["w_ih1"]).T, p(raw["w_hh1"]).T],
                         axis=0).astype(jnp.bfloat16)              # (2H, 4H)
    b1 = p(raw["b_ih1"] + raw["b_hh1"])[None, :].astype(jnp.float32)   # (1, 4H)
    # Lane-pad the degenerate (H, 1) fc weight to (H, FC_PAD) so the output
    # store is lane-dense; extra columns are zero and get sliced off.
    wfc = jnp.zeros((HIDDEN, FC_PAD), jnp.float32)
    wfc = wfc.at[:, :OUTPUT_SIZE].set(raw["w_fc"].T).astype(jnp.bfloat16)
    bfc = jnp.zeros((1, FC_PAD), jnp.float32)
    bfc = bfc.at[:, :OUTPUT_SIZE].set(raw["b_fc"][None, :])
    return {"wih0": wih0, "b0": b0, "whh0": whh0, "w1": w1, "b1": b1,
            "wfc": wfc, "bfc": bfc}


# ---------------------------------------------------------------------------
# Pure-JAX f32 reference replicating the PyTorch forward pass (gate order i,f,g,o)
# ---------------------------------------------------------------------------
def lstm_reference(x, raw):
    B, T, _ = x.shape
    H = HIDDEN
    hp = jax.lax.Precision.HIGHEST
    h0 = c0 = h1 = c1 = jnp.zeros((B, H), jnp.float32)

    def cell(gates, c):
        i = jax.nn.sigmoid(gates[:, :H])
        f = jax.nn.sigmoid(gates[:, H:2 * H])
        g = jnp.tanh(gates[:, 2 * H:3 * H])
        o = jax.nn.sigmoid(gates[:, 3 * H:])
        c = f * c + i * g
        return o * jnp.tanh(c), c

    for t in range(T):
        x_t = x[:, t, :]
        g0 = (jnp.dot(x_t, raw["w_ih0"].T, precision=hp)
              + jnp.dot(h0, raw["w_hh0"].T, precision=hp)
              + raw["b_ih0"] + raw["b_hh0"])
        h0, c0 = cell(g0, c0)
        g1 = (jnp.dot(h0, raw["w_ih1"].T, precision=hp)
              + jnp.dot(h1, raw["w_hh1"].T, precision=hp)
              + raw["b_ih1"] + raw["b_hh1"])
        h1, c1 = cell(g1, c1)
    return jnp.dot(h1, raw["w_fc"].T, precision=hp) + raw["b_fc"]


if __name__ == "__main__":
    key = jax.random.PRNGKey(0)
    pkey, xkey = jax.random.split(key)
    raw_params = init_params(pkey)
    kparams = prep_kernel_params(raw_params)

    B, T = 2, 8
    x = jax.random.normal(xkey, (B, T, INPUT_SIZE), jnp.float32)

    fwd = jax.jit(lstm_forward)  # fuse the transpose/pad with the kernel dispatch
    out = fwd(x, kparams)
    jax.block_until_ready(out)

    ref = lstm_reference(x, raw_params)
    assert out.shape == (B, OUTPUT_SIZE)
    # Kernel uses bf16 MXU operands (f32 accumulate) in the recurrence, so we
    # compare against the full-f32 (HIGHEST precision) reference at a tolerance
    # that covers bf16 operand rounding accumulated over T steps.
    assert jnp.allclose(out, ref, atol=1e-2, rtol=1e-2), (out, ref)
    print("KERNEL_OK")
</pallas_src>

<mosaic_0001>
module attributes {stable_mosaic.version = 11 : i64} {
  func.func @_lstm_kernel(%arg0: memref<8x8x1xf32, #tpu.memory_space<vmem>>, %arg1: memref<1x512xf32, #tpu.memory_space<vmem>>, %arg2: memref<1x512xf32, #tpu.memory_space<vmem>>, %arg3: memref<128x512xbf16, #tpu.memory_space<vmem>>, %arg4: memref<256x512xbf16, #tpu.memory_space<vmem>>, %arg5: memref<1x512xf32, #tpu.memory_space<vmem>>, %arg6: memref<128x128xbf16, #tpu.memory_space<vmem>>, %arg7: memref<1x128xf32, #tpu.memory_space<vmem>>, %arg8: memref<8x128xf32, #tpu.memory_space<vmem>>, %arg9: memref<8x256xbf16, #tpu.memory_space<vmem>>) attributes {dimension_semantics = [], scalar_prefetch = 0 : i64, scratch_operands = 1 : i64, tpu.core_type = #tpu.core_type<tc>} {
    %cst = arith.constant 0.000000e+00 : bf16
    %0 = vector.broadcast %cst : bf16 to vector<8x256xbf16>
    %c0 = arith.constant 0 : index
    %c0_0 = arith.constant 0 : index
    %1 = vector.load %arg9[%c0, %c0_0] : memref<8x256xbf16, #tpu.memory_space<vmem>>, vector<8x256xbf16>
    tpu.vector_store %arg9[%c0, %c0_0], %0 {strides = array<i32>} : memref<8x256xbf16, #tpu.memory_space<vmem>>, vector<8x256xbf16>,
    %c0_1 = arith.constant 0 : index
    %c0_2 = arith.constant 0 : index
    %2 = vector.load %arg1[%c0_1, %c0_2] : memref<1x512xf32, #tpu.memory_space<vmem>>, vector<1x512xf32>
    %3 = vector.shape_cast %2 : vector<1x512xf32> to vector<1x512xf32>
    %4 = vector.broadcast %3 : vector<1x512xf32> to vector<8x512xf32>
    %c0_3 = arith.constant 0 : index
    %c0_4 = arith.constant 0 : index
    %5 = vector.load %arg2[%c0_3, %c0_4] : memref<1x512xf32, #tpu.memory_space<vmem>>, vector<1x512xf32>
    %6 = vector.shape_cast %5 : vector<1x512xf32> to vector<1x512xf32>
    %7 = vector.broadcast %6 : vector<1x512xf32> to vector<8x512xf32>
    %c0_5 = arith.constant 0 : index
    %c0_6 = arith.constant 0 : index
    %8 = vector.load %arg5[%c0_5, %c0_6] : memref<1x512xf32, #tpu.memory_space<vmem>>, vector<1x512xf32>
    %9 = vector.shape_cast %8 : vector<1x512xf32> to vector<1x512xf32>
    %10 = vector.broadcast %9 : vector<1x512xf32> to vector<8x512xf32>
    %cst_7 = arith.constant 0.000000e+00 : f32
    %11 = vector.broadcast %cst_7 : f32 to vector<8x128xf32>
    %c0_i32 = arith.constant 0 : i32
    %12 = arith.index_cast %c0_i32 : i32 to index
    %c0_8 = arith.constant 0 : index
    %c0_9 = arith.constant 0 : index
    %13 = vector.load %arg0[%12, %c0_8, %c0_9] : memref<8x8x1xf32, #tpu.memory_space<vmem>>, vector<1x8x1xf32>
    %14 = vector.shape_cast %13 : vector<1x8x1xf32> to vector<8x1xf32>
    %15 = vector.broadcast %14 : vector<8x1xf32> to vector<8x512xf32>
    %16 = arith.mulf %15, %4 : vector<8x512xf32>
    %17 = arith.addf %16, %7 : vector<8x512xf32>
    %c0_10 = arith.constant 0 : index
    %c0_11 = arith.constant 0 : index
    %18 = vector.load %arg9[%c0_10, %c0_11] : memref<8x256xbf16, #tpu.memory_space<vmem>>, vector<8x128xbf16>
    %c0_12 = arith.constant 0 : index
    %c0_13 = arith.constant 0 : index
    %19 = vector.load %arg3[%c0_12, %c0_13] : memref<128x512xbf16, #tpu.memory_space<vmem>>, vector<128x512xbf16>
    %cst_14 = arith.constant dense<0.000000e+00> : vector<8x512xf32>
    %20 = tpu.matmul %18, %19, %cst_14 {dimension_numbers = #tpu.dot_dimension_numbers<[1], [0], [0], [1], [0, 0, 1, 1], [], []>} : vector<8x128xbf16>, vector<128x512xbf16>, vector<8x512xf32> -> vector<8x512xf32>
    %21 = arith.addf %17, %20 : vector<8x512xf32>
    %22 = vector.extract_strided_slice %21 {offsets = [0, 0], sizes = [8, 384], strides = [1, 1]} : vector<8x512xf32> to vector<8x384xf32>
    %cst_15 = arith.constant 5.000000e-01 : f32
    %23 = vector.broadcast %cst_15 : f32 to vector<8x384xf32>
    %24 = arith.mulf %23, %22 : vector<8x384xf32>
    %25 = math.tanh %24 : vector<8x384xf32>
    %cst_16 = arith.constant 5.000000e-01 : f32
    %26 = vector.broadcast %cst_16 : f32 to vector<8x384xf32>
    %27 = arith.mulf %26, %25 : vector<8x384xf32>
    %cst_17 = arith.constant 5.000000e-01 : f32
    %28 = vector.broadcast %cst_17 : f32 to vector<8x384xf32>
    %29 = arith.addf %27, %28 : vector<8x384xf32>
    %30 = vector.extract_strided_slice %29 {offsets = [0, 0], sizes = [8, 128], strides = [1, 1]} : vector<8x384xf32> to vector<8x128xf32>
    %31 = vector.extract_strided_slice %29 {offsets = [0, 128], sizes = [8, 128], strides = [1, 1]} : vector<8x384xf32> to vector<8x128xf32>
    %32 = vector.extract_strided_slice %29 {offsets = [0, 256], sizes = [8, 128], strides = [1, 1]} : vector<8x384xf32> to vector<8x128xf32>
    %33 = vector.extract_strided_slice %21 {offsets = [0, 384], sizes = [8, 128], strides = [1, 1]} : vector<8x512xf32> to vector<8x128xf32>
    %34 = math.tanh %33 : vector<8x128xf32>
    %35 = arith.mulf %31, %11 : vector<8x128xf32>
    %36 = arith.mulf %30, %34 : vector<8x128xf32>
    %37 = arith.addf %35, %36 : vector<8x128xf32>
    %38 = math.tanh %37 : vector<8x128xf32>
    %39 = arith.mulf %32, %38 : vector<8x128xf32>
    %40 = arith.truncf %39 : vector<8x128xf32> to vector<8x128xbf16>
    %c0_18 = arith.constant 0 : index
    %c0_19 = arith.constant 0 : index
    %41 = vector.load %arg9[%c0_18, %c0_19] : memref<8x256xbf16, #tpu.memory_space<vmem>>, vector<8x128xbf16>
    tpu.vector_store %arg9[%c0_18, %c0_19], %40 {strides = array<i32>} : memref<8x256xbf16, #tpu.memory_space<vmem>>, vector<8x128xbf16>,
    %c0_20 = arith.constant 0 : index
    %c0_21 = arith.constant 0 : index
    %42 = vector.load %arg9[%c0_20, %c0_21] : memref<8x256xbf16, #tpu.memory_space<vmem>>, vector<8x256xbf16>
    %c0_22 = arith.constant 0 : index
    %c0_23 = arith.constant 0 : index
    %43 = vector.load %arg4[%c0_22, %c0_23] : memref<256x512xbf16, #tpu.memory_space<vmem>>, vector<256x512xbf16>
    %cst_24 = arith.constant dense<0.000000e+00> : vector<8x512xf32>
    %44 = tpu.matmul %42, %43, %cst_24 {dimension_numbers = #tpu.dot_dimension_numbers<[1], [0], [0], [1], [0, 0, 1, 1], [], []>} : vector<8x256xbf16>, vector<256x512xbf16>, vector<8x512xf32> -> vector<8x512xf32>
    %45 = arith.addf %44, %10 : vector<8x512xf32>
    %46 = vector.extract_strided_slice %45 {offsets = [0, 0], sizes = [8, 384], strides = [1, 1]} : vector<8x512xf32> to vector<8x384xf32>
    %cst_25 = arith.constant 5.000000e-01 : f32
    %47 = vector.broadcast %cst_25 : f32 to vector<8x384xf32>
    %48 = arith.mulf %47, %46 : vector<8x384xf32>
    %49 = math.tanh %48 : vector<8x384xf32>
    %cst_26 = arith.constant 5.000000e-01 : f32
    %50 = vector.broadcast %cst_26 : f32 to vector<8x384xf32>
    %51 = arith.mulf %50, %49 : vector<8x384xf32>
    %cst_27 = arith.constant 5.000000e-01 : f32
    %52 = vector.broadcast %cst_27 : f32 to vector<8x384xf32>
    %53 = arith.addf %51, %52 : vector<8x384xf32>
    %54 = vector.extract_strided_slice %53 {offsets = [0, 0], sizes = [8, 128], strides = [1, 1]} : vector<8x384xf32> to vector<8x128xf32>
    %55 = vector.extract_strided_slice %53 {offsets = [0, 128], sizes = [8, 128], strides = [1, 1]} : vector<8x384xf32> to vector<8x128xf32>
    %56 = vector.extract_strided_slice %53 {offsets = [0, 256], sizes = [8, 128], strides = [1, 1]} : vector<8x384xf32> to vector<8x128xf32>
    %57 = vector.extract_strided_slice %45 {offsets = [0, 384], sizes = [8, 128], strides = [1, 1]} : vector<8x512xf32> to vector<8x128xf32>
    %58 = math.tanh %57 : vector<8x128xf32>
    %59 = arith.mulf %55, %11 : vector<8x128xf32>
    %60 = arith.mulf %54, %58 : vector<8x128xf32>
    %61 = arith.addf %59, %60 : vector<8x128xf32>
    %62 = math.tanh %61 : vector<8x128xf32>
    %63 = arith.mulf %56, %62 : vector<8x128xf32>
    %64 = arith.truncf %63 : vector<8x128xf32> to vector<8x128xbf16>
    %c0_28 = arith.constant 0 : index
    %c128 = arith.constant 128 : index
    %65 = vector.load %arg9[%c0_28, %c128] : memref<8x256xbf16, #tpu.memory_space<vmem>>, vector<8x128xbf16>
    tpu.vector_store %arg9[%c0_28, %c128], %64 {strides = array<i32>} : memref<8x256xbf16, #tpu.memory_space<vmem>>, vector<8x128xbf16>,
    %c1_i32 = arith.constant 1 : i32
    %66 = arith.index_cast %c1_i32 : i32 to index
    %c0_29 = arith.constant 0 : index
    %c0_30 = arith.constant 0 : index
    %67 = vector.load %arg0[%66, %c0_29, %c0_30] : memref<8x8x1xf32, #tpu.memory_space<vmem>>, vector<1x8x1xf32>
    %68 = vector.shape_cast %67 : vector<1x8x1xf32> to vector<8x1xf32>
    %69 = vector.broadcast %68 : vector<8x1xf32> to vector<8x512xf32>
    %70 = arith.mulf %69, %4 : vector<8x512xf32>
    %71 = arith.addf %70, %7 : vector<8x512xf32>
    %c0_31 = arith.constant 0 : index
    %c0_32 = arith.constant 0 : index
    %72 = vector.load %arg9[%c0_31, %c0_32] : memref<8x256xbf16, #tpu.memory_space<vmem>>, vector<8x128xbf16>
    %c0_33 = arith.constant 0 : index
    %c0_34 = arith.constant 0 : index
    %73 = vector.load %arg3[%c0_33, %c0_34] : memref<128x512xbf16, #tpu.memory_space<vmem>>, vector<128x512xbf16>
    %cst_35 = arith.constant dense<0.000000e+00> : vector<8x512xf32>
    %74 = tpu.matmul %72, %73, %cst_35 {dimension_numbers = #tpu.dot_dimension_numbers<[1], [0], [0], [1], [0, 0, 1, 1], [], []>} : vector<8x128xbf16>, vector<128x512xbf16>, vector<8x512xf32> -> vector<8x512xf32>
    %75 = arith.addf %71, %74 : vector<8x512xf32>
    %76 = vector.extract_strided_slice %75 {offsets = [0, 0], sizes = [8, 384], strides = [1, 1]} : vector<8x512xf32> to vector<8x384xf32>
    %cst_36 = arith.constant 5.000000e-01 : f32
    %77 = vector.broadcast %cst_36 : f32 to vector<8x384xf32>
    %78 = arith.mulf %77, %76 : vector<8x384xf32>
    %79 = math.tanh %78 : vector<8x384xf32>
    %cst_37 = arith.constant 5.000000e-01 : f32
    %80 = vector.broadcast %cst_37 : f32 to vector<8x384xf32>
    %81 = arith.mulf %80, %79 : vector<8x384xf32>
    %cst_38 = arith.constant 5.000000e-01 : f32
    %82 = vector.broadcast %cst_38 : f32 to vector<8x384xf32>
    %83 = arith.addf %81, %82 : vector<8x384xf32>
    %84 = vector.extract_strided_slice %83 {offsets = [0, 0], sizes = [8, 128], strides = [1, 1]} : vector<8x384xf32> to vector<8x128xf32>
    %85 = vector.extract_strided_slice %83 {offsets = [0, 128], sizes = [8, 128], strides = [1, 1]} : vector<8x384xf32> to vector<8x128xf32>
    %86 = vector.extract_strided_slice %83 {offsets = [0, 256], sizes = [8, 128], strides = [1, 1]} : vector<8x384xf32> to vector<8x128xf32>
    %87 = vector.extract_strided_slice %75 {offsets = [0, 384], sizes = [8, 128], strides = [1, 1]} : vector<8x512xf32> to vector<8x128xf32>
    %88 = math.tanh %87 : vector<8x128xf32>
    %89 = arith.mulf %85, %37 : vector<8x128xf32>
    %90 = arith.mulf %84, %88 : vector<8x128xf32>
    %91 = arith.addf %89, %90 : vector<8x128xf32>
    %92 = math.tanh %91 : vector<8x128xf32>
    %93 = arith.mulf %86, %92 : vector<8x128xf32>
    %94 = arith.truncf %93 : vector<8x128xf32> to vector<8x128xbf16>
    %c0_39 = arith.constant 0 : index
    %c0_40 = arith.constant 0 : index
    %95 = vector.load %arg9[%c0_39, %c0_40] : memref<8x256xbf16, #tpu.memory_space<vmem>>, vector<8x128xbf16>
    tpu.vector_store %arg9[%c0_39, %c0_40], %94 {strides = array<i32>} : memref<8x256xbf16, #tpu.memory_space<vmem>>, vector<8x128xbf16>,
    %c0_41 = arith.constant 0 : index
    %c0_42 = arith.constant 0 : index
    %96 = vector.load %arg9[%c0_41, %c0_42] : memref<8x256xbf16, #tpu.memory_space<vmem>>, vector<8x256xbf16>
    %c0_43 = arith.constant 0 : index
    %c0_44 = arith.constant 0 : index
    %97 = vector.load %arg4[%c0_43, %c0_44] : memref<256x512xbf16, #tpu.memory_space<vmem>>, vector<256x512xbf16>
    %cst_45 = arith.constant dense<0.000000e+00> : vector<8x512xf32>
    %98 = tpu.matmul %96, %97, %cst_45 {dimension_numbers = #tpu.dot_dimension_numbers<[1], [0], [0], [1], [0, 0, 1, 1], [], []>} : vector<8x256xbf16>, vector<256x512xbf16>, vector<8x512xf32> -> vector<8x512xf32>
    %99 = arith.addf %98, %10 : vector<8x512xf32>
    %100 = vector.extract_strided_slice %99 {offsets = [0, 0], sizes = [8, 384], strides = [1, 1]} : vector<8x512xf32> to vector<8x384xf32>
    %cst_46 = arith.constant 5.000000e-01 : f32
    %101 = vector.broadcast %cst_46 : f32 to vector<8x384xf32>
    %102 = arith.mulf %101, %100 : vector<8x384xf32>
    %103 = math.tanh %102 : vector<8x384xf32>
    %cst_47 = arith.constant 5.000000e-01 : f32
    %104 = vector.broadcast %cst_47 : f32 to vector<8x384xf32>
    %105 = arith.mulf %104, %103 : vector<8x384xf32>
    %cst_48 = arith.constant 5.000000e-01 : f32
    %106 = vector.broadcast %cst_48 : f32 to vector<8x384xf32>
    %107 = arith.addf %105, %106 : vector<8x384xf32>
    %108 = vector.extract_strided_slice %107 {offsets = [0, 0], sizes = [8, 128], strides = [1, 1]} : vector<8x384xf32> to vector<8x128xf32>
    %109 = vector.extract_strided_slice %107 {offsets = [0, 128], sizes = [8, 128], strides = [1, 1]} : vector<8x384xf32> to vector<8x128xf32>
    %110 = vector.extract_strided_slice %107 {offsets = [0, 256], sizes = [8, 128], strides = [1, 1]} : vector<8x384xf32> to vector<8x128xf32>
    %111 = vector.extract_strided_slice %99 {offsets = [0, 384], sizes = [8, 128], strides = [1, 1]} : vector<8x512xf32> to vector<8x128xf32>
    %112 = math.tanh %111 : vector<8x128xf32>
    %113 = arith.mulf %109, %61 : vector<8x128xf32>
    %114 = arith.mulf %108, %112 : vector<8x128xf32>
    %115 = arith.addf %113, %114 : vector<8x128xf32>
    %116 = math.tanh %115 : vector<8x128xf32>
    %117 = arith.mulf %110, %116 : vector<8x128xf32>
    %118 = arith.truncf %117 : vector<8x128xf32> to vector<8x128xbf16>
    %c0_49 = arith.constant 0 : index
    %c128_50 = arith.constant 128 : index
    %119 = vector.load %arg9[%c0_49, %c128_50] : memref<8x256xbf16, #tpu.memory_space<vmem>>, vector<8x128xbf16>
    tpu.vector_store %arg9[%c0_49, %c128_50], %118 {strides = array<i32>} : memref<8x256xbf16, #tpu.memory_space<vmem>>, vector<8x128xbf16>,
    %c2_i32 = arith.constant 2 : i32
    %120 = arith.index_cast %c2_i32 : i32 to index
    %c0_51 = arith.constant 0 : index
    %c0_52 = arith.constant 0 : index
    %121 = vector.load %arg0[%120, %c0_51, %c0_52] : memref<8x8x1xf32, #tpu.memory_space<vmem>>, vector<1x8x1xf32>
    %122 = vector.shape_cast %121 : vector<1x8x1xf32> to vector<8x1xf32>
    %123 = vector.broadcast %122 : vector<8x1xf32> to vector<8x512xf32>
    %124 = arith.mulf %123, %4 : vector<8x512xf32>
    %125 = arith.addf %124, %7 : vector<8x512xf32>
    %c0_53 = arith.constant 0 : index
    %c0_54 = arith.constant 0 : index
    %126 = vector.load %arg9[%c0_53, %c0_54] : memref<8x256xbf16, #tpu.memory_space<vmem>>, vector<8x128xbf16>
    %c0_55 = arith.constant 0 : index
    %c0_56 = arith.constant 0 : index
    %127 = vector.load %arg3[%c0_55, %c0_56] : memref<128x512xbf16, #tpu.memory_space<vmem>>, vector<128x512xbf16>
    %cst_57 = arith.constant dense<0.000000e+00> : vector<8x512xf32>
    %128 = tpu.matmul %126, %127, %cst_57 {dimension_numbers = #tpu.dot_dimension_numbers<[1], [0], [0], [1], [0, 0, 1, 1], [], []>} : vector<8x128xbf16>, vector<128x512xbf16>, vector<8x512xf32> -> vector<8x512xf32>
    %129 = arith.addf %125, %128 : vector<8x512xf32>
    %130 = vector.extract_strided_slice %129 {offsets = [0, 0], sizes = [8, 384], strides = [1, 1]} : vector<8x512xf32> to vector<8x384xf32>
    %cst_58 = arith.constant 5.000000e-01 : f32
    %131 = vector.broadcast %cst_58 : f32 to vector<8x384xf32>
    %132 = arith.mulf %131, %130 : vector<8x384xf32>
    %133 = math.tanh %132 : vector<8x384xf32>
    %cst_59 = arith.constant 5.000000e-01 : f32
    %134 = vector.broadcast %cst_59 : f32 to vector<8x384xf32>
    %135 = arith.mulf %134, %133 : vector<8x384xf32>
    %cst_60 = arith.constant 5.000000e-01 : f32
    %136 = vector.broadcast %cst_60 : f32 to vector<8x384xf32>
    %137 = arith.addf %135, %136 : vector<8x384xf32>
    %138 = vector.extract_strided_slice %137 {offsets = [0, 0], sizes = [8, 128], strides = [1, 1]} : vector<8x384xf32> to vector<8x128xf32>
    %139 = vector.extract_strided_slice %137 {offsets = [0, 128], sizes = [8, 128], strides = [1, 1]} : vector<8x384xf32> to vector<8x128xf32>
    %140 = vector.extract_strided_slice %137 {offsets = [0, 256], sizes = [8, 128], strides = [1, 1]} : vector<8x384xf32> to vector<8x128xf32>
    %141 = vector.extract_strided_slice %129 {offsets = [0, 384], sizes = [8, 128], strides = [1, 1]} : vector<8x512xf32> to vector<8x128xf32>
    %142 = math.tanh %141 : vector<8x128xf32>
    %143 = arith.mulf %139, %91 : vector<8x128xf32>
    %144 = arith.mulf %138, %142 : vector<8x128xf32>
    %145 = arith.addf %143, %144 : vector<8x128xf32>
    %146 = math.tanh %145 : vector<8x128xf32>
    %147 = arith.mulf %140, %146 : vector<8x128xf32>
    %148 = arith.truncf %147 : vector<8x128xf32> to vector<8x128xbf16>
    %c0_61 = arith.constant 0 : index
    %c0_62 = arith.constant 0 : index
    %149 = vector.load %arg9[%c0_61, %c0_62] : memref<8x256xbf16, #tpu.memory_space<vmem>>, vector<8x128xbf16>
    tpu.vector_store %arg9[%c0_61, %c0_62], %148 {strides = array<i32>} : memref<8x256xbf16, #tpu.memory_space<vmem>>, vector<8x128xbf16>,
    %c0_63 = arith.constant 0 : index
    %c0_64 = arith.constant 0 : index
    %150 = vector.load %arg9[%c0_63, %c0_64] : memref<8x256xbf16, #tpu.memory_space<vmem>>, vector<8x256xbf16>
    %c0_65 = arith.constant 0 : index
    %c0_66 = arith.constant 0 : index
    %151 = vector.load %arg4[%c0_65, %c0_66] : memref<256x512xbf16, #tpu.memory_space<vmem>>, vector<256x512xbf16>
    %cst_67 = arith.constant dense<0.000000e+00> : vector<8x512xf32>
    %152 = tpu.matmul %150, %151, %cst_67 {dimension_numbers = #tpu.dot_dimension_numbers<[1], [0], [0], [1], [0, 0, 1, 1], [], []>} : vector<8x256xbf16>, vector<256x512xbf16>, vector<8x512xf32> -> vector<8x512xf32>
    %153 = arith.addf %152, %10 : vector<8x512xf32>
    %154 = vector.extract_strided_slice %153 {offsets = [0, 0], sizes = [8, 384], strides = [1, 1]} : vector<8x512xf32> to vector<8x384xf32>
    %cst_68 = arith.constant 5.000000e-01 : f32
    %155 = vector.broadcast %cst_68 : f32 to vector<8x384xf32>
    %156 = arith.mulf %155, %154 : vector<8x384xf32>
    %157 = math.tanh %156 : vector<8x384xf32>
    %cst_69 = arith.constant 5.000000e-01 : f32
    %158 = vector.broadcast %cst_69 : f32 to vector<8x384xf32>
    %159 = arith.mulf %158, %157 : vector<8x384xf32>
    %cst_70 = arith.constant 5.000000e-01 : f32
    %160 = vector.broadcast %cst_70 : f32 to vector<8x384xf32>
    %161 = arith.addf %159, %160 : vector<8x384xf32>
    %162 = vector.extract_strided_slice %161 {offsets = [0, 0], sizes = [8, 128], strides = [1, 1]} : vector<8x384xf32> to vector<8x128xf32>
    %163 = vector.extract_strided_slice %161 {offsets = [0, 128], sizes = [8, 128], strides = [1, 1]} : vector<8x384xf32> to vector<8x128xf32>
    %164 = vector.extract_strided_slice %161 {offsets = [0, 256], sizes = [8, 128], strides = [1, 1]} : vector<8x384xf32> to vector<8x128xf32>
    %165 = vector.extract_strided_slice %153 {offsets = [0, 384], sizes = [8, 128], strides = [1, 1]} : vector<8x512xf32> to vector<8x128xf32>
    %166 = math.tanh %165 : vector<8x128xf32>
    %167 = arith.mulf %163, %115 : vector<8x128xf32>
    %168 = arith.mulf %162, %166 : vector<8x128xf32>
    %169 = arith.addf %167, %168 : vector<8x128xf32>
    %170 = math.tanh %169 : vector<8x128xf32>
    %171 = arith.mulf %164, %170 : vector<8x128xf32>
    %172 = arith.truncf %171 : vector<8x128xf32> to vector<8x128xbf16>
    %c0_71 = arith.constant 0 : index
    %c128_72 = arith.constant 128 : index
    %173 = vector.load %arg9[%c0_71, %c128_72] : memref<8x256xbf16, #tpu.memory_space<vmem>>, vector<8x128xbf16>
    tpu.vector_store %arg9[%c0_71, %c128_72], %172 {strides = array<i32>} : memref<8x256xbf16, #tpu.memory_space<vmem>>, vector<8x128xbf16>,
    %c3_i32 = arith.constant 3 : i32
    %174 = arith.index_cast %c3_i32 : i32 to index
    %c0_73 = arith.constant 0 : index
    %c0_74 = arith.constant 0 : index
    %175 = vector.load %arg0[%174, %c0_73, %c0_74] : memref<8x8x1xf32, #tpu.memory_space<vmem>>, vector<1x8x1xf32>
    %176 = vector.shape_cast %175 : vector<1x8x1xf32> to vector<8x1xf32>
    %177 = vector.broadcast %176 : vector<8x1xf32> to vector<8x512xf32>
    %178 = arith.mulf %177, %4 : vector<8x512xf32>
    %179 = arith.addf %178, %7 : vector<8x512xf32>
    %c0_75 = arith.constant 0 : index
    %c0_76 = arith.constant 0 : index
    %180 = vector.load %arg9[%c0_75, %c0_76] : memref<8x256xbf16, #tpu.memory_space<vmem>>, vector<8x128xbf16>
    %c0_77 = arith.constant 0 : index
    %c0_78 = arith.constant 0 : index
    %181 = vector.load %arg3[%c0_77, %c0_78] : memref<128x512xbf16, #tpu.memory_space<vmem>>, vector<128x512xbf16>
    %cst_79 = arith.constant dense<0.000000e+00> : vector<8x512xf32>
    %182 = tpu.matmul %180, %181, %cst_79 {dimension_numbers = #tpu.dot_dimension_numbers<[1], [0], [0], [1], [0, 0, 1, 1], [], []>} : vector<8x128xbf16>, vector<128x512xbf16>, vector<8x512xf32> -> vector<8x512xf32>
    %183 = arith.addf %179, %182 : vector<8x512xf32>
    %184 = vector.extract_strided_slice %183 {offsets = [0, 0], sizes = [8, 384], strides = [1, 1]} : vector<8x512xf32> to vector<8x384xf32>
    %cst_80 = arith.constant 5.000000e-01 : f32
    %185 = vector.broadcast %cst_80 : f32 to vector<8x384xf32>
    %186 = arith.mulf %185, %184 : vector<8x384xf32>
    %187 = math.tanh %186 : vector<8x384xf32>
    %cst_81 = arith.constant 5.000000e-01 : f32
    %188 = vector.broadcast %cst_81 : f32 to vector<8x384xf32>
    %189 = arith.mulf %188, %187 : vector<8x384xf32>
    %cst_82 = arith.constant 5.000000e-01 : f32
    %190 = vector.broadcast %cst_82 : f32 to vector<8x384xf32>
    %191 = arith.addf %189, %190 : vector<8x384xf32>
    %192 = vector.extract_strided_slice %191 {offsets = [0, 0], sizes = [8, 128], strides = [1, 1]} : vector<8x384xf32> to vector<8x128xf32>
    %193 = vector.extract_strided_slice %191 {offsets = [0, 128], sizes = [8, 128], strides = [1, 1]} : vector<8x384xf32> to vector<8x128xf32>
    %194 = vector.extract_strided_slice %191 {offsets = [0, 256], sizes = [8, 128], strides = [1, 1]} : vector<8x384xf32> to vector<8x128xf32>
    %195 = vector.extract_strided_slice %183 {offsets = [0, 384], sizes = [8, 128], strides = [1, 1]} : vector<8x512xf32> to vector<8x128xf32>
    %196 = math.tanh %195 : vector<8x128xf32>
    %197 = arith.mulf %193, %145 : vector<8x128xf32>
    %198 = arith.mulf %192, %196 : vector<8x128xf32>
    %199 = arith.addf %197, %198 : vector<8x128xf32>
    %200 = math.tanh %199 : vector<8x128xf32>
    %201 = arith.mulf %194, %200 : vector<8x128xf32>
    %202 = arith.truncf %201 : vector<8x128xf32> to vector<8x128xbf16>
    %c0_83 = arith.constant 0 : index
    %c0_84 = arith.constant 0 : index
    %203 = vector.load %arg9[%c0_83, %c0_84] : memref<8x256xbf16, #tpu.memory_space<vmem>>, vector<8x128xbf16>
    tpu.vector_store %arg9[%c0_83, %c0_84], %202 {strides = array<i32>} : memref<8x256xbf16, #tpu.memory_space<vmem>>, vector<8x128xbf16>,
    %c0_85 = arith.constant 0 : index
    %c0_86 = arith.constant 0 : index
    %204 = vector.load %arg9[%c0_85, %c0_86] : memref<8x256xbf16, #tpu.memory_space<vmem>>, vector<8x256xbf16>
    %c0_87 = arith.constant 0 : index
    %c0_88 = arith.constant 0 : index
    %205 = vector.load %arg4[%c0_87, %c0_88] : memref<256x512xbf16, #tpu.memory_space<vmem>>, vector<256x512xbf16>
    %cst_89 = arith.constant dense<0.000000e+00> : vector<8x512xf32>
    %206 = tpu.matmul %204, %205, %cst_89 {dimension_numbers = #tpu.dot_dimension_numbers<[1], [0], [0], [1], [0, 0, 1, 1], [], []>} : vector<8x256xbf16>, vector<256x512xbf16>, vector<8x512xf32> -> vector<8x512xf32>
    %207 = arith.addf %206, %10 : vector<8x512xf32>
    %208 = vector.extract_strided_slice %207 {offsets = [0, 0], sizes = [8, 384], strides = [1, 1]} : vector<8x512xf32> to vector<8x384xf32>
    %cst_90 = arith.constant 5.000000e-01 : f32
    %209 = vector.broadcast %cst_90 : f32 to vector<8x384xf32>
    %210 = arith.mulf %209, %208 : vector<8x384xf32>
    %211 = math.tanh %210 : vector<8x384xf32>
    %cst_91 = arith.constant 5.000000e-01 : f32
    %212 = vector.broadcast %cst_91 : f32 to vector<8x384xf32>
    %213 = arith.mulf %212, %211 : vector<8x384xf32>
    %cst_92 = arith.constant 5.000000e-01 : f32
    %214 = vector.broadcast %cst_92 : f32 to vector<8x384xf32>
    %215 = arith.addf %213, %214 : vector<8x384xf32>
    %216 = vector.extract_strided_slice %215 {offsets = [0, 0], sizes = [8, 128], strides = [1, 1]} : vector<8x384xf32> to vector<8x128xf32>
    %217 = vector.extract_strided_slice %215 {offsets = [0, 128], sizes = [8, 128], strides = [1, 1]} : vector<8x384xf32> to vector<8x128xf32>
    %218 = vector.extract_strided_slice %215 {offsets = [0, 256], sizes = [8, 128], strides = [1, 1]} : vector<8x384xf32> to vector<8x128xf32>
    %219 = vector.extract_strided_slice %207 {offsets = [0, 384], sizes = [8, 128], strides = [1, 1]} : vector<8x512xf32> to vector<8x128xf32>
    %220 = math.tanh %219 : vector<8x128xf32>
    %221 = arith.mulf %217, %169 : vector<8x128xf32>
    %222 = arith.mulf %216, %220 : vector<8x128xf32>
    %223 = arith.addf %221, %222 : vector<8x128xf32>
    %224 = math.tanh %223 : vector<8x128xf32>
    %225 = arith.mulf %218, %224 : vector<8x128xf32>
    %226 = arith.truncf %225 : vector<8x128xf32> to vector<8x128xbf16>
    %c0_93 = arith.constant 0 : index
    %c128_94 = arith.constant 128 : index
    %227 = vector.load %arg9[%c0_93, %c128_94] : memref<8x256xbf16, #tpu.memory_space<vmem>>, vector<8x128xbf16>
    tpu.vector_store %arg9[%c0_93, %c128_94], %226 {strides = array<i32>} : memref<8x256xbf16, #tpu.memory_space<vmem>>, vector<8x128xbf16>,
    %c4_i32 = arith.constant 4 : i32
    %228 = arith.index_cast %c4_i32 : i32 to index
    %c0_95 = arith.constant 0 : index
    %c0_96 = arith.constant 0 : index
    %229 = vector.load %arg0[%228, %c0_95, %c0_96] : memref<8x8x1xf32, #tpu.memory_space<vmem>>, vector<1x8x1xf32>
    %230 = vector.shape_cast %229 : vector<1x8x1xf32> to vector<8x1xf32>
    %231 = vector.broadcast %230 : vector<8x1xf32> to vector<8x512xf32>
    %232 = arith.mulf %231, %4 : vector<8x512xf32>
    %233 = arith.addf %232, %7 : vector<8x512xf32>
    %c0_97 = arith.constant 0 : index
    %c0_98 = arith.constant 0 : index
    %234 = vector.load %arg9[%c0_97, %c0_98] : memref<8x256xbf16, #tpu.memory_space<vmem>>, vector<8x128xbf16>
    %c0_99 = arith.constant 0 : index
    %c0_100 = arith.constant 0 : index
    %235 = vector.load %arg3[%c0_99, %c0_100] : memref<128x512xbf16, #tpu.memory_space<vmem>>, vector<128x512xbf16>
    %cst_101 = arith.constant dense<0.000000e+00> : vector<8x512xf32>
    %236 = tpu.matmul %234, %235, %cst_101 {dimension_numbers = #tpu.dot_dimension_numbers<[1], [0], [0], [1], [0, 0, 1, 1], [], []>} : vector<8x128xbf16>, vector<128x512xbf16>, vector<8x512xf32> -> vector<8x512xf32>
    %237 = arith.addf %233, %236 : vector<8x512xf32>
    %238 = vector.extract_strided_slice %237 {offsets = [0, 0], sizes = [8, 384], strides = [1, 1]} : vector<8x512xf32> to vector<8x384xf32>
    %cst_102 = arith.constant 5.000000e-01 : f32
    %239 = vector.broadcast %cst_102 : f32 to vector<8x384xf32>
    %240 = arith.mulf %239, %238 : vector<8x384xf32>
    %241 = math.tanh %240 : vector<8x384xf32>
    %cst_103 = arith.constant 5.000000e-01 : f32
    %242 = vector.broadcast %cst_103 : f32 to vector<8x384xf32>
    %243 = arith.mulf %242, %241 : vector<8x384xf32>
    %cst_104 = arith.constant 5.000000e-01 : f32
    %244 = vector.broadcast %cst_104 : f32 to vector<8x384xf32>
    %245 = arith.addf %243, %244 : vector<8x384xf32>
    %246 = vector.extract_strided_slice %245 {offsets = [0, 0], sizes = [8, 128], strides = [1, 1]} : vector<8x384xf32> to vector<8x128xf32>
    %247 = vector.extract_strided_slice %245 {offsets = [0, 128], sizes = [8, 128], strides = [1, 1]} : vector<8x384xf32> to vector<8x128xf32>
    %248 = vector.extract_strided_slice %245 {offsets = [0, 256], sizes = [8, 128], strides = [1, 1]} : vector<8x384xf32> to vector<8x128xf32>
    %249 = vector.extract_strided_slice %237 {offsets = [0, 384], sizes = [8, 128], strides = [1, 1]} : vector<8x512xf32> to vector<8x128xf32>
    %250 = math.tanh %249 : vector<8x128xf32>
    %251 = arith.mulf %247, %199 : vector<8x128xf32>
    %252 = arith.mulf %246, %250 : vector<8x128xf32>
    %253 = arith.addf %251, %252 : vector<8x128xf32>
    %254 = math.tanh %253 : vector<8x128xf32>
    %255 = arith.mulf %248, %254 : vector<8x128xf32>
    %256 = arith.truncf %255 : vector<8x128xf32> to vector<8x128xbf16>
    %c0_105 = arith.constant 0 : index
    %c0_106 = arith.constant 0 : index
    %257 = vector.load %arg9[%c0_105, %c0_106] : memref<8x256xbf16, #tpu.memory_space<vmem>>, vector<8x128xbf16>
    tpu.vector_store %arg9[%c0_105, %c0_106], %256 {strides = array<i32>} : memref<8x256xbf16, #tpu.memory_space<vmem>>, vector<8x128xbf16>,
    %c0_107 = arith.constant 0 : index
    %c0_108 = arith.constant 0 : index
    %258 = vector.load %arg9[%c0_107, %c0_108] : memref<8x256xbf16, #tpu.memory_space<vmem>>, vector<8x256xbf16>
    %c0_109 = arith.constant 0 : index
    %c0_110 = arith.constant 0 : index
    %259 = vector.load %arg4[%c0_109, %c0_110] : memref<256x512xbf16, #tpu.memory_space<vmem>>, vector<256x512xbf16>
    %cst_111 = arith.constant dense<0.000000e+00> : vector<8x512xf32>
    %260 = tpu.matmul %258, %259, %cst_111 {dimension_numbers = #tpu.dot_dimension_numbers<[1], [0], [0], [1], [0, 0, 1, 1], [], []>} : vector<8x256xbf16>, vector<256x512xbf16>, vector<8x512xf32> -> vector<8x512xf32>
    %261 = arith.addf %260, %10 : vector<8x512xf32>
    %262 = vector.extract_strided_slice %261 {offsets = [0, 0], sizes = [8, 384], strides = [1, 1]} : vector<8x512xf32> to vector<8x384xf32>
    %cst_112 = arith.constant 5.000000e-01 : f32
    %263 = vector.broadcast %cst_112 : f32 to vector<8x384xf32>
    %264 = arith.mulf %263, %262 : vector<8x384xf32>
    %265 = math.tanh %264 : vector<8x384xf32>
    %cst_113 = arith.constant 5.000000e-01 : f32
    %266 = vector.broadcast %cst_113 : f32 to vector<8x384xf32>
    %267 = arith.mulf %266, %265 : vector<8x384xf32>
    %cst_114 = arith.constant 5.000000e-01 : f32
    %268 = vector.broadcast %cst_114 : f32 to vector<8x384xf32>
    %269 = arith.addf %267, %268 : vector<8x384xf32>
    %270 = vector.extract_strided_slice %269 {offsets = [0, 0], sizes = [8, 128], strides = [1, 1]} : vector<8x384xf32> to vector<8x128xf32>
    %271 = vector.extract_strided_slice %269 {offsets = [0, 128], sizes = [8, 128], strides = [1, 1]} : vector<8x384xf32> to vector<8x128xf32>
    %272 = vector.extract_strided_slice %269 {offsets = [0, 256], sizes = [8, 128], strides = [1, 1]} : vector<8x384xf32> to vector<8x128xf32>
    %273 = vector.extract_strided_slice %261 {offsets = [0, 384], sizes = [8, 128], strides = [1, 1]} : vector<8x512xf32> to vector<8x128xf32>
    %274 = math.tanh %273 : vector<8x128xf32>
    %275 = arith.mulf %271, %223 : vector<8x128xf32>
    %276 = arith.mulf %270, %274 : vector<8x128xf32>
    %277 = arith.addf %275, %276 : vector<8x128xf32>
    %278 = math.tanh %277 : vector<8x128xf32>
    %279 = arith.mulf %272, %278 : vector<8x128xf32>
    %280 = arith.truncf %279 : vector<8x128xf32> to vector<8x128xbf16>
    %c0_115 = arith.constant 0 : index
    %c128_116 = arith.constant 128 : index
    %281 = vector.load %arg9[%c0_115, %c128_116] : memref<8x256xbf16, #tpu.memory_space<vmem>>, vector<8x128xbf16>
    tpu.vector_store %arg9[%c0_115, %c128_116], %280 {strides = array<i32>} : memref<8x256xbf16, #tpu.memory_space<vmem>>, vector<8x128xbf16>,
    %c5_i32 = arith.constant 5 : i32
    %282 = arith.index_cast %c5_i32 : i32 to index
    %c0_117 = arith.constant 0 : index
    %c0_118 = arith.constant 0 : index
    %283 = vector.load %arg0[%282, %c0_117, %c0_118] : memref<8x8x1xf32, #tpu.memory_space<vmem>>, vector<1x8x1xf32>
    %284 = vector.shape_cast %283 : vector<1x8x1xf32> to vector<8x1xf32>
    %285 = vector.broadcast %284 : vector<8x1xf32> to vector<8x512xf32>
    %286 = arith.mulf %285, %4 : vector<8x512xf32>
    %287 = arith.addf %286, %7 : vector<8x512xf32>
    %c0_119 = arith.constant 0 : index
    %c0_120 = arith.constant 0 : index
    %288 = vector.load %arg9[%c0_119, %c0_120] : memref<8x256xbf16, #tpu.memory_space<vmem>>, vector<8x128xbf16>
    %c0_121 = arith.constant 0 : index
    %c0_122 = arith.constant 0 : index
    %289 = vector.load %arg3[%c0_121, %c0_122] : memref<128x512xbf16, #tpu.memory_space<vmem>>, vector<128x512xbf16>
    %cst_123 = arith.constant dense<0.000000e+00> : vector<8x512xf32>
    %290 = tpu.matmul %288, %289, %cst_123 {dimension_numbers = #tpu.dot_dimension_numbers<[1], [0], [0], [1], [0, 0, 1, 1], [], []>} : vector<8x128xbf16>, vector<128x512xbf16>, vector<8x512xf32> -> vector<8x512xf32>
    %291 = arith.addf %287, %290 : vector<8x512xf32>
    %292 = vector.extract_strided_slice %291 {offsets = [0, 0], sizes = [8, 384], strides = [1, 1]} : vector<8x512xf32> to vector<8x384xf32>
    %cst_124 = arith.constant 5.000000e-01 : f32
    %293 = vector.broadcast %cst_124 : f32 to vector<8x384xf32>
    %294 = arith.mulf %293, %292 : vector<8x384xf32>
    %295 = math.tanh %294 : vector<8x384xf32>
    %cst_125 = arith.constant 5.000000e-01 : f32
    %296 = vector.broadcast %cst_125 : f32 to vector<8x384xf32>
    %297 = arith.mulf %296, %295 : vector<8x384xf32>
    %cst_126 = arith.constant 5.000000e-01 : f32
    %298 = vector.broadcast %cst_126 : f32 to vector<8x384xf32>
    %299 = arith.addf %297, %298 : vector<8x384xf32>
    %300 = vector.extract_strided_slice %299 {offsets = [0, 0], sizes = [8, 128], strides = [1, 1]} : vector<8x384xf32> to vector<8x128xf32>
    %301 = vector.extract_strided_slice %299 {offsets = [0, 128], sizes = [8, 128], strides = [1, 1]} : vector<8x384xf32> to vector<8x128xf32>
    %302 = vector.extract_strided_slice %299 {offsets = [0, 256], sizes = [8, 128], strides = [1, 1]} : vector<8x384xf32> to vector<8x128xf32>
    %303 = vector.extract_strided_slice %291 {offsets = [0, 384], sizes = [8, 128], strides = [1, 1]} : vector<8x512xf32> to vector<8x128xf32>
    %304 = math.tanh %303 : vector<8x128xf32>
    %305 = arith.mulf %301, %253 : vector<8x128xf32>
    %306 = arith.mulf %300, %304 : vector<8x128xf32>
    %307 = arith.addf %305, %306 : vector<8x128xf32>
    %308 = math.tanh %307 : vector<8x128xf32>
    %309 = arith.mulf %302, %308 : vector<8x128xf32>
    %310 = arith.truncf %309 : vector<8x128xf32> to vector<8x128xbf16>
    %c0_127 = arith.constant 0 : index
    %c0_128 = arith.constant 0 : index
    %311 = vector.load %arg9[%c0_127, %c0_128] : memref<8x256xbf16, #tpu.memory_space<vmem>>, vector<8x128xbf16>
    tpu.vector_store %arg9[%c0_127, %c0_128], %310 {strides = array<i32>} : memref<8x256xbf16, #tpu.memory_space<vmem>>, vector<8x128xbf16>,
    %c0_129 = arith.constant 0 : index
    %c0_130 = arith.constant 0 : index
    %312 = vector.load %arg9[%c0_129, %c0_130] : memref<8x256xbf16, #tpu.memory_space<vmem>>, vector<8x256xbf16>
    %c0_131 = arith.constant 0 : index
    %c0_132 = arith.constant 0 : index
    %313 = vector.load %arg4[%c0_131, %c0_132] : memref<256x512xbf16, #tpu.memory_space<vmem>>, vector<256x512xbf16>
    %cst_133 = arith.constant dense<0.000000e+00> : vector<8x512xf32>
    %314 = tpu.matmul %312, %313, %cst_133 {dimension_numbers = #tpu.dot_dimension_numbers<[1], [0], [0], [1], [0, 0, 1, 1], [], []>} : vector<8x256xbf16>, vector<256x512xbf16>, vector<8x512xf32> -> vector<8x512xf32>
    %315 = arith.addf %314, %10 : vector<8x512xf32>
    %316 = vector.extract_strided_slice %315 {offsets = [0, 0], sizes = [8, 384], strides = [1, 1]} : vector<8x512xf32> to vector<8x384xf32>
    %cst_134 = arith.constant 5.000000e-01 : f32
    %317 = vector.broadcast %cst_134 : f32 to vector<8x384xf32>
    %318 = arith.mulf %317, %316 : vector<8x384xf32>
    %319 = math.tanh %318 : vector<8x384xf32>
    %cst_135 = arith.constant 5.000000e-01 : f32
    %320 = vector.broadcast %cst_135 : f32 to vector<8x384xf32>
    %321 = arith.mulf %320, %319 : vector<8x384xf32>
    %cst_136 = arith.constant 5.000000e-01 : f32
    %322 = vector.broadcast %cst_136 : f32 to vector<8x384xf32>
    %323 = arith.addf %321, %322 : vector<8x384xf32>
    %324 = vector.extract_strided_slice %323 {offsets = [0, 0], sizes = [8, 128], strides = [1, 1]} : vector<8x384xf32> to vector<8x128xf32>
    %325 = vector.extract_strided_slice %323 {offsets = [0, 128], sizes = [8, 128], strides = [1, 1]} : vector<8x384xf32> to vector<8x128xf32>
    %326 = vector.extract_strided_slice %323 {offsets = [0, 256], sizes = [8, 128], strides = [1, 1]} : vector<8x384xf32> to vector<8x128xf32>
    %327 = vector.extract_strided_slice %315 {offsets = [0, 384], sizes = [8, 128], strides = [1, 1]} : vector<8x512xf32> to vector<8x128xf32>
    %328 = math.tanh %327 : vector<8x128xf32>
    %329 = arith.mulf %325, %277 : vector<8x128xf32>
    %330 = arith.mulf %324, %328 : vector<8x128xf32>
    %331 = arith.addf %329, %330 : vector<8x128xf32>
    %332 = math.tanh %331 : vector<8x128xf32>
    %333 = arith.mulf %326, %332 : vector<8x128xf32>
    %334 = arith.truncf %333 : vector<8x128xf32> to vector<8x128xbf16>
    %c0_137 = arith.constant 0 : index
    %c128_138 = arith.constant 128 : index
    %335 = vector.load %arg9[%c0_137, %c128_138] : memref<8x256xbf16, #tpu.memory_space<vmem>>, vector<8x128xbf16>
    tpu.vector_store %arg9[%c0_137, %c128_138], %334 {strides = array<i32>} : memref<8x256xbf16, #tpu.memory_space<vmem>>, vector<8x128xbf16>,
    %c6_i32 = arith.constant 6 : i32
    %336 = arith.index_cast %c6_i32 : i32 to index
    %c0_139 = arith.constant 0 : index
    %c0_140 = arith.constant 0 : index
    %337 = vector.load %arg0[%336, %c0_139, %c0_140] : memref<8x8x1xf32, #tpu.memory_space<vmem>>, vector<1x8x1xf32>
    %338 = vector.shape_cast %337 : vector<1x8x1xf32> to vector<8x1xf32>
    %339 = vector.broadcast %338 : vector<8x1xf32> to vector<8x512xf32>
    %340 = arith.mulf %339, %4 : vector<8x512xf32>
    %341 = arith.addf %340, %7 : vector<8x512xf32>
    %c0_141 = arith.constant 0 : index
    %c0_142 = arith.constant 0 : index
    %342 = vector.load %arg9[%c0_141, %c0_142] : memref<8x256xbf16, #tpu.memory_space<vmem>>, vector<8x128xbf16>
    %c0_143 = arith.constant 0 : index
    %c0_144 = arith.constant 0 : index
    %343 = vector.load %arg3[%c0_143, %c0_144] : memref<128x512xbf16, #tpu.memory_space<vmem>>, vector<128x512xbf16>
    %cst_145 = arith.constant dense<0.000000e+00> : vector<8x512xf32>
    %344 = tpu.matmul %342, %343, %cst_145 {dimension_numbers = #tpu.dot_dimension_numbers<[1], [0], [0], [1], [0, 0, 1, 1], [], []>} : vector<8x128xbf16>, vector<128x512xbf16>, vector<8x512xf32> -> vector<8x512xf32>
    %345 = arith.addf %341, %344 : vector<8x512xf32>
    %346 = vector.extract_strided_slice %345 {offsets = [0, 0], sizes = [8, 384], strides = [1, 1]} : vector<8x512xf32> to vector<8x384xf32>
    %cst_146 = arith.constant 5.000000e-01 : f32
    %347 = vector.broadcast %cst_146 : f32 to vector<8x384xf32>
    %348 = arith.mulf %347, %346 : vector<8x384xf32>
    %349 = math.tanh %348 : vector<8x384xf32>
    %cst_147 = arith.constant 5.000000e-01 : f32
    %350 = vector.broadcast %cst_147 : f32 to vector<8x384xf32>
    %351 = arith.mulf %350, %349 : vector<8x384xf32>
    %cst_148 = arith.constant 5.000000e-01 : f32
    %352 = vector.broadcast %cst_148 : f32 to vector<8x384xf32>
    %353 = arith.addf %351, %352 : vector<8x384xf32>
    %354 = vector.extract_strided_slice %353 {offsets = [0, 0], sizes = [8, 128], strides = [1, 1]} : vector<8x384xf32> to vector<8x128xf32>
    %355 = vector.extract_strided_slice %353 {offsets = [0, 128], sizes = [8, 128], strides = [1, 1]} : vector<8x384xf32> to vector<8x128xf32>
    %356 = vector.extract_strided_slice %353 {offsets = [0, 256], sizes = [8, 128], strides = [1, 1]} : vector<8x384xf32> to vector<8x128xf32>
    %357 = vector.extract_strided_slice %345 {offsets = [0, 384], sizes = [8, 128], strides = [1, 1]} : vector<8x512xf32> to vector<8x128xf32>
    %358 = math.tanh %357 : vector<8x128xf32>
    %359 = arith.mulf %355, %307 : vector<8x128xf32>
    %360 = arith.mulf %354, %358 : vector<8x128xf32>
    %361 = arith.addf %359, %360 : vector<8x128xf32>
    %362 = math.tanh %361 : vector<8x128xf32>
    %363 = arith.mulf %356, %362 : vector<8x128xf32>
    %364 = arith.truncf %363 : vector<8x128xf32> to vector<8x128xbf16>
    %c0_149 = arith.constant 0 : index
    %c0_150 = arith.constant 0 : index
    %365 = vector.load %arg9[%c0_149, %c0_150] : memref<8x256xbf16, #tpu.memory_space<vmem>>, vector<8x128xbf16>
    tpu.vector_store %arg9[%c0_149, %c0_150], %364 {strides = array<i32>} : memref<8x256xbf16, #tpu.memory_space<vmem>>, vector<8x128xbf16>,
    %c0_151 = arith.constant 0 : index
    %c0_152 = arith.constant 0 : index
    %366 = vector.load %arg9[%c0_151, %c0_152] : memref<8x256xbf16, #tpu.memory_space<vmem>>, vector<8x256xbf16>
    %c0_153 = arith.constant 0 : index
    %c0_154 = arith.constant 0 : index
    %367 = vector.load %arg4[%c0_153, %c0_154] : memref<256x512xbf16, #tpu.memory_space<vmem>>, vector<256x512xbf16>
    %cst_155 = arith.constant dense<0.000000e+00> : vector<8x512xf32>
    %368 = tpu.matmul %366, %367, %cst_155 {dimension_numbers = #tpu.dot_dimension_numbers<[1], [0], [0], [1], [0, 0, 1, 1], [], []>} : vector<8x256xbf16>, vector<256x512xbf16>, vector<8x512xf32> -> vector<8x512xf32>
    %369 = arith.addf %368, %10 : vector<8x512xf32>
    %370 = vector.extract_strided_slice %369 {offsets = [0, 0], sizes = [8, 384], strides = [1, 1]} : vector<8x512xf32> to vector<8x384xf32>
    %cst_156 = arith.constant 5.000000e-01 : f32
    %371 = vector.broadcast %cst_156 : f32 to vector<8x384xf32>
    %372 = arith.mulf %371, %370 : vector<8x384xf32>
    %373 = math.tanh %372 : vector<8x384xf32>
    %cst_157 = arith.constant 5.000000e-01 : f32
    %374 = vector.broadcast %cst_157 : f32 to vector<8x384xf32>
    %375 = arith.mulf %374, %373 : vector<8x384xf32>
    %cst_158 = arith.constant 5.000000e-01 : f32
    %376 = vector.broadcast %cst_158 : f32 to vector<8x384xf32>
    %377 = arith.addf %375, %376 : vector<8x384xf32>
    %378 = vector.extract_strided_slice %377 {offsets = [0, 0], sizes = [8, 128], strides = [1, 1]} : vector<8x384xf32> to vector<8x128xf32>
    %379 = vector.extract_strided_slice %377 {offsets = [0, 128], sizes = [8, 128], strides = [1, 1]} : vector<8x384xf32> to vector<8x128xf32>
    %380 = vector.extract_strided_slice %377 {offsets = [0, 256], sizes = [8, 128], strides = [1, 1]} : vector<8x384xf32> to vector<8x128xf32>
    %381 = vector.extract_strided_slice %369 {offsets = [0, 384], sizes = [8, 128], strides = [1, 1]} : vector<8x512xf32> to vector<8x128xf32>
    %382 = math.tanh %381 : vector<8x128xf32>
    %383 = arith.mulf %379, %331 : vector<8x128xf32>
    %384 = arith.mulf %378, %382 : vector<8x128xf32>
    %385 = arith.addf %383, %384 : vector<8x128xf32>
    %386 = math.tanh %385 : vector<8x128xf32>
    %387 = arith.mulf %380, %386 : vector<8x128xf32>
    %388 = arith.truncf %387 : vector<8x128xf32> to vector<8x128xbf16>
    %c0_159 = arith.constant 0 : index
    %c128_160 = arith.constant 128 : index
    %389 = vector.load %arg9[%c0_159, %c128_160] : memref<8x256xbf16, #tpu.memory_space<vmem>>, vector<8x128xbf16>
    tpu.vector_store %arg9[%c0_159, %c128_160], %388 {strides = array<i32>} : memref<8x256xbf16, #tpu.memory_space<vmem>>, vector<8x128xbf16>,
    %c7_i32 = arith.constant 7 : i32
    %390 = arith.index_cast %c7_i32 : i32 to index
    %c0_161 = arith.constant 0 : index
    %c0_162 = arith.constant 0 : index
    %391 = vector.load %arg0[%390, %c0_161, %c0_162] : memref<8x8x1xf32, #tpu.memory_space<vmem>>, vector<1x8x1xf32>
    %392 = vector.shape_cast %391 : vector<1x8x1xf32> to vector<8x1xf32>
    %393 = vector.broadcast %392 : vector<8x1xf32> to vector<8x512xf32>
    %394 = arith.mulf %393, %4 : vector<8x512xf32>
    %395 = arith.addf %394, %7 : vector<8x512xf32>
    %c0_163 = arith.constant 0 : index
    %c0_164 = arith.constant 0 : index
    %396 = vector.load %arg9[%c0_163, %c0_164] : memref<8x256xbf16, #tpu.memory_space<vmem>>, vector<8x128xbf16>
    %c0_165 = arith.constant 0 : index
    %c0_166 = arith.constant 0 : index
    %397 = vector.load %arg3[%c0_165, %c0_166] : memref<128x512xbf16, #tpu.memory_space<vmem>>, vector<128x512xbf16>
    %cst_167 = arith.constant dense<0.000000e+00> : vector<8x512xf32>
    %398 = tpu.matmul %396, %397, %cst_167 {dimension_numbers = #tpu.dot_dimension_numbers<[1], [0], [0], [1], [0, 0, 1, 1], [], []>} : vector<8x128xbf16>, vector<128x512xbf16>, vector<8x512xf32> -> vector<8x512xf32>
    %399 = arith.addf %395, %398 : vector<8x512xf32>
    %400 = vector.extract_strided_slice %399 {offsets = [0, 0], sizes = [8, 384], strides = [1, 1]} : vector<8x512xf32> to vector<8x384xf32>
    %cst_168 = arith.constant 5.000000e-01 : f32
    %401 = vector.broadcast %cst_168 : f32 to vector<8x384xf32>
    %402 = arith.mulf %401, %400 : vector<8x384xf32>
    %403 = math.tanh %402 : vector<8x384xf32>
    %cst_169 = arith.constant 5.000000e-01 : f32
    %404 = vector.broadcast %cst_169 : f32 to vector<8x384xf32>
    %405 = arith.mulf %404, %403 : vector<8x384xf32>
    %cst_170 = arith.constant 5.000000e-01 : f32
    %406 = vector.broadcast %cst_170 : f32 to vector<8x384xf32>
    %407 = arith.addf %405, %406 : vector<8x384xf32>
    %408 = vector.extract_strided_slice %407 {offsets = [0, 0], sizes = [8, 128], strides = [1, 1]} : vector<8x384xf32> to vector<8x128xf32>
    %409 = vector.extract_strided_slice %407 {offsets = [0, 128], sizes = [8, 128], strides = [1, 1]} : vector<8x384xf32> to vector<8x128xf32>
    %410 = vector.extract_strided_slice %407 {offsets = [0, 256], sizes = [8, 128], strides = [1, 1]} : vector<8x384xf32> to vector<8x128xf32>
    %411 = vector.extract_strided_slice %399 {offsets = [0, 384], sizes = [8, 128], strides = [1, 1]} : vector<8x512xf32> to vector<8x128xf32>
    %412 = math.tanh %411 : vector<8x128xf32>
    %413 = arith.mulf %409, %361 : vector<8x128xf32>
    %414 = arith.mulf %408, %412 : vector<8x128xf32>
    %415 = arith.addf %413, %414 : vector<8x128xf32>
    %416 = math.tanh %415 : vector<8x128xf32>
    %417 = arith.mulf %410, %416 : vector<8x128xf32>
    %418 = arith.truncf %417 : vector<8x128xf32> to vector<8x128xbf16>
    %c0_171 = arith.constant 0 : index
    %c0_172 = arith.constant 0 : index
    %419 = vector.load %arg9[%c0_171, %c0_172] : memref<8x256xbf16, #tpu.memory_space<vmem>>, vector<8x128xbf16>
    tpu.vector_store %arg9[%c0_171, %c0_172], %418 {strides = array<i32>} : memref<8x256xbf16, #tpu.memory_space<vmem>>, vector<8x128xbf16>,
    %c0_173 = arith.constant 0 : index
    %c0_174 = arith.constant 0 : index
    %420 = vector.load %arg9[%c0_173, %c0_174] : memref<8x256xbf16, #tpu.memory_space<vmem>>, vector<8x256xbf16>
    %c0_175 = arith.constant 0 : index
    %c0_176 = arith.constant 0 : index
    %421 = vector.load %arg4[%c0_175, %c0_176] : memref<256x512xbf16, #tpu.memory_space<vmem>>, vector<256x512xbf16>
    %cst_177 = arith.constant dense<0.000000e+00> : vector<8x512xf32>
    %422 = tpu.matmul %420, %421, %cst_177 {dimension_numbers = #tpu.dot_dimension_numbers<[1], [0], [0], [1], [0, 0, 1, 1], [], []>} : vector<8x256xbf16>, vector<256x512xbf16>, vector<8x512xf32> -> vector<8x512xf32>
    %423 = arith.addf %422, %10 : vector<8x512xf32>
    %424 = vector.extract_strided_slice %423 {offsets = [0, 0], sizes = [8, 384], strides = [1, 1]} : vector<8x512xf32> to vector<8x384xf32>
    %cst_178 = arith.constant 5.000000e-01 : f32
    %425 = vector.broadcast %cst_178 : f32 to vector<8x384xf32>
    %426 = arith.mulf %425, %424 : vector<8x384xf32>
    %427 = math.tanh %426 : vector<8x384xf32>
    %cst_179 = arith.constant 5.000000e-01 : f32
    %428 = vector.broadcast %cst_179 : f32 to vector<8x384xf32>
    %429 = arith.mulf %428, %427 : vector<8x384xf32>
    %cst_180 = arith.constant 5.000000e-01 : f32
    %430 = vector.broadcast %cst_180 : f32 to vector<8x384xf32>
    %431 = arith.addf %429, %430 : vector<8x384xf32>
    %432 = vector.extract_strided_slice %431 {offsets = [0, 0], sizes = [8, 128], strides = [1, 1]} : vector<8x384xf32> to vector<8x128xf32>
    %433 = vector.extract_strided_slice %431 {offsets = [0, 128], sizes = [8, 128], strides = [1, 1]} : vector<8x384xf32> to vector<8x128xf32>
    %434 = vector.extract_strided_slice %431 {offsets = [0, 256], sizes = [8, 128], strides = [1, 1]} : vector<8x384xf32> to vector<8x128xf32>
    %435 = vector.extract_strided_slice %423 {offsets = [0, 384], sizes = [8, 128], strides = [1, 1]} : vector<8x512xf32> to vector<8x128xf32>
    %436 = math.tanh %435 : vector<8x128xf32>
    %437 = arith.mulf %433, %385 : vector<8x128xf32>
    %438 = arith.mulf %432, %436 : vector<8x128xf32>
    %439 = arith.addf %437, %438 : vector<8x128xf32>
    %440 = math.tanh %439 : vector<8x128xf32>
    %441 = arith.mulf %434, %440 : vector<8x128xf32>
    %442 = arith.truncf %441 : vector<8x128xf32> to vector<8x128xbf16>
    %c0_181 = arith.constant 0 : index
    %c128_182 = arith.constant 128 : index
    %443 = vector.load %arg9[%c0_181, %c128_182] : memref<8x256xbf16, #tpu.memory_space<vmem>>, vector<8x128xbf16>
    tpu.vector_store %arg9[%c0_181, %c128_182], %442 {strides = array<i32>} : memref<8x256xbf16, #tpu.memory_space<vmem>>, vector<8x128xbf16>,
    %c8_i32 = arith.constant 8 : i32
    %444 = arith.truncf %441 : vector<8x128xf32> to vector<8x128xbf16>
    %c0_183 = arith.constant 0 : index
    %c0_184 = arith.constant 0 : index
    %445 = vector.load %arg6[%c0_183, %c0_184] : memref<128x128xbf16, #tpu.memory_space<vmem>>, vector<128x128xbf16>
    %cst_185 = arith.constant dense<0.000000e+00> : vector<8x128xf32>
    %446 = tpu.matmul %444, %445, %cst_185 {dimension_numbers = #tpu.dot_dimension_numbers<[1], [0], [0], [1], [0, 0, 1, 1], [], []>} : vector<8x128xbf16>, vector<128x128xbf16>, vector<8x128xf32> -> vector<8x128xf32>
    %c0_186 = arith.constant 0 : index
    %c0_187 = arith.constant 0 : index
    %447 = vector.load %arg7[%c0_186, %c0_187] : memref<1x128xf32, #tpu.memory_space<vmem>>, vector<1x128xf32>
    %448 = vector.broadcast %447 : vector<1x128xf32> to vector<8x128xf32>
    %449 = arith.addf %446, %448 : vector<8x128xf32>
    %c0_188 = arith.constant 0 : index
    %c0_189 = arith.constant 0 : index
    %450 = vector.load %arg8[%c0_188, %c0_189] : memref<8x128xf32, #tpu.memory_space<vmem>>, vector<8x128xf32>
    tpu.vector_store %arg8[%c0_188, %c0_189], %449 {strides = array<i32>} : memref<8x128xf32, #tpu.memory_space<vmem>>, vector<8x128xf32>,
    return
  }
}

</mosaic_0001>

<llo_original>
// kernel: lstm_forward.1
$region0: #{lstm_forward.1}
  #allocation0 [shape = 'u32[]', space=smem, size = 0x4, offset = 0x4, fixed_abs, tag = 'smem constant byte address 0x4 - core index']
  #allocation1 [shape = 'u32[144,128]{1,0:T(1,128)}', space=vmem, size = 0x12000, scoped, tag = 'internal scratch']
  #allocation2 [shape = 'bf16[8,256]{1,0:T(8,128)(2,1)}', space=vmem, size = 0x1000, scoped, tag = 'scratch operand']
  %s0 = inlined_call_operand.vmem [shape: f32[8,8,1], index: 0, kind: input, shape index: {}]
  %s1 = inlined_call_operand.vmem [shape: f32[1,512], index: 1, kind: input, shape index: {}]
  %s2 = inlined_call_operand.vmem [shape: f32[1,512], index: 2, kind: input, shape index: {}]
  %s3 = inlined_call_operand.hbm [shape: bf16[128,512], index: 3, kind: input, shape index: {}]
  %s4 = inlined_call_operand.hbm [shape: bf16[256,512], index: 4, kind: input, shape index: {}]
  %s5 = inlined_call_operand.vmem [shape: f32[1,512], index: 5, kind: input, shape index: {}]
  %s6 = inlined_call_operand.vmem [shape: bf16[128,128], index: 6, kind: input, shape index: {}]
  %s7 = inlined_call_operand.vmem [shape: f32[1,128], index: 7, kind: input, shape index: {}]
  %s8 = inlined_call_operand.vmem [shape: f32[8,128], index: 8, kind: output, shape index: {}]
  %s9 = sld [smem:[#allocation0]]
  $region50: #{lstm_forward.1} parent=0
    _
  %s11 = ssub.s32 1, %s9
  %s12 = scalar_select 0, %s11, %s9
  $region1: #{lstm_forward.1} parent=0
    #allocation3 [shape = 'u8[131072]{0}', space=vmem, size = 0x20000, scoped, tag = 'input window, operand 3, single buffered']
    #allocation4 [shape = 's32[1]{0}', space=sflag, size = 0x4, scoped, tag = 'scoped memory for lstm_forward.1']
    #allocation5 [shape = 'u8[262144]{0}', space=vmem, size = 0x40000, scoped, tag = 'input window, operand 4, single buffered']
    #allocation6 [shape = 's32[1]{0}', space=sflag, size = 0x4, scoped, tag = 'scoped memory for lstm_forward.1']
    %13 = vsyncpa [#allocation4], 0
    %14 = vsyncpa [#allocation6], 0
    // Predicated region
    $region2: #{lstm_forward.1} parent=1 // pred_check
      _
    $region3: #{lstm_forward.1} parent=1 // pred_check_branch
      %16 = sbr.rel (0) target = $region5
    $region4: #{lstm_forward.1} parent=1 // pred_region
      _
    $region5: #{lstm_forward.1} parent=1 // pred_fallthru
      _
    // Predicated region
    $region6: #{lstm_forward.1} parent=1 // pred_check
      _
    $region7: #{lstm_forward.1} parent=1 // pred_check_branch
      %18 = sbr.rel (0) target = $region9
    $region8: #{lstm_forward.1} parent=1 // pred_region
      _
    $region9: #{lstm_forward.1} parent=1 // pred_fallthru
      _
    // Predicated region
    $region10: #{lstm_forward.1} parent=1 // pred_check
      _
    $region11: #{lstm_forward.1} parent=1 // pred_check_branch
      %20 = sbr.rel (0) target = $region13
    $region12: #{lstm_forward.1} parent=1 // pred_region
      _
    $region13: #{lstm_forward.1} parent=1 // pred_fallthru
      _
    // Predicated region
    $region14: #{lstm_forward.1} parent=1 // pred_check
      _
    $region15: #{lstm_forward.1} parent=1 // pred_check_branch
      %22 = sbr.rel (0) target = $region17
    $region16: #{lstm_forward.1} parent=1 // pred_region
      %s24 = ssub.s32 4096, 4096
      %25 = vsyncadd [#allocation4], %s24
      %s26 = sshll.u32 [#allocation3], 4
      %s27 = int_to_ptr.vmem [resolvable:$true] %s26
      %32 = dma.hbm_to_vmem [thread:$0]  %s3, 4096, %s27, [#allocation4], 256, 256, 16
    $region17: #{lstm_forward.1} parent=1 // pred_fallthru
      _
    // Predicated region
    $region18: #{lstm_forward.1} parent=1 // pred_check
      _
    $region19: #{lstm_forward.1} parent=1 // pred_check_branch
      %34 = sbr.rel (0) target = $region21
    $region20: #{lstm_forward.1} parent=1 // pred_region
      %s36 = ssub.s32 8192, 8192
      %37 = vsyncadd [#allocation6], %s36
      %s38 = sshll.u32 [#allocation5], 4
      %s39 = int_to_ptr.vmem [resolvable:$true] %s38
      %44 = dma.hbm_to_vmem [thread:$0]  %s4, 8192, %s39, [#allocation6], 256, 256, 16
    $region21: #{lstm_forward.1} parent=1 // pred_fallthru
      _
    // Predicated region
    $region22: #{lstm_forward.1} parent=1 // pred_check
      _
    $region23: #{lstm_forward.1} parent=1 // pred_check_branch
      %46 = sbr.rel (0) target = $region25
    $region24: #{lstm_forward.1} parent=1 // pred_region
      _
    $region25: #{lstm_forward.1} parent=1 // pred_fallthru
      _
    // Predicated region
    $region26: #{lstm_forward.1} parent=1 // pred_check
      _
    $region27: #{lstm_forward.1} parent=1 // pred_check_branch
      %48 = sbr.rel (0) target = $region29
    $region28: #{lstm_forward.1} parent=1 // pred_region
      _
    $region29: #{lstm_forward.1} parent=1 // pred_fallthru
      _
    // Predicated region
    $region30: #{lstm_forward.1} parent=1 // pred_check
      _
    $region31: #{lstm_forward.1} parent=1 // pred_check_branch
      %50 = sbr.rel (0) target = $region33
    $region32: #{lstm_forward.1} parent=1 // pred_region
      _
    $region33: #{lstm_forward.1} parent=1 // pred_fallthru
      _
    // Predicated region
    $region34: #{lstm_forward.1} parent=1 // pred_check
      _
    $region35: #{lstm_forward.1} parent=1 // pred_check_branch
      %52 = sbr.rel (0) target = $region37
    $region36: #{lstm_forward.1} parent=1 // pred_region
      %53 = dma.done [#allocation4], 4096
    $region37: #{lstm_forward.1} parent=1 // pred_fallthru
      _
    // Predicated region
    $region38: #{lstm_forward.1} parent=1 // pred_check
      _
    $region39: #{lstm_forward.1} parent=1 // pred_check_branch
      %55 = sbr.rel (0) target = $region41
    $region40: #{lstm_forward.1} parent=1 // pred_region
      %56 = dma.done [#allocation6], 8192
    $region41: #{lstm_forward.1} parent=1 // pred_fallthru
      _
    %58 = vst [vmem:[#allocation2] sm:$0xff] 0
    %v59 = vld [vmem:[%s1] sm:$0xf]
    %v61 = vlaneseq
    %v62 = vshrl.u32 %v61, 7
    %v63 = vsub.s32 0, %v62
    %v64 = vrot.slane %v59, %v63
    %v65 = vlaneseq
    %v66 = vshrl.u32 %v65, 7
    %v67 = vsub.s32 1, %v66
    %v68 = vrot.slane %v59, %v67
    %v69 = vlaneseq
    %v70 = vshrl.u32 %v69, 7
    %v71 = vsub.s32 2, %v70
    %v72 = vrot.slane %v59, %v71
    %v73 = vlaneseq
    %v74 = vshrl.u32 %v73, 7
    %v75 = vsub.s32 3, %v74
    %v76 = vrot.slane %v59, %v75
    %v81 = vld [vmem:[%s2] sm:$0xf]
    %v83 = vlaneseq
    %v84 = vshrl.u32 %v83, 7
    %v85 = vsub.s32 0, %v84
    %v86 = vrot.slane %v81, %v85
    %v87 = vlaneseq
    %v88 = vshrl.u32 %v87, 7
    %v89 = vsub.s32 1, %v88
    %v90 = vrot.slane %v81, %v89
    %v91 = vlaneseq
    %v92 = vshrl.u32 %v91, 7
    %v93 = vsub.s32 2, %v92
    %v94 = vrot.slane %v81, %v93
    %v95 = vlaneseq
    %v96 = vshrl.u32 %v95, 7
    %v97 = vsub.s32 3, %v96
    %v98 = vrot.slane %v81, %v97
    %v103 = vld [vmem:[%s5] sm:$0xf]
    %v105 = vlaneseq
    %v106 = vshrl.u32 %v105, 7
    %v107 = vsub.s32 0, %v106
    %v108 = vrot.slane %v103, %v107
    %v109 = vlaneseq
    %v110 = vshrl.u32 %v109, 7
    %v111 = vsub.s32 1, %v110
    %v112 = vrot.slane %v103, %v111
    %v113 = vlaneseq
    %v114 = vshrl.u32 %v113, 7
    %v115 = vsub.s32 2, %v114
    %v116 = vrot.slane %v103, %v115
    %v117 = vlaneseq
    %v118 = vshrl.u32 %v117, 7
    %v119 = vsub.s32 3, %v118
    %v120 = vrot.slane %v103, %v119
    %v125 = vld [vmem:[%s0] sm:$0xff]
    %127 = vset.pattern.permute.xlu0 0
    %128 = vperm.xlu0 %127, %v125
    %v129 = vpop.permute.xlu0 %128
    %v131 = vmul.f32 %v129, %v64
    %v132 = vmul.f32 %v129, %v68
    %v133 = vmul.f32 %v129, %v72
    %v134 = vmul.f32 %v129, %v76
    %v135 = vadd.f32 %v131, %v86
    %v136 = vadd.f32 %v132, %v90
    %v137 = vadd.f32 %v133, %v94
    %v138 = vadd.f32 %v134, %v98
    %v139 = vld [vmem:[#allocation2] sm:$0xf]
    %v140 = vld [vmem:[#allocation3] sm:$0xff]
    %v141 = vld [vmem:[#allocation3 + $0x8] sm:$0xff]
    %v142 = vld [vmem:[#allocation3 + $0x10] sm:$0xff]
    %v143 = vld [vmem:[#allocation3 + $0x18] sm:$0xff]
    %v144 = vld [vmem:[#allocation3 + $0x20] sm:$0xff]
    %v145 = vld [vmem:[#allocation3 + $0x28] sm:$0xff]
    %v146 = vld [vmem:[#allocation3 + $0x30] sm:$0xff]
    %v147 = vld [vmem:[#allocation3 + $0x38] sm:$0xff]
    %v148 = vld [vmem:[#allocation3 + $0x40] sm:$0xff]
    %v149 = vld [vmem:[#allocation3 + $0x48] sm:$0xff]
    %v150 = vld [vmem:[#allocation3 + $0x50] sm:$0xff]
    %v151 = vld [vmem:[#allocation3 + $0x58] sm:$0xff]
    %v152 = vld [vmem:[#allocation3 + $0x60] sm:$0xff]
    %v153 = vld [vmem:[#allocation3 + $0x68] sm:$0xff]
    %v154 = vld [vmem:[#allocation3 + $0x70] sm:$0xff]
    %v155 = vld [vmem:[#allocation3 + $0x78] sm:$0xff]
    %v156 = vld [vmem:[#allocation3 + $0x80] sm:$0xff]
    %v157 = vld [vmem:[#allocation3 + $0x88] sm:$0xff]
    %v158 = vld [vmem:[#allocation3 + $0x90] sm:$0xff]
    %v159 = vld [vmem:[#allocation3 + $0x98] sm:$0xff]
    %v160 = vld [vmem:[#allocation3 + $0xa0] sm:$0xff]
    %v161 = vld [vmem:[#allocation3 + $0xa8] sm:$0xff]
    %v162 = vld [vmem:[#allocation3 + $0xb0] sm:$0xff]
    %v163 = vld [vmem:[#allocation3 + $0xb8] sm:$0xff]
    %v164 = vld [vmem:[#allocation3 + $0xc0] sm:$0xff]
    %v165 = vld [vmem:[#allocation3 + $0xc8] sm:$0xff]
    %v166 = vld [vmem:[#allocation3 + $0xd0] sm:$0xff]
    %v167 = vld [vmem:[#allocation3 + $0xd8] sm:$0xff]
    %v168 = vld [vmem:[#allocation3 + $0xe0] sm:$0xff]
    %v169 = vld [vmem:[#allocation3 + $0xe8] sm:$0xff]
    %v170 = vld [vmem:[#allocation3 + $0xf0] sm:$0xff]
    %v171 = vld [vmem:[#allocation3 + $0xf8] sm:$0xff]
    %v204 = vunpack.c.l.b16 %v140
    %v205 = vunpack.c.h.b16 %v140
    %v206 = vunpack.c.l.b16 %v141
    %v207 = vunpack.c.h.b16 %v141
    %v208 = vunpack.c.l.b16 %v142
    %v209 = vunpack.c.h.b16 %v142
    %v210 = vunpack.c.l.b16 %v143
    %v211 = vunpack.c.h.b16 %v143
    %v212 = vunpack.c.l.b16 %v144
    %v213 = vunpack.c.h.b16 %v144
    %v214 = vunpack.c.l.b16 %v145
    %v215 = vunpack.c.h.b16 %v145
    %v216 = vunpack.c.l.b16 %v146
    %v217 = vunpack.c.h.b16 %v146
    %v218 = vunpack.c.l.b16 %v147
    %v219 = vunpack.c.h.b16 %v147
    %v220 = vunpack.c.l.b16 %v148
    %v221 = vunpack.c.h.b16 %v148
    %v222 = vunpack.c.l.b16 %v149
    %v223 = vunpack.c.h.b16 %v149
    %v224 = vunpack.c.l.b16 %v150
    %v225 = vunpack.c.h.b16 %v150
    %v226 = vunpack.c.l.b16 %v151
    %v227 = vunpack.c.h.b16 %v151
    %v228 = vunpack.c.l.b16 %v152
    %v229 = vunpack.c.h.b16 %v152
    %v230 = vunpack.c.l.b16 %v153
    %v231 = vunpack.c.h.b16 %v153
    %v232 = vunpack.c.l.b16 %v154
    %v233 = vunpack.c.h.b16 %v154
    %v234 = vunpack.c.l.b16 %v155
    %v235 = vunpack.c.h.b16 %v155
    %v236 = vunpack.c.l.b16 %v156
    %v237 = vunpack.c.h.b16 %v156
    %v238 = vunpack.c.l.b16 %v157
    %v239 = vunpack.c.h.b16 %v157
    %v240 = vunpack.c.l.b16 %v158
    %v241 = vunpack.c.h.b16 %v158
    %v242 = vunpack.c.l.b16 %v159
    %v243 = vunpack.c.h.b16 %v159
    %v244 = vunpack.c.l.b16 %v160
    %v245 = vunpack.c.h.b16 %v160
    %v246 = vunpack.c.l.b16 %v161
    %v247 = vunpack.c.h.b16 %v161
    %v248 = vunpack.c.l.b16 %v162
    %v249 = vunpack.c.h.b16 %v162
    %v250 = vunpack.c.l.b16 %v163
    %v251 = vunpack.c.h.b16 %v163
    %v252 = vunpack.c.l.b16 %v164
    %v253 = vunpack.c.h.b16 %v164
    %v254 = vunpack.c.l.b16 %v165
    %v255 = vunpack.c.h.b16 %v165
    %v256 = vunpack.c.l.b16 %v166
    %v257 = vunpack.c.h.b16 %v166
    %v258 = vunpack.c.l.b16 %v167
    %v259 = vunpack.c.h.b16 %v167
    %v260 = vunpack.c.l.b16 %v168
    %v261 = vunpack.c.h.b16 %v168
    %v262 = vunpack.c.l.b16 %v169
    %v263 = vunpack.c.h.b16 %v169
    %v264 = vunpack.c.l.b16 %v170
    %v265 = vunpack.c.h.b16 %v170
    %v266 = vunpack.c.l.b16 %v171
    %v267 = vunpack.c.h.b16 %v171
    %v268 = vpack.c.b16 %v208, %v204
    %v269 = vpack.c.b16 %v209, %v205
    %v270 = vpack.c.b16 %v210, %v206
    %v271 = vpack.c.b16 %v211, %v207
    %v272 = vpack.c.b16 %v216, %v212
    %v273 = vpack.c.b16 %v217, %v213
    %v274 = vpack.c.b16 %v218, %v214
    %v275 = vpack.c.b16 %v219, %v215
    %v276 = vpack.c.b16 %v224, %v220
    %v277 = vpack.c.b16 %v225, %v221
    %v278 = vpack.c.b16 %v226, %v222
    %v279 = vpack.c.b16 %v227, %v223
    %v280 = vpack.c.b16 %v232, %v228
    %v281 = vpack.c.b16 %v233, %v229
    %v282 = vpack.c.b16 %v234, %v230
    %v283 = vpack.c.b16 %v235, %v231
    %v284 = vpack.c.b16 %v240, %v236
    %v285 = vpack.c.b16 %v241, %v237
    %v286 = vpack.c.b16 %v242, %v238
    %v287 = vpack.c.b16 %v243, %v239
    %v288 = vpack.c.b16 %v248, %v244
    %v289 = vpack.c.b16 %v249, %v245
    %v290 = vpack.c.b16 %v250, %v246
    %v291 = vpack.c.b16 %v251, %v247
    %v292 = vpack.c.b16 %v256, %v252
    %v293 = vpack.c.b16 %v257, %v253
    %v294 = vpack.c.b16 %v258, %v254
    %v295 = vpack.c.b16 %v259, %v255
    %v296 = vpack.c.b16 %v264, %v260
    %v297 = vpack.c.b16 %v265, %v261
    %v298 = vpack.c.b16 %v266, %v262
    %v299 = vpack.c.b16 %v267, %v263
    %332 = vmatprep.subr.bf16.mxu0 %v297
    %333 = vmatpush1.bf16.msra.mxu0 %v296
    %334 = vmatprep.subr.bf16.mxu0 %v293
    %335 = vmatpush1.bf16.msra.mxu0 %v292
    %336 = vmatprep.subr.bf16.mxu0 %v289
    %337 = vmatpush1.bf16.msra.mxu0 %v288
    %338 = vmatprep.subr.bf16.mxu0 %v285
    %339 = vmatpush1.bf16.msra.mxu0 %v284
    %340 = vmatprep.subr.bf16.mxu0 %v281
    %341 = vmatpush1.bf16.msra.mxu0 %v280
    %342 = vmatprep.subr.bf16.mxu0 %v277
    %343 = vmatpush1.bf16.msra.mxu0 %v276
    %344 = vmatprep.subr.bf16.mxu0 %v273
    %345 = vmatpush1.bf16.msra.mxu0 %v272
    %346 = vmatprep.subr.bf16.mxu0 %v269
    %347 = vmatpush1.bf16.msra.mxu0 %v268
    %348 = vmatprep.subr.bf16.mxu0 0
    %349 = vmatpush2.bf16.msra.mxu0 0
    %350 = vmatprep.subr.bf16.mxu0 0
    %351 = vmatpush2.bf16.msra.mxu0 0
    %352 = vmatprep.subr.bf16.mxu0 0
    %353 = vmatpush2.bf16.msra.mxu0 0
    %354 = vmatprep.subr.bf16.mxu0 0
    %355 = vmatpush2.bf16.msra.mxu0 0
    %356 = vmatprep.subr.bf16.mxu0 0
    %357 = vmatpush2.bf16.msra.mxu0 0
    %358 = vmatprep.subr.bf16.mxu0 0
    %359 = vmatpush2.bf16.msra.mxu0 0
    %360 = vmatprep.subr.bf16.mxu0 0
    %361 = vmatpush2.bf16.msra.mxu0 0
    %362 = vmatprep.subr.bf16.mxu0 0
    %363 = vmatpush2.bf16.msra.mxu0 0
    %364 = vmatprep.mubr.bf16.mxu0 0
    %365 = vmatmul.mubr.bf16.gmra.mxu0 %v139
    %v366 = vpop.f32.mrf.mxu0
    %v367 = vadd.f32 0.0, %v366
    %v368 = vpop.f32.mrf.mxu0
    %v369 = vadd.f32 0.0, %v368
    %v370 = vpop.f32.mrf.mxu0
    %v371 = vpop.f32.mrf.mxu0
    %372 = vdwg.mxu0
    %373 = vmatprep.subr.bf16.mxu0 %v299
    %374 = vmatpush1.bf16.msra.mxu0 %v298
    %375 = vmatprep.subr.bf16.mxu0 %v295
    %376 = vmatpush1.bf16.msra.mxu0 %v294
    %377 = vmatprep.subr.bf16.mxu0 %v291
    %378 = vmatpush1.bf16.msra.mxu0 %v290
    %379 = vmatprep.subr.bf16.mxu0 %v287
    %380 = vmatpush1.bf16.msra.mxu0 %v286
    %381 = vmatprep.subr.bf16.mxu0 %v283
    %382 = vmatpush1.bf16.msra.mxu0 %v282
    %383 = vmatprep.subr.bf16.mxu0 %v279
    %384 = vmatpush1.bf16.msra.mxu0 %v278
    %385 = vmatprep.subr.bf16.mxu0 %v275
    %386 = vmatpush1.bf16.msra.mxu0 %v274
    %387 = vmatprep.subr.bf16.mxu0 %v271
    %388 = vmatpush1.bf16.msra.mxu0 %v270
    %389 = vmatprep.subr.bf16.mxu0 0
    %390 = vmatpush2.bf16.msra.mxu0 0
    %391 = vmatprep.subr.bf16.mxu0 0
    %392 = vmatpush2.bf16.msra.mxu0 0
    %393 = vmatprep.subr.bf16.mxu0 0
    %394 = vmatpush2.bf16.msra.mxu0 0
    %395 = vmatprep.subr.bf16.mxu0 0
    %396 = vmatpush2.bf16.msra.mxu0 0
    %397 = vmatprep.subr.bf16.mxu0 0
    %398 = vmatpush2.bf16.msra.mxu0 0
    %399 = vmatprep.subr.bf16.mxu0 0
    %400 = vmatpush2.bf16.msra.mxu0 0
    %401 = vmatprep.subr.bf16.mxu0 0
    %402 = vmatpush2.bf16.msra.mxu0 0
    %403 = vmatprep.subr.bf16.mxu0 0
    %404 = vmatpush2.bf16.msra.mxu0 0
    %405 = vmatprep.mubr.bf16.mxu0 0
    %406 = vmatmul.mubr.bf16.gmra.mxu0 %v139
    %v407 = vpop.f32.mrf.mxu0
    %v408 = vadd.f32 0.0, %v407
    %v409 = vpop.f32.mrf.mxu0
    %v410 = vadd.f32 0.0, %v409
    %v411 = vpop.f32.mrf.mxu0
    %v412 = vpop.f32.mrf.mxu0
    %413 = vdwg.mxu0
    %v414 = vadd.f32 %v135, %v367
    %v415 = vadd.f32 %v136, %v369
    %v416 = vadd.f32 %v137, %v408
    %v417 = vadd.f32 %v138, %v410
    %v418 = vmul.f32 %v414, 0.5
    %v419 = vmul.f32 %v415, 0.5
    %v420 = vmul.f32 %v416, 0.5
    %v421 = vtanh.pop %v418
    %v422 = vtanh.pop %v419
    %v423 = vtanh.pop %v420
    %v424 = vmul.f32 %v421, 0.5
    %v425 = vmul.f32 %v422, 0.5
    %v426 = vmul.f32 %v423, 0.5
    %v427 = vadd.f32 %v424, 0.5
    %v428 = vadd.f32 %v425, 0.5
    %v429 = vadd.f32 %v426, 0.5
    %v430 = vtanh.pop %v417
    %v431 = vmul.f32 %v428, 0.0
    %v432 = vmul.f32 %v427, %v430
    %v433 = vadd.f32 %v431, %v432
    %v434 = vtanh.pop %v433
    %v435 = vmul.f32 %v429, %v434
    %v436 = vpack.c.bf16 %v435, %v435
    %437 = vst [vmem:[#allocation2] sm:$0xf] %v436
    %v438 = vld [vmem:[#allocation2] sm:$0xff]
    %v439 = vld [vmem:[#allocation5] sm:$0xff]
    %v440 = vld [vmem:[#allocation5 + $0x8] sm:$0xff]
    %v441 = vld [vmem:[#allocation5 + $0x10] sm:$0xff]
    %v442 = vld [vmem:[#allocation5 + $0x18] sm:$0xff]
    %v443 = vld [vmem:[#allocation5 + $0x20] sm:$0xff]
    %v444 = vld [vmem:[#allocation5 + $0x28] sm:$0xff]
    %v445 = vld [vmem:[#allocation5 + $0x30] sm:$0xff]
    %v446 = vld [vmem:[#allocation5 + $0x38] sm:$0xff]
    %v447 = vld [vmem:[#allocation5 + $0x40] sm:$0xff]
    %v448 = vld [vmem:[#allocation5 + $0x48] sm:$0xff]
    %v449 = vld [vmem:[#allocation5 + $0x50] sm:$0xff]
    %v450 = vld [vmem:[#allocation5 + $0x58] sm:$0xff]
    %v451 = vld [vmem:[#allocation5 + $0x60] sm:$0xff]
    %v452 = vld [vmem:[#allocation5 + $0x68] sm:$0xff]
    %v453 = vld [vmem:[#allocation5 + $0x70] sm:$0xff]
    %v454 = vld [vmem:[#allocation5 + $0x78] sm:$0xff]
    %v455 = vld [vmem:[#allocation5 + $0x80] sm:$0xff]
    %v456 = vld [vmem:[#allocation5 + $0x88] sm:$0xff]
    %v457 = vld [vmem:[#allocation5 + $0x90] sm:$0xff]
    %v458 = vld [vmem:[#allocation5 + $0x98] sm:$0xff]
    %v459 = vld [vmem:[#allocation5 + $0xa0] sm:$0xff]
    %v460 = vld [vmem:[#allocation5 + $0xa8] sm:$0xff]
    %v461 = vld [vmem:[#allocation5 + $0xb0] sm:$0xff]
    %v462 = vld [vmem:[#allocation5 + $0xb8] sm:$0xff]
    %v463 = vld [vmem:[#allocation5 + $0xc0] sm:$0xff]
    %v464 = vld [vmem:[#allocation5 + $0xc8] sm:$0xff]
    %v465 = vld [vmem:[#allocation5 + $0xd0] sm:$0xff]
    %v466 = vld [vmem:[#allocation5 + $0xd8] sm:$0xff]
    %v467 = vld [vmem:[#allocation5 + $0xe0] sm:$0xff]
    %v468 = vld [vmem:[#allocation5 + $0xe8] sm:$0xff]
    %v469 = vld [vmem:[#allocation5 + $0xf0] sm:$0xff]
    %v470 = vld [vmem:[#allocation5 + $0xf8] sm:$0xff]
    %v471 = vld [vmem:[#allocation5 + $0x100] sm:$0xff]
    %v472 = vld [vmem:[#allocation5 + $0x108] sm:$0xff]
    %v473 = vld [vmem:[#allocation5 + $0x110] sm:$0xff]
    %v474 = vld [vmem:[#allocation5 + $0x118] sm:$0xff]
    %v475 = vld [vmem:[#allocation5 + $0x120] sm:$0xff]
    %v476 = vld [vmem:[#allocation5 + $0x128] sm:$0xff]
    %v477 = vld [vmem:[#allocation5 + $0x130] sm:$0xff]
    %v478 = vld [vmem:[#allocation5 + $0x138] sm:$0xff]
    %v479 = vld [vmem:[#allocation5 + $0x140] sm:$0xff]
    %v480 = vld [vmem:[#allocation5 + $0x148] sm:$0xff]
    %v481 = vld [vmem:[#allocation5 + $0x150] sm:$0xff]
    %v482 = vld [vmem:[#allocation5 + $0x158] sm:$0xff]
    %v483 = vld [vmem:[#allocation5 + $0x160] sm:$0xff]
    %v484 = vld [vmem:[#allocation5 + $0x168] sm:$0xff]
    %v485 = vld [vmem:[#allocation5 + $0x170] sm:$0xff]
    %v486 = vld [vmem:[#allocation5 + $0x178] sm:$0xff]
    %v487 = vld [vmem:[#allocation5 + $0x180] sm:$0xff]
    %v488 = vld [vmem:[#allocation5 + $0x188] sm:$0xff]
    %v489 = vld [vmem:[#allocation5 + $0x190] sm:$0xff]
    %v490 = vld [vmem:[#allocation5 + $0x198] sm:$0xff]
    %v491 = vld [vmem:[#allocation5 + $0x1a0] sm:$0xff]
    %v492 = vld [vmem:[#allocation5 + $0x1a8] sm:$0xff]
    %v493 = vld [vmem:[#allocation5 + $0x1b0] sm:$0xff]
    %v494 = vld [vmem:[#allocation5 + $0x1b8] sm:$0xff]
    %v495 = vld [vmem:[#allocation5 + $0x1c0] sm:$0xff]
    %v496 = vld [vmem:[#allocation5 + $0x1c8] sm:$0xff]
    %v497 = vld [vmem:[#allocation5 + $0x1d0] sm:$0xff]
    %v498 = vld [vmem:[#allocation5 + $0x1d8] sm:$0xff]
    %v499 = vld [vmem:[#allocation5 + $0x1e0] sm:$0xff]
    %v500 = vld [vmem:[#allocation5 + $0x1e8] sm:$0xff]
    %v501 = vld [vmem:[#allocation5 + $0x1f0] sm:$0xff]
    %v502 = vld [vmem:[#allocation5 + $0x1f8] sm:$0xff]
    %v504 = vunpack.c.l.b16 %v438
    %v505 = vunpack.c.h.b16 %v438
    %v506 = vpack.c.b16 %v504, %v504
    %v507 = vpack.c.b16 %v505, %v505
    %v574 = vunpack.c.l.b16 %v439
    %v575 = vunpack.c.h.b16 %v439
    %v576 = vunpack.c.l.b16 %v440
    %v577 = vunpack.c.h.b16 %v440
    %v578 = vunpack.c.l.b16 %v441
    %v579 = vunpack.c.h.b16 %v441
    %v580 = vunpack.c.l.b16 %v442
    %v581 = vunpack.c.h.b16 %v442
    %v582 = vunpack.c.l.b16 %v443
    %v583 = vunpack.c.h.b16 %v443
    %v584 = vunpack.c.l.b16 %v444
    %v585 = vunpack.c.h.b16 %v444
    %v586 = vunpack.c.l.b16 %v445
    %v587 = vunpack.c.h.b16 %v445
    %v588 = vunpack.c.l.b16 %v446
    %v589 = vunpack.c.h.b16 %v446
    %v590 = vunpack.c.l.b16 %v447
    %v591 = vunpack.c.h.b16 %v447
    %v592 = vunpack.c.l.b16 %v448
    %v593 = vunpack.c.h.b16 %v448
    %v594 = vunpack.c.l.b16 %v449
    %v595 = vunpack.c.h.b16 %v449
    %v596 = vunpack.c.l.b16 %v450
    %v597 = vunpack.c.h.b16 %v450
    %v598 = vunpack.c.l.b16 %v451
    %v599 = vunpack.c.h.b16 %v451
    %v600 = vunpack.c.l.b16 %v452
    %v601 = vunpack.c.h.b16 %v452
    %v602 = vunpack.c.l.b16 %v453
    %v603 = vunpack.c.h.b16 %v453
    %v604 = vunpack.c.l.b16 %v454
    %v605 = vunpack.c.h.b16 %v454
    %v606 = vunpack.c.l.b16 %v455
    %v607 = vunpack.c.h.b16 %v455
    %v608 = vunpack.c.l.b16 %v456
    %v609 = vunpack.c.h.b16 %v456
    %v610 = vunpack.c.l.b16 %v457
    %v611 = vunpack.c.h.b16 %v457
    %v612 = vunpack.c.l.b16 %v458
    %v613 = vunpack.c.h.b16 %v458
    %v614 = vunpack.c.l.b16 %v459
    %v615 = vunpack.c.h.b16 %v459
    %v616 = vunpack.c.l.b16 %v460
    %v617 = vunpack.c.h.b16 %v460
    %v618 = vunpack.c.l.b16 %v461
    %v619 = vunpack.c.h.b16 %v461
    %v620 = vunpack.c.l.b16 %v462
    %v621 = vunpack.c.h.b16 %v462
    %v622 = vunpack.c.l.b16 %v463
    %v623 = vunpack.c.h.b16 %v463
    %v624 = vunpack.c.l.b16 %v464
    %v625 = vunpack.c.h.b16 %v464
    %v626 = vunpack.c.l.b16 %v465
    %v627 = vunpack.c.h.b16 %v465
    %v628 = vunpack.c.l.b16 %v466
    %v629 = vunpack.c.h.b16 %v466
    %v630 = vunpack.c.l.b16 %v467
    %v631 = vunpack.c.h.b16 %v467
    %v632 = vunpack.c.l.b16 %v468
    %v633 = vunpack.c.h.b16 %v468
    %v634 = vunpack.c.l.b16 %v469
    %v635 = vunpack.c.h.b16 %v469
    %v636 = vunpack.c.l.b16 %v470
    %v637 = vunpack.c.h.b16 %v470
    %v638 = vunpack.c.l.b16 %v471
    %v639 = vunpack.c.h.b16 %v471
    %v640 = vunpack.c.l.b16 %v472
    %v641 = vunpack.c.h.b16 %v472
    %v642 = vunpack.c.l.b16 %v473
    %v643 = vunpack.c.h.b16 %v473
    %v644 = vunpack.c.l.b16 %v474
    %v645 = vunpack.c.h.b16 %v474
    %v646 = vunpack.c.l.b16 %v475
    %v647 = vunpack.c.h.b16 %v475
    %v648 = vunpack.c.l.b16 %v476
    %v649 = vunpack.c.h.b16 %v476
    %v650 = vunpack.c.l.b16 %v477
    %v651 = vunpack.c.h.b16 %v477
    %v652 = vunpack.c.l.b16 %v478
    %v653 = vunpack.c.h.b16 %v478
    %v654 = vunpack.c.l.b16 %v479
    %v655 = vunpack.c.h.b16 %v479
    %v656 = vunpack.c.l.b16 %v480
    %v657 = vunpack.c.h.b16 %v480
    %v658 = vunpack.c.l.b16 %v481
    %v659 = vunpack.c.h.b16 %v481
    %v660 = vunpack.c.l.b16 %v482
    %v661 = vunpack.c.h.b16 %v482
    %v662 = vunpack.c.l.b16 %v483
    %v663 = vunpack.c.h.b16 %v483
    %v664 = vunpack.c.l.b16 %v484
    %v665 = vunpack.c.h.b16 %v484
    %v666 = vunpack.c.l.b16 %v485
    %v667 = vunpack.c.h.b16 %v485
    %v668 = vunpack.c.l.b16 %v486
    %v669 = vunpack.c.h.b16 %v486
    %v670 = vunpack.c.l.b16 %v487
    %v671 = vunpack.c.h.b16 %v487
    %v672 = vunpack.c.l.b16 %v488
    %v673 = vunpack.c.h.b16 %v488
    %v674 = vunpack.c.l.b16 %v489
    %v675 = vunpack.c.h.b16 %v489
    %v676 = vunpack.c.l.b16 %v490
    %v677 = vunpack.c.h.b16 %v490
    %v678 = vunpack.c.l.b16 %v491
    %v679 = vunpack.c.h.b16 %v491
    %v680 = vunpack.c.l.b16 %v492
    %v681 = vunpack.c.h.b16 %v492
    %v682 = vunpack.c.l.b16 %v493
    %v683 = vunpack.c.h.b16 %v493
    %v684 = vunpack.c.l.b16 %v494
    %v685 = vunpack.c.h.b16 %v494
    %v686 = vunpack.c.l.b16 %v495
    %v687 = vunpack.c.h.b16 %v495
    %v688 = vunpack.c.l.b16 %v496
    %v689 = vunpack.c.h.b16 %v496
    %v690 = vunpack.c.l.b16 %v497
    %v691 = vunpack.c.h.b16 %v497
    %v692 = vunpack.c.l.b16 %v498
    %v693 = vunpack.c.h.b16 %v498
    %v694 = vunpack.c.l.b16 %v499
    %v695 = vunpack.c.h.b16 %v499
    %v696 = vunpack.c.l.b16 %v500
    %v697 = vunpack.c.h.b16 %v500
    %v698 = vunpack.c.l.b16 %v501
    %v699 = vunpack.c.h.b16 %v501
    %v700 = vunpack.c.l.b16 %v502
    %v701 = vunpack.c.h.b16 %v502
    %v702 = vpack.c.b16 %v578, %v574
    %v703 = vpack.c.b16 %v579, %v575
    %v704 = vpack.c.b16 %v580, %v576
    %v705 = vpack.c.b16 %v581, %v577
    %v706 = vpack.c.b16 %v586, %v582
    %v707 = vpack.c.b16 %v587, %v583
    %v708 = vpack.c.b16 %v588, %v584
    %v709 = vpack.c.b16 %v589, %v585
    %v710 = vpack.c.b16 %v594, %v590
    %v711 = vpack.c.b16 %v595, %v591
    %v712 = vpack.c.b16 %v596, %v592
    %v713 = vpack.c.b16 %v597, %v593
    %v714 = vpack.c.b16 %v602, %v598
    %v715 = vpack.c.b16 %v603, %v599
    %v716 = vpack.c.b16 %v604, %v600
    %v717 = vpack.c.b16 %v605, %v601
    %v718 = vpack.c.b16 %v610, %v606
    %v719 = vpack.c.b16 %v611, %v607
    %v720 = vpack.c.b16 %v612, %v608
    %v721 = vpack.c.b16 %v613, %v609
    %v722 = vpack.c.b16 %v618, %v614
    %v723 = vpack.c.b16 %v619, %v615
    %v724 = vpack.c.b16 %v620, %v616
    %v725 = vpack.c.b16 %v621, %v617
    %v726 = vpack.c.b16 %v626, %v622
    %v727 = vpack.c.b16 %v627, %v623
    %v728 = vpack.c.b16 %v628, %v624
    %v729 = vpack.c.b16 %v629, %v625
    %v730 = vpack.c.b16 %v634, %v630
    %v731 = vpack.c.b16 %v635, %v631
    %v732 = vpack.c.b16 %v636, %v632
    %v733 = vpack.c.b16 %v637, %v633
    %v734 = vpack.c.b16 %v642, %v638
    %v735 = vpack.c.b16 %v643, %v639
    %v736 = vpack.c.b16 %v644, %v640
    %v737 = vpack.c.b16 %v645, %v641
    %v738 = vpack.c.b16 %v650, %v646
    %v739 = vpack.c.b16 %v651, %v647
    %v740 = vpack.c.b16 %v652, %v648
    %v741 = vpack.c.b16 %v653, %v649
    %v742 = vpack.c.b16 %v658, %v654
    %v743 = vpack.c.b16 %v659, %v655
    %v744 = vpack.c.b16 %v660, %v656
    %v745 = vpack.c.b16 %v661, %v657
    %v746 = vpack.c.b16 %v666, %v662
    %v747 = vpack.c.b16 %v667, %v663
    %v748 = vpack.c.b16 %v668, %v664
    %v749 = vpack.c.b16 %v669, %v665
    %v750 = vpack.c.b16 %v674, %v670
    %v751 = vpack.c.b16 %v675, %v671
    %v752 = vpack.c.b16 %v676, %v672
    %v753 = vpack.c.b16 %v677, %v673
    %v754 = vpack.c.b16 %v682, %v678
    %v755 = vpack.c.b16 %v683, %v679
    %v756 = vpack.c.b16 %v684, %v680
    %v757 = vpack.c.b16 %v685, %v681
    %v758 = vpack.c.b16 %v690, %v686
    %v759 = vpack.c.b16 %v691, %v687
    %v760 = vpack.c.b16 %v692, %v688
    %v761 = vpack.c.b16 %v693, %v689
    %v762 = vpack.c.b16 %v698, %v694
    %v763 = vpack.c.b16 %v699, %v695
    %v764 = vpack.c.b16 %v700, %v696
    %v765 = vpack.c.b16 %v701, %v697
    %830 = vmatprep.subr.bf16.mxu0 %v731
    %831 = vmatpush1.bf16.msra.mxu0 %v730
    %832 = vmatprep.subr.bf16.mxu0 %v727
    %833 = vmatpush1.bf16.msra.mxu0 %v726
    %834 = vmatprep.subr.bf16.mxu0 %v723
    %835 = vmatpush1.bf16.msra.mxu0 %v722
    %836 = vmatprep.subr.bf16.mxu0 %v719
    %837 = vmatpush1.bf16.msra.mxu0 %v718
    %838 = vmatprep.subr.bf16.mxu0 %v715
    %839 = vmatpush1.bf16.msra.mxu0 %v714
    %840 = vmatprep.subr.bf16.mxu0 %v711
    %841 = vmatpush1.bf16.msra.mxu0 %v710
    %842 = vmatprep.subr.bf16.mxu0 %v707
    %843 = vmatpush1.bf16.msra.mxu0 %v706
    %844 = vmatprep.subr.bf16.mxu0 %v703
    %845 = vmatpush1.bf16.msra.mxu0 %v702
    %846 = vmatprep.subr.bf16.mxu0 %v763
    %847 = vmatpush2.bf16.msra.mxu0 %v762
    %848 = vmatprep.subr.bf16.mxu0 %v759
    %849 = vmatpush2.bf16.msra.mxu0 %v758
    %850 = vmatprep.subr.bf16.mxu0 %v755
    %851 = vmatpush2.bf16.msra.mxu0 %v754
    %852 = vmatprep.subr.bf16.mxu0 %v751
    %853 = vmatpush2.bf16.msra.mxu0 %v750
    %854 = vmatprep.subr.bf16.mxu0 %v747
    %855 = vmatpush2.bf16.msra.mxu0 %v746
    %856 = vmatprep.subr.bf16.mxu0 %v743
    %857 = vmatpush2.bf16.msra.mxu0 %v742
    %858 = vmatprep.subr.bf16.mxu0 %v739
    %859 = vmatpush2.bf16.msra.mxu0 %v738
    %860 = vmatprep.subr.bf16.mxu0 %v735
    %861 = vmatpush2.bf16.msra.mxu0 %v734
    %862 = vmatprep.mubr.bf16.mxu0 %v507
    %863 = vmatmul.mubr.bf16.gmra.mxu0 %v506
    %v864 = vpop.f32.mrf.mxu0
    %v865 = vadd.f32 %v108, %v864
    %v866 = vpop.f32.mrf.mxu0
    %v867 = vadd.f32 %v112, %v866
    %v868 = vpop.f32.mrf.mxu0
    %v869 = vpop.f32.mrf.mxu0
    %870 = vdwg.mxu0
    %871 = vmatprep.subr.bf16.mxu0 %v733
    %872 = vmatpush1.bf16.msra.mxu0 %v732
    %873 = vmatprep.subr.bf16.mxu0 %v729
    %874 = vmatpush1.bf16.msra.mxu0 %v728
    %875 = vmatprep.subr.bf16.mxu0 %v725
    %876 = vmatpush1.bf16.msra.mxu0 %v724
    %877 = vmatprep.subr.bf16.mxu0 %v721
    %878 = vmatpush1.bf16.msra.mxu0 %v720
    %879 = vmatprep.subr.bf16.mxu0 %v717
    %880 = vmatpush1.bf16.msra.mxu0 %v716
    %881 = vmatprep.subr.bf16.mxu0 %v713
    %882 = vmatpush1.bf16.msra.mxu0 %v712
    %883 = vmatprep.subr.bf16.mxu0 %v709
    %884 = vmatpush1.bf16.msra.mxu0 %v708
    %885 = vmatprep.subr.bf16.mxu0 %v705
    %886 = vmatpush1.bf16.msra.mxu0 %v704
    %887 = vmatprep.subr.bf16.mxu0 %v765
    %888 = vmatpush2.bf16.msra.mxu0 %v764
    %889 = vmatprep.subr.bf16.mxu0 %v761
    %890 = vmatpush2.bf16.msra.mxu0 %v760
    %891 = vmatprep.subr.bf16.mxu0 %v757
    %892 = vmatpush2.bf16.msra.mxu0 %v756
    %893 = vmatprep.subr.bf16.mxu0 %v753
    %894 = vmatpush2.bf16.msra.mxu0 %v752
    %895 = vmatprep.subr.bf16.mxu0 %v749
    %896 = vmatpush2.bf16.msra.mxu0 %v748
    %897 = vmatprep.subr.bf16.mxu0 %v745
    %898 = vmatpush2.bf16.msra.mxu0 %v744
    %899 = vmatprep.subr.bf16.mxu0 %v741
    %900 = vmatpush2.bf16.msra.mxu0 %v740
    %901 = vmatprep.subr.bf16.mxu0 %v737
    %902 = vmatpush2.bf16.msra.mxu0 %v736
    %903 = vmatprep.mubr.bf16.mxu0 %v507
    %904 = vmatmul.mubr.bf16.gmra.mxu0 %v506
    %v905 = vpop.f32.mrf.mxu0
    %v906 = vadd.f32 %v116, %v905
    %v907 = vpop.f32.mrf.mxu0
    %v908 = vadd.f32 %v120, %v907
    %v909 = vpop.f32.mrf.mxu0
    %v910 = vpop.f32.mrf.mxu0
    %911 = vdwg.mxu0
    %v912 = vmul.f32 %v865, 0.5
    %v913 = vmul.f32 %v867, 0.5
    %v914 = vmul.f32 %v906, 0.5
    %v915 = vtanh.pop %v912
    %v916 = vtanh.pop %v913
    %v917 = vtanh.pop %v914
    %v918 = vmul.f32 %v915, 0.5
    %v919 = vmul.f32 %v916, 0.5
    %v920 = vmul.f32 %v917, 0.5
    %v921 = vadd.f32 %v918, 0.5
    %v922 = vadd.f32 %v919, 0.5
    %v923 = vadd.f32 %v920, 0.5
    %v924 = vtanh.pop %v908
    %v925 = vmul.f32 %v922, 0.0
    %v926 = vmul.f32 %v921, %v924
    %v927 = vadd.f32 %v925, %v926
    %v928 = vtanh.pop %v927
    %v929 = vmul.f32 %v923, %v928
    %v930 = vpack.c.bf16 %v929, %v929
    %931 = vst [vmem:[#allocation2 + $0x4] sm:$0xf] %v930
    %s932 = scalar_lea.vmem %s0, 8
    %v933 = vld [vmem:[%s932] sm:$0xff]
    %935 = vset.pattern.permute.xlu0 0
    %936 = vperm.xlu0 %935, %v933
    %v937 = vpop.permute.xlu0 %936
    %v939 = vmul.f32 %v937, %v64
    %v940 = vmul.f32 %v937, %v68
    %v941 = vmul.f32 %v937, %v72
    %v942 = vmul.f32 %v937, %v76
    %v943 = vadd.f32 %v939, %v86
    %v944 = vadd.f32 %v940, %v90
    %v945 = vadd.f32 %v941, %v94
    %v946 = vadd.f32 %v942, %v98
    %v947 = vld [vmem:[#allocation2] sm:$0xf]
    %v948 = vld [vmem:[#allocation3] sm:$0xff]
    %v949 = vld [vmem:[#allocation3 + $0x8] sm:$0xff]
    %v950 = vld [vmem:[#allocation3 + $0x10] sm:$0xff]
    %v951 = vld [vmem:[#allocation3 + $0x18] sm:$0xff]
    %v952 = vld [vmem:[#allocation3 + $0x20] sm:$0xff]
    %v953 = vld [vmem:[#allocation3 + $0x28] sm:$0xff]
    %v954 = vld [vmem:[#allocation3 + $0x30] sm:$0xff]
    %v955 = vld [vmem:[#allocation3 + $0x38] sm:$0xff]
    %v956 = vld [vmem:[#allocation3 + $0x40] sm:$0xff]
    %v957 = vld [vmem:[#allocation3 + $0x48] sm:$0xff]
    %v958 = vld [vmem:[#allocation3 + $0x50] sm:$0xff]
    %v959 = vld [vmem:[#allocation3 + $0x58] sm:$0xff]
    %v960 = vld [vmem:[#allocation3 + $0x60] sm:$0xff]
    %v961 = vld [vmem:[#allocation3 + $0x68] sm:$0xff]
    %v962 = vld [vmem:[#allocation3 + $0x70] sm:$0xff]
    %v963 = vld [vmem:[#allocation3 + $0x78] sm:$0xff]
    %v964 = vld [vmem:[#allocation3 + $0x80] sm:$0xff]
    %v965 = vld [vmem:[#allocation3 + $0x88] sm:$0xff]
    %v966 = vld [vmem:[#allocation3 + $0x90] sm:$0xff]
    %v967 = vld [vmem:[#allocation3 + $0x98] sm:$0xff]
    %v968 = vld [vmem:[#allocation3 + $0xa0] sm:$0xff]
    %v969 = vld [vmem:[#allocation3 + $0xa8] sm:$0xff]
    %v970 = vld [vmem:[#allocation3 + $0xb0] sm:$0xff]
    %v971 = vld [vmem:[#allocation3 + $0xb8] sm:$0xff]
    %v972 = vld [vmem:[#allocation3 + $0xc0] sm:$0xff]
    %v973 = vld [vmem:[#allocation3 + $0xc8] sm:$0xff]
    %v974 = vld [vmem:[#allocation3 + $0xd0] sm:$0xff]
    %v975 = vld [vmem:[#allocation3 + $0xd8] sm:$0xff]
    %v976 = vld [vmem:[#allocation3 + $0xe0] sm:$0xff]
    %v977 = vld [vmem:[#allocation3 + $0xe8] sm:$0xff]
    %v978 = vld [vmem:[#allocation3 + $0xf0] sm:$0xff]
    %v979 = vld [vmem:[#allocation3 + $0xf8] sm:$0xff]
    %v1012 = vunpack.c.l.b16 %v948
    %v1013 = vunpack.c.h.b16 %v948
    %v1014 = vunpack.c.l.b16 %v949
    %v1015 = vunpack.c.h.b16 %v949
    %v1016 = vunpack.c.l.b16 %v950
    %v1017 = vunpack.c.h.b16 %v950
    %v1018 = vunpack.c.l.b16 %v951
    %v1019 = vunpack.c.h.b16 %v951
    %v1020 = vunpack.c.l.b16 %v952
    %v1021 = vunpack.c.h.b16 %v952
    %v1022 = vunpack.c.l.b16 %v953
    %v1023 = vunpack.c.h.b16 %v953
    %v1024 = vunpack.c.l.b16 %v954
    %v1025 = vunpack.c.h.b16 %v954
    %v1026 = vunpack.c.l.b16 %v955
    %v1027 = vunpack.c.h.b16 %v955
    %v1028 = vunpack.c.l.b16 %v956
    %v1029 = vunpack.c.h.b16 %v956
    %v1030 = vunpack.c.l.b16 %v957
    %v1031 = vunpack.c.h.b16 %v957
    %v1032 = vunpack.c.l.b16 %v958
    %v1033 = vunpack.c.h.b16 %v958
    %v1034 = vunpack.c.l.b16 %v959
    %v1035 = vunpack.c.h.b16 %v959
    %v1036 = vunpack.c.l.b16 %v960
    %v1037 = vunpack.c.h.b16 %v960
    %v1038 = vunpack.c.l.b16 %v961
    %v1039 = vunpack.c.h.b16 %v961
    %v1040 = vunpack.c.l.b16 %v962
    %v1041 = vunpack.c.h.b16 %v962
    %v1042 = vunpack.c.l.b16 %v963
    %v1043 = vunpack.c.h.b16 %v963
    %v1044 = vunpack.c.l.b16 %v964
    %v1045 = vunpack.c.h.b16 %v964
    %v1046 = vunpack.c.l.b16 %v965
    %v1047 = vunpack.c.h.b16 %v965
    %v1048 = vunpack.c.l.b16 %v966
    %v1049 = vunpack.c.h.b16 %v966
    %v1050 = vunpack.c.l.b16 %v967
    %v1051 = vunpack.c.h.b16 %v967
    %v1052 = vunpack.c.l.b16 %v968
    %v1053 = vunpack.c.h.b16 %v968
    %v1054 = vunpack.c.l.b16 %v969
    %v1055 = vunpack.c.h.b16 %v969
    %v1056 = vunpack.c.l.b16 %v970
    %v1057 = vunpack.c.h.b16 %v970
    %v1058 = vunpack.c.l.b16 %v971
    %v1059 = vunpack.c.h.b16 %v971
    %v1060 = vunpack.c.l.b16 %v972
    %v1061 = vunpack.c.h.b16 %v972
    %v1062 = vunpack.c.l.b16 %v973
    %v1063 = vunpack.c.h.b16 %v973
    %v1064 = vunpack.c.l.b16 %v974
    %v1065 = vunpack.c.h.b16 %v974
    %v1066 = vunpack.c.l.b16 %v975
    %v1067 = vunpack.c.h.b16 %v975
    %v1068 = vunpack.c.l.b16 %v976
    %v1069 = vunpack.c.h.b16 %v976
    %v1070 = vunpack.c.l.b16 %v977
    %v1071 = vunpack.c.h.b16 %v977
    %v1072 = vunpack.c.l.b16 %v978
    %v1073 = vunpack.c.h.b16 %v978
    %v1074 = vunpack.c.l.b16 %v979
    %v1075 = vunpack.c.h.b16 %v979
    %v1076 = vpack.c.b16 %v1016, %v1012
    %v1077 = vpack.c.b16 %v1017, %v1013
    %v1078 = vpack.c.b16 %v1018, %v1014
    %v1079 = vpack.c.b16 %v1019, %v1015
    %v1080 = vpack.c.b16 %v1024, %v1020
    %v1081 = vpack.c.b16 %v1025, %v1021
    %v1082 = vpack.c.b16 %v1026, %v1022
    %v1083 = vpack.c.b16 %v1027, %v1023
    %v1084 = vpack.c.b16 %v1032, %v1028
    %v1085 = vpack.c.b16 %v1033, %v1029
    %v1086 = vpack.c.b16 %v1034, %v1030
    %v1087 = vpack.c.b16 %v1035, %v1031
    %v1088 = vpack.c.b16 %v1040, %v1036
    %v1089 = vpack.c.b16 %v1041, %v1037
    %v1090 = vpack.c.b16 %v1042, %v1038
    %v1091 = vpack.c.b16 %v1043, %v1039
    %v1092 = vpack.c.b16 %v1048, %v1044
    %v1093 = vpack.c.b16 %v1049, %v1045
    %v1094 = vpack.c.b16 %v1050, %v1046
    %v1095 = vpack.c.b16 %v1051, %v1047
    %v1096 = vpack.c.b16 %v1056, %v1052
    %v1097 = vpack.c.b16 %v1057, %v1053
    %v1098 = vpack.c.b16 %v1058, %v1054
    %v1099 = vpack.c.b16 %v1059, %v1055
    %v1100 = vpack.c.b16 %v1064, %v1060
    %v1101 = vpack.c.b16 %v1065, %v1061
    %v1102 = vpack.c.b16 %v1066, %v1062
    %v1103 = vpack.c.b16 %v1067, %v1063
    %v1104 = vpack.c.b16 %v1072, %v1068
    %v1105 = vpack.c.b16 %v1073, %v1069
    %v1106 = vpack.c.b16 %v1074, %v1070
    %v1107 = vpack.c.b16 %v1075, %v1071
    %1140 = vmatprep.subr.bf16.mxu0 %v1105
    %1141 = vmatpush1.bf16.msra.mxu0 %v1104
    %1142 = vmatprep.subr.bf16.mxu0 %v1101
    %1143 = vmatpush1.bf16.msra.mxu0 %v1100
    %1144 = vmatprep.subr.bf16.mxu0 %v1097
    %1145 = vmatpush1.bf16.msra.mxu0 %v1096
    %1146 = vmatprep.subr.bf16.mxu0 %v1093
    %1147 = vmatpush1.bf16.msra.mxu0 %v1092
    %1148 = vmatprep.subr.bf16.mxu0 %v1089
    %1149 = vmatpush1.bf16.msra.mxu0 %v1088
    %1150 = vmatprep.subr.bf16.mxu0 %v1085
    %1151 = vmatpush1.bf16.msra.mxu0 %v1084
    %1152 = vmatprep.subr.bf16.mxu0 %v1081
    %1153 = vmatpush1.bf16.msra.mxu0 %v1080
    %1154 = vmatprep.subr.bf16.mxu0 %v1077
    %1155 = vmatpush1.bf16.msra.mxu0 %v1076
    %1156 = vmatprep.subr.bf16.mxu0 0
    %1157 = vmatpush2.bf16.msra.mxu0 0
    %1158 = vmatprep.subr.bf16.mxu0 0
    %1159 = vmatpush2.bf16.msra.mxu0 0
    %1160 = vmatprep.subr.bf16.mxu0 0
    %1161 = vmatpush2.bf16.msra.mxu0 0
    %1162 = vmatprep.subr.bf16.mxu0 0
    %1163 = vmatpush2.bf16.msra.mxu0 0
    %1164 = vmatprep.subr.bf16.mxu0 0
    %1165 = vmatpush2.bf16.msra.mxu0 0
    %1166 = vmatprep.subr.bf16.mxu0 0
    %1167 = vmatpush2.bf16.msra.mxu0 0
    %1168 = vmatprep.subr.bf16.mxu0 0
    %1169 = vmatpush2.bf16.msra.mxu0 0
    %1170 = vmatprep.subr.bf16.mxu0 0
    %1171 = vmatpush2.bf16.msra.mxu0 0
    %1172 = vmatprep.mubr.bf16.mxu0 0
    %1173 = vmatmul.mubr.bf16.gmra.mxu0 %v947
    %v1174 = vpop.f32.mrf.mxu0
    %v1175 = vadd.f32 0.0, %v1174
    %v1176 = vpop.f32.mrf.mxu0
    %v1177 = vadd.f32 0.0, %v1176
    %v1178 = vpop.f32.mrf.mxu0
    %v1179 = vpop.f32.mrf.mxu0
    %1180 = vdwg.mxu0
    %1181 = vmatprep.subr.bf16.mxu0 %v1107
    %1182 = vmatpush1.bf16.msra.mxu0 %v1106
    %1183 = vmatprep.subr.bf16.mxu0 %v1103
    %1184 = vmatpush1.bf16.msra.mxu0 %v1102
    %1185 = vmatprep.subr.bf16.mxu0 %v1099
    %1186 = vmatpush1.bf16.msra.mxu0 %v1098
    %1187 = vmatprep.subr.bf16.mxu0 %v1095
    %1188 = vmatpush1.bf16.msra.mxu0 %v1094
    %1189 = vmatprep.subr.bf16.mxu0 %v1091
    %1190 = vmatpush1.bf16.msra.mxu0 %v1090
    %1191 = vmatprep.subr.bf16.mxu0 %v1087
    %1192 = vmatpush1.bf16.msra.mxu0 %v1086
    %1193 = vmatprep.subr.bf16.mxu0 %v1083
    %1194 = vmatpush1.bf16.msra.mxu0 %v1082
    %1195 = vmatprep.subr.bf16.mxu0 %v1079
    %1196 = vmatpush1.bf16.msra.mxu0 %v1078
    %1197 = vmatprep.subr.bf16.mxu0 0
    %1198 = vmatpush2.bf16.msra.mxu0 0
    %1199 = vmatprep.subr.bf16.mxu0 0
    %1200 = vmatpush2.bf16.msra.mxu0 0
    %1201 = vmatprep.subr.bf16.mxu0 0
    %1202 = vmatpush2.bf16.msra.mxu0 0
    %1203 = vmatprep.subr.bf16.mxu0 0
    %1204 = vmatpush2.bf16.msra.mxu0 0
    %1205 = vmatprep.subr.bf16.mxu0 0
    %1206 = vmatpush2.bf16.msra.mxu0 0
    %1207 = vmatprep.subr.bf16.mxu0 0
    %1208 = vmatpush2.bf16.msra.mxu0 0
    %1209 = vmatprep.subr.bf16.mxu0 0
    %1210 = vmatpush2.bf16.msra.mxu0 0
    %1211 = vmatprep.subr.bf16.mxu0 0
    %1212 = vmatpush2.bf16.msra.mxu0 0
    %1213 = vmatprep.mubr.bf16.mxu0 0
    %1214 = vmatmul.mubr.bf16.gmra.mxu0 %v947
    %v1215 = vpop.f32.mrf.mxu0
    %v1216 = vadd.f32 0.0, %v1215
    %v1217 = vpop.f32.mrf.mxu0
    %v1218 = vadd.f32 0.0, %v1217
    %v1219 = vpop.f32.mrf.mxu0
    %v1220 = vpop.f32.mrf.mxu0
    %1221 = vdwg.mxu0
    %v1222 = vadd.f32 %v943, %v1175
    %v1223 = vadd.f32 %v944, %v1177
    %v1224 = vadd.f32 %v945, %v1216
    %v1225 = vadd.f32 %v946, %v1218
    %v1226 = vmul.f32 %v1222, 0.5
    %v1227 = vmul.f32 %v1223, 0.5
    %v1228 = vmul.f32 %v1224, 0.5
    %v1229 = vtanh.pop %v1226
    %v1230 = vtanh.pop %v1227
    %v1231 = vtanh.pop %v1228
    %v1232 = vmul.f32 %v1229, 0.5
    %v1233 = vmul.f32 %v1230, 0.5
    %v1234 = vmul.f32 %v1231, 0.5
    %v1235 = vadd.f32 %v1232, 0.5
    %v1236 = vadd.f32 %v1233, 0.5
    %v1237 = vadd.f32 %v1234, 0.5
    %v1238 = vtanh.pop %v1225
    %v1239 = vmul.f32 %v1236, %v433
    %v1240 = vmul.f32 %v1235, %v1238
    %v1241 = vadd.f32 %v1239, %v1240
    %v1242 = vtanh.pop %v1241
    %v1243 = vmul.f32 %v1237, %v1242
    %v1244 = vpack.c.bf16 %v1243, %v1243
    %1245 = vst [vmem:[#allocation2] sm:$0xf] %v1244
    %v1246 = vld [vmem:[#allocation2] sm:$0xff]
    %v1247 = vld [vmem:[#allocation5] sm:$0xff]
    %v1248 = vld [vmem:[#allocation5 + $0x8] sm:$0xff]
    %v1249 = vld [vmem:[#allocation5 + $0x10] sm:$0xff]
    %v1250 = vld [vmem:[#allocation5 + $0x18] sm:$0xff]
    %v1251 = vld [vmem:[#allocation5 + $0x20] sm:$0xff]
    %v1252 = vld [vmem:[#allocation5 + $0x28] sm:$0xff]
    %v1253 = vld [vmem:[#allocation5 + $0x30] sm:$0xff]
    %v1254 = vld [vmem:[#allocation5 + $0x38] sm:$0xff]
    %v1255 = vld [vmem:[#allocation5 + $0x40] sm:$0xff]
    %v1256 = vld [vmem:[#allocation5 + $0x48] sm:$0xff]
    %v1257 = vld [vmem:[#allocation5 + $0x50] sm:$0xff]
    %v1258 = vld [vmem:[#allocation5 + $0x58] sm:$0xff]
    %v1259 = vld [vmem:[#allocation5 + $0x60] sm:$0xff]
    %v1260 = vld [vmem:[#allocation5 + $0x68] sm:$0xff]
    %v1261 = vld [vmem:[#allocation5 + $0x70] sm:$0xff]
    %v1262 = vld [vmem:[#allocation5 + $0x78] sm:$0xff]
    %v1263 = vld [vmem:[#allocation5 + $0x80] sm:$0xff]
    %v1264 = vld [vmem:[#allocation5 + $0x88] sm:$0xff]
    %v1265 = vld [vmem:[#allocation5 + $0x90] sm:$0xff]
    %v1266 = vld [vmem:[#allocation5 + $0x98] sm:$0xff]
    %v1267 = vld [vmem:[#allocation5 + $0xa0] sm:$0xff]
    %v1268 = vld [vmem:[#allocation5 + $0xa8] sm:$0xff]
    %v1269 = vld [vmem:[#allocation5 + $0xb0] sm:$0xff]
    %v1270 = vld [vmem:[#allocation5 + $0xb8] sm:$0xff]
    %v1271 = vld [vmem:[#allocation5 + $0xc0] sm:$0xff]
    %v1272 = vld [vmem:[#allocation5 + $0xc8] sm:$0xff]
    %v1273 = vld [vmem:[#allocation5 + $0xd0] sm:$0xff]
    %v1274 = vld [vmem:[#allocation5 + $0xd8] sm:$0xff]
    %v1275 = vld [vmem:[#allocation5 + $0xe0] sm:$0xff]
    %v1276 = vld [vmem:[#allocation5 + $0xe8] sm:$0xff]
    %v1277 = vld [vmem:[#allocation5 + $0xf0] sm:$0xff]
    %v1278 = vld [vmem:[#allocation5 + $0xf8] sm:$0xff]
    %v1279 = vld [vmem:[#allocation5 + $0x100] sm:$0xff]
    %v1280 = vld [vmem:[#allocation5 + $0x108] sm:$0xff]
    %v1281 = vld [vmem:[#allocation5 + $0x110] sm:$0xff]
    %v1282 = vld [vmem:[#allocation5 + $0x118] sm:$0xff]
    %v1283 = vld [vmem:[#allocation5 + $0x120] sm:$0xff]
    %v1284 = vld [vmem:[#allocation5 + $0x128] sm:$0xff]
    %v1285 = vld [vmem:[#allocation5 + $0x130] sm:$0xff]
    %v1286 = vld [vmem:[#allocation5 + $0x138] sm:$0xff]
    %v1287 = vld [vmem:[#allocation5 + $0x140] sm:$0xff]
    %v1288 = vld [vmem:[#allocation5 + $0x148] sm:$0xff]
    %v1289 = vld [vmem:[#allocation5 + $0x150] sm:$0xff]
    %v1290 = vld [vmem:[#allocation5 + $0x158] sm:$0xff]
    %v1291 = vld [vmem:[#allocation5 + $0x160] sm:$0xff]
    %v1292 = vld [vmem:[#allocation5 + $0x168] sm:$0xff]
    %v1293 = vld [vmem:[#allocation5 + $0x170] sm:$0xff]
    %v1294 = vld [vmem:[#allocation5 + $0x178] sm:$0xff]
    %v1295 = vld [vmem:[#allocation5 + $0x180] sm:$0xff]
    %v1296 = vld [vmem:[#allocation5 + $0x188] sm:$0xff]
    %v1297 = vld [vmem:[#allocation5 + $0x190] sm:$0xff]
    %v1298 = vld [vmem:[#allocation5 + $0x198] sm:$0xff]
    %v1299 = vld [vmem:[#allocation5 + $0x1a0] sm:$0xff]
    %v1300 = vld [vmem:[#allocation5 + $0x1a8] sm:$0xff]
    %v1301 = vld [vmem:[#allocation5 + $0x1b0] sm:$0xff]
    %v1302 = vld [vmem:[#allocation5 + $0x1b8] sm:$0xff]
    %v1303 = vld [vmem:[#allocation5 + $0x1c0] sm:$0xff]
    %v1304 = vld [vmem:[#allocation5 + $0x1c8] sm:$0xff]
    %v1305 = vld [vmem:[#allocation5 + $0x1d0] sm:$0xff]
    %v1306 = vld [vmem:[#allocation5 + $0x1d8] sm:$0xff]
    %v1307 = vld [vmem:[#allocation5 + $0x1e0] sm:$0xff]
    %v1308 = vld [vmem:[#allocation5 + $0x1e8] sm:$0xff]
    %v1309 = vld [vmem:[#allocation5 + $0x1f0] sm:$0xff]
    %v1310 = vld [vmem:[#allocation5 + $0x1f8] sm:$0xff]
    %v1312 = vunpack.c.l.b16 %v1246
    %v1313 = vunpack.c.h.b16 %v1246
    %v1314 = vpack.c.b16 %v1312, %v1312
    %v1315 = vpack.c.b16 %v1313, %v1313
    %v1382 = vunpack.c.l.b16 %v1247
    %v1383 = vunpack.c.h.b16 %v1247
    %v1384 = vunpack.c.l.b16 %v1248
    %v1385 = vunpack.c.h.b16 %v1248
    %v1386 = vunpack.c.l.b16 %v1249
    %v1387 = vunpack.c.h.b16 %v1249
    %v1388 = vunpack.c.l.b16 %v1250
    %v1389 = vunpack.c.h.b16 %v1250
    %v1390 = vunpack.c.l.b16 %v1251
    %v1391 = vunpack.c.h.b16 %v1251
    %v1392 = vunpack.c.l.b16 %v1252
    %v1393 = vunpack.c.h.b16 %v1252
    %v1394 = vunpack.c.l.b16 %v1253
    %v1395 = vunpack.c.h.b16 %v1253
    %v1396 = vunpack.c.l.b16 %v1254
    %v1397 = vunpack.c.h.b16 %v1254
    %v1398 = vunpack.c.l.b16 %v1255
    %v1399 = vunpack.c.h.b16 %v1255
    %v1400 = vunpack.c.l.b16 %v1256
    %v1401 = vunpack.c.h.b16 %v1256
    %v1402 = vunpack.c.l.b16 %v1257
    %v1403 = vunpack.c.h.b16 %v1257
    %v1404 = vunpack.c.l.b16 %v1258
    %v1405 = vunpack.c.h.b16 %v1258
    %v1406 = vunpack.c.l.b16 %v1259
    %v1407 = vunpack.c.h.b16 %v1259
    %v1408 = vunpack.c.l.b16 %v1260
    %v1409 = vunpack.c.h.b16 %v1260
    %v1410 = vunpack.c.l.b16 %v1261
    %v1411 = vunpack.c.h.b16 %v1261
    %v1412 = vunpack.c.l.b16 %v1262
    %v1413 = vunpack.c.h.b16 %v1262
    %v1414 = vunpack.c.l.b16 %v1263
    %v1415 = vunpack.c.h.b16 %v1263
    %v1416 = vunpack.c.l.b16 %v1264
    %v1417 = vunpack.c.h.b16 %v1264
    %v1418 = vunpack.c.l.b16 %v1265
    %v1419 = vunpack.c.h.b16 %v1265
    %v1420 = vunpack.c.l.b16 %v1266
    %v1421 = vunpack.c.h.b16 %v1266
    %v1422 = vunpack.c.l.b16 %v1267
    %v1423 = vunpack.c.h.b16 %v1267
    %v1424 = vunpack.c.l.b16 %v1268
    %v1425 = vunpack.c.h.b16 %v1268
    %v1426 = vunpack.c.l.b16 %v1269
    %v1427 = vunpack.c.h.b16 %v1269
    %v1428 = vunpack.c.l.b16 %v1270
    %v1429 = vunpack.c.h.b16 %v1270
    %v1430 = vunpack.c.l.b16 %v1271
    %v1431 = vunpack.c.h.b16 %v1271
    %v1432 = vunpack.c.l.b16 %v1272
    %v1433 = vunpack.c.h.b16 %v1272
    %v1434 = vunpack.c.l.b16 %v1273
    %v1435 = vunpack.c.h.b16 %v1273
    %v1436 = vunpack.c.l.b16 %v1274
    %v1437 = vunpack.c.h.b16 %v1274
    %v1438 = vunpack.c.l.b16 %v1275
    %v1439 = vunpack.c.h.b16 %v1275
    %v1440 = vunpack.c.l.b16 %v1276
    %v1441 = vunpack.c.h.b16 %v1276
    %v1442 = vunpack.c.l.b16 %v1277
    %v1443 = vunpack.c.h.b16 %v1277
    %v1444 = vunpack.c.l.b16 %v1278
    %v1445 = vunpack.c.h.b16 %v1278
    %v1446 = vunpack.c.l.b16 %v1279
    %v1447 = vunpack.c.h.b16 %v1279
    %v1448 = vunpack.c.l.b16 %v1280
    %v1449 = vunpack.c.h.b16 %v1280
    %v1450 = vunpack.c.l.b16 %v1281
    %v1451 = vunpack.c.h.b16 %v1281
    %v1452 = vunpack.c.l.b16 %v1282
    %v1453 = vunpack.c.h.b16 %v1282
    %v1454 = vunpack.c.l.b16 %v1283
    %v1455 = vunpack.c.h.b16 %v1283
    %v1456 = vunpack.c.l.b16 %v1284
    %v1457 = vunpack.c.h.b16 %v1284
    %v1458 = vunpack.c.l.b16 %v1285
    %v1459 = vunpack.c.h.b16 %v1285
    %v1460 = vunpack.c.l.b16 %v1286
    %v1461 = vunpack.c.h.b16 %v1286
    %v1462 = vunpack.c.l.b16 %v1287
    %v1463 = vunpack.c.h.b16 %v1287
    %v1464 = vunpack.c.l.b16 %v1288
    %v1465 = vunpack.c.h.b16 %v1288
    %v1466 = vunpack.c.l.b16 %v1289
    %v1467 = vunpack.c.h.b16 %v1289
    %v1468 = vunpack.c.l.b16 %v1290
    %v1469 = vunpack.c.h.b16 %v1290
    %v1470 = vunpack.c.l.b16 %v1291
    %v1471 = vunpack.c.h.b16 %v1291
    %v1472 = vunpack.c.l.b16 %v1292
    %v1473 = vunpack.c.h.b16 %v1292
    %v1474 = vunpack.c.l.b16 %v1293
    %v1475 = vunpack.c.h.b16 %v1293
    %v1476 = vunpack.c.l.b16 %v1294
    %v1477 = vunpack.c.h.b16 %v1294
    %v1478 = vunpack.c.l.b16 %v1295
    %v1479 = vunpack.c.h.b16 %v1295
    %v1480 = vunpack.c.l.b16 %v1296
    %v1481 = vunpack.c.h.b16 %v1296
    %v1482 = vunpack.c.l.b16 %v1297
    %v1483 = vunpack.c.h.b16 %v1297
    %v1484 = vunpack.c.l.b16 %v1298
    %v1485 = vunpack.c.h.b16 %v1298
    %v1486 = vunpack.c.l.b16 %v1299
    %v1487 = vunpack.c.h.b16 %v1299
    %v1488 = vunpack.c.l.b16 %v1300
    %v1489 = vunpack.c.h.b16 %v1300
    %v1490 = vunpack.c.l.b16 %v1301
    %v1491 = vunpack.c.h.b16 %v1301
    %v1492 = vunpack.c.l.b16 %v1302
    %v1493 = vunpack.c.h.b16 %v1302
    %v1494 = vunpack.c.l.b16 %v1303
    %v1495 = vunpack.c.h.b16 %v1303
    %v1496 = vunpack.c.l.b16 %v1304
    %v1497 = vunpack.c.h.b16 %v1304
    %v1498 = vunpack.c.l.b16 %v1305
    %v1499 = vunpack.c.h.b16 %v1305
    %v1500 = vunpack.c.l.b16 %v1306
    %v1501 = vunpack.c.h.b16 %v1306
    %v1502 = vunpack.c.l.b16 %v1307
    %v1503 = vunpack.c.h.b16 %v1307
    %v1504 = vunpack.c.l.b16 %v1308
    %v1505 = vunpack.c.h.b16 %v1308
    %v1506 = vunpack.c.l.b16 %v1309
    %v1507 = vunpack.c.h.b16 %v1309
    %v1508 = vunpack.c.l.b16 %v1310
    %v1509 = vunpack.c.h.b16 %v1310
    %v1510 = vpack.c.b16 %v1386, %v1382
    %v1511 = vpack.c.b16 %v1387, %v1383
    %v1512 = vpack.c.b16 %v1388, %v1384
    %v1513 = vpack.c.b16 %v1389, %v1385
    %v1514 = vpack.c.b16 %v1394, %v1390
    %v1515 = vpack.c.b16 %v1395, %v1391
    %v1516 = vpack.c.b16 %v1396, %v1392
    %v1517 = vpack.c.b16 %v1397, %v1393
    %v1518 = vpack.c.b16 %v1402, %v1398
    %v1519 = vpack.c.b16 %v1403, %v1399
    %v1520 = vpack.c.b16 %v1404, %v1400
    %v1521 = vpack.c.b16 %v1405, %v1401
    %v1522 = vpack.c.b16 %v1410, %v1406
    %v1523 = vpack.c.b16 %v1411, %v1407
    %v1524 = vpack.c.b16 %v1412, %v1408
    %v1525 = vpack.c.b16 %v1413, %v1409
    %v1526 = vpack.c.b16 %v1418, %v1414
    %v1527 = vpack.c.b16 %v1419, %v1415
    %v1528 = vpack.c.b16 %v1420, %v1416
    %v1529 = vpack.c.b16 %v1421, %v1417
    %v1530 = vpack.c.b16 %v1426, %v1422
    %v1531 = vpack.c.b16 %v1427, %v1423
    %v1532 = vpack.c.b16 %v1428, %v1424
    %v1533 = vpack.c.b16 %v1429, %v1425
    %v1534 = vpack.c.b16 %v1434, %v1430
    %v1535 = vpack.c.b16 %v1435, %v1431
    %v1536 = vpack.c.b16 %v1436, %v1432
    %v1537 = vpack.c.b16 %v1437, %v1433
    %v1538 = vpack.c.b16 %v1442, %v1438
    %v1539 = vpack.c.b16 %v1443, %v1439
    %v1540 = vpack.c.b16 %v1444, %v1440
    %v1541 = vpack.c.b16 %v1445, %v1441
    %v1542 = vpack.c.b16 %v1450, %v1446
    %v1543 = vpack.c.b16 %v1451, %v1447
    %v1544 = vpack.c.b16 %v1452, %v1448
    %v1545 = vpack.c.b16 %v1453, %v1449
    %v1546 = vpack.c.b16 %v1458, %v1454
    %v1547 = vpack.c.b16 %v1459, %v1455
    %v1548 = vpack.c.b16 %v1460, %v1456
    %v1549 = vpack.c.b16 %v1461, %v1457
    %v1550 = vpack.c.b16 %v1466, %v1462
    %v1551 = vpack.c.b16 %v1467, %v1463
    %v1552 = vpack.c.b16 %v1468, %v1464
    %v1553 = vpack.c.b16 %v1469, %v1465
    %v1554 = vpack.c.b16 %v1474, %v1470
    %v1555 = vpack.c.b16 %v1475, %v1471
    %v1556 = vpack.c.b16 %v1476, %v1472
    %v1557 = vpack.c.b16 %v1477, %v1473
    %v1558 = vpack.c.b16 %v1482, %v1478
    %v1559 = vpack.c.b16 %v1483, %v1479
    %v1560 = vpack.c.b16 %v1484, %v1480
    %v1561 = vpack.c.b16 %v1485, %v1481
    %v1562 = vpack.c.b16 %v1490, %v1486
    %v1563 = vpack.c.b16 %v1491, %v1487
    %v1564 = vpack.c.b16 %v1492, %v1488
    %v1565 = vpack.c.b16 %v1493, %v1489
    %v1566 = vpack.c.b16 %v1498, %v1494
    %v1567 = vpack.c.b16 %v1499, %v1495
    %v1568 = vpack.c.b16 %v1500, %v1496
    %v1569 = vpack.c.b16 %v1501, %v1497
    %v1570 = vpack.c.b16 %v1506, %v1502
    %v1571 = vpack.c.b16 %v1507, %v1503
    %v1572 = vpack.c.b16 %v1508, %v1504
    %v1573 = vpack.c.b16 %v1509, %v1505
    %1638 = vmatprep.subr.bf16.mxu0 %v1539
    %1639 = vmatpush1.bf16.msra.mxu0 %v1538
    %1640 = vmatprep.subr.bf16.mxu0 %v1535
    %1641 = vmatpush1.bf16.msra.mxu0 %v1534
    %1642 = vmatprep.subr.bf16.mxu0 %v1531
    %1643 = vmatpush1.bf16.msra.mxu0 %v1530
    %1644 = vmatprep.subr.bf16.mxu0 %v1527
    %1645 = vmatpush1.bf16.msra.mxu0 %v1526
    %1646 = vmatprep.subr.bf16.mxu0 %v1523
    %1647 = vmatpush1.bf16.msra.mxu0 %v1522
    %1648 = vmatprep.subr.bf16.mxu0 %v1519
    %1649 = vmatpush1.bf16.msra.mxu0 %v1518
    %1650 = vmatprep.subr.bf16.mxu0 %v1515
    %1651 = vmatpush1.bf16.msra.mxu0 %v1514
    %1652 = vmatprep.subr.bf16.mxu0 %v1511
    %1653 = vmatpush1.bf16.msra.mxu0 %v1510
    %1654 = vmatprep.subr.bf16.mxu0 %v1571
    %1655 = vmatpush2.bf16.msra.mxu0 %v1570
    %1656 = vmatprep.subr.bf16.mxu0 %v1567
    %1657 = vmatpush2.bf16.msra.mxu0 %v1566
    %1658 = vmatprep.subr.bf16.mxu0 %v1563
    %1659 = vmatpush2.bf16.msra.mxu0 %v1562
    %1660 = vmatprep.subr.bf16.mxu0 %v1559
    %1661 = vmatpush2.bf16.msra.mxu0 %v1558
    %1662 = vmatprep.subr.bf16.mxu0 %v1555
    %1663 = vmatpush2.bf16.msra.mxu0 %v1554
    %1664 = vmatprep.subr.bf16.mxu0 %v1551
    %1665 = vmatpush2.bf16.msra.mxu0 %v1550
    %1666 = vmatprep.subr.bf16.mxu0 %v1547
    %1667 = vmatpush2.bf16.msra.mxu0 %v1546
    %1668 = vmatprep.subr.bf16.mxu0 %v1543
    %1669 = vmatpush2.bf16.msra.mxu0 %v1542
    %1670 = vmatprep.mubr.bf16.mxu0 %v1315
    %1671 = vmatmul.mubr.bf16.gmra.mxu0 %v1314
    %v1672 = vpop.f32.mrf.mxu0
    %v1673 = vadd.f32 %v108, %v1672
    %v1674 = vpop.f32.mrf.mxu0
    %v1675 = vadd.f32 %v112, %v1674
    %v1676 = vpop.f32.mrf.mxu0
    %v1677 = vpop.f32.mrf.mxu0
    %1678 = vdwg.mxu0
    %1679 = vmatprep.subr.bf16.mxu0 %v1541
    %1680 = vmatpush1.bf16.msra.mxu0 %v1540
    %1681 = vmatprep.subr.bf16.mxu0 %v1537
    %1682 = vmatpush1.bf16.msra.mxu0 %v1536
    %1683 = vmatprep.subr.bf16.mxu0 %v1533
    %1684 = vmatpush1.bf16.msra.mxu0 %v1532
    %1685 = vmatprep.subr.bf16.mxu0 %v1529
    %1686 = vmatpush1.bf16.msra.mxu0 %v1528
    %1687 = vmatprep.subr.bf16.mxu0 %v1525
    %1688 = vmatpush1.bf16.msra.mxu0 %v1524
    %1689 = vmatprep.subr.bf16.mxu0 %v1521
    %1690 = vmatpush1.bf16.msra.mxu0 %v1520
    %1691 = vmatprep.subr.bf16.mxu0 %v1517
    %1692 = vmatpush1.bf16.msra.mxu0 %v1516
    %1693 = vmatprep.subr.bf16.mxu0 %v1513
    %1694 = vmatpush1.bf16.msra.mxu0 %v1512
    %1695 = vmatprep.subr.bf16.mxu0 %v1573
    %1696 = vmatpush2.bf16.msra.mxu0 %v1572
    %1697 = vmatprep.subr.bf16.mxu0 %v1569
    %1698 = vmatpush2.bf16.msra.mxu0 %v1568
    %1699 = vmatprep.subr.bf16.mxu0 %v1565
    %1700 = vmatpush2.bf16.msra.mxu0 %v1564
    %1701 = vmatprep.subr.bf16.mxu0 %v1561
    %1702 = vmatpush2.bf16.msra.mxu0 %v1560
    %1703 = vmatprep.subr.bf16.mxu0 %v1557
    %1704 = vmatpush2.bf16.msra.mxu0 %v1556
    %1705 = vmatprep.subr.bf16.mxu0 %v1553
    %1706 = vmatpush2.bf16.msra.mxu0 %v1552
    %1707 = vmatprep.subr.bf16.mxu0 %v1549
    %1708 = vmatpush2.bf16.msra.mxu0 %v1548
    %1709 = vmatprep.subr.bf16.mxu0 %v1545
    %1710 = vmatpush2.bf16.msra.mxu0 %v1544
    %1711 = vmatprep.mubr.bf16.mxu0 %v1315
    %1712 = vmatmul.mubr.bf16.gmra.mxu0 %v1314
    %v1713 = vpop.f32.mrf.mxu0
    %v1714 = vadd.f32 %v116, %v1713
    %v1715 = vpop.f32.mrf.mxu0
    %v1716 = vadd.f32 %v120, %v1715
    %v1717 = vpop.f32.mrf.mxu0
    %v1718 = vpop.f32.mrf.mxu0
    %1719 = vdwg.mxu0
    %v1720 = vmul.f32 %v1673, 0.5
    %v1721 = vmul.f32 %v1675, 0.5
    %v1722 = vmul.f32 %v1714, 0.5
    %v1723 = vtanh.pop %v1720
    %v1724 = vtanh.pop %v1721
    %v1725 = vtanh.pop %v1722
    %v1726 = vmul.f32 %v1723, 0.5
    %v1727 = vmul.f32 %v1724, 0.5
    %v1728 = vmul.f32 %v1725, 0.5
    %v1729 = vadd.f32 %v1726, 0.5
    %v1730 = vadd.f32 %v1727, 0.5
    %v1731 = vadd.f32 %v1728, 0.5
    %v1732 = vtanh.pop %v1716
    %v1733 = vmul.f32 %v1730, %v927
    %v1734 = vmul.f32 %v1729, %v1732
    %v1735 = vadd.f32 %v1733, %v1734
    %v1736 = vtanh.pop %v1735
    %v1737 = vmul.f32 %v1731, %v1736
    %v1738 = vpack.c.bf16 %v1737, %v1737
    %1739 = vst [vmem:[#allocation2 + $0x4] sm:$0xf] %v1738
    %s1740 = scalar_lea.vmem %s0, 16
    %v1741 = vld [vmem:[%s1740] sm:$0xff]
    %1743 = vset.pattern.permute.xlu0 0
    %1744 = vperm.xlu0 %1743, %v1741
    %v1745 = vpop.permute.xlu0 %1744
    %v1747 = vmul.f32 %v1745, %v64
    %v1748 = vmul.f32 %v1745, %v68
    %v1749 = vmul.f32 %v1745, %v72
    %v1750 = vmul.f32 %v1745, %v76
    %v1751 = vadd.f32 %v1747, %v86
    %v1752 = vadd.f32 %v1748, %v90
    %v1753 = vadd.f32 %v1749, %v94
    %v1754 = vadd.f32 %v1750, %v98
    %v1755 = vld [vmem:[#allocation2] sm:$0xf]
    %v1756 = vld [vmem:[#allocation3] sm:$0xff]
    %v1757 = vld [vmem:[#allocation3 + $0x8] sm:$0xff]
    %v1758 = vld [vmem:[#allocation3 + $0x10] sm:$0xff]
    %v1759 = vld [vmem:[#allocation3 + $0x18] sm:$0xff]
    %v1760 = vld [vmem:[#allocation3 + $0x20] sm:$0xff]
    %v1761 = vld [vmem:[#allocation3 + $0x28] sm:$0xff]
    %v1762 = vld [vmem:[#allocation3 + $0x30] sm:$0xff]
    %v1763 = vld [vmem:[#allocation3 + $0x38] sm:$0xff]
    %v1764 = vld [vmem:[#allocation3 + $0x40] sm:$0xff]
    %v1765 = vld [vmem:[#allocation3 + $0x48] sm:$0xff]
    %v1766 = vld [vmem:[#allocation3 + $0x50] sm:$0xff]
    %v1767 = vld [vmem:[#allocation3 + $0x58] sm:$0xff]
    %v1768 = vld [vmem:[#allocation3 + $0x60] sm:$0xff]
    %v1769 = vld [vmem:[#allocation3 + $0x68] sm:$0xff]
    %v1770 = vld [vmem:[#allocation3 + $0x70] sm:$0xff]
    %v1771 = vld [vmem:[#allocation3 + $0x78] sm:$0xff]
    %v1772 = vld [vmem:[#allocation3 + $0x80] sm:$0xff]
    %v1773 = vld [vmem:[#allocation3 + $0x88] sm:$0xff]
    %v1774 = vld [vmem:[#allocation3 + $0x90] sm:$0xff]
    %v1775 = vld [vmem:[#allocation3 + $0x98] sm:$0xff]
    %v1776 = vld [vmem:[#allocation3 + $0xa0] sm:$0xff]
    %v1777 = vld [vmem:[#allocation3 + $0xa8] sm:$0xff]
    %v1778 = vld [vmem:[#allocation3 + $0xb0] sm:$0xff]
    %v1779 = vld [vmem:[#allocation3 + $0xb8] sm:$0xff]
    %v1780 = vld [vmem:[#allocation3 + $0xc0] sm:$0xff]
    %v1781 = vld [vmem:[#allocation3 + $0xc8] sm:$0xff]
    %v1782 = vld [vmem:[#allocation3 + $0xd0] sm:$0xff]
    %v1783 = vld [vmem:[#allocation3 + $0xd8] sm:$0xff]
    %v1784 = vld [vmem:[#allocation3 + $0xe0] sm:$0xff]
    %v1785 = vld [vmem:[#allocation3 + $0xe8] sm:$0xff]
    %v1786 = vld [vmem:[#allocation3 + $0xf0] sm:$0xff]
    %v1787 = vld [vmem:[#allocation3 + $0xf8] sm:$0xff]
    %v1820 = vunpack.c.l.b16 %v1756
    %v1821 = vunpack.c.h.b16 %v1756
    %v1822 = vunpack.c.l.b16 %v1757
    %v1823 = vunpack.c.h.b16 %v1757
    %v1824 = vunpack.c.l.b16 %v1758
    %v1825 = vunpack.c.h.b16 %v1758
    %v1826 = vunpack.c.l.b16 %v1759
    %v1827 = vunpack.c.h.b16 %v1759
    %v1828 = vunpack.c.l.b16 %v1760
    %v1829 = vunpack.c.h.b16 %v1760
    %v1830 = vunpack.c.l.b16 %v1761
    %v1831 = vunpack.c.h.b16 %v1761
    %v1832 = vunpack.c.l.b16 %v1762
    %v1833 = vunpack.c.h.b16 %v1762
    %v1834 = vunpack.c.l.b16 %v1763
    %v1835 = vunpack.c.h.b16 %v1763
    %v1836 = vunpack.c.l.b16 %v1764
    %v1837 = vunpack.c.h.b16 %v1764
    %v1838 = vunpack.c.l.b16 %v1765
    %v1839 = vunpack.c.h.b16 %v1765
    %v1840 = vunpack.c.l.b16 %v1766
    %v1841 = vunpack.c.h.b16 %v1766
    %v1842 = vunpack.c.l.b16 %v1767
    %v1843 = vunpack.c.h.b16 %v1767
    %v1844 = vunpack.c.l.b16 %v1768
    %v1845 = vunpack.c.h.b16 %v1768
    %v1846 = vunpack.c.l.b16 %v1769
    %v1847 = vunpack.c.h.b16 %v1769
    %v1848 = vunpack.c.l.b16 %v1770
    %v1849 = vunpack.c.h.b16 %v1770
    %v1850 = vunpack.c.l.b16 %v1771
    %v1851 = vunpack.c.h.b16 %v1771
    %v1852 = vunpack.c.l.b16 %v1772
    %v1853 = vunpack.c.h.b16 %v1772
    %v1854 = vunpack.c.l.b16 %v1773
    %v1855 = vunpack.c.h.b16 %v1773
    %v1856 = vunpack.c.l.b16 %v1774
    %v1857 = vunpack.c.h.b16 %v1774
    %v1858 = vunpack.c.l.b16 %v1775
    %v1859 = vunpack.c.h.b16 %v1775
    %v1860 = vunpack.c.l.b16 %v1776
    %v1861 = vunpack.c.h.b16 %v1776
    %v1862 = vunpack.c.l.b16 %v1777
    %v1863 = vunpack.c.h.b16 %v1777
    %v1864 = vunpack.c.l.b16 %v1778
    %v1865 = vunpack.c.h.b16 %v1778
    %v1866 = vunpack.c.l.b16 %v1779
    %v1867 = vunpack.c.h.b16 %v1779
    %v1868 = vunpack.c.l.b16 %v1780
    %v1869 = vunpack.c.h.b16 %v1780
    %v1870 = vunpack.c.l.b16 %v1781
    %v1871 = vunpack.c.h.b16 %v1781
    %v1872 = vunpack.c.l.b16 %v1782
    %v1873 = vunpack.c.h.b16 %v1782
    %v1874 = vunpack.c.l.b16 %v1783
    %v1875 = vunpack.c.h.b16 %v1783
    %v1876 = vunpack.c.l.b16 %v1784
    %v1877 = vunpack.c.h.b16 %v1784
    %v1878 = vunpack.c.l.b16 %v1785
    %v1879 = vunpack.c.h.b16 %v1785
    %v1880 = vunpack.c.l.b16 %v1786
    %v1881 = vunpack.c.h.b16 %v1786
    %v1882 = vunpack.c.l.b16 %v1787
    %v1883 = vunpack.c.h.b16 %v1787
    %v1884 = vpack.c.b16 %v1824, %v1820
    %v1885 = vpack.c.b16 %v1825, %v1821
    %v1886 = vpack.c.b16 %v1826, %v1822
    %v1887 = vpack.c.b16 %v1827, %v1823
    %v1888 = vpack.c.b16 %v1832, %v1828
    %v1889 = vpack.c.b16 %v1833, %v1829
    %v1890 = vpack.c.b16 %v1834, %v1830
    %v1891 = vpack.c.b16 %v1835, %v1831
    %v1892 = vpack.c.b16 %v1840, %v1836
    %v1893 = vpack.c.b16 %v1841, %v1837
    %v1894 = vpack.c.b16 %v1842, %v1838
    %v1895 = vpack.c.b16 %v1843, %v1839
    %v1896 = vpack.c.b16 %v1848, %v1844
    %v1897 = vpack.c.b16 %v1849, %v1845
    %v1898 = vpack.c.b16 %v1850, %v1846
    %v1899 = vpack.c.b16 %v1851, %v1847
    %v1900 = vpack.c.b16 %v1856, %v1852
    %v1901 = vpack.c.b16 %v1857, %v1853
    %v1902 = vpack.c.b16 %v1858, %v1854
    %v1903 = vpack.c.b16 %v1859, %v1855
    %v1904 = vpack.c.b16 %v1864, %v1860
    %v1905 = vpack.c.b16 %v1865, %v1861
    %v1906 = vpack.c.b16 %v1866, %v1862
    %v1907 = vpack.c.b16 %v1867, %v1863
    %v1908 = vpack.c.b16 %v1872, %v1868
    %v1909 = vpack.c.b16 %v1873, %v1869
    %v1910 = vpack.c.b16 %v1874, %v1870
    %v1911 = vpack.c.b16 %v1875, %v1871
    %v1912 = vpack.c.b16 %v1880, %v1876
    %v1913 = vpack.c.b16 %v1881, %v1877
    %v1914 = vpack.c.b16 %v1882, %v1878
    %v1915 = vpack.c.b16 %v1883, %v1879
    %1948 = vmatprep.subr.bf16.mxu0 %v1913
    %1949 = vmatpush1.bf16.msra.mxu0 %v1912
    %1950 = vmatprep.subr.bf16.mxu0 %v1909
    %1951 = vmatpush1.bf16.msra.mxu0 %v1908
    %1952 = vmatprep.subr.bf16.mxu0 %v1905
    %1953 = vmatpush1.bf16.msra.mxu0 %v1904
    %1954 = vmatprep.subr.bf16.mxu0 %v1901
    %1955 = vmatpush1.bf16.msra.mxu0 %v1900
    %1956 = vmatprep.subr.bf16.mxu0 %v1897
    %1957 = vmatpush1.bf16.msra.mxu0 %v1896
    %1958 = vmatprep.subr.bf16.mxu0 %v1893
    %1959 = vmatpush1.bf16.msra.mxu0 %v1892
    %1960 = vmatprep.subr.bf16.mxu0 %v1889
    %1961 = vmatpush1.bf16.msra.mxu0 %v1888
    %1962 = vmatprep.subr.bf16.mxu0 %v1885
    %1963 = vmatpush1.bf16.msra.mxu0 %v1884
    %1964 = vmatprep.subr.bf16.mxu0 0
    %1965 = vmatpush2.bf16.msra.mxu0 0
    %1966 = vmatprep.subr.bf16.mxu0 0
    %1967 = vmatpush2.bf16.msra.mxu0 0
    %1968 = vmatprep.subr.bf16.mxu0 0
    %1969 = vmatpush2.bf16.msra.mxu0 0
    %1970 = vmatprep.subr.bf16.mxu0 0
    %1971 = vmatpush2.bf16.msra.mxu0 0
    %1972 = vmatprep.subr.bf16.mxu0 0
    %1973 = vmatpush2.bf16.msra.mxu0 0
    %1974 = vmatprep.subr.bf16.mxu0 0
    %1975 = vmatpush2.bf16.msra.mxu0 0
    %1976 = vmatprep.subr.bf16.mxu0 0
    %1977 = vmatpush2.bf16.msra.mxu0 0
    %1978 = vmatprep.subr.bf16.mxu0 0
    %1979 = vmatpush2.bf16.msra.mxu0 0
    %1980 = vmatprep.mubr.bf16.mxu0 0
    %1981 = vmatmul.mubr.bf16.gmra.mxu0 %v1755
    %v1982 = vpop.f32.mrf.mxu0
    %v1983 = vadd.f32 0.0, %v1982
    %v1984 = vpop.f32.mrf.mxu0
    %v1985 = vadd.f32 0.0, %v1984
    %v1986 = vpop.f32.mrf.mxu0
    %v1987 = vpop.f32.mrf.mxu0
    %1988 = vdwg.mxu0
    %1989 = vmatprep.subr.bf16.mxu0 %v1915
    %1990 = vmatpush1.bf16.msra.mxu0 %v1914
    %1991 = vmatprep.subr.bf16.mxu0 %v1911
    %1992 = vmatpush1.bf16.msra.mxu0 %v1910
    %1993 = vmatprep.subr.bf16.mxu0 %v1907
    %1994 = vmatpush1.bf16.msra.mxu0 %v1906
    %1995 = vmatprep.subr.bf16.mxu0 %v1903
    %1996 = vmatpush1.bf16.msra.mxu0 %v1902
    %1997 = vmatprep.subr.bf16.mxu0 %v1899
    %1998 = vmatpush1.bf16.msra.mxu0 %v1898
    %1999 = vmatprep.subr.bf16.mxu0 %v1895
    %2000 = vmatpush1.bf16.msra.mxu0 %v1894
    %2001 = vmatprep.subr.bf16.mxu0 %v1891
    %2002 = vmatpush1.bf16.msra.mxu0 %v1890
    %2003 = vmatprep.subr.bf16.mxu0 %v1887
    %2004 = vmatpush1.bf16.msra.mxu0 %v1886
    %2005 = vmatprep.subr.bf16.mxu0 0
    %2006 = vmatpush2.bf16.msra.mxu0 0
    %2007 = vmatprep.subr.bf16.mxu0 0
    %2008 = vmatpush2.bf16.msra.mxu0 0
    %2009 = vmatprep.subr.bf16.mxu0 0
    %2010 = vmatpush2.bf16.msra.mxu0 0
    %2011 = vmatprep.subr.bf16.mxu0 0
    %2012 = vmatpush2.bf16.msra.mxu0 0
    %2013 = vmatprep.subr.bf16.mxu0 0
    %2014 = vmatpush2.bf16.msra.mxu0 0
    %2015 = vmatprep.subr.bf16.mxu0 0
    %2016 = vmatpush2.bf16.msra.mxu0 0
    %2017 = vmatprep.subr.bf16.mxu0 0
    %2018 = vmatpush2.bf16.msra.mxu0 0
    %2019 = vmatprep.subr.bf16.mxu0 0
    %2020 = vmatpush2.bf16.msra.mxu0 0
    %2021 = vmatprep.mubr.bf16.mxu0 0
    %2022 = vmatmul.mubr.bf16.gmra.mxu0 %v1755
    %v2023 = vpop.f32.mrf.mxu0
    %v2024 = vadd.f32 0.0, %v2023
    %v2025 = vpop.f32.mrf.mxu0
    %v2026 = vadd.f32 0.0, %v2025
    %v2027 = vpop.f32.mrf.mxu0
    %v2028 = vpop.f32.mrf.mxu0
    %2029 = vdwg.mxu0
    %v2030 = vadd.f32 %v1751, %v1983
    %v2031 = vadd.f32 %v1752, %v1985
    %v2032 = vadd.f32 %v1753, %v2024
    %v2033 = vadd.f32 %v1754, %v2026
    %v2034 = vmul.f32 %v2030, 0.5
    %v2035 = vmul.f32 %v2031, 0.5
    %v2036 = vmul.f32 %v2032, 0.5
    %v2037 = vtanh.pop %v2034
    %v2038 = vtanh.pop %v2035
    %v2039 = vtanh.pop %v2036
    %v2040 = vmul.f32 %v2037, 0.5
    %v2041 = vmul.f32 %v2038, 0.5
    %v2042 = vmul.f32 %v2039, 0.5
    %v2043 = vadd.f32 %v2040, 0.5
    %v2044 = vadd.f32 %v2041, 0.5
    %v2045 = vadd.f32 %v2042, 0.5
    %v2046 = vtanh.pop %v2033
    %v2047 = vmul.f32 %v2044, %v1241
    %v2048 = vmul.f32 %v2043, %v2046
    %v2049 = vadd.f32 %v2047, %v2048
    %v2050 = vtanh.pop %v2049
    %v2051 = vmul.f32 %v2045, %v2050
    %v2052 = vpack.c.bf16 %v2051, %v2051
    %2053 = vst [vmem:[#allocation2] sm:$0xf] %v2052
    %v2054 = vld [vmem:[#allocation2] sm:$0xff]
    %v2055 = vld [vmem:[#allocation5] sm:$0xff]
    %v2056 = vld [vmem:[#allocation5 + $0x8] sm:$0xff]
    %v2057 = vld [vmem:[#allocation5 + $0x10] sm:$0xff]
    %v2058 = vld [vmem:[#allocation5 + $0x18] sm:$0xff]
    %v2059 = vld [vmem:[#allocation5 + $0x20] sm:$0xff]
    %v2060 = vld [vmem:[#allocation5 + $0x28] sm:$0xff]
    %v2061 = vld [vmem:[#allocation5 + $0x30] sm:$0xff]
    %v2062 = vld [vmem:[#allocation5 + $0x38] sm:$0xff]
    %v2063 = vld [vmem:[#allocation5 + $0x40] sm:$0xff]
    %v2064 = vld [vmem:[#allocation5 + $0x48] sm:$0xff]
    %v2065 = vld [vmem:[#allocation5 + $0x50] sm:$0xff]
    %v2066 = vld [vmem:[#allocation5 + $0x58] sm:$0xff]
    %v2067 = vld [vmem:[#allocation5 + $0x60] sm:$0xff]
    %v2068 = vld [vmem:[#allocation5 + $0x68] sm:$0xff]
    %v2069 = vld [vmem:[#allocation5 + $0x70] sm:$0xff]
    %v2070 = vld [vmem:[#allocation5 + $0x78] sm:$0xff]
    %v2071 = vld [vmem:[#allocation5 + $0x80] sm:$0xff]
    %v2072 = vld [vmem:[#allocation5 + $0x88] sm:$0xff]
    %v2073 = vld [vmem:[#allocation5 + $0x90] sm:$0xff]
    %v2074 = vld [vmem:[#allocation5 + $0x98] sm:$0xff]
    %v2075 = vld [vmem:[#allocation5 + $0xa0] sm:$0xff]
    %v2076 = vld [vmem:[#allocation5 + $0xa8] sm:$0xff]
    %v2077 = vld [vmem:[#allocation5 + $0xb0] sm:$0xff]
    %v2078 = vld [vmem:[#allocation5 + $0xb8] sm:$0xff]
    %v2079 = vld [vmem:[#allocation5 + $0xc0] sm:$0xff]
    %v2080 = vld [vmem:[#allocation5 + $0xc8] sm:$0xff]
    %v2081 = vld [vmem:[#allocation5 + $0xd0] sm:$0xff]
    %v2082 = vld [vmem:[#allocation5 + $0xd8] sm:$0xff]
    %v2083 = vld [vmem:[#allocation5 + $0xe0] sm:$0xff]
    %v2084 = vld [vmem:[#allocation5 + $0xe8] sm:$0xff]
    %v2085 = vld [vmem:[#allocation5 + $0xf0] sm:$0xff]
    %v2086 = vld [vmem:[#allocation5 + $0xf8] sm:$0xff]
    %v2087 = vld [vmem:[#allocation5 + $0x100] sm:$0xff]
    %v2088 = vld [vmem:[#allocation5 + $0x108] sm:$0xff]
    %v2089 = vld [vmem:[#allocation5 + $0x110] sm:$0xff]
    %v2090 = vld [vmem:[#allocation5 + $0x118] sm:$0xff]
    %v2091 = vld [vmem:[#allocation5 + $0x120] sm:$0xff]
    %v2092 = vld [vmem:[#allocation5 + $0x128] sm:$0xff]
    %v2093 = vld [vmem:[#allocation5 + $0x130] sm:$0xff]
    %v2094 = vld [vmem:[#allocation5 + $0x138] sm:$0xff]
    %v2095 = vld [vmem:[#allocation5 + $0x140] sm:$0xff]
    %v2096 = vld [vmem:[#allocation5 + $0x148] sm:$0xff]
    %v2097 = vld [vmem:[#allocation5 + $0x150] sm:$0xff]
    %v2098 = vld [vmem:[#allocation5 + $0x158] sm:$0xff]
    %v2099 = vld [vmem:[#allocation5 + $0x160] sm:$0xff]
    %v2100 = vld [vmem:[#allocation5 + $0x168] sm:$0xff]
    %v2101 = vld [vmem:[#allocation5 + $0x170] sm:$0xff]
    %v2102 = vld [vmem:[#allocation5 + $0x178] sm:$0xff]
    %v2103 = vld [vmem:[#allocation5 + $0x180] sm:$0xff]
    %v2104 = vld [vmem:[#allocation5 + $0x188] sm:$0xff]
    %v2105 = vld [vmem:[#allocation5 + $0x190] sm:$0xff]
    %v2106 = vld [vmem:[#allocation5 + $0x198] sm:$0xff]
    %v2107 = vld [vmem:[#allocation5 + $0x1a0] sm:$0xff]
    %v2108 = vld [vmem:[#allocation5 + $0x1a8] sm:$0xff]
    %v2109 = vld [vmem:[#allocation5 + $0x1b0] sm:$0xff]
    %v2110 = vld [vmem:[#allocation5 + $0x1b8] sm:$0xff]
    %v2111 = vld [vmem:[#allocation5 + $0x1c0] sm:$0xff]
    %v2112 = vld [vmem:[#allocation5 + $0x1c8] sm:$0xff]
    %v2113 = vld [vmem:[#allocation5 + $0x1d0] sm:$0xff]
    %v2114 = vld [vmem:[#allocation5 + $0x1d8] sm:$0xff]
    %v2115 = vld [vmem:[#allocation5 + $0x1e0] sm:$0xff]
    %v2116 = vld [vmem:[#allocation5 + $0x1e8] sm:$0xff]
    %v2117 = vld [vmem:[#allocation5 + $0x1f0] sm:$0xff]
    %v2118 = vld [vmem:[#allocation5 + $0x1f8] sm:$0xff]
    %v2120 = vunpack.c.l.b16 %v2054
    %v2121 = vunpack.c.h.b16 %v2054
    %v2122 = vpack.c.b16 %v2120, %v2120
    %v2123 = vpack.c.b16 %v2121, %v2121
    %v2190 = vunpack.c.l.b16 %v2055
    %v2191 = vunpack.c.h.b16 %v2055
    %v2192 = vunpack.c.l.b16 %v2056
    %v2193 = vunpack.c.h.b16 %v2056
    %v2194 = vunpack.c.l.b16 %v2057
    %v2195 = vunpack.c.h.b16 %v2057
    %v2196 = vunpack.c.l.b16 %v2058
    %v2197 = vunpack.c.h.b16 %v2058
    %v2198 = vunpack.c.l.b16 %v2059
    %v2199 = vunpack.c.h.b16 %v2059
    %v2200 = vunpack.c.l.b16 %v2060
    %v2201 = vunpack.c.h.b16 %v2060
    %v2202 = vunpack.c.l.b16 %v2061
    %v2203 = vunpack.c.h.b16 %v2061
    %v2204 = vunpack.c.l.b16 %v2062
    %v2205 = vunpack.c.h.b16 %v2062
    %v2206 = vunpack.c.l.b16 %v2063
    %v2207 = vunpack.c.h.b16 %v2063
    %v2208 = vunpack.c.l.b16 %v2064
    %v2209 = vunpack.c.h.b16 %v2064
    %v2210 = vunpack.c.l.b16 %v2065
    %v2211 = vunpack.c.h.b16 %v2065
    %v2212 = vunpack.c.l.b16 %v2066
    %v2213 = vunpack.c.h.b16 %v2066
    %v2214 = vunpack.c.l.b16 %v2067
    %v2215 = vunpack.c.h.b16 %v2067
    %v2216 = vunpack.c.l.b16 %v2068
    %v2217 = vunpack.c.h.b16 %v2068
    %v2218 = vunpack.c.l.b16 %v2069
    %v2219 = vunpack.c.h.b16 %v2069
    %v2220 = vunpack.c.l.b16 %v2070
    %v2221 = vunpack.c.h.b16 %v2070
    %v2222 = vunpack.c.l.b16 %v2071
    %v2223 = vunpack.c.h.b16 %v2071
    %v2224 = vunpack.c.l.b16 %v2072
    %v2225 = vunpack.c.h.b16 %v2072
    %v2226 = vunpack.c.l.b16 %v2073
    %v2227 = vunpack.c.h.b16 %v2073
    %v2228 = vunpack.c.l.b16 %v2074
    %v2229 = vunpack.c.h.b16 %v2074
    %v2230 = vunpack.c.l.b16 %v2075
    %v2231 = vunpack.c.h.b16 %v2075
    %v2232 = vunpack.c.l.b16 %v2076
    %v2233 = vunpack.c.h.b16 %v2076
    %v2234 = vunpack.c.l.b16 %v2077
    %v2235 = vunpack.c.h.b16 %v2077
    %v2236 = vunpack.c.l.b16 %v2078
    %v2237 = vunpack.c.h.b16 %v2078
    %v2238 = vunpack.c.l.b16 %v2079
    %v2239 = vunpack.c.h.b16 %v2079
    %v2240 = vunpack.c.l.b16 %v2080
    %v2241 = vunpack.c.h.b16 %v2080
    %v2242 = vunpack.c.l.b16 %v2081
    %v2243 = vunpack.c.h.b16 %v2081
    %v2244 = vunpack.c.l.b16 %v2082
    %v2245 = vunpack.c.h.b16 %v2082
    %v2246 = vunpack.c.l.b16 %v2083
    %v2247 = vunpack.c.h.b16 %v2083
    %v2248 = vunpack.c.l.b16 %v2084
    %v2249 = vunpack.c.h.b16 %v2084
    %v2250 = vunpack.c.l.b16 %v2085
    %v2251 = vunpack.c.h.b16 %v2085
    %v2252 = vunpack.c.l.b16 %v2086
    %v2253 = vunpack.c.h.b16 %v2086
    %v2254 = vunpack.c.l.b16 %v2087
    %v2255 = vunpack.c.h.b16 %v2087
    %v2256 = vunpack.c.l.b16 %v2088
    %v2257 = vunpack.c.h.b16 %v2088
    %v2258 = vunpack.c.l.b16 %v2089
    %v2259 = vunpack.c.h.b16 %v2089
    %v2260 = vunpack.c.l.b16 %v2090
    %v2261 = vunpack.c.h.b16 %v2090
    %v2262 = vunpack.c.l.b16 %v2091
    %v2263 = vunpack.c.h.b16 %v2091
    %v2264 = vunpack.c.l.b16 %v2092
    %v2265 = vunpack.c.h.b16 %v2092
    %v2266 = vunpack.c.l.b16 %v2093
    %v2267 = vunpack.c.h.b16 %v2093
    %v2268 = vunpack.c.l.b16 %v2094
    %v2269 = vunpack.c.h.b16 %v2094
    %v2270 = vunpack.c.l.b16 %v2095
    %v2271 = vunpack.c.h.b16 %v2095
    %v2272 = vunpack.c.l.b16 %v2096
    %v2273 = vunpack.c.h.b16 %v2096
    %v2274 = vunpack.c.l.b16 %v2097
    %v2275 = vunpack.c.h.b16 %v2097
    %v2276 = vunpack.c.l.b16 %v2098
    %v2277 = vunpack.c.h.b16 %v2098
    %v2278 = vunpack.c.l.b16 %v2099
    %v2279 = vunpack.c.h.b16 %v2099
    %v2280 = vunpack.c.l.b16 %v2100
    %v2281 = vunpack.c.h.b16 %v2100
    %v2282 = vunpack.c.l.b16 %v2101
    %v2283 = vunpack.c.h.b16 %v2101
    %v2284 = vunpack.c.l.b16 %v2102
    %v2285 = vunpack.c.h.b16 %v2102
    %v2286 = vunpack.c.l.b16 %v2103
    %v2287 = vunpack.c.h.b16 %v2103
    %v2288 = vunpack.c.l.b16 %v2104
    %v2289 = vunpack.c.h.b16 %v2104
    %v2290 = vunpack.c.l.b16 %v2105
    %v2291 = vunpack.c.h.b16 %v2105
    %v2292 = vunpack.c.l.b16 %v2106
    %v2293 = vunpack.c.h.b16 %v2106
    %v2294 = vunpack.c.l.b16 %v2107
    %v2295 = vunpack.c.h.b16 %v2107
    %v2296 = vunpack.c.l.b16 %v2108
    %v2297 = vunpack.c.h.b16 %v2108
    %v2298 = vunpack.c.l.b16 %v2109
    %v2299 = vunpack.c.h.b16 %v2109
    %v2300 = vunpack.c.l.b16 %v2110
    %v2301 = vunpack.c.h.b16 %v2110
    %v2302 = vunpack.c.l.b16 %v2111
    %v2303 = vunpack.c.h.b16 %v2111
    %v2304 = vunpack.c.l.b16 %v2112
    %v2305 = vunpack.c.h.b16 %v2112
    %v2306 = vunpack.c.l.b16 %v2113
    %v2307 = vunpack.c.h.b16 %v2113
    %v2308 = vunpack.c.l.b16 %v2114
    %v2309 = vunpack.c.h.b16 %v2114
    %v2310 = vunpack.c.l.b16 %v2115
    %v2311 = vunpack.c.h.b16 %v2115
    %v2312 = vunpack.c.l.b16 %v2116
    %v2313 = vunpack.c.h.b16 %v2116
    %v2314 = vunpack.c.l.b16 %v2117
    %v2315 = vunpack.c.h.b16 %v2117
    %v2316 = vunpack.c.l.b16 %v2118
    %v2317 = vunpack.c.h.b16 %v2118
    %v2318 = vpack.c.b16 %v2194, %v2190
    %v2319 = vpack.c.b16 %v2195, %v2191
    %v2320 = vpack.c.b16 %v2196, %v2192
    %v2321 = vpack.c.b16 %v2197, %v2193
    %v2322 = vpack.c.b16 %v2202, %v2198
    %v2323 = vpack.c.b16 %v2203, %v2199
    %v2324 = vpack.c.b16 %v2204, %v2200
    %v2325 = vpack.c.b16 %v2205, %v2201
    %v2326 = vpack.c.b16 %v2210, %v2206
    %v2327 = vpack.c.b16 %v2211, %v2207
    %v2328 = vpack.c.b16 %v2212, %v2208
    %v2329 = vpack.c.b16 %v2213, %v2209
    %v2330 = vpack.c.b16 %v2218, %v2214
    %v2331 = vpack.c.b16 %v2219, %v2215
    %v2332 = vpack.c.b16 %v2220, %v2216
    %v2333 = vpack.c.b16 %v2221, %v2217
    %v2334 = vpack.c.b16 %v2226, %v2222
    %v2335 = vpack.c.b16 %v2227, %v2223
    %v2336 = vpack.c.b16 %v2228, %v2224
    %v2337 = vpack.c.b16 %v2229, %v2225
    %v2338 = vpack.c.b16 %v2234, %v2230
    %v2339 = vpack.c.b16 %v2235, %v2231
    %v2340 = vpack.c.b16 %v2236, %v2232
    %v2341 = vpack.c.b16 %v2237, %v2233
    %v2342 = vpack.c.b16 %v2242, %v2238
    %v2343 = vpack.c.b16 %v2243, %v2239
    %v2344 = vpack.c.b16 %v2244, %v2240
    %v2345 = vpack.c.b16 %v2245, %v2241
    %v2346 = vpack.c.b16 %v2250, %v2246
    %v2347 = vpack.c.b16 %v2251, %v2247
    %v2348 = vpack.c.b16 %v2252, %v2248
    %v2349 = vpack.c.b16 %v2253, %v2249
    %v2350 = vpack.c.b16 %v2258, %v2254
    %v2351 = vpack.c.b16 %v2259, %v2255
    %v2352 = vpack.c.b16 %v2260, %v2256
    %v2353 = vpack.c.b16 %v2261, %v2257
    %v2354 = vpack.c.b16 %v2266, %v2262
    %v2355 = vpack.c.b16 %v2267, %v2263
    %v2356 = vpack.c.b16 %v2268, %v2264
    %v2357 = vpack.c.b16 %v2269, %v2265
    %v2358 = vpack.c.b16 %v2274, %v2270
    %v2359 = vpack.c.b16 %v2275, %v2271
    %v2360 = vpack.c.b16 %v2276, %v2272
    %v2361 = vpack.c.b16 %v2277, %v2273
    %v2362 = vpack.c.b16 %v2282, %v2278
    %v2363 = vpack.c.b16 %v2283, %v2279
    %v2364 = vpack.c.b16 %v2284, %v2280
    %v2365 = vpack.c.b16 %v2285, %v2281
    %v2366 = vpack.c.b16 %v2290, %v2286
    %v2367 = vpack.c.b16 %v2291, %v2287
    %v2368 = vpack.c.b16 %v2292, %v2288
    %v2369 = vpack.c.b16 %v2293, %v2289
    %v2370 = vpack.c.b16 %v2298, %v2294
    %v2371 = vpack.c.b16 %v2299, %v2295
    %v2372 = vpack.c.b16 %v2300, %v2296
    %v2373 = vpack.c.b16 %v2301, %v2297
    %v2374 = vpack.c.b16 %v2306, %v2302
    %v2375 = vpack.c.b16 %v2307, %v2303
    %v2376 = vpack.c.b16 %v2308, %v2304
    %v2377 = vpack.c.b16 %v2309, %v2305
    %v2378 = vpack.c.b16 %v2314, %v2310
    %v2379 = vpack.c.b16 %v2315, %v2311
    %v2380 = vpack.c.b16 %v2316, %v2312
    %v2381 = vpack.c.b16 %v2317, %v2313
    %2446 = vmatprep.subr.bf16.mxu0 %v2347
    %2447 = vmatpush1.bf16.msra.mxu0 %v2346
    %2448 = vmatprep.subr.bf16.mxu0 %v2343
    %2449 = vmatpush1.bf16.msra.mxu0 %v2342
    %2450 = vmatprep.subr.bf16.mxu0 %v2339
    %2451 = vmatpush1.bf16.msra.mxu0 %v2338
    %2452 = vmatprep.subr.bf16.mxu0 %v2335
    %2453 = vmatpush1.bf16.msra.mxu0 %v2334
    %2454 = vmatprep.subr.bf16.mxu0 %v2331
    %2455 = vmatpush1.bf16.msra.mxu0 %v2330
    %2456 = vmatprep.subr.bf16.mxu0 %v2327
    %2457 = vmatpush1.bf16.msra.mxu0 %v2326
    %2458 = vmatprep.subr.bf16.mxu0 %v2323
    %2459 = vmatpush1.bf16.msra.mxu0 %v2322
    %2460 = vmatprep.subr.bf16.mxu0 %v2319
    %2461 = vmatpush1.bf16.msra.mxu0 %v2318
    %2462 = vmatprep.subr.bf16.mxu0 %v2379
    %2463 = vmatpush2.bf16.msra.mxu0 %v2378
    %2464 = vmatprep.subr.bf16.mxu0 %v2375
    %2465 = vmatpush2.bf16.msra.mxu0 %v2374
    %2466 = vmatprep.subr.bf16.mxu0 %v2371
    %2467 = vmatpush2.bf16.msra.mxu0 %v2370
    %2468 = vmatprep.subr.bf16.mxu0 %v2367
    %2469 = vmatpush2.bf16.msra.mxu0 %v2366
    %2470 = vmatprep.subr.bf16.mxu0 %v2363
    %2471 = vmatpush2.bf16.msra.mxu0 %v2362
    %2472 = vmatprep.subr.bf16.mxu0 %v2359
    %2473 = vmatpush2.bf16.msra.mxu0 %v2358
    %2474 = vmatprep.subr.bf16.mxu0 %v2355
    %2475 = vmatpush2.bf16.msra.mxu0 %v2354
    %2476 = vmatprep.subr.bf16.mxu0 %v2351
    %2477 = vmatpush2.bf16.msra.mxu0 %v2350
    %2478 = vmatprep.mubr.bf16.mxu0 %v2123
    %2479 = vmatmul.mubr.bf16.gmra.mxu0 %v2122
    %v2480 = vpop.f32.mrf.mxu0
    %v2481 = vadd.f32 %v108, %v2480
    %v2482 = vpop.f32.mrf.mxu0
    %v2483 = vadd.f32 %v112, %v2482
    %v2484 = vpop.f32.mrf.mxu0
    %v2485 = vpop.f32.mrf.mxu0
    %2486 = vdwg.mxu0
    %2487 = vmatprep.subr.bf16.mxu0 %v2349
    %2488 = vmatpush1.bf16.msra.mxu0 %v2348
    %2489 = vmatprep.subr.bf16.mxu0 %v2345
    %2490 = vmatpush1.bf16.msra.mxu0 %v2344
    %2491 = vmatprep.subr.bf16.mxu0 %v2341
    %2492 = vmatpush1.bf16.msra.mxu0 %v2340
    %2493 = vmatprep.subr.bf16.mxu0 %v2337
    %2494 = vmatpush1.bf16.msra.mxu0 %v2336
    %2495 = vmatprep.subr.bf16.mxu0 %v2333
    %2496 = vmatpush1.bf16.msra.mxu0 %v2332
    %2497 = vmatprep.subr.bf16.mxu0 %v2329
    %2498 = vmatpush1.bf16.msra.mxu0 %v2328
    %2499 = vmatprep.subr.bf16.mxu0 %v2325
    %2500 = vmatpush1.bf16.msra.mxu0 %v2324
    %2501 = vmatprep.subr.bf16.mxu0 %v2321
    %2502 = vmatpush1.bf16.msra.mxu0 %v2320
    %2503 = vmatprep.subr.bf16.mxu0 %v2381
    %2504 = vmatpush2.bf16.msra.mxu0 %v2380
    %2505 = vmatprep.subr.bf16.mxu0 %v2377
    %2506 = vmatpush2.bf16.msra.mxu0 %v2376
    %2507 = vmatprep.subr.bf16.mxu0 %v2373
    %2508 = vmatpush2.bf16.msra.mxu0 %v2372
    %2509 = vmatprep.subr.bf16.mxu0 %v2369
    %2510 = vmatpush2.bf16.msra.mxu0 %v2368
    %2511 = vmatprep.subr.bf16.mxu0 %v2365
    %2512 = vmatpush2.bf16.msra.mxu0 %v2364
    %2513 = vmatprep.subr.bf16.mxu0 %v2361
    %2514 = vmatpush2.bf16.msra.mxu0 %v2360
    %2515 = vmatprep.subr.bf16.mxu0 %v2357
    %2516 = vmatpush2.bf16.msra.mxu0 %v2356
    %2517 = vmatprep.subr.bf16.mxu0 %v2353
    %2518 = vmatpush2.bf16.msra.mxu0 %v2352
    %2519 = vmatprep.mubr.bf16.mxu0 %v2123
    %2520 = vmatmul.mubr.bf16.gmra.mxu0 %v2122
    %v2521 = vpop.f32.mrf.mxu0
    %v2522 = vadd.f32 %v116, %v2521
    %v2523 = vpop.f32.mrf.mxu0
    %v2524 = vadd.f32 %v120, %v2523
    %v2525 = vpop.f32.mrf.mxu0
    %v2526 = vpop.f32.mrf.mxu0
    %2527 = vdwg.mxu0
    %v2528 = vmul.f32 %v2481, 0.5
    %v2529 = vmul.f32 %v2483, 0.5
    %v2530 = vmul.f32 %v2522, 0.5
    %v2531 = vtanh.pop %v2528
    %v2532 = vtanh.pop %v2529
    %v2533 = vtanh.pop %v2530
    %v2534 = vmul.f32 %v2531, 0.5
    %v2535 = vmul.f32 %v2532, 0.5
    %v2536 = vmul.f32 %v2533, 0.5
    %v2537 = vadd.f32 %v2534, 0.5
    %v2538 = vadd.f32 %v2535, 0.5
    %v2539 = vadd.f32 %v2536, 0.5
    %v2540 = vtanh.pop %v2524
    %v2541 = vmul.f32 %v2538, %v1735
    %v2542 = vmul.f32 %v2537, %v2540
    %v2543 = vadd.f32 %v2541, %v2542
    %v2544 = vtanh.pop %v2543
    %v2545 = vmul.f32 %v2539, %v2544
    %v2546 = vpack.c.bf16 %v2545, %v2545
    %2547 = vst [vmem:[#allocation2 + $0x4] sm:$0xf] %v2546
    %s2548 = scalar_lea.vmem %s0, 24
    %v2549 = vld [vmem:[%s2548] sm:$0xff]
    %2551 = vset.pattern.permute.xlu0 0
    %2552 = vperm.xlu0 %2551, %v2549
    %v2553 = vpop.permute.xlu0 %2552
    %v2555 = vmul.f32 %v2553, %v64
    %v2556 = vmul.f32 %v2553, %v68
    %v2557 = vmul.f32 %v2553, %v72
    %v2558 = vmul.f32 %v2553, %v76
    %v2559 = vadd.f32 %v2555, %v86
    %v2560 = vadd.f32 %v2556, %v90
    %v2561 = vadd.f32 %v2557, %v94
    %v2562 = vadd.f32 %v2558, %v98
    %v2563 = vld [vmem:[#allocation2] sm:$0xf]
    %v2564 = vld [vmem:[#allocation3] sm:$0xff]
    %v2565 = vld [vmem:[#allocation3 + $0x8] sm:$0xff]
    %v2566 = vld [vmem:[#allocation3 + $0x10] sm:$0xff]
    %v2567 = vld [vmem:[#allocation3 + $0x18] sm:$0xff]
    %v2568 = vld [vmem:[#allocation3 + $0x20] sm:$0xff]
    %v2569 = vld [vmem:[#allocation3 + $0x28] sm:$0xff]
    %v2570 = vld [vmem:[#allocation3 + $0x30] sm:$0xff]
    %v2571 = vld [vmem:[#allocation3 + $0x38] sm:$0xff]
    %v2572 = vld [vmem:[#allocation3 + $0x40] sm:$0xff]
    %v2573 = vld [vmem:[#allocation3 + $0x48] sm:$0xff]
    %v2574 = vld [vmem:[#allocation3 + $0x50] sm:$0xff]
    %v2575 = vld [vmem:[#allocation3 + $0x58] sm:$0xff]
    %v2576 = vld [vmem:[#allocation3 + $0x60] sm:$0xff]
    %v2577 = vld [vmem:[#allocation3 + $0x68] sm:$0xff]
    %v2578 = vld [vmem:[#allocation3 + $0x70] sm:$0xff]
    %v2579 = vld [vmem:[#allocation3 + $0x78] sm:$0xff]
    %v2580 = vld [vmem:[#allocation3 + $0x80] sm:$0xff]
    %v2581 = vld [vmem:[#allocation3 + $0x88] sm:$0xff]
    %v2582 = vld [vmem:[#allocation3 + $0x90] sm:$0xff]
    %v2583 = vld [vmem:[#allocation3 + $0x98] sm:$0xff]
    %v2584 = vld [vmem:[#allocation3 + $0xa0] sm:$0xff]
    %v2585 = vld [vmem:[#allocation3 + $0xa8] sm:$0xff]
    %v2586 = vld [vmem:[#allocation3 + $0xb0] sm:$0xff]
    %v2587 = vld [vmem:[#allocation3 + $0xb8] sm:$0xff]
    %v2588 = vld [vmem:[#allocation3 + $0xc0] sm:$0xff]
    %v2589 = vld [vmem:[#allocation3 + $0xc8] sm:$0xff]
    %v2590 = vld [vmem:[#allocation3 + $0xd0] sm:$0xff]
    %v2591 = vld [vmem:[#allocation3 + $0xd8] sm:$0xff]
    %v2592 = vld [vmem:[#allocation3 + $0xe0] sm:$0xff]
    %v2593 = vld [vmem:[#allocation3 + $0xe8] sm:$0xff]
    %v2594 = vld [vmem:[#allocation3 + $0xf0] sm:$0xff]
    %v2595 = vld [vmem:[#allocation3 + $0xf8] sm:$0xff]
    %v2628 = vunpack.c.l.b16 %v2564
    %v2629 = vunpack.c.h.b16 %v2564
    %v2630 = vunpack.c.l.b16 %v2565
    %v2631 = vunpack.c.h.b16 %v2565
    %v2632 = vunpack.c.l.b16 %v2566
    %v2633 = vunpack.c.h.b16 %v2566
    %v2634 = vunpack.c.l.b16 %v2567
    %v2635 = vunpack.c.h.b16 %v2567
    %v2636 = vunpack.c.l.b16 %v2568
    %v2637 = vunpack.c.h.b16 %v2568
    %v2638 = vunpack.c.l.b16 %v2569
    %v2639 = vunpack.c.h.b16 %v2569
    %v2640 = vunpack.c.l.b16 %v2570
    %v2641 = vunpack.c.h.b16 %v2570
    %v2642 = vunpack.c.l.b16 %v2571
    %v2643 = vunpack.c.h.b16 %v2571
    %v2644 = vunpack.c.l.b16 %v2572
    %v2645 = vunpack.c.h.b16 %v2572
    %v2646 = vunpack.c.l.b16 %v2573
    %v2647 = vunpack.c.h.b16 %v2573
    %v2648 = vunpack.c.l.b16 %v2574
    %v2649 = vunpack.c.h.b16 %v2574
    %v2650 = vunpack.c.l.b16 %v2575
    %v2651 = vunpack.c.h.b16 %v2575
    %v2652 = vunpack.c.l.b16 %v2576
    %v2653 = vunpack.c.h.b16 %v2576
    %v2654 = vunpack.c.l.b16 %v2577
    %v2655 = vunpack.c.h.b16 %v2577
    %v2656 = vunpack.c.l.b16 %v2578
    %v2657 = vunpack.c.h.b16 %v2578
    %v2658 = vunpack.c.l.b16 %v2579
    %v2659 = vunpack.c.h.b16 %v2579
    %v2660 = vunpack.c.l.b16 %v2580
    %v2661 = vunpack.c.h.b16 %v2580
    %v2662 = vunpack.c.l.b16 %v2581
    %v2663 = vunpack.c.h.b16 %v2581
    %v2664 = vunpack.c.l.b16 %v2582
    %v2665 = vunpack.c.h.b16 %v2582
    %v2666 = vunpack.c.l.b16 %v2583
    %v2667 = vunpack.c.h.b16 %v2583
    %v2668 = vunpack.c.l.b16 %v2584
    %v2669 = vunpack.c.h.b16 %v2584
    %v2670 = vunpack.c.l.b16 %v2585
    %v2671 = vunpack.c.h.b16 %v2585
    %v2672 = vunpack.c.l.b16 %v2586
    %v2673 = vunpack.c.h.b16 %v2586
    %v2674 = vunpack.c.l.b16 %v2587
    %v2675 = vunpack.c.h.b16 %v2587
    %v2676 = vunpack.c.l.b16 %v2588
    %v2677 = vunpack.c.h.b16 %v2588
    %v2678 = vunpack.c.l.b16 %v2589
    %v2679 = vunpack.c.h.b16 %v2589
    %v2680 = vunpack.c.l.b16 %v2590
    %v2681 = vunpack.c.h.b16 %v2590
    %v2682 = vunpack.c.l.b16 %v2591
    %v2683 = vunpack.c.h.b16 %v2591
    %v2684 = vunpack.c.l.b16 %v2592
    %v2685 = vunpack.c.h.b16 %v2592
    %v2686 = vunpack.c.l.b16 %v2593
    %v2687 = vunpack.c.h.b16 %v2593
    %v2688 = vunpack.c.l.b16 %v2594
    %v2689 = vunpack.c.h.b16 %v2594
    %v2690 = vunpack.c.l.b16 %v2595
    %v2691 = vunpack.c.h.b16 %v2595
    %v2692 = vpack.c.b16 %v2632, %v2628
    %v2693 = vpack.c.b16 %v2633, %v2629
    %v2694 = vpack.c.b16 %v2634, %v2630
    %v2695 = vpack.c.b16 %v2635, %v2631
    %v2696 = vpack.c.b16 %v2640, %v2636
    %v2697 = vpack.c.b16 %v2641, %v2637
    %v2698 = vpack.c.b16 %v2642, %v2638
    %v2699 = vpack.c.b16 %v2643, %v2639
    %v2700 = vpack.c.b16 %v2648, %v2644
    %v2701 = vpack.c.b16 %v2649, %v2645
    %v2702 = vpack.c.b16 %v2650, %v2646
    %v2703 = vpack.c.b16 %v2651, %v2647
    %v2704 = vpack.c.b16 %v2656, %v2652
    %v2705 = vpack.c.b16 %v2657, %v2653
    %v2706 = vpack.c.b16 %v2658, %v2654
    %v2707 = vpack.c.b16 %v2659, %v2655
    %v2708 = vpack.c.b16 %v2664, %v2660
    %v2709 = vpack.c.b16 %v2665, %v2661
    %v2710 = vpack.c.b16 %v2666, %v2662
    %v2711 = vpack.c.b16 %v2667, %v2663
    %v2712 = vpack.c.b16 %v2672, %v2668
    %v2713 = vpack.c.b16 %v2673, %v2669
    %v2714 = vpack.c.b16 %v2674, %v2670
    %v2715 = vpack.c.b16 %v2675, %v2671
    %v2716 = vpack.c.b16 %v2680, %v2676
    %v2717 = vpack.c.b16 %v2681, %v2677
    %v2718 = vpack.c.b16 %v2682, %v2678
    %v2719 = vpack.c.b16 %v2683, %v2679
    %v2720 = vpack.c.b16 %v2688, %v2684
    %v2721 = vpack.c.b16 %v2689, %v2685
    %v2722 = vpack.c.b16 %v2690, %v2686
    %v2723 = vpack.c.b16 %v2691, %v2687
    %2756 = vmatprep.subr.bf16.mxu0 %v2721
    %2757 = vmatpush1.bf16.msra.mxu0 %v2720
    %2758 = vmatprep.subr.bf16.mxu0 %v2717
    %2759 = vmatpush1.bf16.msra.mxu0 %v2716
    %2760 = vmatprep.subr.bf16.mxu0 %v2713
    %2761 = vmatpush1.bf16.msra.mxu0 %v2712
    %2762 = vmatprep.subr.bf16.mxu0 %v2709
    %2763 = vmatpush1.bf16.msra.mxu0 %v2708
    %2764 = vmatprep.subr.bf16.mxu0 %v2705
    %2765 = vmatpush1.bf16.msra.mxu0 %v2704
    %2766 = vmatprep.subr.bf16.mxu0 %v2701
    %2767 = vmatpush1.bf16.msra.mxu0 %v2700
    %2768 = vmatprep.subr.bf16.mxu0 %v2697
    %2769 = vmatpush1.bf16.msra.mxu0 %v2696
    %2770 = vmatprep.subr.bf16.mxu0 %v2693
    %2771 = vmatpush1.bf16.msra.mxu0 %v2692
    %2772 = vmatprep.subr.bf16.mxu0 0
    %2773 = vmatpush2.bf16.msra.mxu0 0
    %2774 = vmatprep.subr.bf16.mxu0 0
    %2775 = vmatpush2.bf16.msra.mxu0 0
    %2776 = vmatprep.subr.bf16.mxu0 0
    %2777 = vmatpush2.bf16.msra.mxu0 0
    %2778 = vmatprep.subr.bf16.mxu0 0
    %2779 = vmatpush2.bf16.msra.mxu0 0
    %2780 = vmatprep.subr.bf16.mxu0 0
    %2781 = vmatpush2.bf16.msra.mxu0 0
    %2782 = vmatprep.subr.bf16.mxu0 0
    %2783 = vmatpush2.bf16.msra.mxu0 0
    %2784 = vmatprep.subr.bf16.mxu0 0
    %2785 = vmatpush2.bf16.msra.mxu0 0
    %2786 = vmatprep.subr.bf16.mxu0 0
    %2787 = vmatpush2.bf16.msra.mxu0 0
    %2788 = vmatprep.mubr.bf16.mxu0 0
    %2789 = vmatmul.mubr.bf16.gmra.mxu0 %v2563
    %v2790 = vpop.f32.mrf.mxu0
    %v2791 = vadd.f32 0.0, %v2790
    %v2792 = vpop.f32.mrf.mxu0
    %v2793 = vadd.f32 0.0, %v2792
    %v2794 = vpop.f32.mrf.mxu0
    %v2795 = vpop.f32.mrf.mxu0
    %2796 = vdwg.mxu0
    %2797 = vmatprep.subr.bf16.mxu0 %v2723
    %2798 = vmatpush1.bf16.msra.mxu0 %v2722
    %2799 = vmatprep.subr.bf16.mxu0 %v2719
    %2800 = vmatpush1.bf16.msra.mxu0 %v2718
    %2801 = vmatprep.subr.bf16.mxu0 %v2715
    %2802 = vmatpush1.bf16.msra.mxu0 %v2714
    %2803 = vmatprep.subr.bf16.mxu0 %v2711
    %2804 = vmatpush1.bf16.msra.mxu0 %v2710
    %2805 = vmatprep.subr.bf16.mxu0 %v2707
    %2806 = vmatpush1.bf16.msra.mxu0 %v2706
    %2807 = vmatprep.subr.bf16.mxu0 %v2703
    %2808 = vmatpush1.bf16.msra.mxu0 %v2702
    %2809 = vmatprep.subr.bf16.mxu0 %v2699
    %2810 = vmatpush1.bf16.msra.mxu0 %v2698
    %2811 = vmatprep.subr.bf16.mxu0 %v2695
    %2812 = vmatpush1.bf16.msra.mxu0 %v2694
    %2813 = vmatprep.subr.bf16.mxu0 0
    %2814 = vmatpush2.bf16.msra.mxu0 0
    %2815 = vmatprep.subr.bf16.mxu0 0
    %2816 = vmatpush2.bf16.msra.mxu0 0
    %2817 = vmatprep.subr.bf16.mxu0 0
    %2818 = vmatpush2.bf16.msra.mxu0 0
    %2819 = vmatprep.subr.bf16.mxu0 0
    %2820 = vmatpush2.bf16.msra.mxu0 0
    %2821 = vmatprep.subr.bf16.mxu0 0
    %2822 = vmatpush2.bf16.msra.mxu0 0
    %2823 = vmatprep.subr.bf16.mxu0 0
    %2824 = vmatpush2.bf16.msra.mxu0 0
    %2825 = vmatprep.subr.bf16.mxu0 0
    %2826 = vmatpush2.bf16.msra.mxu0 0
    %2827 = vmatprep.subr.bf16.mxu0 0
    %2828 = vmatpush2.bf16.msra.mxu0 0
    %2829 = vmatprep.mubr.bf16.mxu0 0
    %2830 = vmatmul.mubr.bf16.gmra.mxu0 %v2563
    %v2831 = vpop.f32.mrf.mxu0
    %v2832 = vadd.f32 0.0, %v2831
    %v2833 = vpop.f32.mrf.mxu0
    %v2834 = vadd.f32 0.0, %v2833
    %v2835 = vpop.f32.mrf.mxu0
    %v2836 = vpop.f32.mrf.mxu0
    %2837 = vdwg.mxu0
    %v2838 = vadd.f32 %v2559, %v2791
    %v2839 = vadd.f32 %v2560, %v2793
    %v2840 = vadd.f32 %v2561, %v2832
    %v2841 = vadd.f32 %v2562, %v2834
    %v2842 = vmul.f32 %v2838, 0.5
    %v2843 = vmul.f32 %v2839, 0.5
    %v2844 = vmul.f32 %v2840, 0.5
    %v2845 = vtanh.pop %v2842
    %v2846 = vtanh.pop %v2843
    %v2847 = vtanh.pop %v2844
    %v2848 = vmul.f32 %v2845, 0.5
    %v2849 = vmul.f32 %v2846, 0.5
    %v2850 = vmul.f32 %v2847, 0.5
    %v2851 = vadd.f32 %v2848, 0.5
    %v2852 = vadd.f32 %v2849, 0.5
    %v2853 = vadd.f32 %v2850, 0.5
    %v2854 = vtanh.pop %v2841
    %v2855 = vmul.f32 %v2852, %v2049
    %v2856 = vmul.f32 %v2851, %v2854
    %v2857 = vadd.f32 %v2855, %v2856
    %v2858 = vtanh.pop %v2857
    %v2859 = vmul.f32 %v2853, %v2858
    %v2860 = vpack.c.bf16 %v2859, %v2859
    %2861 = vst [vmem:[#allocation2] sm:$0xf] %v2860
    %v2862 = vld [vmem:[#allocation2] sm:$0xff]
    %v2863 = vld [vmem:[#allocation5] sm:$0xff]
    %v2864 = vld [vmem:[#allocation5 + $0x8] sm:$0xff]
    %v2865 = vld [vmem:[#allocation5 + $0x10] sm:$0xff]
    %v2866 = vld [vmem:[#allocation5 + $0x18] sm:$0xff]
    %v2867 = vld [vmem:[#allocation5 + $0x20] sm:$0xff]
    %v2868 = vld [vmem:[#allocation5 + $0x28] sm:$0xff]
    %v2869 = vld [vmem:[#allocation5 + $0x30] sm:$0xff]
    %v2870 = vld [vmem:[#allocation5 + $0x38] sm:$0xff]
    %v2871 = vld [vmem:[#allocation5 + $0x40] sm:$0xff]
    %v2872 = vld [vmem:[#allocation5 + $0x48] sm:$0xff]
    %v2873 = vld [vmem:[#allocation5 + $0x50] sm:$0xff]
    %v2874 = vld [vmem:[#allocation5 + $0x58] sm:$0xff]
    %v2875 = vld [vmem:[#allocation5 + $0x60] sm:$0xff]
    %v2876 = vld [vmem:[#allocation5 + $0x68] sm:$0xff]
    %v2877 = vld [vmem:[#allocation5 + $0x70] sm:$0xff]
    %v2878 = vld [vmem:[#allocation5 + $0x78] sm:$0xff]
    %v2879 = vld [vmem:[#allocation5 + $0x80] sm:$0xff]
    %v2880 = vld [vmem:[#allocation5 + $0x88] sm:$0xff]
    %v2881 = vld [vmem:[#allocation5 + $0x90] sm:$0xff]
    %v2882 = vld [vmem:[#allocation5 + $0x98] sm:$0xff]
    %v2883 = vld [vmem:[#allocation5 + $0xa0] sm:$0xff]
    %v2884 = vld [vmem:[#allocation5 + $0xa8] sm:$0xff]
    %v2885 = vld [vmem:[#allocation5 + $0xb0] sm:$0xff]
    %v2886 = vld [vmem:[#allocation5 + $0xb8] sm:$0xff]
    %v2887 = vld [vmem:[#allocation5 + $0xc0] sm:$0xff]
    %v2888 = vld [vmem:[#allocation5 + $0xc8] sm:$0xff]
    %v2889 = vld [vmem:[#allocation5 + $0xd0] sm:$0xff]
    %v2890 = vld [vmem:[#allocation5 + $0xd8] sm:$0xff]
    %v2891 = vld [vmem:[#allocation5 + $0xe0] sm:$0xff]
    %v2892 = vld [vmem:[#allocation5 + $0xe8] sm:$0xff]
    %v2893 = vld [vmem:[#allocation5 + $0xf0] sm:$0xff]
    %v2894 = vld [vmem:[#allocation5 + $0xf8] sm:$0xff]
    %v2895 = vld [vmem:[#allocation5 + $0x100] sm:$0xff]
    %v2896 = vld [vmem:[#allocation5 + $0x108] sm:$0xff]
    %v2897 = vld [vmem:[#allocation5 + $0x110] sm:$0xff]
    %v2898 = vld [vmem:[#allocation5 + $0x118] sm:$0xff]
    %v2899 = vld [vmem:[#allocation5 + $0x120] sm:$0xff]
    %v2900 = vld [vmem:[#allocation5 + $0x128] sm:$0xff]
    %v2901 = vld [vmem:[#allocation5 + $0x130] sm:$0xff]
    %v2902 = vld [vmem:[#allocation5 + $0x138] sm:$0xff]
    %v2903 = vld [vmem:[#allocation5 + $0x140] sm:$0xff]
    %v2904 = vld [vmem:[#allocation5 + $0x148] sm:$0xff]
    %v2905 = vld [vmem:[#allocation5 + $0x150] sm:$0xff]
    %v2906 = vld [vmem:[#allocation5 + $0x158] sm:$0xff]
    %v2907 = vld [vmem:[#allocation5 + $0x160] sm:$0xff]
    %v2908 = vld [vmem:[#allocation5 + $0x168] sm:$0xff]
    %v2909 = vld [vmem:[#allocation5 + $0x170] sm:$0xff]
    %v2910 = vld [vmem:[#allocation5 + $0x178] sm:$0xff]
    %v2911 = vld [vmem:[#allocation5 + $0x180] sm:$0xff]
    %v2912 = vld [vmem:[#allocation5 + $0x188] sm:$0xff]
    %v2913 = vld [vmem:[#allocation5 + $0x190] sm:$0xff]
    %v2914 = vld [vmem:[#allocation5 + $0x198] sm:$0xff]
    %v2915 = vld [vmem:[#allocation5 + $0x1a0] sm:$0xff]
    %v2916 = vld [vmem:[#allocation5 + $0x1a8] sm:$0xff]
    %v2917 = vld [vmem:[#allocation5 + $0x1b0] sm:$0xff]
    %v2918 = vld [vmem:[#allocation5 + $0x1b8] sm:$0xff]
    %v2919 = vld [vmem:[#allocation5 + $0x1c0] sm:$0xff]
    %v2920 = vld [vmem:[#allocation5 + $0x1c8] sm:$0xff]
    %v2921 = vld [vmem:[#allocation5 + $0x1d0] sm:$0xff]
    %v2922 = vld [vmem:[#allocation5 + $0x1d8] sm:$0xff]
    %v2923 = vld [vmem:[#allocation5 + $0x1e0] sm:$0xff]
    %v2924 = vld [vmem:[#allocation5 + $0x1e8] sm:$0xff]
    %v2925 = vld [vmem:[#allocation5 + $0x1f0] sm:$0xff]
    %v2926 = vld [vmem:[#allocation5 + $0x1f8] sm:$0xff]
    %v2928 = vunpack.c.l.b16 %v2862
    %v2929 = vunpack.c.h.b16 %v2862
    %v2930 = vpack.c.b16 %v2928, %v2928
    %v2931 = vpack.c.b16 %v2929, %v2929
    %v2998 = vunpack.c.l.b16 %v2863
    %v2999 = vunpack.c.h.b16 %v2863
    %v3000 = vunpack.c.l.b16 %v2864
    %v3001 = vunpack.c.h.b16 %v2864
    %v3002 = vunpack.c.l.b16 %v2865
    %v3003 = vunpack.c.h.b16 %v2865
    %v3004 = vunpack.c.l.b16 %v2866
    %v3005 = vunpack.c.h.b16 %v2866
    %v3006 = vunpack.c.l.b16 %v2867
    %v3007 = vunpack.c.h.b16 %v2867
    %v3008 = vunpack.c.l.b16 %v2868
    %v3009 = vunpack.c.h.b16 %v2868
    %v3010 = vunpack.c.l.b16 %v2869
    %v3011 = vunpack.c.h.b16 %v2869
    %v3012 = vunpack.c.l.b16 %v2870
    %v3013 = vunpack.c.h.b16 %v2870
    %v3014 = vunpack.c.l.b16 %v2871
    %v3015 = vunpack.c.h.b16 %v2871
    %v3016 = vunpack.c.l.b16 %v2872
    %v3017 = vunpack.c.h.b16 %v2872
    %v3018 = vunpack.c.l.b16 %v2873
    %v3019 = vunpack.c.h.b16 %v2873
    %v3020 = vunpack.c.l.b16 %v2874
    %v3021 = vunpack.c.h.b16 %v2874
    %v3022 = vunpack.c.l.b16 %v2875
    %v3023 = vunpack.c.h.b16 %v2875
    %v3024 = vunpack.c.l.b16 %v2876
    %v3025 = vunpack.c.h.b16 %v2876
    %v3026 = vunpack.c.l.b16 %v2877
    %v3027 = vunpack.c.h.b16 %v2877
    %v3028 = vunpack.c.l.b16 %v2878
    %v3029 = vunpack.c.h.b16 %v2878
    %v3030 = vunpack.c.l.b16 %v2879
    %v3031 = vunpack.c.h.b16 %v2879
    %v3032 = vunpack.c.l.b16 %v2880
    %v3033 = vunpack.c.h.b16 %v2880
    %v3034 = vunpack.c.l.b16 %v2881
    %v3035 = vunpack.c.h.b16 %v2881
    %v3036 = vunpack.c.l.b16 %v2882
    %v3037 = vunpack.c.h.b16 %v2882
    %v3038 = vunpack.c.l.b16 %v2883
    %v3039 = vunpack.c.h.b16 %v2883
    %v3040 = vunpack.c.l.b16 %v2884
    %v3041 = vunpack.c.h.b16 %v2884
    %v3042 = vunpack.c.l.b16 %v2885
    %v3043 = vunpack.c.h.b16 %v2885
    %v3044 = vunpack.c.l.b16 %v2886
    %v3045 = vunpack.c.h.b16 %v2886
    %v3046 = vunpack.c.l.b16 %v2887
    %v3047 = vunpack.c.h.b16 %v2887
    %v3048 = vunpack.c.l.b16 %v2888
    %v3049 = vunpack.c.h.b16 %v2888
    %v3050 = vunpack.c.l.b16 %v2889
    %v3051 = vunpack.c.h.b16 %v2889
    %v3052 = vunpack.c.l.b16 %v2890
    %v3053 = vunpack.c.h.b16 %v2890
    %v3054 = vunpack.c.l.b16 %v2891
    %v3055 = vunpack.c.h.b16 %v2891
    %v3056 = vunpack.c.l.b16 %v2892
    %v3057 = vunpack.c.h.b16 %v2892
    %v3058 = vunpack.c.l.b16 %v2893
    %v3059 = vunpack.c.h.b16 %v2893
    %v3060 = vunpack.c.l.b16 %v2894
    %v3061 = vunpack.c.h.b16 %v2894
    %v3062 = vunpack.c.l.b16 %v2895
    %v3063 = vunpack.c.h.b16 %v2895
    %v3064 = vunpack.c.l.b16 %v2896
    %v3065 = vunpack.c.h.b16 %v2896
    %v3066 = vunpack.c.l.b16 %v2897
    %v3067 = vunpack.c.h.b16 %v2897
    %v3068 = vunpack.c.l.b16 %v2898
    %v3069 = vunpack.c.h.b16 %v2898
    %v3070 = vunpack.c.l.b16 %v2899
    %v3071 = vunpack.c.h.b16 %v2899
    %v3072 = vunpack.c.l.b16 %v2900
    %v3073 = vunpack.c.h.b16 %v2900
    %v3074 = vunpack.c.l.b16 %v2901
    %v3075 = vunpack.c.h.b16 %v2901
    %v3076 = vunpack.c.l.b16 %v2902
    %v3077 = vunpack.c.h.b16 %v2902
    %v3078 = vunpack.c.l.b16 %v2903
    %v3079 = vunpack.c.h.b16 %v2903
    %v3080 = vunpack.c.l.b16 %v2904
    %v3081 = vunpack.c.h.b16 %v2904
    %v3082 = vunpack.c.l.b16 %v2905
    %v3083 = vunpack.c.h.b16 %v2905
    %v3084 = vunpack.c.l.b16 %v2906
    %v3085 = vunpack.c.h.b16 %v2906
    %v3086 = vunpack.c.l.b16 %v2907
    %v3087 = vunpack.c.h.b16 %v2907
    %v3088 = vunpack.c.l.b16 %v2908
    %v3089 = vunpack.c.h.b16 %v2908
    %v3090 = vunpack.c.l.b16 %v2909
    %v3091 = vunpack.c.h.b16 %v2909
    %v3092 = vunpack.c.l.b16 %v2910
    %v3093 = vunpack.c.h.b16 %v2910
    %v3094 = vunpack.c.l.b16 %v2911
    %v3095 = vunpack.c.h.b16 %v2911
    %v3096 = vunpack.c.l.b16 %v2912
    %v3097 = vunpack.c.h.b16 %v2912
    %v3098 = vunpack.c.l.b16 %v2913
    %v3099 = vunpack.c.h.b16 %v2913
    %v3100 = vunpack.c.l.b16 %v2914
    %v3101 = vunpack.c.h.b16 %v2914
    %v3102 = vunpack.c.l.b16 %v2915
    %v3103 = vunpack.c.h.b16 %v2915
    %v3104 = vunpack.c.l.b16 %v2916
    %v3105 = vunpack.c.h.b16 %v2916
    %v3106 = vunpack.c.l.b16 %v2917
    %v3107 = vunpack.c.h.b16 %v2917
    %v3108 = vunpack.c.l.b16 %v2918
    %v3109 = vunpack.c.h.b16 %v2918
    %v3110 = vunpack.c.l.b16 %v2919
    %v3111 = vunpack.c.h.b16 %v2919
    %v3112 = vunpack.c.l.b16 %v2920
    %v3113 = vunpack.c.h.b16 %v2920
    %v3114 = vunpack.c.l.b16 %v2921
    %v3115 = vunpack.c.h.b16 %v2921
    %v3116 = vunpack.c.l.b16 %v2922
    %v3117 = vunpack.c.h.b16 %v2922
    %v3118 = vunpack.c.l.b16 %v2923
    %v3119 = vunpack.c.h.b16 %v2923
    %v3120 = vunpack.c.l.b16 %v2924
    %v3121 = vunpack.c.h.b16 %v2924
    %v3122 = vunpack.c.l.b16 %v2925
    %v3123 = vunpack.c.h.b16 %v2925
    %v3124 = vunpack.c.l.b16 %v2926
    %v3125 = vunpack.c.h.b16 %v2926
    %v3126 = vpack.c.b16 %v3002, %v2998
    %v3127 = vpack.c.b16 %v3003, %v2999
    %v3128 = vpack.c.b16 %v3004, %v3000
    %v3129 = vpack.c.b16 %v3005, %v3001
    %v3130 = vpack.c.b16 %v3010, %v3006
    %v3131 = vpack.c.b16 %v3011, %v3007
    %v3132 = vpack.c.b16 %v3012, %v3008
    %v3133 = vpack.c.b16 %v3013, %v3009
    %v3134 = vpack.c.b16 %v3018, %v3014
    %v3135 = vpack.c.b16 %v3019, %v3015
    %v3136 = vpack.c.b16 %v3020, %v3016
    %v3137 = vpack.c.b16 %v3021, %v3017
    %v3138 = vpack.c.b16 %v3026, %v3022
    %v3139 = vpack.c.b16 %v3027, %v3023
    %v3140 = vpack.c.b16 %v3028, %v3024
    %v3141 = vpack.c.b16 %v3029, %v3025
    %v3142 = vpack.c.b16 %v3034, %v3030
    %v3143 = vpack.c.b16 %v3035, %v3031
    %v3144 = vpack.c.b16 %v3036, %v3032
    %v3145 = vpack.c.b16 %v3037, %v3033
    %v3146 = vpack.c.b16 %v3042, %v3038
    %v3147 = vpack.c.b16 %v3043, %v3039
    %v3148 = vpack.c.b16 %v3044, %v3040
    %v3149 = vpack.c.b16 %v3045, %v3041
    %v3150 = vpack.c.b16 %v3050, %v3046
    %v3151 = vpack.c.b16 %v3051, %v3047
    %v3152 = vpack.c.b16 %v3052, %v3048
    %v3153 = vpack.c.b16 %v3053, %v3049
    %v3154 = vpack.c.b16 %v3058, %v3054
    %v3155 = vpack.c.b16 %v3059, %v3055
    %v3156 = vpack.c.b16 %v3060, %v3056
    %v3157 = vpack.c.b16 %v3061, %v3057
    %v3158 = vpack.c.b16 %v3066, %v3062
    %v3159 = vpack.c.b16 %v3067, %v3063
    %v3160 = vpack.c.b16 %v3068, %v3064
    %v3161 = vpack.c.b16 %v3069, %v3065
    %v3162 = vpack.c.b16 %v3074, %v3070
    %v3163 = vpack.c.b16 %v3075, %v3071
    %v3164 = vpack.c.b16 %v3076, %v3072
    %v3165 = vpack.c.b16 %v3077, %v3073
    %v3166 = vpack.c.b16 %v3082, %v3078
    %v3167 = vpack.c.b16 %v3083, %v3079
    %v3168 = vpack.c.b16 %v3084, %v3080
    %v3169 = vpack.c.b16 %v3085, %v3081
    %v3170 = vpack.c.b16 %v3090, %v3086
    %v3171 = vpack.c.b16 %v3091, %v3087
    %v3172 = vpack.c.b16 %v3092, %v3088
    %v3173 = vpack.c.b16 %v3093, %v3089
    %v3174 = vpack.c.b16 %v3098, %v3094
    %v3175 = vpack.c.b16 %v3099, %v3095
    %v3176 = vpack.c.b16 %v3100, %v3096
    %v3177 = vpack.c.b16 %v3101, %v3097
    %v3178 = vpack.c.b16 %v3106, %v3102
    %v3179 = vpack.c.b16 %v3107, %v3103
    %v3180 = vpack.c.b16 %v3108, %v3104
    %v3181 = vpack.c.b16 %v3109, %v3105
    %v3182 = vpack.c.b16 %v3114, %v3110
    %v3183 = vpack.c.b16 %v3115, %v3111
    %v3184 = vpack.c.b16 %v3116, %v3112
    %v3185 = vpack.c.b16 %v3117, %v3113
    %v3186 = vpack.c.b16 %v3122, %v3118
    %v3187 = vpack.c.b16 %v3123, %v3119
    %v3188 = vpack.c.b16 %v3124, %v3120
    %v3189 = vpack.c.b16 %v3125, %v3121
    %3254 = vmatprep.subr.bf16.mxu0 %v3155
    %3255 = vmatpush1.bf16.msra.mxu0 %v3154
    %3256 = vmatprep.subr.bf16.mxu0 %v3151
    %3257 = vmatpush1.bf16.msra.mxu0 %v3150
    %3258 = vmatprep.subr.bf16.mxu0 %v3147
    %3259 = vmatpush1.bf16.msra.mxu0 %v3146
    %3260 = vmatprep.subr.bf16.mxu0 %v3143
    %3261 = vmatpush1.bf16.msra.mxu0 %v3142
    %3262 = vmatprep.subr.bf16.mxu0 %v3139
    %3263 = vmatpush1.bf16.msra.mxu0 %v3138
    %3264 = vmatprep.subr.bf16.mxu0 %v3135
    %3265 = vmatpush1.bf16.msra.mxu0 %v3134
    %3266 = vmatprep.subr.bf16.mxu0 %v3131
    %3267 = vmatpush1.bf16.msra.mxu0 %v3130
    %3268 = vmatprep.subr.bf16.mxu0 %v3127
    %3269 = vmatpush1.bf16.msra.mxu0 %v3126
    %3270 = vmatprep.subr.bf16.mxu0 %v3187
    %3271 = vmatpush2.bf16.msra.mxu0 %v3186
    %3272 = vmatprep.subr.bf16.mxu0 %v3183
    %3273 = vmatpush2.bf16.msra.mxu0 %v3182
    %3274 = vmatprep.subr.bf16.mxu0 %v3179
    %3275 = vmatpush2.bf16.msra.mxu0 %v3178
    %3276 = vmatprep.subr.bf16.mxu0 %v3175
    %3277 = vmatpush2.bf16.msra.mxu0 %v3174
    %3278 = vmatprep.subr.bf16.mxu0 %v3171
    %3279 = vmatpush2.bf16.msra.mxu0 %v3170
    %3280 = vmatprep.subr.bf16.mxu0 %v3167
    %3281 = vmatpush2.bf16.msra.mxu0 %v3166
    %3282 = vmatprep.subr.bf16.mxu0 %v3163
    %3283 = vmatpush2.bf16.msra.mxu0 %v3162
    %3284 = vmatprep.subr.bf16.mxu0 %v3159
    %3285 = vmatpush2.bf16.msra.mxu0 %v3158
    %3286 = vmatprep.mubr.bf16.mxu0 %v2931
    %3287 = vmatmul.mubr.bf16.gmra.mxu0 %v2930
    %v3288 = vpop.f32.mrf.mxu0
    %v3289 = vadd.f32 %v108, %v3288
    %v3290 = vpop.f32.mrf.mxu0
    %v3291 = vadd.f32 %v112, %v3290
    %v3292 = vpop.f32.mrf.mxu0
    %v3293 = vpop.f32.mrf.mxu0
    %3294 = vdwg.mxu0
    %3295 = vmatprep.subr.bf16.mxu0 %v3157
    %3296 = vmatpush1.bf16.msra.mxu0 %v3156
    %3297 = vmatprep.subr.bf16.mxu0 %v3153
    %3298 = vmatpush1.bf16.msra.mxu0 %v3152
    %3299 = vmatprep.subr.bf16.mxu0 %v3149
    %3300 = vmatpush1.bf16.msra.mxu0 %v3148
    %3301 = vmatprep.subr.bf16.mxu0 %v3145
    %3302 = vmatpush1.bf16.msra.mxu0 %v3144
    %3303 = vmatprep.subr.bf16.mxu0 %v3141
    %3304 = vmatpush1.bf16.msra.mxu0 %v3140
    %3305 = vmatprep.subr.bf16.mxu0 %v3137
    %3306 = vmatpush1.bf16.msra.mxu0 %v3136
    %3307 = vmatprep.subr.bf16.mxu0 %v3133
    %3308 = vmatpush1.bf16.msra.mxu0 %v3132
    %3309 = vmatprep.subr.bf16.mxu0 %v3129
    %3310 = vmatpush1.bf16.msra.mxu0 %v3128
    %3311 = vmatprep.subr.bf16.mxu0 %v3189
    %3312 = vmatpush2.bf16.msra.mxu0 %v3188
    %3313 = vmatprep.subr.bf16.mxu0 %v3185
    %3314 = vmatpush2.bf16.msra.mxu0 %v3184
    %3315 = vmatprep.subr.bf16.mxu0 %v3181
    %3316 = vmatpush2.bf16.msra.mxu0 %v3180
    %3317 = vmatprep.subr.bf16.mxu0 %v3177
    %3318 = vmatpush2.bf16.msra.mxu0 %v3176
    %3319 = vmatprep.subr.bf16.mxu0 %v3173
    %3320 = vmatpush2.bf16.msra.mxu0 %v3172
    %3321 = vmatprep.subr.bf16.mxu0 %v3169
    %3322 = vmatpush2.bf16.msra.mxu0 %v3168
    %3323 = vmatprep.subr.bf16.mxu0 %v3165
    %3324 = vmatpush2.bf16.msra.mxu0 %v3164
    %3325 = vmatprep.subr.bf16.mxu0 %v3161
    %3326 = vmatpush2.bf16.msra.mxu0 %v3160
    %3327 = vmatprep.mubr.bf16.mxu0 %v2931
    %3328 = vmatmul.mubr.bf16.gmra.mxu0 %v2930
    %v3329 = vpop.f32.mrf.mxu0
    %v3330 = vadd.f32 %v116, %v3329
    %v3331 = vpop.f32.mrf.mxu0
    %v3332 = vadd.f32 %v120, %v3331
    %v3333 = vpop.f32.mrf.mxu0
    %v3334 = vpop.f32.mrf.mxu0
    %3335 = vdwg.mxu0
    %v3336 = vmul.f32 %v3289, 0.5
    %v3337 = vmul.f32 %v3291, 0.5
    %v3338 = vmul.f32 %v3330, 0.5
    %v3339 = vtanh.pop %v3336
    %v3340 = vtanh.pop %v3337
    %v3341 = vtanh.pop %v3338
    %v3342 = vmul.f32 %v3339, 0.5
    %v3343 = vmul.f32 %v3340, 0.5
    %v3344 = vmul.f32 %v3341, 0.5
    %v3345 = vadd.f32 %v3342, 0.5
    %v3346 = vadd.f32 %v3343, 0.5
    %v3347 = vadd.f32 %v3344, 0.5
    %v3348 = vtanh.pop %v3332
    %v3349 = vmul.f32 %v3346, %v2543
    %v3350 = vmul.f32 %v3345, %v3348
    %v3351 = vadd.f32 %v3349, %v3350
    %v3352 = vtanh.pop %v3351
    %v3353 = vmul.f32 %v3347, %v3352
    %v3354 = vpack.c.bf16 %v3353, %v3353
    %3355 = vst [vmem:[#allocation2 + $0x4] sm:$0xf] %v3354
    %s3356 = scalar_lea.vmem %s0, 32
    %v3357 = vld [vmem:[%s3356] sm:$0xff]
    %3359 = vset.pattern.permute.xlu0 0
    %3360 = vperm.xlu0 %3359, %v3357
    %v3361 = vpop.permute.xlu0 %3360
    %v3363 = vmul.f32 %v3361, %v64
    %v3364 = vmul.f32 %v3361, %v68
    %v3365 = vmul.f32 %v3361, %v72
    %v3366 = vmul.f32 %v3361, %v76
    %v3367 = vadd.f32 %v3363, %v86
    %v3368 = vadd.f32 %v3364, %v90
    %v3369 = vadd.f32 %v3365, %v94
    %v3370 = vadd.f32 %v3366, %v98
    %v3371 = vld [vmem:[#allocation2] sm:$0xf]
    %v3372 = vld [vmem:[#allocation3] sm:$0xff]
    %v3373 = vld [vmem:[#allocation3 + $0x8] sm:$0xff]
    %v3374 = vld [vmem:[#allocation3 + $0x10] sm:$0xff]
    %v3375 = vld [vmem:[#allocation3 + $0x18] sm:$0xff]
    %v3376 = vld [vmem:[#allocation3 + $0x20] sm:$0xff]
    %v3377 = vld [vmem:[#allocation3 + $0x28] sm:$0xff]
    %v3378 = vld [vmem:[#allocation3 + $0x30] sm:$0xff]
    %v3379 = vld [vmem:[#allocation3 + $0x38] sm:$0xff]
    %v3380 = vld [vmem:[#allocation3 + $0x40] sm:$0xff]
    %v3381 = vld [vmem:[#allocation3 + $0x48] sm:$0xff]
    %v3382 = vld [vmem:[#allocation3 + $0x50] sm:$0xff]
    %v3383 = vld [vmem:[#allocation3 + $0x58] sm:$0xff]
    %v3384 = vld [vmem:[#allocation3 + $0x60] sm:$0xff]
    %v3385 = vld [vmem:[#allocation3 + $0x68] sm:$0xff]
    %v3386 = vld [vmem:[#allocation3 + $0x70] sm:$0xff]
    %v3387 = vld [vmem:[#allocation3 + $0x78] sm:$0xff]
    %v3388 = vld [vmem:[#allocation3 + $0x80] sm:$0xff]
    %v3389 = vld [vmem:[#allocation3 + $0x88] sm:$0xff]
    %v3390 = vld [vmem:[#allocation3 + $0x90] sm:$0xff]
    %v3391 = vld [vmem:[#allocation3 + $0x98] sm:$0xff]
    %v3392 = vld [vmem:[#allocation3 + $0xa0] sm:$0xff]
    %v3393 = vld [vmem:[#allocation3 + $0xa8] sm:$0xff]
    %v3394 = vld [vmem:[#allocation3 + $0xb0] sm:$0xff]
    %v3395 = vld [vmem:[#allocation3 + $0xb8] sm:$0xff]
    %v3396 = vld [vmem:[#allocation3 + $0xc0] sm:$0xff]
    %v3397 = vld [vmem:[#allocation3 + $0xc8] sm:$0xff]
    %v3398 = vld [vmem:[#allocation3 + $0xd0] sm:$0xff]
    %v3399 = vld [vmem:[#allocation3 + $0xd8] sm:$0xff]
    %v3400 = vld [vmem:[#allocation3 + $0xe0] sm:$0xff]
    %v3401 = vld [vmem:[#allocation3 + $0xe8] sm:$0xff]
    %v3402 = vld [vmem:[#allocation3 + $0xf0] sm:$0xff]
    %v3403 = vld [vmem:[#allocation3 + $0xf8] sm:$0xff]
    %v3436 = vunpack.c.l.b16 %v3372
    %v3437 = vunpack.c.h.b16 %v3372
    %v3438 = vunpack.c.l.b16 %v3373
    %v3439 = vunpack.c.h.b16 %v3373
    %v3440 = vunpack.c.l.b16 %v3374
    %v3441 = vunpack.c.h.b16 %v3374
    %v3442 = vunpack.c.l.b16 %v3375
    %v3443 = vunpack.c.h.b16 %v3375
    %v3444 = vunpack.c.l.b16 %v3376
    %v3445 = vunpack.c.h.b16 %v3376
    %v3446 = vunpack.c.l.b16 %v3377
    %v3447 = vunpack.c.h.b16 %v3377
    %v3448 = vunpack.c.l.b16 %v3378
    %v3449 = vunpack.c.h.b16 %v3378
    %v3450 = vunpack.c.l.b16 %v3379
    %v3451 = vunpack.c.h.b16 %v3379
    %v3452 = vunpack.c.l.b16 %v3380
    %v3453 = vunpack.c.h.b16 %v3380
    %v3454 = vunpack.c.l.b16 %v3381
    %v3455 = vunpack.c.h.b16 %v3381
    %v3456 = vunpack.c.l.b16 %v3382
    %v3457 = vunpack.c.h.b16 %v3382
    %v3458 = vunpack.c.l.b16 %v3383
    %v3459 = vunpack.c.h.b16 %v3383
    %v3460 = vunpack.c.l.b16 %v3384
    %v3461 = vunpack.c.h.b16 %v3384
    %v3462 = vunpack.c.l.b16 %v3385
    %v3463 = vunpack.c.h.b16 %v3385
    %v3464 = vunpack.c.l.b16 %v3386
    %v3465 = vunpack.c.h.b16 %v3386
    %v3466 = vunpack.c.l.b16 %v3387
    %v3467 = vunpack.c.h.b16 %v3387
    %v3468 = vunpack.c.l.b16 %v3388
    %v3469 = vunpack.c.h.b16 %v3388
    %v3470 = vunpack.c.l.b16 %v3389
    %v3471 = vunpack.c.h.b16 %v3389
    %v3472 = vunpack.c.l.b16 %v3390
    %v3473 = vunpack.c.h.b16 %v3390
    %v3474 = vunpack.c.l.b16 %v3391
    %v3475 = vunpack.c.h.b16 %v3391
    %v3476 = vunpack.c.l.b16 %v3392
    %v3477 = vunpack.c.h.b16 %v3392
    %v3478 = vunpack.c.l.b16 %v3393
    %v3479 = vunpack.c.h.b16 %v3393
    %v3480 = vunpack.c.l.b16 %v3394
    %v3481 = vunpack.c.h.b16 %v3394
    %v3482 = vunpack.c.l.b16 %v3395
    %v3483 = vunpack.c.h.b16 %v3395
    %v3484 = vunpack.c.l.b16 %v3396
    %v3485 = vunpack.c.h.b16 %v3396
    %v3486 = vunpack.c.l.b16 %v3397
    %v3487 = vunpack.c.h.b16 %v3397
    %v3488 = vunpack.c.l.b16 %v3398
    %v3489 = vunpack.c.h.b16 %v3398
    %v3490 = vunpack.c.l.b16 %v3399
    %v3491 = vunpack.c.h.b16 %v3399
    %v3492 = vunpack.c.l.b16 %v3400
    %v3493 = vunpack.c.h.b16 %v3400
    %v3494 = vunpack.c.l.b16 %v3401
    %v3495 = vunpack.c.h.b16 %v3401
    %v3496 = vunpack.c.l.b16 %v3402
    %v3497 = vunpack.c.h.b16 %v3402
    %v3498 = vunpack.c.l.b16 %v3403
    %v3499 = vunpack.c.h.b16 %v3403
    %v3500 = vpack.c.b16 %v3440, %v3436
    %v3501 = vpack.c.b16 %v3441, %v3437
    %v3502 = vpack.c.b16 %v3442, %v3438
    %v3503 = vpack.c.b16 %v3443, %v3439
    %v3504 = vpack.c.b16 %v3448, %v3444
    %v3505 = vpack.c.b16 %v3449, %v3445
    %v3506 = vpack.c.b16 %v3450, %v3446
    %v3507 = vpack.c.b16 %v3451, %v3447
    %v3508 = vpack.c.b16 %v3456, %v3452
    %v3509 = vpack.c.b16 %v3457, %v3453
    %v3510 = vpack.c.b16 %v3458, %v3454
    %v3511 = vpack.c.b16 %v3459, %v3455
    %v3512 = vpack.c.b16 %v3464, %v3460
    %v3513 = vpack.c.b16 %v3465, %v3461
    %v3514 = vpack.c.b16 %v3466, %v3462
    %v3515 = vpack.c.b16 %v3467, %v3463
    %v3516 = vpack.c.b16 %v3472, %v3468
    %v3517 = vpack.c.b16 %v3473, %v3469
    %v3518 = vpack.c.b16 %v3474, %v3470
    %v3519 = vpack.c.b16 %v3475, %v3471
    %v3520 = vpack.c.b16 %v3480, %v3476
    %v3521 = vpack.c.b16 %v3481, %v3477
    %v3522 = vpack.c.b16 %v3482, %v3478
    %v3523 = vpack.c.b16 %v3483, %v3479
    %v3524 = vpack.c.b16 %v3488, %v3484
    %v3525 = vpack.c.b16 %v3489, %v3485
    %v3526 = vpack.c.b16 %v3490, %v3486
    %v3527 = vpack.c.b16 %v3491, %v3487
    %v3528 = vpack.c.b16 %v3496, %v3492
    %v3529 = vpack.c.b16 %v3497, %v3493
    %v3530 = vpack.c.b16 %v3498, %v3494
    %v3531 = vpack.c.b16 %v3499, %v3495
    %3564 = vmatprep.subr.bf16.mxu0 %v3529
    %3565 = vmatpush1.bf16.msra.mxu0 %v3528
    %3566 = vmatprep.subr.bf16.mxu0 %v3525
    %3567 = vmatpush1.bf16.msra.mxu0 %v3524
    %3568 = vmatprep.subr.bf16.mxu0 %v3521
    %3569 = vmatpush1.bf16.msra.mxu0 %v3520
    %3570 = vmatprep.subr.bf16.mxu0 %v3517
    %3571 = vmatpush1.bf16.msra.mxu0 %v3516
    %3572 = vmatprep.subr.bf16.mxu0 %v3513
    %3573 = vmatpush1.bf16.msra.mxu0 %v3512
    %3574 = vmatprep.subr.bf16.mxu0 %v3509
    %3575 = vmatpush1.bf16.msra.mxu0 %v3508
    %3576 = vmatprep.subr.bf16.mxu0 %v3505
    %3577 = vmatpush1.bf16.msra.mxu0 %v3504
    %3578 = vmatprep.subr.bf16.mxu0 %v3501
    %3579 = vmatpush1.bf16.msra.mxu0 %v3500
    %3580 = vmatprep.subr.bf16.mxu0 0
    %3581 = vmatpush2.bf16.msra.mxu0 0
    %3582 = vmatprep.subr.bf16.mxu0 0
    %3583 = vmatpush2.bf16.msra.mxu0 0
    %3584 = vmatprep.subr.bf16.mxu0 0
    %3585 = vmatpush2.bf16.msra.mxu0 0
    %3586 = vmatprep.subr.bf16.mxu0 0
    %3587 = vmatpush2.bf16.msra.mxu0 0
    %3588 = vmatprep.subr.bf16.mxu0 0
    %3589 = vmatpush2.bf16.msra.mxu0 0
    %3590 = vmatprep.subr.bf16.mxu0 0
    %3591 = vmatpush2.bf16.msra.mxu0 0
    %3592 = vmatprep.subr.bf16.mxu0 0
    %3593 = vmatpush2.bf16.msra.mxu0 0
    %3594 = vmatprep.subr.bf16.mxu0 0
    %3595 = vmatpush2.bf16.msra.mxu0 0
    %3596 = vmatprep.mubr.bf16.mxu0 0
    %3597 = vmatmul.mubr.bf16.gmra.mxu0 %v3371
    %v3598 = vpop.f32.mrf.mxu0
    %v3599 = vadd.f32 0.0, %v3598
    %v3600 = vpop.f32.mrf.mxu0
    %v3601 = vadd.f32 0.0, %v3600
    %v3602 = vpop.f32.mrf.mxu0
    %v3603 = vpop.f32.mrf.mxu0
    %3604 = vdwg.mxu0
    %3605 = vmatprep.subr.bf16.mxu0 %v3531
    %3606 = vmatpush1.bf16.msra.mxu0 %v3530
    %3607 = vmatprep.subr.bf16.mxu0 %v3527
    %3608 = vmatpush1.bf16.msra.mxu0 %v3526
    %3609 = vmatprep.subr.bf16.mxu0 %v3523
    %3610 = vmatpush1.bf16.msra.mxu0 %v3522
    %3611 = vmatprep.subr.bf16.mxu0 %v3519
    %3612 = vmatpush1.bf16.msra.mxu0 %v3518
    %3613 = vmatprep.subr.bf16.mxu0 %v3515
    %3614 = vmatpush1.bf16.msra.mxu0 %v3514
    %3615 = vmatprep.subr.bf16.mxu0 %v3511
    %3616 = vmatpush1.bf16.msra.mxu0 %v3510
    %3617 = vmatprep.subr.bf16.mxu0 %v3507
    %3618 = vmatpush1.bf16.msra.mxu0 %v3506
    %3619 = vmatprep.subr.bf16.mxu0 %v3503
    %3620 = vmatpush1.bf16.msra.mxu0 %v3502
    %3621 = vmatprep.subr.bf16.mxu0 0
    %3622 = vmatpush2.bf16.msra.mxu0 0
    %3623 = vmatprep.subr.bf16.mxu0 0
    %3624 = vmatpush2.bf16.msra.mxu0 0
    %3625 = vmatprep.subr.bf16.mxu0 0
    %3626 = vmatpush2.bf16.msra.mxu0 0
    %3627 = vmatprep.subr.bf16.mxu0 0
    %3628 = vmatpush2.bf16.msra.mxu0 0
    %3629 = vmatprep.subr.bf16.mxu0 0
    %3630 = vmatpush2.bf16.msra.mxu0 0
    %3631 = vmatprep.subr.bf16.mxu0 0
    %3632 = vmatpush2.bf16.msra.mxu0 0
    %3633 = vmatprep.subr.bf16.mxu0 0
    %3634 = vmatpush2.bf16.msra.mxu0 0
    %3635 = vmatprep.subr.bf16.mxu0 0
    %3636 = vmatpush2.bf16.msra.mxu0 0
    %3637 = vmatprep.mubr.bf16.mxu0 0
    %3638 = vmatmul.mubr.bf16.gmra.mxu0 %v3371
    %v3639 = vpop.f32.mrf.mxu0
    %v3640 = vadd.f32 0.0, %v3639
    %v3641 = vpop.f32.mrf.mxu0
    %v3642 = vadd.f32 0.0, %v3641
    %v3643 = vpop.f32.mrf.mxu0
    %v3644 = vpop.f32.mrf.mxu0
    %3645 = vdwg.mxu0
    %v3646 = vadd.f32 %v3367, %v3599
    %v3647 = vadd.f32 %v3368, %v3601
    %v3648 = vadd.f32 %v3369, %v3640
    %v3649 = vadd.f32 %v3370, %v3642
    %v3650 = vmul.f32 %v3646, 0.5
    %v3651 = vmul.f32 %v3647, 0.5
    %v3652 = vmul.f32 %v3648, 0.5
    %v3653 = vtanh.pop %v3650
    %v3654 = vtanh.pop %v3651
    %v3655 = vtanh.pop %v3652
    %v3656 = vmul.f32 %v3653, 0.5
    %v3657 = vmul.f32 %v3654, 0.5
    %v3658 = vmul.f32 %v3655, 0.5
    %v3659 = vadd.f32 %v3656, 0.5
    %v3660 = vadd.f32 %v3657, 0.5
    %v3661 = vadd.f32 %v3658, 0.5
    %v3662 = vtanh.pop %v3649
    %v3663 = vmul.f32 %v3660, %v2857
    %v3664 = vmul.f32 %v3659, %v3662
    %v3665 = vadd.f32 %v3663, %v3664
    %v3666 = vtanh.pop %v3665
    %v3667 = vmul.f32 %v3661, %v3666
    %v3668 = vpack.c.bf16 %v3667, %v3667
    %3669 = vst [vmem:[#allocation2] sm:$0xf] %v3668
    %v3670 = vld [vmem:[#allocation2] sm:$0xff]
    %v3671 = vld [vmem:[#allocation5] sm:$0xff]
    %v3672 = vld [vmem:[#allocation5 + $0x8] sm:$0xff]
    %v3673 = vld [vmem:[#allocation5 + $0x10] sm:$0xff]
    %v3674 = vld [vmem:[#allocation5 + $0x18] sm:$0xff]
    %v3675 = vld [vmem:[#allocation5 + $0x20] sm:$0xff]
    %v3676 = vld [vmem:[#allocation5 + $0x28] sm:$0xff]
    %v3677 = vld [vmem:[#allocation5 + $0x30] sm:$0xff]
    %v3678 = vld [vmem:[#allocation5 + $0x38] sm:$0xff]
    %v3679 = vld [vmem:[#allocation5 + $0x40] sm:$0xff]
    %v3680 = vld [vmem:[#allocation5 + $0x48] sm:$0xff]
    %v3681 = vld [vmem:[#allocation5 + $0x50] sm:$0xff]
    %v3682 = vld [vmem:[#allocation5 + $0x58] sm:$0xff]
    %v3683 = vld [vmem:[#allocation5 + $0x60] sm:$0xff]
    %v3684 = vld [vmem:[#allocation5 + $0x68] sm:$0xff]
    %v3685 = vld [vmem:[#allocation5 + $0x70] sm:$0xff]
    %v3686 = vld [vmem:[#allocation5 + $0x78] sm:$0xff]
    %v3687 = vld [vmem:[#allocation5 + $0x80] sm:$0xff]
    %v3688 = vld [vmem:[#allocation5 + $0x88] sm:$0xff]
    %v3689 = vld [vmem:[#allocation5 + $0x90] sm:$0xff]
    %v3690 = vld [vmem:[#allocation5 + $0x98] sm:$0xff]
    %v3691 = vld [vmem:[#allocation5 + $0xa0] sm:$0xff]
    %v3692 = vld [vmem:[#allocation5 + $0xa8] sm:$0xff]
    %v3693 = vld [vmem:[#allocation5 + $0xb0] sm:$0xff]
    %v3694 = vld [vmem:[#allocation5 + $0xb8] sm:$0xff]
    %v3695 = vld [vmem:[#allocation5 + $0xc0] sm:$0xff]
    %v3696 = vld [vmem:[#allocation5 + $0xc8] sm:$0xff]
    %v3697 = vld [vmem:[#allocation5 + $0xd0] sm:$0xff]
    %v3698 = vld [vmem:[#allocation5 + $0xd8] sm:$0xff]
    %v3699 = vld [vmem:[#allocation5 + $0xe0] sm:$0xff]
    %v3700 = vld [vmem:[#allocation5 + $0xe8] sm:$0xff]
    %v3701 = vld [vmem:[#allocation5 + $0xf0] sm:$0xff]
    %v3702 = vld [vmem:[#allocation5 + $0xf8] sm:$0xff]
    %v3703 = vld [vmem:[#allocation5 + $0x100] sm:$0xff]
    %v3704 = vld [vmem:[#allocation5 + $0x108] sm:$0xff]
    %v3705 = vld [vmem:[#allocation5 + $0x110] sm:$0xff]
    %v3706 = vld [vmem:[#allocation5 + $0x118] sm:$0xff]
    %v3707 = vld [vmem:[#allocation5 + $0x120] sm:$0xff]
    %v3708 = vld [vmem:[#allocation5 + $0x128] sm:$0xff]
    %v3709 = vld [vmem:[#allocation5 + $0x130] sm:$0xff]
    %v3710 = vld [vmem:[#allocation5 + $0x138] sm:$0xff]
    %v3711 = vld [vmem:[#allocation5 + $0x140] sm:$0xff]
    %v3712 = vld [vmem:[#allocation5 + $0x148] sm:$0xff]
    %v3713 = vld [vmem:[#allocation5 + $0x150] sm:$0xff]
    %v3714 = vld [vmem:[#allocation5 + $0x158] sm:$0xff]
    %v3715 = vld [vmem:[#allocation5 + $0x160] sm:$0xff]
    %v3716 = vld [vmem:[#allocation5 + $0x168] sm:$0xff]
    %v3717 = vld [vmem:[#allocation5 + $0x170] sm:$0xff]
    %v3718 = vld [vmem:[#allocation5 + $0x178] sm:$0xff]
    %v3719 = vld [vmem:[#allocation5 + $0x180] sm:$0xff]
    %v3720 = vld [vmem:[#allocation5 + $0x188] sm:$0xff]
    %v3721 = vld [vmem:[#allocation5 + $0x190] sm:$0xff]
    %v3722 = vld [vmem:[#allocation5 + $0x198] sm:$0xff]
    %v3723 = vld [vmem:[#allocation5 + $0x1a0] sm:$0xff]
    %v3724 = vld [vmem:[#allocation5 + $0x1a8] sm:$0xff]
    %v3725 = vld [vmem:[#allocation5 + $0x1b0] sm:$0xff]
    %v3726 = vld [vmem:[#allocation5 + $0x1b8] sm:$0xff]
    %v3727 = vld [vmem:[#allocation5 + $0x1c0] sm:$0xff]
    %v3728 = vld [vmem:[#allocation5 + $0x1c8] sm:$0xff]
    %v3729 = vld [vmem:[#allocation5 + $0x1d0] sm:$0xff]
    %v3730 = vld [vmem:[#allocation5 + $0x1d8] sm:$0xff]
    %v3731 = vld [vmem:[#allocation5 + $0x1e0] sm:$0xff]
    %v3732 = vld [vmem:[#allocation5 + $0x1e8] sm:$0xff]
    %v3733 = vld [vmem:[#allocation5 + $0x1f0] sm:$0xff]
    %v3734 = vld [vmem:[#allocation5 + $0x1f8] sm:$0xff]
    %v3736 = vunpack.c.l.b16 %v3670
    %v3737 = vunpack.c.h.b16 %v3670
    %v3738 = vpack.c.b16 %v3736, %v3736
    %v3739 = vpack.c.b16 %v3737, %v3737
    %v3806 = vunpack.c.l.b16 %v3671
    %v3807 = vunpack.c.h.b16 %v3671
    %v3808 = vunpack.c.l.b16 %v3672
    %v3809 = vunpack.c.h.b16 %v3672
    %v3810 = vunpack.c.l.b16 %v3673
    %v3811 = vunpack.c.h.b16 %v3673
    %v3812 = vunpack.c.l.b16 %v3674
    %v3813 = vunpack.c.h.b16 %v3674
    %v3814 = vunpack.c.l.b16 %v3675
    %v3815 = vunpack.c.h.b16 %v3675
    %v3816 = vunpack.c.l.b16 %v3676
    %v3817 = vunpack.c.h.b16 %v3676
    %v3818 = vunpack.c.l.b16 %v3677
    %v3819 = vunpack.c.h.b16 %v3677
    %v3820 = vunpack.c.l.b16 %v3678
    %v3821 = vunpack.c.h.b16 %v3678
    %v3822 = vunpack.c.l.b16 %v3679
    %v3823 = vunpack.c.h.b16 %v3679
    %v3824 = vunpack.c.l.b16 %v3680
    %v3825 = vunpack.c.h.b16 %v3680
    %v3826 = vunpack.c.l.b16 %v3681
    %v3827 = vunpack.c.h.b16 %v3681
    %v3828 = vunpack.c.l.b16 %v3682
    %v3829 = vunpack.c.h.b16 %v3682
    %v3830 = vunpack.c.l.b16 %v3683
    %v3831 = vunpack.c.h.b16 %v3683
    %v3832 = vunpack.c.l.b16 %v3684
    %v3833 = vunpack.c.h.b16 %v3684
    %v3834 = vunpack.c.l.b16 %v3685
    %v3835 = vunpack.c.h.b16 %v3685
    %v3836 = vunpack.c.l.b16 %v3686
    %v3837 = vunpack.c.h.b16 %v3686
    %v3838 = vunpack.c.l.b16 %v3687
    %v3839 = vunpack.c.h.b16 %v3687
    %v3840 = vunpack.c.l.b16 %v3688
    %v3841 = vunpack.c.h.b16 %v3688
    %v3842 = vunpack.c.l.b16 %v3689
    %v3843 = vunpack.c.h.b16 %v3689
    %v3844 = vunpack.c.l.b16 %v3690
    %v3845 = vunpack.c.h.b16 %v3690
    %v3846 = vunpack.c.l.b16 %v3691
    %v3847 = vunpack.c.h.b16 %v3691
    %v3848 = vunpack.c.l.b16 %v3692
    %v3849 = vunpack.c.h.b16 %v3692
    %v3850 = vunpack.c.l.b16 %v3693
    %v3851 = vunpack.c.h.b16 %v3693
    %v3852 = vunpack.c.l.b16 %v3694
    %v3853 = vunpack.c.h.b16 %v3694
    %v3854 = vunpack.c.l.b16 %v3695
    %v3855 = vunpack.c.h.b16 %v3695
    %v3856 = vunpack.c.l.b16 %v3696
    %v3857 = vunpack.c.h.b16 %v3696
    %v3858 = vunpack.c.l.b16 %v3697
    %v3859 = vunpack.c.h.b16 %v3697
    %v3860 = vunpack.c.l.b16 %v3698
    %v3861 = vunpack.c.h.b16 %v3698
    %v3862 = vunpack.c.l.b16 %v3699
    %v3863 = vunpack.c.h.b16 %v3699
    %v3864 = vunpack.c.l.b16 %v3700
    %v3865 = vunpack.c.h.b16 %v3700
    %v3866 = vunpack.c.l.b16 %v3701
    %v3867 = vunpack.c.h.b16 %v3701
    %v3868 = vunpack.c.l.b16 %v3702
    %v3869 = vunpack.c.h.b16 %v3702
    %v3870 = vunpack.c.l.b16 %v3703
    %v3871 = vunpack.c.h.b16 %v3703
    %v3872 = vunpack.c.l.b16 %v3704
    %v3873 = vunpack.c.h.b16 %v3704
    %v3874 = vunpack.c.l.b16 %v3705
    %v3875 = vunpack.c.h.b16 %v3705
    %v3876 = vunpack.c.l.b16 %v3706
    %v3877 = vunpack.c.h.b16 %v3706
    %v3878 = vunpack.c.l.b16 %v3707
    %v3879 = vunpack.c.h.b16 %v3707
    %v3880 = vunpack.c.l.b16 %v3708
    %v3881 = vunpack.c.h.b16 %v3708
    %v3882 = vunpack.c.l.b16 %v3709
    %v3883 = vunpack.c.h.b16 %v3709
    %v3884 = vunpack.c.l.b16 %v3710
    %v3885 = vunpack.c.h.b16 %v3710
    %v3886 = vunpack.c.l.b16 %v3711
    %v3887 = vunpack.c.h.b16 %v3711
    %v3888 = vunpack.c.l.b16 %v3712
    %v3889 = vunpack.c.h.b16 %v3712
    %v3890 = vunpack.c.l.b16 %v3713
    %v3891 = vunpack.c.h.b16 %v3713
    %v3892 = vunpack.c.l.b16 %v3714
    %v3893 = vunpack.c.h.b16 %v3714
    %v3894 = vunpack.c.l.b16 %v3715
    %v3895 = vunpack.c.h.b16 %v3715
    %v3896 = vunpack.c.l.b16 %v3716
    %v3897 = vunpack.c.h.b16 %v3716
    %v3898 = vunpack.c.l.b16 %v3717
    %v3899 = vunpack.c.h.b16 %v3717
    %v3900 = vunpack.c.l.b16 %v3718
    %v3901 = vunpack.c.h.b16 %v3718
    %v3902 = vunpack.c.l.b16 %v3719
    %v3903 = vunpack.c.h.b16 %v3719
    %v3904 = vunpack.c.l.b16 %v3720
    %v3905 = vunpack.c.h.b16 %v3720
    %v3906 = vunpack.c.l.b16 %v3721
    %v3907 = vunpack.c.h.b16 %v3721
    %v3908 = vunpack.c.l.b16 %v3722
    %v3909 = vunpack.c.h.b16 %v3722
    %v3910 = vunpack.c.l.b16 %v3723
    %v3911 = vunpack.c.h.b16 %v3723
    %v3912 = vunpack.c.l.b16 %v3724
    %v3913 = vunpack.c.h.b16 %v3724
    %v3914 = vunpack.c.l.b16 %v3725
    %v3915 = vunpack.c.h.b16 %v3725
    %v3916 = vunpack.c.l.b16 %v3726
    %v3917 = vunpack.c.h.b16 %v3726
    %v3918 = vunpack.c.l.b16 %v3727
    %v3919 = vunpack.c.h.b16 %v3727
    %v3920 = vunpack.c.l.b16 %v3728
    %v3921 = vunpack.c.h.b16 %v3728
    %v3922 = vunpack.c.l.b16 %v3729
    %v3923 = vunpack.c.h.b16 %v3729
    %v3924 = vunpack.c.l.b16 %v3730
    %v3925 = vunpack.c.h.b16 %v3730
    %v3926 = vunpack.c.l.b16 %v3731
    %v3927 = vunpack.c.h.b16 %v3731
    %v3928 = vunpack.c.l.b16 %v3732
    %v3929 = vunpack.c.h.b16 %v3732
    %v3930 = vunpack.c.l.b16 %v3733
    %v3931 = vunpack.c.h.b16 %v3733
    %v3932 = vunpack.c.l.b16 %v3734
    %v3933 = vunpack.c.h.b16 %v3734
    %v3934 = vpack.c.b16 %v3810, %v3806
    %v3935 = vpack.c.b16 %v3811, %v3807
    %v3936 = vpack.c.b16 %v3812, %v3808
    %v3937 = vpack.c.b16 %v3813, %v3809
    %v3938 = vpack.c.b16 %v3818, %v3814
    %v3939 = vpack.c.b16 %v3819, %v3815
    %v3940 = vpack.c.b16 %v3820, %v3816
    %v3941 = vpack.c.b16 %v3821, %v3817
    %v3942 = vpack.c.b16 %v3826, %v3822
    %v3943 = vpack.c.b16 %v3827, %v3823
    %v3944 = vpack.c.b16 %v3828, %v3824
    %v3945 = vpack.c.b16 %v3829, %v3825
    %v3946 = vpack.c.b16 %v3834, %v3830
    %v3947 = vpack.c.b16 %v3835, %v3831
    %v3948 = vpack.c.b16 %v3836, %v3832
    %v3949 = vpack.c.b16 %v3837, %v3833
    %v3950 = vpack.c.b16 %v3842, %v3838
    %v3951 = vpack.c.b16 %v3843, %v3839
    %v3952 = vpack.c.b16 %v3844, %v3840
    %v3953 = vpack.c.b16 %v3845, %v3841
    %v3954 = vpack.c.b16 %v3850, %v3846
    %v3955 = vpack.c.b16 %v3851, %v3847
    %v3956 = vpack.c.b16 %v3852, %v3848
    %v3957 = vpack.c.b16 %v3853, %v3849
    %v3958 = vpack.c.b16 %v3858, %v3854
    %v3959 = vpack.c.b16 %v3859, %v3855
    %v3960 = vpack.c.b16 %v3860, %v3856
    %v3961 = vpack.c.b16 %v3861, %v3857
    %v3962 = vpack.c.b16 %v3866, %v3862
    %v3963 = vpack.c.b16 %v3867, %v3863
    %v3964 = vpack.c.b16 %v3868, %v3864
    %v3965 = vpack.c.b16 %v3869, %v3865
    %v3966 = vpack.c.b16 %v3874, %v3870
    %v3967 = vpack.c.b16 %v3875, %v3871
    %v3968 = vpack.c.b16 %v3876, %v3872
    %v3969 = vpack.c.b16 %v3877, %v3873
    %v3970 = vpack.c.b16 %v3882, %v3878
    %v3971 = vpack.c.b16 %v3883, %v3879
    %v3972 = vpack.c.b16 %v3884, %v3880
    %v3973 = vpack.c.b16 %v3885, %v3881
    %v3974 = vpack.c.b16 %v3890, %v3886
    %v3975 = vpack.c.b16 %v3891, %v3887
    %v3976 = vpack.c.b16 %v3892, %v3888
    %v3977 = vpack.c.b16 %v3893, %v3889
    %v3978 = vpack.c.b16 %v3898, %v3894
    %v3979 = vpack.c.b16 %v3899, %v3895
    %v3980 = vpack.c.b16 %v3900, %v3896
    %v3981 = vpack.c.b16 %v3901, %v3897
    %v3982 = vpack.c.b16 %v3906, %v3902
    %v3983 = vpack.c.b16 %v3907, %v3903
    %v3984 = vpack.c.b16 %v3908, %v3904
    %v3985 = vpack.c.b16 %v3909, %v3905
    %v3986 = vpack.c.b16 %v3914, %v3910
    %v3987 = vpack.c.b16 %v3915, %v3911
    %v3988 = vpack.c.b16 %v3916, %v3912
    %v3989 = vpack.c.b16 %v3917, %v3913
    %v3990 = vpack.c.b16 %v3922, %v3918
    %v3991 = vpack.c.b16 %v3923, %v3919
    %v3992 = vpack.c.b16 %v3924, %v3920
    %v3993 = vpack.c.b16 %v3925, %v3921
    %v3994 = vpack.c.b16 %v3930, %v3926
    %v3995 = vpack.c.b16 %v3931, %v3927
    %v3996 = vpack.c.b16 %v3932, %v3928
    %v3997 = vpack.c.b16 %v3933, %v3929
    %4062 = vmatprep.subr.bf16.mxu0 %v3963
    %4063 = vmatpush1.bf16.msra.mxu0 %v3962
    %4064 = vmatprep.subr.bf16.mxu0 %v3959
    %4065 = vmatpush1.bf16.msra.mxu0 %v3958
    %4066 = vmatprep.subr.bf16.mxu0 %v3955
    %4067 = vmatpush1.bf16.msra.mxu0 %v3954
    %4068 = vmatprep.subr.bf16.mxu0 %v3951
    %4069 = vmatpush1.bf16.msra.mxu0 %v3950
    %4070 = vmatprep.subr.bf16.mxu0 %v3947
    %4071 = vmatpush1.bf16.msra.mxu0 %v3946
    %4072 = vmatprep.subr.bf16.mxu0 %v3943
    %4073 = vmatpush1.bf16.msra.mxu0 %v3942
    %4074 = vmatprep.subr.bf16.mxu0 %v3939
    %4075 = vmatpush1.bf16.msra.mxu0 %v3938
    %4076 = vmatprep.subr.bf16.mxu0 %v3935
    %4077 = vmatpush1.bf16.msra.mxu0 %v3934
    %4078 = vmatprep.subr.bf16.mxu0 %v3995
    %4079 = vmatpush2.bf16.msra.mxu0 %v3994
    %4080 = vmatprep.subr.bf16.mxu0 %v3991
    %4081 = vmatpush2.bf16.msra.mxu0 %v3990
    %4082 = vmatprep.subr.bf16.mxu0 %v3987
    %4083 = vmatpush2.bf16.msra.mxu0 %v3986
    %4084 = vmatprep.subr.bf16.mxu0 %v3983
    %4085 = vmatpush2.bf16.msra.mxu0 %v3982
    %4086 = vmatprep.subr.bf16.mxu0 %v3979
    %4087 = vmatpush2.bf16.msra.mxu0 %v3978
    %4088 = vmatprep.subr.bf16.mxu0 %v3975
    %4089 = vmatpush2.bf16.msra.mxu0 %v3974
    %4090 = vmatprep.subr.bf16.mxu0 %v3971
    %4091 = vmatpush2.bf16.msra.mxu0 %v3970
    %4092 = vmatprep.subr.bf16.mxu0 %v3967
    %4093 = vmatpush2.bf16.msra.mxu0 %v3966
    %4094 = vmatprep.mubr.bf16.mxu0 %v3739
    %4095 = vmatmul.mubr.bf16.gmra.mxu0 %v3738
    %v4096 = vpop.f32.mrf.mxu0
    %v4097 = vadd.f32 %v108, %v4096
    %v4098 = vpop.f32.mrf.mxu0
    %v4099 = vadd.f32 %v112, %v4098
    %v4100 = vpop.f32.mrf.mxu0
    %v4101 = vpop.f32.mrf.mxu0
    %4102 = vdwg.mxu0
    %4103 = vmatprep.subr.bf16.mxu0 %v3965
    %4104 = vmatpush1.bf16.msra.mxu0 %v3964
    %4105 = vmatprep.subr.bf16.mxu0 %v3961
    %4106 = vmatpush1.bf16.msra.mxu0 %v3960
    %4107 = vmatprep.subr.bf16.mxu0 %v3957
    %4108 = vmatpush1.bf16.msra.mxu0 %v3956
    %4109 = vmatprep.subr.bf16.mxu0 %v3953
    %4110 = vmatpush1.bf16.msra.mxu0 %v3952
    %4111 = vmatprep.subr.bf16.mxu0 %v3949
    %4112 = vmatpush1.bf16.msra.mxu0 %v3948
    %4113 = vmatprep.subr.bf16.mxu0 %v3945
    %4114 = vmatpush1.bf16.msra.mxu0 %v3944
    %4115 = vmatprep.subr.bf16.mxu0 %v3941
    %4116 = vmatpush1.bf16.msra.mxu0 %v3940
    %4117 = vmatprep.subr.bf16.mxu0 %v3937
    %4118 = vmatpush1.bf16.msra.mxu0 %v3936
    %4119 = vmatprep.subr.bf16.mxu0 %v3997
    %4120 = vmatpush2.bf16.msra.mxu0 %v3996
    %4121 = vmatprep.subr.bf16.mxu0 %v3993
    %4122 = vmatpush2.bf16.msra.mxu0 %v3992
    %4123 = vmatprep.subr.bf16.mxu0 %v3989
    %4124 = vmatpush2.bf16.msra.mxu0 %v3988
    %4125 = vmatprep.subr.bf16.mxu0 %v3985
    %4126 = vmatpush2.bf16.msra.mxu0 %v3984
    %4127 = vmatprep.subr.bf16.mxu0 %v3981
    %4128 = vmatpush2.bf16.msra.mxu0 %v3980
    %4129 = vmatprep.subr.bf16.mxu0 %v3977
    %4130 = vmatpush2.bf16.msra.mxu0 %v3976
    %4131 = vmatprep.subr.bf16.mxu0 %v3973
    %4132 = vmatpush2.bf16.msra.mxu0 %v3972
    %4133 = vmatprep.subr.bf16.mxu0 %v3969
    %4134 = vmatpush2.bf16.msra.mxu0 %v3968
    %4135 = vmatprep.mubr.bf16.mxu0 %v3739
    %4136 = vmatmul.mubr.bf16.gmra.mxu0 %v3738
    %v4137 = vpop.f32.mrf.mxu0
    %v4138 = vadd.f32 %v116, %v4137
    %v4139 = vpop.f32.mrf.mxu0
    %v4140 = vadd.f32 %v120, %v4139
    %v4141 = vpop.f32.mrf.mxu0
    %v4142 = vpop.f32.mrf.mxu0
    %4143 = vdwg.mxu0
    %v4144 = vmul.f32 %v4097, 0.5
    %v4145 = vmul.f32 %v4099, 0.5
    %v4146 = vmul.f32 %v4138, 0.5
    %v4147 = vtanh.pop %v4144
    %v4148 = vtanh.pop %v4145
    %v4149 = vtanh.pop %v4146
    %v4150 = vmul.f32 %v4147, 0.5
    %v4151 = vmul.f32 %v4148, 0.5
    %v4152 = vmul.f32 %v4149, 0.5
    %v4153 = vadd.f32 %v4150, 0.5
    %v4154 = vadd.f32 %v4151, 0.5
    %v4155 = vadd.f32 %v4152, 0.5
    %v4156 = vtanh.pop %v4140
    %v4157 = vmul.f32 %v4154, %v3351
    %v4158 = vmul.f32 %v4153, %v4156
    %v4159 = vadd.f32 %v4157, %v4158
    %v4160 = vtanh.pop %v4159
    %v4161 = vmul.f32 %v4155, %v4160
    %v4162 = vpack.c.bf16 %v4161, %v4161
    %4163 = vst [vmem:[#allocation2 + $0x4] sm:$0xf] %v4162
    %s4164 = scalar_lea.vmem %s0, 40
    %v4165 = vld [vmem:[%s4164] sm:$0xff]
    %4167 = vset.pattern.permute.xlu0 0
    %4168 = vperm.xlu0 %4167, %v4165
    %v4169 = vpop.permute.xlu0 %4168
    %v4171 = vmul.f32 %v4169, %v64
    %v4172 = vmul.f32 %v4169, %v68
    %v4173 = vmul.f32 %v4169, %v72
    %v4174 = vmul.f32 %v4169, %v76
    %v4175 = vadd.f32 %v4171, %v86
    %v4176 = vadd.f32 %v4172, %v90
    %v4177 = vadd.f32 %v4173, %v94
    %v4178 = vadd.f32 %v4174, %v98
    %v4179 = vld [vmem:[#allocation2] sm:$0xf]
    %v4180 = vld [vmem:[#allocation3] sm:$0xff]
    %v4181 = vld [vmem:[#allocation3 + $0x8] sm:$0xff]
    %v4182 = vld [vmem:[#allocation3 + $0x10] sm:$0xff]
    %v4183 = vld [vmem:[#allocation3 + $0x18] sm:$0xff]
    %v4184 = vld [vmem:[#allocation3 + $0x20] sm:$0xff]
    %v4185 = vld [vmem:[#allocation3 + $0x28] sm:$0xff]
    %v4186 = vld [vmem:[#allocation3 + $0x30] sm:$0xff]
    %v4187 = vld [vmem:[#allocation3 + $0x38] sm:$0xff]
    %v4188 = vld [vmem:[#allocation3 + $0x40] sm:$0xff]
    %v4189 = vld [vmem:[#allocation3 + $0x48] sm:$0xff]
    %v4190 = vld [vmem:[#allocation3 + $0x50] sm:$0xff]
    %v4191 = vld [vmem:[#allocation3 + $0x58] sm:$0xff]
    %v4192 = vld [vmem:[#allocation3 + $0x60] sm:$0xff]
    %v4193 = vld [vmem:[#allocation3 + $0x68] sm:$0xff]
    %v4194 = vld [vmem:[#allocation3 + $0x70] sm:$0xff]
    %v4195 = vld [vmem:[#allocation3 + $0x78] sm:$0xff]
    %v4196 = vld [vmem:[#allocation3 + $0x80] sm:$0xff]
    %v4197 = vld [vmem:[#allocation3 + $0x88] sm:$0xff]
    %v4198 = vld [vmem:[#allocation3 + $0x90] sm:$0xff]
    %v4199 = vld [vmem:[#allocation3 + $0x98] sm:$0xff]
    %v4200 = vld [vmem:[#allocation3 + $0xa0] sm:$0xff]
    %v4201 = vld [vmem:[#allocation3 + $0xa8] sm:$0xff]
    %v4202 = vld [vmem:[#allocation3 + $0xb0] sm:$0xff]
    %v4203 = vld [vmem:[#allocation3 + $0xb8] sm:$0xff]
    %v4204 = vld [vmem:[#allocation3 + $0xc0] sm:$0xff]
    %v4205 = vld [vmem:[#allocation3 + $0xc8] sm:$0xff]
    %v4206 = vld [vmem:[#allocation3 + $0xd0] sm:$0xff]
    %v4207 = vld [vmem:[#allocation3 + $0xd8] sm:$0xff]
    %v4208 = vld [vmem:[#allocation3 + $0xe0] sm:$0xff]
    %v4209 = vld [vmem:[#allocation3 + $0xe8] sm:$0xff]
    %v4210 = vld [vmem:[#allocation3 + $0xf0] sm:$0xff]
    %v4211 = vld [vmem:[#allocation3 + $0xf8] sm:$0xff]
    %v4244 = vunpack.c.l.b16 %v4180
    %v4245 = vunpack.c.h.b16 %v4180
    %v4246 = vunpack.c.l.b16 %v4181
    %v4247 = vunpack.c.h.b16 %v4181
    %v4248 = vunpack.c.l.b16 %v4182
    %v4249 = vunpack.c.h.b16 %v4182
    %v4250 = vunpack.c.l.b16 %v4183
    %v4251 = vunpack.c.h.b16 %v4183
    %v4252 = vunpack.c.l.b16 %v4184
    %v4253 = vunpack.c.h.b16 %v4184
    %v4254 = vunpack.c.l.b16 %v4185
    %v4255 = vunpack.c.h.b16 %v4185
    %v4256 = vunpack.c.l.b16 %v4186
    %v4257 = vunpack.c.h.b16 %v4186
    %v4258 = vunpack.c.l.b16 %v4187
    %v4259 = vunpack.c.h.b16 %v4187
    %v4260 = vunpack.c.l.b16 %v4188
    %v4261 = vunpack.c.h.b16 %v4188
    %v4262 = vunpack.c.l.b16 %v4189
    %v4263 = vunpack.c.h.b16 %v4189
    %v4264 = vunpack.c.l.b16 %v4190
    %v4265 = vunpack.c.h.b16 %v4190
    %v4266 = vunpack.c.l.b16 %v4191
    %v4267 = vunpack.c.h.b16 %v4191
    %v4268 = vunpack.c.l.b16 %v4192
    %v4269 = vunpack.c.h.b16 %v4192
    %v4270 = vunpack.c.l.b16 %v4193
    %v4271 = vunpack.c.h.b16 %v4193
    %v4272 = vunpack.c.l.b16 %v4194
    %v4273 = vunpack.c.h.b16 %v4194
    %v4274 = vunpack.c.l.b16 %v4195
    %v4275 = vunpack.c.h.b16 %v4195
    %v4276 = vunpack.c.l.b16 %v4196
    %v4277 = vunpack.c.h.b16 %v4196
    %v4278 = vunpack.c.l.b16 %v4197
    %v4279 = vunpack.c.h.b16 %v4197
    %v4280 = vunpack.c.l.b16 %v4198
    %v4281 = vunpack.c.h.b16 %v4198
    %v4282 = vunpack.c.l.b16 %v4199
    %v4283 = vunpack.c.h.b16 %v4199
    %v4284 = vunpack.c.l.b16 %v4200
    %v4285 = vunpack.c.h.b16 %v4200
    %v4286 = vunpack.c.l.b16 %v4201
    %v4287 = vunpack.c.h.b16 %v4201
    %v4288 = vunpack.c.l.b16 %v4202
    %v4289 = vunpack.c.h.b16 %v4202
    %v4290 = vunpack.c.l.b16 %v4203
    %v4291 = vunpack.c.h.b16 %v4203
    %v4292 = vunpack.c.l.b16 %v4204
    %v4293 = vunpack.c.h.b16 %v4204
    %v4294 = vunpack.c.l.b16 %v4205
    %v4295 = vunpack.c.h.b16 %v4205
    %v4296 = vunpack.c.l.b16 %v4206
    %v4297 = vunpack.c.h.b16 %v4206
    %v4298 = vunpack.c.l.b16 %v4207
    %v4299 = vunpack.c.h.b16 %v4207
    %v4300 = vunpack.c.l.b16 %v4208
    %v4301 = vunpack.c.h.b16 %v4208
    %v4302 = vunpack.c.l.b16 %v4209
    %v4303 = vunpack.c.h.b16 %v4209
    %v4304 = vunpack.c.l.b16 %v4210
    %v4305 = vunpack.c.h.b16 %v4210
    %v4306 = vunpack.c.l.b16 %v4211
    %v4307 = vunpack.c.h.b16 %v4211
    %v4308 = vpack.c.b16 %v4248, %v4244
    %v4309 = vpack.c.b16 %v4249, %v4245
    %v4310 = vpack.c.b16 %v4250, %v4246
    %v4311 = vpack.c.b16 %v4251, %v4247
    %v4312 = vpack.c.b16 %v4256, %v4252
    %v4313 = vpack.c.b16 %v4257, %v4253
    %v4314 = vpack.c.b16 %v4258, %v4254
    %v4315 = vpack.c.b16 %v4259, %v4255
    %v4316 = vpack.c.b16 %v4264, %v4260
    %v4317 = vpack.c.b16 %v4265, %v4261
    %v4318 = vpack.c.b16 %v4266, %v4262
    %v4319 = vpack.c.b16 %v4267, %v4263
    %v4320 = vpack.c.b16 %v4272, %v4268
    %v4321 = vpack.c.b16 %v4273, %v4269
    %v4322 = vpack.c.b16 %v4274, %v4270
    %v4323 = vpack.c.b16 %v4275, %v4271
    %v4324 = vpack.c.b16 %v4280, %v4276
    %v4325 = vpack.c.b16 %v4281, %v4277
    %v4326 = vpack.c.b16 %v4282, %v4278
    %v4327 = vpack.c.b16 %v4283, %v4279
    %v4328 = vpack.c.b16 %v4288, %v4284
    %v4329 = vpack.c.b16 %v4289, %v4285
    %v4330 = vpack.c.b16 %v4290, %v4286
    %v4331 = vpack.c.b16 %v4291, %v4287
    %v4332 = vpack.c.b16 %v4296, %v4292
    %v4333 = vpack.c.b16 %v4297, %v4293
    %v4334 = vpack.c.b16 %v4298, %v4294
    %v4335 = vpack.c.b16 %v4299, %v4295
    %v4336 = vpack.c.b16 %v4304, %v4300
    %v4337 = vpack.c.b16 %v4305, %v4301
    %v4338 = vpack.c.b16 %v4306, %v4302
    %v4339 = vpack.c.b16 %v4307, %v4303
    %4372 = vmatprep.subr.bf16.mxu0 %v4337
    %4373 = vmatpush1.bf16.msra.mxu0 %v4336
    %4374 = vmatprep.subr.bf16.mxu0 %v4333
    %4375 = vmatpush1.bf16.msra.mxu0 %v4332
    %4376 = vmatprep.subr.bf16.mxu0 %v4329
    %4377 = vmatpush1.bf16.msra.mxu0 %v4328
    %4378 = vmatprep.subr.bf16.mxu0 %v4325
    %4379 = vmatpush1.bf16.msra.mxu0 %v4324
    %4380 = vmatprep.subr.bf16.mxu0 %v4321
    %4381 = vmatpush1.bf16.msra.mxu0 %v4320
    %4382 = vmatprep.subr.bf16.mxu0 %v4317
    %4383 = vmatpush1.bf16.msra.mxu0 %v4316
    %4384 = vmatprep.subr.bf16.mxu0 %v4313
    %4385 = vmatpush1.bf16.msra.mxu0 %v4312
    %4386 = vmatprep.subr.bf16.mxu0 %v4309
    %4387 = vmatpush1.bf16.msra.mxu0 %v4308
    %4388 = vmatprep.subr.bf16.mxu0 0
    %4389 = vmatpush2.bf16.msra.mxu0 0
    %4390 = vmatprep.subr.bf16.mxu0 0
    %4391 = vmatpush2.bf16.msra.mxu0 0
    %4392 = vmatprep.subr.bf16.mxu0 0
    %4393 = vmatpush2.bf16.msra.mxu0 0
    %4394 = vmatprep.subr.bf16.mxu0 0
    %4395 = vmatpush2.bf16.msra.mxu0 0
    %4396 = vmatprep.subr.bf16.mxu0 0
    %4397 = vmatpush2.bf16.msra.mxu0 0
    %4398 = vmatprep.subr.bf16.mxu0 0
    %4399 = vmatpush2.bf16.msra.mxu0 0
    %4400 = vmatprep.subr.bf16.mxu0 0
    %4401 = vmatpush2.bf16.msra.mxu0 0
    %4402 = vmatprep.subr.bf16.mxu0 0
    %4403 = vmatpush2.bf16.msra.mxu0 0
    %4404 = vmatprep.mubr.bf16.mxu0 0
    %4405 = vmatmul.mubr.bf16.gmra.mxu0 %v4179
    %v4406 = vpop.f32.mrf.mxu0
    %v4407 = vadd.f32 0.0, %v4406
    %v4408 = vpop.f32.mrf.mxu0
    %v4409 = vadd.f32 0.0, %v4408
    %v4410 = vpop.f32.mrf.mxu0
    %v4411 = vpop.f32.mrf.mxu0
    %4412 = vdwg.mxu0
    %4413 = vmatprep.subr.bf16.mxu0 %v4339
    %4414 = vmatpush1.bf16.msra.mxu0 %v4338
    %4415 = vmatprep.subr.bf16.mxu0 %v4335
    %4416 = vmatpush1.bf16.msra.mxu0 %v4334
    %4417 = vmatprep.subr.bf16.mxu0 %v4331
    %4418 = vmatpush1.bf16.msra.mxu0 %v4330
    %4419 = vmatprep.subr.bf16.mxu0 %v4327
    %4420 = vmatpush1.bf16.msra.mxu0 %v4326
    %4421 = vmatprep.subr.bf16.mxu0 %v4323
    %4422 = vmatpush1.bf16.msra.mxu0 %v4322
    %4423 = vmatprep.subr.bf16.mxu0 %v4319
    %4424 = vmatpush1.bf16.msra.mxu0 %v4318
    %4425 = vmatprep.subr.bf16.mxu0 %v4315
    %4426 = vmatpush1.bf16.msra.mxu0 %v4314
    %4427 = vmatprep.subr.bf16.mxu0 %v4311
    %4428 = vmatpush1.bf16.msra.mxu0 %v4310
    %4429 = vmatprep.subr.bf16.mxu0 0
    %4430 = vmatpush2.bf16.msra.mxu0 0
    %4431 = vmatprep.subr.bf16.mxu0 0
    %4432 = vmatpush2.bf16.msra.mxu0 0
    %4433 = vmatprep.subr.bf16.mxu0 0
    %4434 = vmatpush2.bf16.msra.mxu0 0
    %4435 = vmatprep.subr.bf16.mxu0 0
    %4436 = vmatpush2.bf16.msra.mxu0 0
    %4437 = vmatprep.subr.bf16.mxu0 0
    %4438 = vmatpush2.bf16.msra.mxu0 0
    %4439 = vmatprep.subr.bf16.mxu0 0
    %4440 = vmatpush2.bf16.msra.mxu0 0
    %4441 = vmatprep.subr.bf16.mxu0 0
    %4442 = vmatpush2.bf16.msra.mxu0 0
    %4443 = vmatprep.subr.bf16.mxu0 0
    %4444 = vmatpush2.bf16.msra.mxu0 0
    %4445 = vmatprep.mubr.bf16.mxu0 0
    %4446 = vmatmul.mubr.bf16.gmra.mxu0 %v4179
    %v4447 = vpop.f32.mrf.mxu0
    %v4448 = vadd.f32 0.0, %v4447
    %v4449 = vpop.f32.mrf.mxu0
    %v4450 = vadd.f32 0.0, %v4449
    %v4451 = vpop.f32.mrf.mxu0
    %v4452 = vpop.f32.mrf.mxu0
    %4453 = vdwg.mxu0
    %v4454 = vadd.f32 %v4175, %v4407
    %v4455 = vadd.f32 %v4176, %v4409
    %v4456 = vadd.f32 %v4177, %v4448
    %v4457 = vadd.f32 %v4178, %v4450
    %v4458 = vmul.f32 %v4454, 0.5
    %v4459 = vmul.f32 %v4455, 0.5
    %v4460 = vmul.f32 %v4456, 0.5
    %v4461 = vtanh.pop %v4458
    %v4462 = vtanh.pop %v4459
    %v4463 = vtanh.pop %v4460
    %v4464 = vmul.f32 %v4461, 0.5
    %v4465 = vmul.f32 %v4462, 0.5
    %v4466 = vmul.f32 %v4463, 0.5
    %v4467 = vadd.f32 %v4464, 0.5
    %v4468 = vadd.f32 %v4465, 0.5
    %v4469 = vadd.f32 %v4466, 0.5
    %v4470 = vtanh.pop %v4457
    %v4471 = vmul.f32 %v4468, %v3665
    %v4472 = vmul.f32 %v4467, %v4470
    %v4473 = vadd.f32 %v4471, %v4472
    %v4474 = vtanh.pop %v4473
    %v4475 = vmul.f32 %v4469, %v4474
    %v4476 = vpack.c.bf16 %v4475, %v4475
    %4477 = vst [vmem:[#allocation2] sm:$0xf] %v4476
    %v4478 = vld [vmem:[#allocation2] sm:$0xff]
    %v4479 = vld [vmem:[#allocation5] sm:$0xff]
    %v4480 = vld [vmem:[#allocation5 + $0x8] sm:$0xff]
    %v4481 = vld [vmem:[#allocation5 + $0x10] sm:$0xff]
    %v4482 = vld [vmem:[#allocation5 + $0x18] sm:$0xff]
    %v4483 = vld [vmem:[#allocation5 + $0x20] sm:$0xff]
    %v4484 = vld [vmem:[#allocation5 + $0x28] sm:$0xff]
    %v4485 = vld [vmem:[#allocation5 + $0x30] sm:$0xff]
    %v4486 = vld [vmem:[#allocation5 + $0x38] sm:$0xff]
    %v4487 = vld [vmem:[#allocation5 + $0x40] sm:$0xff]
    %v4488 = vld [vmem:[#allocation5 + $0x48] sm:$0xff]
    %v4489 = vld [vmem:[#allocation5 + $0x50] sm:$0xff]
    %v4490 = vld [vmem:[#allocation5 + $0x58] sm:$0xff]
    %v4491 = vld [vmem:[#allocation5 + $0x60] sm:$0xff]
    %v4492 = vld [vmem:[#allocation5 + $0x68] sm:$0xff]
    %v4493 = vld [vmem:[#allocation5 + $0x70] sm:$0xff]
    %v4494 = vld [vmem:[#allocation5 + $0x78] sm:$0xff]
    %v4495 = vld [vmem:[#allocation5 + $0x80] sm:$0xff]
    %v4496 = vld [vmem:[#allocation5 + $0x88] sm:$0xff]
    %v4497 = vld [vmem:[#allocation5 + $0x90] sm:$0xff]
    %v4498 = vld [vmem:[#allocation5 + $0x98] sm:$0xff]
    %v4499 = vld [vmem:[#allocation5 + $0xa0] sm:$0xff]
    %v4500 = vld [vmem:[#allocation5 + $0xa8] sm:$0xff]
    %v4501 = vld [vmem:[#allocation5 + $0xb0] sm:$0xff]
    %v4502 = vld [vmem:[#allocation5 + $0xb8] sm:$0xff]
    %v4503 = vld [vmem:[#allocation5 + $0xc0] sm:$0xff]
    %v4504 = vld [vmem:[#allocation5 + $0xc8] sm:$0xff]
    %v4505 = vld [vmem:[#allocation5 + $0xd0] sm:$0xff]
    %v4506 = vld [vmem:[#allocation5 + $0xd8] sm:$0xff]
    %v4507 = vld [vmem:[#allocation5 + $0xe0] sm:$0xff]
    %v4508 = vld [vmem:[#allocation5 + $0xe8] sm:$0xff]
    %v4509 = vld [vmem:[#allocation5 + $0xf0] sm:$0xff]
    %v4510 = vld [vmem:[#allocation5 + $0xf8] sm:$0xff]
    %v4511 = vld [vmem:[#allocation5 + $0x100] sm:$0xff]
    %v4512 = vld [vmem:[#allocation5 + $0x108] sm:$0xff]
    %v4513 = vld [vmem:[#allocation5 + $0x110] sm:$0xff]
    %v4514 = vld [vmem:[#allocation5 + $0x118] sm:$0xff]
    %v4515 = vld [vmem:[#allocation5 + $0x120] sm:$0xff]
    %v4516 = vld [vmem:[#allocation5 + $0x128] sm:$0xff]
    %v4517 = vld [vmem:[#allocation5 + $0x130] sm:$0xff]
    %v4518 = vld [vmem:[#allocation5 + $0x138] sm:$0xff]
    %v4519 = vld [vmem:[#allocation5 + $0x140] sm:$0xff]
    %v4520 = vld [vmem:[#allocation5 + $0x148] sm:$0xff]
    %v4521 = vld [vmem:[#allocation5 + $0x150] sm:$0xff]
    %v4522 = vld [vmem:[#allocation5 + $0x158] sm:$0xff]
    %v4523 = vld [vmem:[#allocation5 + $0x160] sm:$0xff]
    %v4524 = vld [vmem:[#allocation5 + $0x168] sm:$0xff]
    %v4525 = vld [vmem:[#allocation5 + $0x170] sm:$0xff]
    %v4526 = vld [vmem:[#allocation5 + $0x178] sm:$0xff]
    %v4527 = vld [vmem:[#allocation5 + $0x180] sm:$0xff]
    %v4528 = vld [vmem:[#allocation5 + $0x188] sm:$0xff]
    %v4529 = vld [vmem:[#allocation5 + $0x190] sm:$0xff]
    %v4530 = vld [vmem:[#allocation5 + $0x198] sm:$0xff]
    %v4531 = vld [vmem:[#allocation5 + $0x1a0] sm:$0xff]
    %v4532 = vld [vmem:[#allocation5 + $0x1a8] sm:$0xff]
    %v4533 = vld [vmem:[#allocation5 + $0x1b0] sm:$0xff]
    %v4534 = vld [vmem:[#allocation5 + $0x1b8] sm:$0xff]
    %v4535 = vld [vmem:[#allocation5 + $0x1c0] sm:$0xff]
    %v4536 = vld [vmem:[#allocation5 + $0x1c8] sm:$0xff]
    %v4537 = vld [vmem:[#allocation5 + $0x1d0] sm:$0xff]
    %v4538 = vld [vmem:[#allocation5 + $0x1d8] sm:$0xff]
    %v4539 = vld [vmem:[#allocation5 + $0x1e0] sm:$0xff]
    %v4540 = vld [vmem:[#allocation5 + $0x1e8] sm:$0xff]
    %v4541 = vld [vmem:[#allocation5 + $0x1f0] sm:$0xff]
    %v4542 = vld [vmem:[#allocation5 + $0x1f8] sm:$0xff]
    %v4544 = vunpack.c.l.b16 %v4478
    %v4545 = vunpack.c.h.b16 %v4478
    %v4546 = vpack.c.b16 %v4544, %v4544
    %v4547 = vpack.c.b16 %v4545, %v4545
    %v4614 = vunpack.c.l.b16 %v4479
    %v4615 = vunpack.c.h.b16 %v4479
    %v4616 = vunpack.c.l.b16 %v4480
    %v4617 = vunpack.c.h.b16 %v4480
    %v4618 = vunpack.c.l.b16 %v4481
    %v4619 = vunpack.c.h.b16 %v4481
    %v4620 = vunpack.c.l.b16 %v4482
    %v4621 = vunpack.c.h.b16 %v4482
    %v4622 = vunpack.c.l.b16 %v4483
    %v4623 = vunpack.c.h.b16 %v4483
    %v4624 = vunpack.c.l.b16 %v4484
    %v4625 = vunpack.c.h.b16 %v4484
    %v4626 = vunpack.c.l.b16 %v4485
    %v4627 = vunpack.c.h.b16 %v4485
    %v4628 = vunpack.c.l.b16 %v4486
    %v4629 = vunpack.c.h.b16 %v4486
    %v4630 = vunpack.c.l.b16 %v4487
    %v4631 = vunpack.c.h.b16 %v4487
    %v4632 = vunpack.c.l.b16 %v4488
    %v4633 = vunpack.c.h.b16 %v4488
    %v4634 = vunpack.c.l.b16 %v4489
    %v4635 = vunpack.c.h.b16 %v4489
    %v4636 = vunpack.c.l.b16 %v4490
    %v4637 = vunpack.c.h.b16 %v4490
    %v4638 = vunpack.c.l.b16 %v4491
    %v4639 = vunpack.c.h.b16 %v4491
    %v4640 = vunpack.c.l.b16 %v4492
    %v4641 = vunpack.c.h.b16 %v4492
    %v4642 = vunpack.c.l.b16 %v4493
    %v4643 = vunpack.c.h.b16 %v4493
    %v4644 = vunpack.c.l.b16 %v4494
    %v4645 = vunpack.c.h.b16 %v4494
    %v4646 = vunpack.c.l.b16 %v4495
    %v4647 = vunpack.c.h.b16 %v4495
    %v4648 = vunpack.c.l.b16 %v4496
    %v4649 = vunpack.c.h.b16 %v4496
    %v4650 = vunpack.c.l.b16 %v4497
    %v4651 = vunpack.c.h.b16 %v4497
    %v4652 = vunpack.c.l.b16 %v4498
    %v4653 = vunpack.c.h.b16 %v4498
    %v4654 = vunpack.c.l.b16 %v4499
    %v4655 = vunpack.c.h.b16 %v4499
    %v4656 = vunpack.c.l.b16 %v4500
    %v4657 = vunpack.c.h.b16 %v4500
    %v4658 = vunpack.c.l.b16 %v4501
    %v4659 = vunpack.c.h.b16 %v4501
    %v4660 = vunpack.c.l.b16 %v4502
    %v4661 = vunpack.c.h.b16 %v4502
    %v4662 = vunpack.c.l.b16 %v4503
    %v4663 = vunpack.c.h.b16 %v4503
    %v4664 = vunpack.c.l.b16 %v4504
    %v4665 = vunpack.c.h.b16 %v4504
    %v4666 = vunpack.c.l.b16 %v4505
    %v4667 = vunpack.c.h.b16 %v4505
    %v4668 = vunpack.c.l.b16 %v4506
    %v4669 = vunpack.c.h.b16 %v4506
    %v4670 = vunpack.c.l.b16 %v4507
    %v4671 = vunpack.c.h.b16 %v4507
    %v4672 = vunpack.c.l.b16 %v4508
    %v4673 = vunpack.c.h.b16 %v4508
    %v4674 = vunpack.c.l.b16 %v4509
    %v4675 = vunpack.c.h.b16 %v4509
    %v4676 = vunpack.c.l.b16 %v4510
    %v4677 = vunpack.c.h.b16 %v4510
    %v4678 = vunpack.c.l.b16 %v4511
    %v4679 = vunpack.c.h.b16 %v4511
    %v4680 = vunpack.c.l.b16 %v4512
    %v4681 = vunpack.c.h.b16 %v4512
    %v4682 = vunpack.c.l.b16 %v4513
    %v4683 = vunpack.c.h.b16 %v4513
    %v4684 = vunpack.c.l.b16 %v4514
    %v4685 = vunpack.c.h.b16 %v4514
    %v4686 = vunpack.c.l.b16 %v4515
    %v4687 = vunpack.c.h.b16 %v4515
    %v4688 = vunpack.c.l.b16 %v4516
    %v4689 = vunpack.c.h.b16 %v4516
    %v4690 = vunpack.c.l.b16 %v4517
    %v4691 = vunpack.c.h.b16 %v4517
    %v4692 = vunpack.c.l.b16 %v4518
    %v4693 = vunpack.c.h.b16 %v4518
    %v4694 = vunpack.c.l.b16 %v4519
    %v4695 = vunpack.c.h.b16 %v4519
    %v4696 = vunpack.c.l.b16 %v4520
    %v4697 = vunpack.c.h.b16 %v4520
    %v4698 = vunpack.c.l.b16 %v4521
    %v4699 = vunpack.c.h.b16 %v4521
    %v4700 = vunpack.c.l.b16 %v4522
    %v4701 = vunpack.c.h.b16 %v4522
    %v4702 = vunpack.c.l.b16 %v4523
    %v4703 = vunpack.c.h.b16 %v4523
    %v4704 = vunpack.c.l.b16 %v4524
    %v4705 = vunpack.c.h.b16 %v4524
    %v4706 = vunpack.c.l.b16 %v4525
    %v4707 = vunpack.c.h.b16 %v4525
    %v4708 = vunpack.c.l.b16 %v4526
    %v4709 = vunpack.c.h.b16 %v4526
    %v4710 = vunpack.c.l.b16 %v4527
    %v4711 = vunpack.c.h.b16 %v4527
    %v4712 = vunpack.c.l.b16 %v4528
    %v4713 = vunpack.c.h.b16 %v4528
    %v4714 = vunpack.c.l.b16 %v4529
    %v4715 = vunpack.c.h.b16 %v4529
    %v4716 = vunpack.c.l.b16 %v4530
    %v4717 = vunpack.c.h.b16 %v4530
    %v4718 = vunpack.c.l.b16 %v4531
    %v4719 = vunpack.c.h.b16 %v4531
    %v4720 = vunpack.c.l.b16 %v4532
    %v4721 = vunpack.c.h.b16 %v4532
    %v4722 = vunpack.c.l.b16 %v4533
    %v4723 = vunpack.c.h.b16 %v4533
    %v4724 = vunpack.c.l.b16 %v4534
    %v4725 = vunpack.c.h.b16 %v4534
    %v4726 = vunpack.c.l.b16 %v4535
    %v4727 = vunpack.c.h.b16 %v4535
    %v4728 = vunpack.c.l.b16 %v4536
    %v4729 = vunpack.c.h.b16 %v4536
    %v4730 = vunpack.c.l.b16 %v4537
    %v4731 = vunpack.c.h.b16 %v4537
    %v4732 = vunpack.c.l.b16 %v4538
    %v4733 = vunpack.c.h.b16 %v4538
    %v4734 = vunpack.c.l.b16 %v4539
    %v4735 = vunpack.c.h.b16 %v4539
    %v4736 = vunpack.c.l.b16 %v4540
    %v4737 = vunpack.c.h.b16 %v4540
    %v4738 = vunpack.c.l.b16 %v4541
    %v4739 = vunpack.c.h.b16 %v4541
    %v4740 = vunpack.c.l.b16 %v4542
    %v4741 = vunpack.c.h.b16 %v4542
    %v4742 = vpack.c.b16 %v4618, %v4614
    %v4743 = vpack.c.b16 %v4619, %v4615
    %v4744 = vpack.c.b16 %v4620, %v4616
    %v4745 = vpack.c.b16 %v4621, %v4617
    %v4746 = vpack.c.b16 %v4626, %v4622
    %v4747 = vpack.c.b16 %v4627, %v4623
    %v4748 = vpack.c.b16 %v4628, %v4624
    %v4749 = vpack.c.b16 %v4629, %v4625
    %v4750 = vpack.c.b16 %v4634, %v4630
    %v4751 = vpack.c.b16 %v4635, %v4631
    %v4752 = vpack.c.b16 %v4636, %v4632
    %v4753 = vpack.c.b16 %v4637, %v4633
    %v4754 = vpack.c.b16 %v4642, %v4638
    %v4755 = vpack.c.b16 %v4643, %v4639
    %v4756 = vpack.c.b16 %v4644, %v4640
    %v4757 = vpack.c.b16 %v4645, %v4641
    %v4758 = vpack.c.b16 %v4650, %v4646
    %v4759 = vpack.c.b16 %v4651, %v4647
    %v4760 = vpack.c.b16 %v4652, %v4648
    %v4761 = vpack.c.b16 %v4653, %v4649
    %v4762 = vpack.c.b16 %v4658, %v4654
    %v4763 = vpack.c.b16 %v4659, %v4655
    %v4764 = vpack.c.b16 %v4660, %v4656
    %v4765 = vpack.c.b16 %v4661, %v4657
    %v4766 = vpack.c.b16 %v4666, %v4662
    %v4767 = vpack.c.b16 %v4667, %v4663
    %v4768 = vpack.c.b16 %v4668, %v4664
    %v4769 = vpack.c.b16 %v4669, %v4665
    %v4770 = vpack.c.b16 %v4674, %v4670
    %v4771 = vpack.c.b16 %v4675, %v4671
    %v4772 = vpack.c.b16 %v4676, %v4672
    %v4773 = vpack.c.b16 %v4677, %v4673
    %v4774 = vpack.c.b16 %v4682, %v4678
    %v4775 = vpack.c.b16 %v4683, %v4679
    %v4776 = vpack.c.b16 %v4684, %v4680
    %v4777 = vpack.c.b16 %v4685, %v4681
    %v4778 = vpack.c.b16 %v4690, %v4686
    %v4779 = vpack.c.b16 %v4691, %v4687
    %v4780 = vpack.c.b16 %v4692, %v4688
    %v4781 = vpack.c.b16 %v4693, %v4689
    %v4782 = vpack.c.b16 %v4698, %v4694
    %v4783 = vpack.c.b16 %v4699, %v4695
    %v4784 = vpack.c.b16 %v4700, %v4696
    %v4785 = vpack.c.b16 %v4701, %v4697
    %v4786 = vpack.c.b16 %v4706, %v4702
    %v4787 = vpack.c.b16 %v4707, %v4703
    %v4788 = vpack.c.b16 %v4708, %v4704
    %v4789 = vpack.c.b16 %v4709, %v4705
    %v4790 = vpack.c.b16 %v4714, %v4710
    %v4791 = vpack.c.b16 %v4715, %v4711
    %v4792 = vpack.c.b16 %v4716, %v4712
    %v4793 = vpack.c.b16 %v4717, %v4713
    %v4794 = vpack.c.b16 %v4722, %v4718
    %v4795 = vpack.c.b16 %v4723, %v4719
    %v4796 = vpack.c.b16 %v4724, %v4720
    %v4797 = vpack.c.b16 %v4725, %v4721
    %v4798 = vpack.c.b16 %v4730, %v4726
    %v4799 = vpack.c.b16 %v4731, %v4727
    %v4800 = vpack.c.b16 %v4732, %v4728
    %v4801 = vpack.c.b16 %v4733, %v4729
    %v4802 = vpack.c.b16 %v4738, %v4734
    %v4803 = vpack.c.b16 %v4739, %v4735
    %v4804 = vpack.c.b16 %v4740, %v4736
    %v4805 = vpack.c.b16 %v4741, %v4737
    %4870 = vmatprep.subr.bf16.mxu0 %v4771
    %4871 = vmatpush1.bf16.msra.mxu0 %v4770
    %4872 = vmatprep.subr.bf16.mxu0 %v4767
    %4873 = vmatpush1.bf16.msra.mxu0 %v4766
    %4874 = vmatprep.subr.bf16.mxu0 %v4763
    %4875 = vmatpush1.bf16.msra.mxu0 %v4762
    %4876 = vmatprep.subr.bf16.mxu0 %v4759
    %4877 = vmatpush1.bf16.msra.mxu0 %v4758
    %4878 = vmatprep.subr.bf16.mxu0 %v4755
    %4879 = vmatpush1.bf16.msra.mxu0 %v4754
    %4880 = vmatprep.subr.bf16.mxu0 %v4751
    %4881 = vmatpush1.bf16.msra.mxu0 %v4750
    %4882 = vmatprep.subr.bf16.mxu0 %v4747
    %4883 = vmatpush1.bf16.msra.mxu0 %v4746
    %4884 = vmatprep.subr.bf16.mxu0 %v4743
    %4885 = vmatpush1.bf16.msra.mxu0 %v4742
    %4886 = vmatprep.subr.bf16.mxu0 %v4803
    %4887 = vmatpush2.bf16.msra.mxu0 %v4802
    %4888 = vmatprep.subr.bf16.mxu0 %v4799
    %4889 = vmatpush2.bf16.msra.mxu0 %v4798
    %4890 = vmatprep.subr.bf16.mxu0 %v4795
    %4891 = vmatpush2.bf16.msra.mxu0 %v4794
    %4892 = vmatprep.subr.bf16.mxu0 %v4791
    %4893 = vmatpush2.bf16.msra.mxu0 %v4790
    %4894 = vmatprep.subr.bf16.mxu0 %v4787
    %4895 = vmatpush2.bf16.msra.mxu0 %v4786
    %4896 = vmatprep.subr.bf16.mxu0 %v4783
    %4897 = vmatpush2.bf16.msra.mxu0 %v4782
    %4898 = vmatprep.subr.bf16.mxu0 %v4779
    %4899 = vmatpush2.bf16.msra.mxu0 %v4778
    %4900 = vmatprep.subr.bf16.mxu0 %v4775
    %4901 = vmatpush2.bf16.msra.mxu0 %v4774
    %4902 = vmatprep.mubr.bf16.mxu0 %v4547
    %4903 = vmatmul.mubr.bf16.gmra.mxu0 %v4546
    %v4904 = vpop.f32.mrf.mxu0
    %v4905 = vadd.f32 %v108, %v4904
    %v4906 = vpop.f32.mrf.mxu0
    %v4907 = vadd.f32 %v112, %v4906
    %v4908 = vpop.f32.mrf.mxu0
    %v4909 = vpop.f32.mrf.mxu0
    %4910 = vdwg.mxu0
    %4911 = vmatprep.subr.bf16.mxu0 %v4773
    %4912 = vmatpush1.bf16.msra.mxu0 %v4772
    %4913 = vmatprep.subr.bf16.mxu0 %v4769
    %4914 = vmatpush1.bf16.msra.mxu0 %v4768
    %4915 = vmatprep.subr.bf16.mxu0 %v4765
    %4916 = vmatpush1.bf16.msra.mxu0 %v4764
    %4917 = vmatprep.subr.bf16.mxu0 %v4761
    %4918 = vmatpush1.bf16.msra.mxu0 %v4760
    %4919 = vmatprep.subr.bf16.mxu0 %v4757
    %4920 = vmatpush1.bf16.msra.mxu0 %v4756
    %4921 = vmatprep.subr.bf16.mxu0 %v4753
    %4922 = vmatpush1.bf16.msra.mxu0 %v4752
    %4923 = vmatprep.subr.bf16.mxu0 %v4749
    %4924 = vmatpush1.bf16.msra.mxu0 %v4748
    %4925 = vmatprep.subr.bf16.mxu0 %v4745
    %4926 = vmatpush1.bf16.msra.mxu0 %v4744
    %4927 = vmatprep.subr.bf16.mxu0 %v4805
    %4928 = vmatpush2.bf16.msra.mxu0 %v4804
    %4929 = vmatprep.subr.bf16.mxu0 %v4801
    %4930 = vmatpush2.bf16.msra.mxu0 %v4800
    %4931 = vmatprep.subr.bf16.mxu0 %v4797
    %4932 = vmatpush2.bf16.msra.mxu0 %v4796
    %4933 = vmatprep.subr.bf16.mxu0 %v4793
    %4934 = vmatpush2.bf16.msra.mxu0 %v4792
    %4935 = vmatprep.subr.bf16.mxu0 %v4789
    %4936 = vmatpush2.bf16.msra.mxu0 %v4788
    %4937 = vmatprep.subr.bf16.mxu0 %v4785
    %4938 = vmatpush2.bf16.msra.mxu0 %v4784
    %4939 = vmatprep.subr.bf16.mxu0 %v4781
    %4940 = vmatpush2.bf16.msra.mxu0 %v4780
    %4941 = vmatprep.subr.bf16.mxu0 %v4777
    %4942 = vmatpush2.bf16.msra.mxu0 %v4776
    %4943 = vmatprep.mubr.bf16.mxu0 %v4547
    %4944 = vmatmul.mubr.bf16.gmra.mxu0 %v4546
    %v4945 = vpop.f32.mrf.mxu0
    %v4946 = vadd.f32 %v116, %v4945
    %v4947 = vpop.f32.mrf.mxu0
    %v4948 = vadd.f32 %v120, %v4947
    %v4949 = vpop.f32.mrf.mxu0
    %v4950 = vpop.f32.mrf.mxu0
    %4951 = vdwg.mxu0
    %v4952 = vmul.f32 %v4905, 0.5
    %v4953 = vmul.f32 %v4907, 0.5
    %v4954 = vmul.f32 %v4946, 0.5
    %v4955 = vtanh.pop %v4952
    %v4956 = vtanh.pop %v4953
    %v4957 = vtanh.pop %v4954
    %v4958 = vmul.f32 %v4955, 0.5
    %v4959 = vmul.f32 %v4956, 0.5
    %v4960 = vmul.f32 %v4957, 0.5
    %v4961 = vadd.f32 %v4958, 0.5
    %v4962 = vadd.f32 %v4959, 0.5
    %v4963 = vadd.f32 %v4960, 0.5
    %v4964 = vtanh.pop %v4948
    %v4965 = vmul.f32 %v4962, %v4159
    %v4966 = vmul.f32 %v4961, %v4964
    %v4967 = vadd.f32 %v4965, %v4966
    %v4968 = vtanh.pop %v4967
    %v4969 = vmul.f32 %v4963, %v4968
    %v4970 = vpack.c.bf16 %v4969, %v4969
    %4971 = vst [vmem:[#allocation2 + $0x4] sm:$0xf] %v4970
    %s4972 = scalar_lea.vmem %s0, 48
    %v4973 = vld [vmem:[%s4972] sm:$0xff]
    %4975 = vset.pattern.permute.xlu0 0
    %4976 = vperm.xlu0 %4975, %v4973
    %v4977 = vpop.permute.xlu0 %4976
    %v4979 = vmul.f32 %v4977, %v64
    %v4980 = vmul.f32 %v4977, %v68
    %v4981 = vmul.f32 %v4977, %v72
    %v4982 = vmul.f32 %v4977, %v76
    %v4983 = vadd.f32 %v4979, %v86
    %v4984 = vadd.f32 %v4980, %v90
    %v4985 = vadd.f32 %v4981, %v94
    %v4986 = vadd.f32 %v4982, %v98
    %v4987 = vld [vmem:[#allocation2] sm:$0xf]
    %v4988 = vld [vmem:[#allocation3] sm:$0xff]
    %v4989 = vld [vmem:[#allocation3 + $0x8] sm:$0xff]
    %v4990 = vld [vmem:[#allocation3 + $0x10] sm:$0xff]
    %v4991 = vld [vmem:[#allocation3 + $0x18] sm:$0xff]
    %v4992 = vld [vmem:[#allocation3 + $0x20] sm:$0xff]
    %v4993 = vld [vmem:[#allocation3 + $0x28] sm:$0xff]
    %v4994 = vld [vmem:[#allocation3 + $0x30] sm:$0xff]
    %v4995 = vld [vmem:[#allocation3 + $0x38] sm:$0xff]
    %v4996 = vld [vmem:[#allocation3 + $0x40] sm:$0xff]
    %v4997 = vld [vmem:[#allocation3 + $0x48] sm:$0xff]
    %v4998 = vld [vmem:[#allocation3 + $0x50] sm:$0xff]
    %v4999 = vld [vmem:[#allocation3 + $0x58] sm:$0xff]
    %v5000 = vld [vmem:[#allocation3 + $0x60] sm:$0xff]
    %v5001 = vld [vmem:[#allocation3 + $0x68] sm:$0xff]
    %v5002 = vld [vmem:[#allocation3 + $0x70] sm:$0xff]
    %v5003 = vld [vmem:[#allocation3 + $0x78] sm:$0xff]
    %v5004 = vld [vmem:[#allocation3 + $0x80] sm:$0xff]
    %v5005 = vld [vmem:[#allocation3 + $0x88] sm:$0xff]
    %v5006 = vld [vmem:[#allocation3 + $0x90] sm:$0xff]
    %v5007 = vld [vmem:[#allocation3 + $0x98] sm:$0xff]
    %v5008 = vld [vmem:[#allocation3 + $0xa0] sm:$0xff]
    %v5009 = vld [vmem:[#allocation3 + $0xa8] sm:$0xff]
    %v5010 = vld [vmem:[#allocation3 + $0xb0] sm:$0xff]
    %v5011 = vld [vmem:[#allocation3 + $0xb8] sm:$0xff]
    %v5012 = vld [vmem:[#allocation3 + $0xc0] sm:$0xff]
    %v5013 = vld [vmem:[#allocation3 + $0xc8] sm:$0xff]
    %v5014 = vld [vmem:[#allocation3 + $0xd0] sm:$0xff]
    %v5015 = vld [vmem:[#allocation3 + $0xd8] sm:$0xff]
    %v5016 = vld [vmem:[#allocation3 + $0xe0] sm:$0xff]
    %v5017 = vld [vmem:[#allocation3 + $0xe8] sm:$0xff]
    %v5018 = vld [vmem:[#allocation3 + $0xf0] sm:$0xff]
    %v5019 = vld [vmem:[#allocation3 + $0xf8] sm:$0xff]
    %v5052 = vunpack.c.l.b16 %v4988
    %v5053 = vunpack.c.h.b16 %v4988
    %v5054 = vunpack.c.l.b16 %v4989
    %v5055 = vunpack.c.h.b16 %v4989
    %v5056 = vunpack.c.l.b16 %v4990
    %v5057 = vunpack.c.h.b16 %v4990
    %v5058 = vunpack.c.l.b16 %v4991
    %v5059 = vunpack.c.h.b16 %v4991
    %v5060 = vunpack.c.l.b16 %v4992
    %v5061 = vunpack.c.h.b16 %v4992
    %v5062 = vunpack.c.l.b16 %v4993
    %v5063 = vunpack.c.h.b16 %v4993
    %v5064 = vunpack.c.l.b16 %v4994
    %v5065 = vunpack.c.h.b16 %v4994
    %v5066 = vunpack.c.l.b16 %v4995
    %v5067 = vunpack.c.h.b16 %v4995
    %v5068 = vunpack.c.l.b16 %v4996
    %v5069 = vunpack.c.h.b16 %v4996
    %v5070 = vunpack.c.l.b16 %v4997
    %v5071 = vunpack.c.h.b16 %v4997
    %v5072 = vunpack.c.l.b16 %v4998
    %v5073 = vunpack.c.h.b16 %v4998
    %v5074 = vunpack.c.l.b16 %v4999
    %v5075 = vunpack.c.h.b16 %v4999
    %v5076 = vunpack.c.l.b16 %v5000
    %v5077 = vunpack.c.h.b16 %v5000
    %v5078 = vunpack.c.l.b16 %v5001
    %v5079 = vunpack.c.h.b16 %v5001
    %v5080 = vunpack.c.l.b16 %v5002
    %v5081 = vunpack.c.h.b16 %v5002
    %v5082 = vunpack.c.l.b16 %v5003
    %v5083 = vunpack.c.h.b16 %v5003
    %v5084 = vunpack.c.l.b16 %v5004
    %v5085 = vunpack.c.h.b16 %v5004
    %v5086 = vunpack.c.l.b16 %v5005
    %v5087 = vunpack.c.h.b16 %v5005
    %v5088 = vunpack.c.l.b16 %v5006
    %v5089 = vunpack.c.h.b16 %v5006
    %v5090 = vunpack.c.l.b16 %v5007
    %v5091 = vunpack.c.h.b16 %v5007
    %v5092 = vunpack.c.l.b16 %v5008
    %v5093 = vunpack.c.h.b16 %v5008
    %v5094 = vunpack.c.l.b16 %v5009
    %v5095 = vunpack.c.h.b16 %v5009
    %v5096 = vunpack.c.l.b16 %v5010
    %v5097 = vunpack.c.h.b16 %v5010
    %v5098 = vunpack.c.l.b16 %v5011
    %v5099 = vunpack.c.h.b16 %v5011
    %v5100 = vunpack.c.l.b16 %v5012
    %v5101 = vunpack.c.h.b16 %v5012
    %v5102 = vunpack.c.l.b16 %v5013
    %v5103 = vunpack.c.h.b16 %v5013
    %v5104 = vunpack.c.l.b16 %v5014
    %v5105 = vunpack.c.h.b16 %v5014
    %v5106 = vunpack.c.l.b16 %v5015
    %v5107 = vunpack.c.h.b16 %v5015
    %v5108 = vunpack.c.l.b16 %v5016
    %v5109 = vunpack.c.h.b16 %v5016
    %v5110 = vunpack.c.l.b16 %v5017
    %v5111 = vunpack.c.h.b16 %v5017
    %v5112 = vunpack.c.l.b16 %v5018
    %v5113 = vunpack.c.h.b16 %v5018
    %v5114 = vunpack.c.l.b16 %v5019
    %v5115 = vunpack.c.h.b16 %v5019
    %v5116 = vpack.c.b16 %v5056, %v5052
    %v5117 = vpack.c.b16 %v5057, %v5053
    %v5118 = vpack.c.b16 %v5058, %v5054
    %v5119 = vpack.c.b16 %v5059, %v5055
    %v5120 = vpack.c.b16 %v5064, %v5060
    %v5121 = vpack.c.b16 %v5065, %v5061
    %v5122 = vpack.c.b16 %v5066, %v5062
    %v5123 = vpack.c.b16 %v5067, %v5063
    %v5124 = vpack.c.b16 %v5072, %v5068
    %v5125 = vpack.c.b16 %v5073, %v5069
    %v5126 = vpack.c.b16 %v5074, %v5070
    %v5127 = vpack.c.b16 %v5075, %v5071
    %v5128 = vpack.c.b16 %v5080, %v5076
    %v5129 = vpack.c.b16 %v5081, %v5077
    %v5130 = vpack.c.b16 %v5082, %v5078
    %v5131 = vpack.c.b16 %v5083, %v5079
    %v5132 = vpack.c.b16 %v5088, %v5084
    %v5133 = vpack.c.b16 %v5089, %v5085
    %v5134 = vpack.c.b16 %v5090, %v5086
    %v5135 = vpack.c.b16 %v5091, %v5087
    %v5136 = vpack.c.b16 %v5096, %v5092
    %v5137 = vpack.c.b16 %v5097, %v5093
    %v5138 = vpack.c.b16 %v5098, %v5094
    %v5139 = vpack.c.b16 %v5099, %v5095
    %v5140 = vpack.c.b16 %v5104, %v5100
    %v5141 = vpack.c.b16 %v5105, %v5101
    %v5142 = vpack.c.b16 %v5106, %v5102
    %v5143 = vpack.c.b16 %v5107, %v5103
    %v5144 = vpack.c.b16 %v5112, %v5108
    %v5145 = vpack.c.b16 %v5113, %v5109
    %v5146 = vpack.c.b16 %v5114, %v5110
    %v5147 = vpack.c.b16 %v5115, %v5111
    %5180 = vmatprep.subr.bf16.mxu0 %v5145
    %5181 = vmatpush1.bf16.msra.mxu0 %v5144
    %5182 = vmatprep.subr.bf16.mxu0 %v5141
    %5183 = vmatpush1.bf16.msra.mxu0 %v5140
    %5184 = vmatprep.subr.bf16.mxu0 %v5137
    %5185 = vmatpush1.bf16.msra.mxu0 %v5136
    %5186 = vmatprep.subr.bf16.mxu0 %v5133
    %5187 = vmatpush1.bf16.msra.mxu0 %v5132
    %5188 = vmatprep.subr.bf16.mxu0 %v5129
    %5189 = vmatpush1.bf16.msra.mxu0 %v5128
    %5190 = vmatprep.subr.bf16.mxu0 %v5125
    %5191 = vmatpush1.bf16.msra.mxu0 %v5124
    %5192 = vmatprep.subr.bf16.mxu0 %v5121
    %5193 = vmatpush1.bf16.msra.mxu0 %v5120
    %5194 = vmatprep.subr.bf16.mxu0 %v5117
    %5195 = vmatpush1.bf16.msra.mxu0 %v5116
    %5196 = vmatprep.subr.bf16.mxu0 0
    %5197 = vmatpush2.bf16.msra.mxu0 0
    %5198 = vmatprep.subr.bf16.mxu0 0
    %5199 = vmatpush2.bf16.msra.mxu0 0
    %5200 = vmatprep.subr.bf16.mxu0 0
    %5201 = vmatpush2.bf16.msra.mxu0 0
    %5202 = vmatprep.subr.bf16.mxu0 0
    %5203 = vmatpush2.bf16.msra.mxu0 0
    %5204 = vmatprep.subr.bf16.mxu0 0
    %5205 = vmatpush2.bf16.msra.mxu0 0
    %5206 = vmatprep.subr.bf16.mxu0 0
    %5207 = vmatpush2.bf16.msra.mxu0 0
    %5208 = vmatprep.subr.bf16.mxu0 0
    %5209 = vmatpush2.bf16.msra.mxu0 0
    %5210 = vmatprep.subr.bf16.mxu0 0
    %5211 = vmatpush2.bf16.msra.mxu0 0
    %5212 = vmatprep.mubr.bf16.mxu0 0
    %5213 = vmatmul.mubr.bf16.gmra.mxu0 %v4987
    %v5214 = vpop.f32.mrf.mxu0
    %v5215 = vadd.f32 0.0, %v5214
    %v5216 = vpop.f32.mrf.mxu0
    %v5217 = vadd.f32 0.0, %v5216
    %v5218 = vpop.f32.mrf.mxu0
    %v5219 = vpop.f32.mrf.mxu0
    %5220 = vdwg.mxu0
    %5221 = vmatprep.subr.bf16.mxu0 %v5147
    %5222 = vmatpush1.bf16.msra.mxu0 %v5146
    %5223 = vmatprep.subr.bf16.mxu0 %v5143
    %5224 = vmatpush1.bf16.msra.mxu0 %v5142
    %5225 = vmatprep.subr.bf16.mxu0 %v5139
    %5226 = vmatpush1.bf16.msra.mxu0 %v5138
    %5227 = vmatprep.subr.bf16.mxu0 %v5135
    %5228 = vmatpush1.bf16.msra.mxu0 %v5134
    %5229 = vmatprep.subr.bf16.mxu0 %v5131
    %5230 = vmatpush1.bf16.msra.mxu0 %v5130
    %5231 = vmatprep.subr.bf16.mxu0 %v5127
    %5232 = vmatpush1.bf16.msra.mxu0 %v5126
    %5233 = vmatprep.subr.bf16.mxu0 %v5123
    %5234 = vmatpush1.bf16.msra.mxu0 %v5122
    %5235 = vmatprep.subr.bf16.mxu0 %v5119
    %5236 = vmatpush1.bf16.msra.mxu0 %v5118
    %5237 = vmatprep.subr.bf16.mxu0 0
    %5238 = vmatpush2.bf16.msra.mxu0 0
    %5239 = vmatprep.subr.bf16.mxu0 0
    %5240 = vmatpush2.bf16.msra.mxu0 0
    %5241 = vmatprep.subr.bf16.mxu0 0
    %5242 = vmatpush2.bf16.msra.mxu0 0
    %5243 = vmatprep.subr.bf16.mxu0 0
    %5244 = vmatpush2.bf16.msra.mxu0 0
    %5245 = vmatprep.subr.bf16.mxu0 0
    %5246 = vmatpush2.bf16.msra.mxu0 0
    %5247 = vmatprep.subr.bf16.mxu0 0
    %5248 = vmatpush2.bf16.msra.mxu0 0
    %5249 = vmatprep.subr.bf16.mxu0 0
    %5250 = vmatpush2.bf16.msra.mxu0 0
    %5251 = vmatprep.subr.bf16.mxu0 0
    %5252 = vmatpush2.bf16.msra.mxu0 0
    %5253 = vmatprep.mubr.bf16.mxu0 0
    %5254 = vmatmul.mubr.bf16.gmra.mxu0 %v4987
    %v5255 = vpop.f32.mrf.mxu0
    %v5256 = vadd.f32 0.0, %v5255
    %v5257 = vpop.f32.mrf.mxu0
    %v5258 = vadd.f32 0.0, %v5257
    %v5259 = vpop.f32.mrf.mxu0
    %v5260 = vpop.f32.mrf.mxu0
    %5261 = vdwg.mxu0
    %v5262 = vadd.f32 %v4983, %v5215
    %v5263 = vadd.f32 %v4984, %v5217
    %v5264 = vadd.f32 %v4985, %v5256
    %v5265 = vadd.f32 %v4986, %v5258
    %v5266 = vmul.f32 %v5262, 0.5
    %v5267 = vmul.f32 %v5263, 0.5
    %v5268 = vmul.f32 %v5264, 0.5
    %v5269 = vtanh.pop %v5266
    %v5270 = vtanh.pop %v5267
    %v5271 = vtanh.pop %v5268
    %v5272 = vmul.f32 %v5269, 0.5
    %v5273 = vmul.f32 %v5270, 0.5
    %v5274 = vmul.f32 %v5271, 0.5
    %v5275 = vadd.f32 %v5272, 0.5
    %v5276 = vadd.f32 %v5273, 0.5
    %v5277 = vadd.f32 %v5274, 0.5
    %v5278 = vtanh.pop %v5265
    %v5279 = vmul.f32 %v5276, %v4473
    %v5280 = vmul.f32 %v5275, %v5278
    %v5281 = vadd.f32 %v5279, %v5280
    %v5282 = vtanh.pop %v5281
    %v5283 = vmul.f32 %v5277, %v5282
    %v5284 = vpack.c.bf16 %v5283, %v5283
    %5285 = vst [vmem:[#allocation2] sm:$0xf] %v5284
    %v5286 = vld [vmem:[#allocation2] sm:$0xff]
    %v5287 = vld [vmem:[#allocation5] sm:$0xff]
    %v5288 = vld [vmem:[#allocation5 + $0x8] sm:$0xff]
    %v5289 = vld [vmem:[#allocation5 + $0x10] sm:$0xff]
    %v5290 = vld [vmem:[#allocation5 + $0x18] sm:$0xff]
    %v5291 = vld [vmem:[#allocation5 + $0x20] sm:$0xff]
    %v5292 = vld [vmem:[#allocation5 + $0x28] sm:$0xff]
    %v5293 = vld [vmem:[#allocation5 + $0x30] sm:$0xff]
    %v5294 = vld [vmem:[#allocation5 + $0x38] sm:$0xff]
    %v5295 = vld [vmem:[#allocation5 + $0x40] sm:$0xff]
    %v5296 = vld [vmem:[#allocation5 + $0x48] sm:$0xff]
    %v5297 = vld [vmem:[#allocation5 + $0x50] sm:$0xff]
    %v5298 = vld [vmem:[#allocation5 + $0x58] sm:$0xff]
    %v5299 = vld [vmem:[#allocation5 + $0x60] sm:$0xff]
    %v5300 = vld [vmem:[#allocation5 + $0x68] sm:$0xff]
    %v5301 = vld [vmem:[#allocation5 + $0x70] sm:$0xff]
    %v5302 = vld [vmem:[#allocation5 + $0x78] sm:$0xff]
    %v5303 = vld [vmem:[#allocation5 + $0x80] sm:$0xff]
    %v5304 = vld [vmem:[#allocation5 + $0x88] sm:$0xff]
    %v5305 = vld [vmem:[#allocation5 + $0x90] sm:$0xff]
    %v5306 = vld [vmem:[#allocation5 + $0x98] sm:$0xff]
    %v5307 = vld [vmem:[#allocation5 + $0xa0] sm:$0xff]
    %v5308 = vld [vmem:[#allocation5 + $0xa8] sm:$0xff]
    %v5309 = vld [vmem:[#allocation5 + $0xb0] sm:$0xff]
    %v5310 = vld [vmem:[#allocation5 + $0xb8] sm:$0xff]
    %v5311 = vld [vmem:[#allocation5 + $0xc0] sm:$0xff]
    %v5312 = vld [vmem:[#allocation5 + $0xc8] sm:$0xff]
    %v5313 = vld [vmem:[#allocation5 + $0xd0] sm:$0xff]
    %v5314 = vld [vmem:[#allocation5 + $0xd8] sm:$0xff]
    %v5315 = vld [vmem:[#allocation5 + $0xe0] sm:$0xff]
    %v5316 = vld [vmem:[#allocation5 + $0xe8] sm:$0xff]
    %v5317 = vld [vmem:[#allocation5 + $0xf0] sm:$0xff]
    %v5318 = vld [vmem:[#allocation5 + $0xf8] sm:$0xff]
    %v5319 = vld [vmem:[#allocation5 + $0x100] sm:$0xff]
    %v5320 = vld [vmem:[#allocation5 + $0x108] sm:$0xff]
    %v5321 = vld [vmem:[#allocation5 + $0x110] sm:$0xff]
    %v5322 = vld [vmem:[#allocation5 + $0x118] sm:$0xff]
    %v5323 = vld [vmem:[#allocation5 + $0x120] sm:$0xff]
    %v5324 = vld [vmem:[#allocation5 + $0x128] sm:$0xff]
    %v5325 = vld [vmem:[#allocation5 + $0x130] sm:$0xff]
    %v5326 = vld [vmem:[#allocation5 + $0x138] sm:$0xff]
    %v5327 = vld [vmem:[#allocation5 + $0x140] sm:$0xff]
    %v5328 = vld [vmem:[#allocation5 + $0x148] sm:$0xff]
    %v5329 = vld [vmem:[#allocation5 + $0x150] sm:$0xff]
    %v5330 = vld [vmem:[#allocation5 + $0x158] sm:$0xff]
    %v5331 = vld [vmem:[#allocation5 + $0x160] sm:$0xff]
    %v5332 = vld [vmem:[#allocation5 + $0x168] sm:$0xff]
    %v5333 = vld [vmem:[#allocation5 + $0x170] sm:$0xff]
    %v5334 = vld [vmem:[#allocation5 + $0x178] sm:$0xff]
    %v5335 = vld [vmem:[#allocation5 + $0x180] sm:$0xff]
    %v5336 = vld [vmem:[#allocation5 + $0x188] sm:$0xff]
    %v5337 = vld [vmem:[#allocation5 + $0x190] sm:$0xff]
    %v5338 = vld [vmem:[#allocation5 + $0x198] sm:$0xff]
    %v5339 = vld [vmem:[#allocation5 + $0x1a0] sm:$0xff]
    %v5340 = vld [vmem:[#allocation5 + $0x1a8] sm:$0xff]
    %v5341 = vld [vmem:[#allocation5 + $0x1b0] sm:$0xff]
    %v5342 = vld [vmem:[#allocation5 + $0x1b8] sm:$0xff]
    %v5343 = vld [vmem:[#allocation5 + $0x1c0] sm:$0xff]
    %v5344 = vld [vmem:[#allocation5 + $0x1c8] sm:$0xff]
    %v5345 = vld [vmem:[#allocation5 + $0x1d0] sm:$0xff]
    %v5346 = vld [vmem:[#allocation5 + $0x1d8] sm:$0xff]
    %v5347 = vld [vmem:[#allocation5 + $0x1e0] sm:$0xff]
    %v5348 = vld [vmem:[#allocation5 + $0x1e8] sm:$0xff]
    %v5349 = vld [vmem:[#allocation5 + $0x1f0] sm:$0xff]
    %v5350 = vld [vmem:[#allocation5 + $0x1f8] sm:$0xff]
    %v5352 = vunpack.c.l.b16 %v5286
    %v5353 = vunpack.c.h.b16 %v5286
    %v5354 = vpack.c.b16 %v5352, %v5352
    %v5355 = vpack.c.b16 %v5353, %v5353
    %v5422 = vunpack.c.l.b16 %v5287
    %v5423 = vunpack.c.h.b16 %v5287
    %v5424 = vunpack.c.l.b16 %v5288
    %v5425 = vunpack.c.h.b16 %v5288
    %v5426 = vunpack.c.l.b16 %v5289
    %v5427 = vunpack.c.h.b16 %v5289
    %v5428 = vunpack.c.l.b16 %v5290
    %v5429 = vunpack.c.h.b16 %v5290
    %v5430 = vunpack.c.l.b16 %v5291
    %v5431 = vunpack.c.h.b16 %v5291
    %v5432 = vunpack.c.l.b16 %v5292
    %v5433 = vunpack.c.h.b16 %v5292
    %v5434 = vunpack.c.l.b16 %v5293
    %v5435 = vunpack.c.h.b16 %v5293
    %v5436 = vunpack.c.l.b16 %v5294
    %v5437 = vunpack.c.h.b16 %v5294
    %v5438 = vunpack.c.l.b16 %v5295
    %v5439 = vunpack.c.h.b16 %v5295
    %v5440 = vunpack.c.l.b16 %v5296
    %v5441 = vunpack.c.h.b16 %v5296
    %v5442 = vunpack.c.l.b16 %v5297
    %v5443 = vunpack.c.h.b16 %v5297
    %v5444 = vunpack.c.l.b16 %v5298
    %v5445 = vunpack.c.h.b16 %v5298
    %v5446 = vunpack.c.l.b16 %v5299
    %v5447 = vunpack.c.h.b16 %v5299
    %v5448 = vunpack.c.l.b16 %v5300
    %v5449 = vunpack.c.h.b16 %v5300
    %v5450 = vunpack.c.l.b16 %v5301
    %v5451 = vunpack.c.h.b16 %v5301
    %v5452 = vunpack.c.l.b16 %v5302
    %v5453 = vunpack.c.h.b16 %v5302
    %v5454 = vunpack.c.l.b16 %v5303
    %v5455 = vunpack.c.h.b16 %v5303
    %v5456 = vunpack.c.l.b16 %v5304
    %v5457 = vunpack.c.h.b16 %v5304
    %v5458 = vunpack.c.l.b16 %v5305
    %v5459 = vunpack.c.h.b16 %v5305
    %v5460 = vunpack.c.l.b16 %v5306
    %v5461 = vunpack.c.h.b16 %v5306
    %v5462 = vunpack.c.l.b16 %v5307
    %v5463 = vunpack.c.h.b16 %v5307
    %v5464 = vunpack.c.l.b16 %v5308
    %v5465 = vunpack.c.h.b16 %v5308
    %v5466 = vunpack.c.l.b16 %v5309
    %v5467 = vunpack.c.h.b16 %v5309
    %v5468 = vunpack.c.l.b16 %v5310
    %v5469 = vunpack.c.h.b16 %v5310
    %v5470 = vunpack.c.l.b16 %v5311
    %v5471 = vunpack.c.h.b16 %v5311
    %v5472 = vunpack.c.l.b16 %v5312
    %v5473 = vunpack.c.h.b16 %v5312
    %v5474 = vunpack.c.l.b16 %v5313
    %v5475 = vunpack.c.h.b16 %v5313
    %v5476 = vunpack.c.l.b16 %v5314
    %v5477 = vunpack.c.h.b16 %v5314
    %v5478 = vunpack.c.l.b16 %v5315
    %v5479 = vunpack.c.h.b16 %v5315
    %v5480 = vunpack.c.l.b16 %v5316
    %v5481 = vunpack.c.h.b16 %v5316
    %v5482 = vunpack.c.l.b16 %v5317
    %v5483 = vunpack.c.h.b16 %v5317
    %v5484 = vunpack.c.l.b16 %v5318
    %v5485 = vunpack.c.h.b16 %v5318
    %v5486 = vunpack.c.l.b16 %v5319
    %v5487 = vunpack.c.h.b16 %v5319
    %v5488 = vunpack.c.l.b16 %v5320
    %v5489 = vunpack.c.h.b16 %v5320
    %v5490 = vunpack.c.l.b16 %v5321
    %v5491 = vunpack.c.h.b16 %v5321
    %v5492 = vunpack.c.l.b16 %v5322
    %v5493 = vunpack.c.h.b16 %v5322
    %v5494 = vunpack.c.l.b16 %v5323
    %v5495 = vunpack.c.h.b16 %v5323
    %v5496 = vunpack.c.l.b16 %v5324
    %v5497 = vunpack.c.h.b16 %v5324
    %v5498 = vunpack.c.l.b16 %v5325
    %v5499 = vunpack.c.h.b16 %v5325
    %v5500 = vunpack.c.l.b16 %v5326
    %v5501 = vunpack.c.h.b16 %v5326
    %v5502 = vunpack.c.l.b16 %v5327
    %v5503 = vunpack.c.h.b16 %v5327
    %v5504 = vunpack.c.l.b16 %v5328
    %v5505 = vunpack.c.h.b16 %v5328
    %v5506 = vunpack.c.l.b16 %v5329
    %v5507 = vunpack.c.h.b16 %v5329
    %v5508 = vunpack.c.l.b16 %v5330
    %v5509 = vunpack.c.h.b16 %v5330
    %v5510 = vunpack.c.l.b16 %v5331
    %v5511 = vunpack.c.h.b16 %v5331
    %v5512 = vunpack.c.l.b16 %v5332
    %v5513 = vunpack.c.h.b16 %v5332
    %v5514 = vunpack.c.l.b16 %v5333
    %v5515 = vunpack.c.h.b16 %v5333
    %v5516 = vunpack.c.l.b16 %v5334
    %v5517 = vunpack.c.h.b16 %v5334
    %v5518 = vunpack.c.l.b16 %v5335
    %v5519 = vunpack.c.h.b16 %v5335
    %v5520 = vunpack.c.l.b16 %v5336
    %v5521 = vunpack.c.h.b16 %v5336
    %v5522 = vunpack.c.l.b16 %v5337
    %v5523 = vunpack.c.h.b16 %v5337
    %v5524 = vunpack.c.l.b16 %v5338
    %v5525 = vunpack.c.h.b16 %v5338
    %v5526 = vunpack.c.l.b16 %v5339
    %v5527 = vunpack.c.h.b16 %v5339
    %v5528 = vunpack.c.l.b16 %v5340
    %v5529 = vunpack.c.h.b16 %v5340
    %v5530 = vunpack.c.l.b16 %v5341
    %v5531 = vunpack.c.h.b16 %v5341
    %v5532 = vunpack.c.l.b16 %v5342
    %v5533 = vunpack.c.h.b16 %v5342
    %v5534 = vunpack.c.l.b16 %v5343
    %v5535 = vunpack.c.h.b16 %v5343
    %v5536 = vunpack.c.l.b16 %v5344
    %v5537 = vunpack.c.h.b16 %v5344
    %v5538 = vunpack.c.l.b16 %v5345
    %v5539 = vunpack.c.h.b16 %v5345
    %v5540 = vunpack.c.l.b16 %v5346
    %v5541 = vunpack.c.h.b16 %v5346
    %v5542 = vunpack.c.l.b16 %v5347
    %v5543 = vunpack.c.h.b16 %v5347
    %v5544 = vunpack.c.l.b16 %v5348
    %v5545 = vunpack.c.h.b16 %v5348
    %v5546 = vunpack.c.l.b16 %v5349
    %v5547 = vunpack.c.h.b16 %v5349
    %v5548 = vunpack.c.l.b16 %v5350
    %v5549 = vunpack.c.h.b16 %v5350
    %v5550 = vpack.c.b16 %v5426, %v5422
    %v5551 = vpack.c.b16 %v5427, %v5423
    %v5552 = vpack.c.b16 %v5428, %v5424
    %v5553 = vpack.c.b16 %v5429, %v5425
    %v5554 = vpack.c.b16 %v5434, %v5430
    %v5555 = vpack.c.b16 %v5435, %v5431
    %v5556 = vpack.c.b16 %v5436, %v5432
    %v5557 = vpack.c.b16 %v5437, %v5433
    %v5558 = vpack.c.b16 %v5442, %v5438
    %v5559 = vpack.c.b16 %v5443, %v5439
    %v5560 = vpack.c.b16 %v5444, %v5440
    %v5561 = vpack.c.b16 %v5445, %v5441
    %v5562 = vpack.c.b16 %v5450, %v5446
    %v5563 = vpack.c.b16 %v5451, %v5447
    %v5564 = vpack.c.b16 %v5452, %v5448
    %v5565 = vpack.c.b16 %v5453, %v5449
    %v5566 = vpack.c.b16 %v5458, %v5454
    %v5567 = vpack.c.b16 %v5459, %v5455
    %v5568 = vpack.c.b16 %v5460, %v5456
    %v5569 = vpack.c.b16 %v5461, %v5457
    %v5570 = vpack.c.b16 %v5466, %v5462
    %v5571 = vpack.c.b16 %v5467, %v5463
    %v5572 = vpack.c.b16 %v5468, %v5464
    %v5573 = vpack.c.b16 %v5469, %v5465
    %v5574 = vpack.c.b16 %v5474, %v5470
    %v5575 = vpack.c.b16 %v5475, %v5471
    %v5576 = vpack.c.b16 %v5476, %v5472
    %v5577 = vpack.c.b16 %v5477, %v5473
    %v5578 = vpack.c.b16 %v5482, %v5478
    %v5579 = vpack.c.b16 %v5483, %v5479
    %v5580 = vpack.c.b16 %v5484, %v5480
    %v5581 = vpack.c.b16 %v5485, %v5481
    %v5582 = vpack.c.b16 %v5490, %v5486
    %v5583 = vpack.c.b16 %v5491, %v5487
    %v5584 = vpack.c.b16 %v5492, %v5488
    %v5585 = vpack.c.b16 %v5493, %v5489
    %v5586 = vpack.c.b16 %v5498, %v5494
    %v5587 = vpack.c.b16 %v5499, %v5495
    %v5588 = vpack.c.b16 %v5500, %v5496
    %v5589 = vpack.c.b16 %v5501, %v5497
    %v5590 = vpack.c.b16 %v5506, %v5502
    %v5591 = vpack.c.b16 %v5507, %v5503
    %v5592 = vpack.c.b16 %v5508, %v5504
    %v5593 = vpack.c.b16 %v5509, %v5505
    %v5594 = vpack.c.b16 %v5514, %v5510
    %v5595 = vpack.c.b16 %v5515, %v5511
    %v5596 = vpack.c.b16 %v5516, %v5512
    %v5597 = vpack.c.b16 %v5517, %v5513
    %v5598 = vpack.c.b16 %v5522, %v5518
    %v5599 = vpack.c.b16 %v5523, %v5519
    %v5600 = vpack.c.b16 %v5524, %v5520
    %v5601 = vpack.c.b16 %v5525, %v5521
    %v5602 = vpack.c.b16 %v5530, %v5526
    %v5603 = vpack.c.b16 %v5531, %v5527
    %v5604 = vpack.c.b16 %v5532, %v5528
    %v5605 = vpack.c.b16 %v5533, %v5529
    %v5606 = vpack.c.b16 %v5538, %v5534
    %v5607 = vpack.c.b16 %v5539, %v5535
    %v5608 = vpack.c.b16 %v5540, %v5536
    %v5609 = vpack.c.b16 %v5541, %v5537
    %v5610 = vpack.c.b16 %v5546, %v5542
    %v5611 = vpack.c.b16 %v5547, %v5543
    %v5612 = vpack.c.b16 %v5548, %v5544
    %v5613 = vpack.c.b16 %v5549, %v5545
    %5678 = vmatprep.subr.bf16.mxu0 %v5579
    %5679 = vmatpush1.bf16.msra.mxu0 %v5578
    %5680 = vmatprep.subr.bf16.mxu0 %v5575
    %5681 = vmatpush1.bf16.msra.mxu0 %v5574
    %5682 = vmatprep.subr.bf16.mxu0 %v5571
    %5683 = vmatpush1.bf16.msra.mxu0 %v5570
    %5684 = vmatprep.subr.bf16.mxu0 %v5567
    %5685 = vmatpush1.bf16.msra.mxu0 %v5566
    %5686 = vmatprep.subr.bf16.mxu0 %v5563
    %5687 = vmatpush1.bf16.msra.mxu0 %v5562
    %5688 = vmatprep.subr.bf16.mxu0 %v5559
    %5689 = vmatpush1.bf16.msra.mxu0 %v5558
    %5690 = vmatprep.subr.bf16.mxu0 %v5555
    %5691 = vmatpush1.bf16.msra.mxu0 %v5554
    %5692 = vmatprep.subr.bf16.mxu0 %v5551
    %5693 = vmatpush1.bf16.msra.mxu0 %v5550
    %5694 = vmatprep.subr.bf16.mxu0 %v5611
    %5695 = vmatpush2.bf16.msra.mxu0 %v5610
    %5696 = vmatprep.subr.bf16.mxu0 %v5607
    %5697 = vmatpush2.bf16.msra.mxu0 %v5606
    %5698 = vmatprep.subr.bf16.mxu0 %v5603
    %5699 = vmatpush2.bf16.msra.mxu0 %v5602
    %5700 = vmatprep.subr.bf16.mxu0 %v5599
    %5701 = vmatpush2.bf16.msra.mxu0 %v5598
    %5702 = vmatprep.subr.bf16.mxu0 %v5595
    %5703 = vmatpush2.bf16.msra.mxu0 %v5594
    %5704 = vmatprep.subr.bf16.mxu0 %v5591
    %5705 = vmatpush2.bf16.msra.mxu0 %v5590
    %5706 = vmatprep.subr.bf16.mxu0 %v5587
    %5707 = vmatpush2.bf16.msra.mxu0 %v5586
    %5708 = vmatprep.subr.bf16.mxu0 %v5583
    %5709 = vmatpush2.bf16.msra.mxu0 %v5582
    %5710 = vmatprep.mubr.bf16.mxu0 %v5355
    %5711 = vmatmul.mubr.bf16.gmra.mxu0 %v5354
    %v5712 = vpop.f32.mrf.mxu0
    %v5713 = vadd.f32 %v108, %v5712
    %v5714 = vpop.f32.mrf.mxu0
    %v5715 = vadd.f32 %v112, %v5714
    %v5716 = vpop.f32.mrf.mxu0
    %v5717 = vpop.f32.mrf.mxu0
    %5718 = vdwg.mxu0
    %5719 = vmatprep.subr.bf16.mxu0 %v5581
    %5720 = vmatpush1.bf16.msra.mxu0 %v5580
    %5721 = vmatprep.subr.bf16.mxu0 %v5577
    %5722 = vmatpush1.bf16.msra.mxu0 %v5576
    %5723 = vmatprep.subr.bf16.mxu0 %v5573
    %5724 = vmatpush1.bf16.msra.mxu0 %v5572
    %5725 = vmatprep.subr.bf16.mxu0 %v5569
    %5726 = vmatpush1.bf16.msra.mxu0 %v5568
    %5727 = vmatprep.subr.bf16.mxu0 %v5565
    %5728 = vmatpush1.bf16.msra.mxu0 %v5564
    %5729 = vmatprep.subr.bf16.mxu0 %v5561
    %5730 = vmatpush1.bf16.msra.mxu0 %v5560
    %5731 = vmatprep.subr.bf16.mxu0 %v5557
    %5732 = vmatpush1.bf16.msra.mxu0 %v5556
    %5733 = vmatprep.subr.bf16.mxu0 %v5553
    %5734 = vmatpush1.bf16.msra.mxu0 %v5552
    %5735 = vmatprep.subr.bf16.mxu0 %v5613
    %5736 = vmatpush2.bf16.msra.mxu0 %v5612
    %5737 = vmatprep.subr.bf16.mxu0 %v5609
    %5738 = vmatpush2.bf16.msra.mxu0 %v5608
    %5739 = vmatprep.subr.bf16.mxu0 %v5605
    %5740 = vmatpush2.bf16.msra.mxu0 %v5604
    %5741 = vmatprep.subr.bf16.mxu0 %v5601
    %5742 = vmatpush2.bf16.msra.mxu0 %v5600
    %5743 = vmatprep.subr.bf16.mxu0 %v5597
    %5744 = vmatpush2.bf16.msra.mxu0 %v5596
    %5745 = vmatprep.subr.bf16.mxu0 %v5593
    %5746 = vmatpush2.bf16.msra.mxu0 %v5592
    %5747 = vmatprep.subr.bf16.mxu0 %v5589
    %5748 = vmatpush2.bf16.msra.mxu0 %v5588
    %5749 = vmatprep.subr.bf16.mxu0 %v5585
    %5750 = vmatpush2.bf16.msra.mxu0 %v5584
    %5751 = vmatprep.mubr.bf16.mxu0 %v5355
    %5752 = vmatmul.mubr.bf16.gmra.mxu0 %v5354
    %v5753 = vpop.f32.mrf.mxu0
    %v5754 = vadd.f32 %v116, %v5753
    %v5755 = vpop.f32.mrf.mxu0
    %v5756 = vadd.f32 %v120, %v5755
    %v5757 = vpop.f32.mrf.mxu0
    %v5758 = vpop.f32.mrf.mxu0
    %5759 = vdwg.mxu0
    %v5760 = vmul.f32 %v5713, 0.5
    %v5761 = vmul.f32 %v5715, 0.5
    %v5762 = vmul.f32 %v5754, 0.5
    %v5763 = vtanh.pop %v5760
    %v5764 = vtanh.pop %v5761
    %v5765 = vtanh.pop %v5762
    %v5766 = vmul.f32 %v5763, 0.5
    %v5767 = vmul.f32 %v5764, 0.5
    %v5768 = vmul.f32 %v5765, 0.5
    %v5769 = vadd.f32 %v5766, 0.5
    %v5770 = vadd.f32 %v5767, 0.5
    %v5771 = vadd.f32 %v5768, 0.5
    %v5772 = vtanh.pop %v5756
    %v5773 = vmul.f32 %v5770, %v4967
    %v5774 = vmul.f32 %v5769, %v5772
    %v5775 = vadd.f32 %v5773, %v5774
    %v5776 = vtanh.pop %v5775
    %v5777 = vmul.f32 %v5771, %v5776
    %v5778 = vpack.c.bf16 %v5777, %v5777
    %5779 = vst [vmem:[#allocation2 + $0x4] sm:$0xf] %v5778
    %s5780 = scalar_lea.vmem %s0, 56
    %v5781 = vld [vmem:[%s5780] sm:$0xff]
    %5783 = vset.pattern.permute.xlu0 0
    %5784 = vperm.xlu0 %5783, %v5781
    %v5785 = vpop.permute.xlu0 %5784
    %v5787 = vmul.f32 %v5785, %v64
    %v5788 = vmul.f32 %v5785, %v68
    %v5789 = vmul.f32 %v5785, %v72
    %v5790 = vmul.f32 %v5785, %v76
    %v5791 = vadd.f32 %v5787, %v86
    %v5792 = vadd.f32 %v5788, %v90
    %v5793 = vadd.f32 %v5789, %v94
    %v5794 = vadd.f32 %v5790, %v98
    %v5795 = vld [vmem:[#allocation2] sm:$0xf]
    %v5796 = vld [vmem:[#allocation3] sm:$0xff]
    %v5797 = vld [vmem:[#allocation3 + $0x8] sm:$0xff]
    %v5798 = vld [vmem:[#allocation3 + $0x10] sm:$0xff]
    %v5799 = vld [vmem:[#allocation3 + $0x18] sm:$0xff]
    %v5800 = vld [vmem:[#allocation3 + $0x20] sm:$0xff]
    %v5801 = vld [vmem:[#allocation3 + $0x28] sm:$0xff]
    %v5802 = vld [vmem:[#allocation3 + $0x30] sm:$0xff]
    %v5803 = vld [vmem:[#allocation3 + $0x38] sm:$0xff]
    %v5804 = vld [vmem:[#allocation3 + $0x40] sm:$0xff]
    %v5805 = vld [vmem:[#allocation3 + $0x48] sm:$0xff]
    %v5806 = vld [vmem:[#allocation3 + $0x50] sm:$0xff]
    %v5807 = vld [vmem:[#allocation3 + $0x58] sm:$0xff]
    %v5808 = vld [vmem:[#allocation3 + $0x60] sm:$0xff]
    %v5809 = vld [vmem:[#allocation3 + $0x68] sm:$0xff]
    %v5810 = vld [vmem:[#allocation3 + $0x70] sm:$0xff]
    %v5811 = vld [vmem:[#allocation3 + $0x78] sm:$0xff]
    %v5812 = vld [vmem:[#allocation3 + $0x80] sm:$0xff]
    %v5813 = vld [vmem:[#allocation3 + $0x88] sm:$0xff]
    %v5814 = vld [vmem:[#allocation3 + $0x90] sm:$0xff]
    %v5815 = vld [vmem:[#allocation3 + $0x98] sm:$0xff]
    %v5816 = vld [vmem:[#allocation3 + $0xa0] sm:$0xff]
    %v5817 = vld [vmem:[#allocation3 + $0xa8] sm:$0xff]
    %v5818 = vld [vmem:[#allocation3 + $0xb0] sm:$0xff]
    %v5819 = vld [vmem:[#allocation3 + $0xb8] sm:$0xff]
    %v5820 = vld [vmem:[#allocation3 + $0xc0] sm:$0xff]
    %v5821 = vld [vmem:[#allocation3 + $0xc8] sm:$0xff]
    %v5822 = vld [vmem:[#allocation3 + $0xd0] sm:$0xff]
    %v5823 = vld [vmem:[#allocation3 + $0xd8] sm:$0xff]
    %v5824 = vld [vmem:[#allocation3 + $0xe0] sm:$0xff]
    %v5825 = vld [vmem:[#allocation3 + $0xe8] sm:$0xff]
    %v5826 = vld [vmem:[#allocation3 + $0xf0] sm:$0xff]
    %v5827 = vld [vmem:[#allocation3 + $0xf8] sm:$0xff]
    %v5860 = vunpack.c.l.b16 %v5796
    %v5861 = vunpack.c.h.b16 %v5796
    %v5862 = vunpack.c.l.b16 %v5797
    %v5863 = vunpack.c.h.b16 %v5797
    %v5864 = vunpack.c.l.b16 %v5798
    %v5865 = vunpack.c.h.b16 %v5798
    %v5866 = vunpack.c.l.b16 %v5799
    %v5867 = vunpack.c.h.b16 %v5799
    %v5868 = vunpack.c.l.b16 %v5800
    %v5869 = vunpack.c.h.b16 %v5800
    %v5870 = vunpack.c.l.b16 %v5801
    %v5871 = vunpack.c.h.b16 %v5801
    %v5872 = vunpack.c.l.b16 %v5802
    %v5873 = vunpack.c.h.b16 %v5802
    %v5874 = vunpack.c.l.b16 %v5803
    %v5875 = vunpack.c.h.b16 %v5803
    %v5876 = vunpack.c.l.b16 %v5804
    %v5877 = vunpack.c.h.b16 %v5804
    %v5878 = vunpack.c.l.b16 %v5805
    %v5879 = vunpack.c.h.b16 %v5805
    %v5880 = vunpack.c.l.b16 %v5806
    %v5881 = vunpack.c.h.b16 %v5806
    %v5882 = vunpack.c.l.b16 %v5807
    %v5883 = vunpack.c.h.b16 %v5807
    %v5884 = vunpack.c.l.b16 %v5808
    %v5885 = vunpack.c.h.b16 %v5808
    %v5886 = vunpack.c.l.b16 %v5809
    %v5887 = vunpack.c.h.b16 %v5809
    %v5888 = vunpack.c.l.b16 %v5810
    %v5889 = vunpack.c.h.b16 %v5810
    %v5890 = vunpack.c.l.b16 %v5811
    %v5891 = vunpack.c.h.b16 %v5811
    %v5892 = vunpack.c.l.b16 %v5812
    %v5893 = vunpack.c.h.b16 %v5812
    %v5894 = vunpack.c.l.b16 %v5813
    %v5895 = vunpack.c.h.b16 %v5813
    %v5896 = vunpack.c.l.b16 %v5814
    %v5897 = vunpack.c.h.b16 %v5814
    %v5898 = vunpack.c.l.b16 %v5815
    %v5899 = vunpack.c.h.b16 %v5815
    %v5900 = vunpack.c.l.b16 %v5816
    %v5901 = vunpack.c.h.b16 %v5816
    %v5902 = vunpack.c.l.b16 %v5817
    %v5903 = vunpack.c.h.b16 %v5817
    %v5904 = vunpack.c.l.b16 %v5818
    %v5905 = vunpack.c.h.b16 %v5818
    %v5906 = vunpack.c.l.b16 %v5819
    %v5907 = vunpack.c.h.b16 %v5819
    %v5908 = vunpack.c.l.b16 %v5820
    %v5909 = vunpack.c.h.b16 %v5820
    %v5910 = vunpack.c.l.b16 %v5821
    %v5911 = vunpack.c.h.b16 %v5821
    %v5912 = vunpack.c.l.b16 %v5822
    %v5913 = vunpack.c.h.b16 %v5822
    %v5914 = vunpack.c.l.b16 %v5823
    %v5915 = vunpack.c.h.b16 %v5823
    %v5916 = vunpack.c.l.b16 %v5824
    %v5917 = vunpack.c.h.b16 %v5824
    %v5918 = vunpack.c.l.b16 %v5825
    %v5919 = vunpack.c.h.b16 %v5825
    %v5920 = vunpack.c.l.b16 %v5826
    %v5921 = vunpack.c.h.b16 %v5826
    %v5922 = vunpack.c.l.b16 %v5827
    %v5923 = vunpack.c.h.b16 %v5827
    %v5924 = vpack.c.b16 %v5864, %v5860
    %v5925 = vpack.c.b16 %v5865, %v5861
    %v5926 = vpack.c.b16 %v5866, %v5862
    %v5927 = vpack.c.b16 %v5867, %v5863
    %v5928 = vpack.c.b16 %v5872, %v5868
    %v5929 = vpack.c.b16 %v5873, %v5869
    %v5930 = vpack.c.b16 %v5874, %v5870
    %v5931 = vpack.c.b16 %v5875, %v5871
    %v5932 = vpack.c.b16 %v5880, %v5876
    %v5933 = vpack.c.b16 %v5881, %v5877
    %v5934 = vpack.c.b16 %v5882, %v5878
    %v5935 = vpack.c.b16 %v5883, %v5879
    %v5936 = vpack.c.b16 %v5888, %v5884
    %v5937 = vpack.c.b16 %v5889, %v5885
    %v5938 = vpack.c.b16 %v5890, %v5886
    %v5939 = vpack.c.b16 %v5891, %v5887
    %v5940 = vpack.c.b16 %v5896, %v5892
    %v5941 = vpack.c.b16 %v5897, %v5893
    %v5942 = vpack.c.b16 %v5898, %v5894
    %v5943 = vpack.c.b16 %v5899, %v5895
    %v5944 = vpack.c.b16 %v5904, %v5900
    %v5945 = vpack.c.b16 %v5905, %v5901
    %v5946 = vpack.c.b16 %v5906, %v5902
    %v5947 = vpack.c.b16 %v5907, %v5903
    %v5948 = vpack.c.b16 %v5912, %v5908
    %v5949 = vpack.c.b16 %v5913, %v5909
    %v5950 = vpack.c.b16 %v5914, %v5910
    %v5951 = vpack.c.b16 %v5915, %v5911
    %v5952 = vpack.c.b16 %v5920, %v5916
    %v5953 = vpack.c.b16 %v5921, %v5917
    %v5954 = vpack.c.b16 %v5922, %v5918
    %v5955 = vpack.c.b16 %v5923, %v5919
    %5988 = vmatprep.subr.bf16.mxu0 %v5953
    %5989 = vmatpush1.bf16.msra.mxu0 %v5952
    %5990 = vmatprep.subr.bf16.mxu0 %v5949
    %5991 = vmatpush1.bf16.msra.mxu0 %v5948
    %5992 = vmatprep.subr.bf16.mxu0 %v5945
    %5993 = vmatpush1.bf16.msra.mxu0 %v5944
    %5994 = vmatprep.subr.bf16.mxu0 %v5941
    %5995 = vmatpush1.bf16.msra.mxu0 %v5940
    %5996 = vmatprep.subr.bf16.mxu0 %v5937
    %5997 = vmatpush1.bf16.msra.mxu0 %v5936
    %5998 = vmatprep.subr.bf16.mxu0 %v5933
    %5999 = vmatpush1.bf16.msra.mxu0 %v5932
    %6000 = vmatprep.subr.bf16.mxu0 %v5929
    %6001 = vmatpush1.bf16.msra.mxu0 %v5928
    %6002 = vmatprep.subr.bf16.mxu0 %v5925
    %6003 = vmatpush1.bf16.msra.mxu0 %v5924
    %6004 = vmatprep.subr.bf16.mxu0 0
    %6005 = vmatpush2.bf16.msra.mxu0 0
    %6006 = vmatprep.subr.bf16.mxu0 0
    %6007 = vmatpush2.bf16.msra.mxu0 0
    %6008 = vmatprep.subr.bf16.mxu0 0
    %6009 = vmatpush2.bf16.msra.mxu0 0
    %6010 = vmatprep.subr.bf16.mxu0 0
    %6011 = vmatpush2.bf16.msra.mxu0 0
    %6012 = vmatprep.subr.bf16.mxu0 0
    %6013 = vmatpush2.bf16.msra.mxu0 0
    %6014 = vmatprep.subr.bf16.mxu0 0
    %6015 = vmatpush2.bf16.msra.mxu0 0
    %6016 = vmatprep.subr.bf16.mxu0 0
    %6017 = vmatpush2.bf16.msra.mxu0 0
    %6018 = vmatprep.subr.bf16.mxu0 0
    %6019 = vmatpush2.bf16.msra.mxu0 0
    %6020 = vmatprep.mubr.bf16.mxu0 0
    %6021 = vmatmul.mubr.bf16.gmra.mxu0 %v5795
    %v6022 = vpop.f32.mrf.mxu0
    %v6023 = vadd.f32 0.0, %v6022
    %v6024 = vpop.f32.mrf.mxu0
    %v6025 = vadd.f32 0.0, %v6024
    %v6026 = vpop.f32.mrf.mxu0
    %v6027 = vpop.f32.mrf.mxu0
    %6028 = vdwg.mxu0
    %6029 = vmatprep.subr.bf16.mxu0 %v5955
    %6030 = vmatpush1.bf16.msra.mxu0 %v5954
    %6031 = vmatprep.subr.bf16.mxu0 %v5951
    %6032 = vmatpush1.bf16.msra.mxu0 %v5950
    %6033 = vmatprep.subr.bf16.mxu0 %v5947
    %6034 = vmatpush1.bf16.msra.mxu0 %v5946
    %6035 = vmatprep.subr.bf16.mxu0 %v5943
    %6036 = vmatpush1.bf16.msra.mxu0 %v5942
    %6037 = vmatprep.subr.bf16.mxu0 %v5939
    %6038 = vmatpush1.bf16.msra.mxu0 %v5938
    %6039 = vmatprep.subr.bf16.mxu0 %v5935
    %6040 = vmatpush1.bf16.msra.mxu0 %v5934
    %6041 = vmatprep.subr.bf16.mxu0 %v5931
    %6042 = vmatpush1.bf16.msra.mxu0 %v5930
    %6043 = vmatprep.subr.bf16.mxu0 %v5927
    %6044 = vmatpush1.bf16.msra.mxu0 %v5926
    %6045 = vmatprep.subr.bf16.mxu0 0
    %6046 = vmatpush2.bf16.msra.mxu0 0
    %6047 = vmatprep.subr.bf16.mxu0 0
    %6048 = vmatpush2.bf16.msra.mxu0 0
    %6049 = vmatprep.subr.bf16.mxu0 0
    %6050 = vmatpush2.bf16.msra.mxu0 0
    %6051 = vmatprep.subr.bf16.mxu0 0
    %6052 = vmatpush2.bf16.msra.mxu0 0
    %6053 = vmatprep.subr.bf16.mxu0 0
    %6054 = vmatpush2.bf16.msra.mxu0 0
    %6055 = vmatprep.subr.bf16.mxu0 0
    %6056 = vmatpush2.bf16.msra.mxu0 0
    %6057 = vmatprep.subr.bf16.mxu0 0
    %6058 = vmatpush2.bf16.msra.mxu0 0
    %6059 = vmatprep.subr.bf16.mxu0 0
    %6060 = vmatpush2.bf16.msra.mxu0 0
    %6061 = vmatprep.mubr.bf16.mxu0 0
    %6062 = vmatmul.mubr.bf16.gmra.mxu0 %v5795
    %v6063 = vpop.f32.mrf.mxu0
    %v6064 = vadd.f32 0.0, %v6063
    %v6065 = vpop.f32.mrf.mxu0
    %v6066 = vadd.f32 0.0, %v6065
    %v6067 = vpop.f32.mrf.mxu0
    %v6068 = vpop.f32.mrf.mxu0
    %6069 = vdwg.mxu0
    %v6070 = vadd.f32 %v5791, %v6023
    %v6071 = vadd.f32 %v5792, %v6025
    %v6072 = vadd.f32 %v5793, %v6064
    %v6073 = vadd.f32 %v5794, %v6066
    %v6074 = vmul.f32 %v6070, 0.5
    %v6075 = vmul.f32 %v6071, 0.5
    %v6076 = vmul.f32 %v6072, 0.5
    %v6077 = vtanh.pop %v6074
    %v6078 = vtanh.pop %v6075
    %v6079 = vtanh.pop %v6076
    %v6080 = vmul.f32 %v6077, 0.5
    %v6081 = vmul.f32 %v6078, 0.5
    %v6082 = vmul.f32 %v6079, 0.5
    %v6083 = vadd.f32 %v6080, 0.5
    %v6084 = vadd.f32 %v6081, 0.5
    %v6085 = vadd.f32 %v6082, 0.5
    %v6086 = vtanh.pop %v6073
    %v6087 = vmul.f32 %v6084, %v5281
    %v6088 = vmul.f32 %v6083, %v6086
    %v6089 = vadd.f32 %v6087, %v6088
    %v6090 = vtanh.pop %v6089
    %v6091 = vmul.f32 %v6085, %v6090
    %v6092 = vpack.c.bf16 %v6091, %v6091
    %6093 = vst [vmem:[#allocation2] sm:$0xf] %v6092
    %v6094 = vld [vmem:[#allocation2] sm:$0xff]
    %v6095 = vld [vmem:[#allocation5] sm:$0xff]
    %v6096 = vld [vmem:[#allocation5 + $0x8] sm:$0xff]
    %v6097 = vld [vmem:[#allocation5 + $0x10] sm:$0xff]
    %v6098 = vld [vmem:[#allocation5 + $0x18] sm:$0xff]
    %v6099 = vld [vmem:[#allocation5 + $0x20] sm:$0xff]
    %v6100 = vld [vmem:[#allocation5 + $0x28] sm:$0xff]
    %v6101 = vld [vmem:[#allocation5 + $0x30] sm:$0xff]
    %v6102 = vld [vmem:[#allocation5 + $0x38] sm:$0xff]
    %v6103 = vld [vmem:[#allocation5 + $0x40] sm:$0xff]
    %v6104 = vld [vmem:[#allocation5 + $0x48] sm:$0xff]
    %v6105 = vld [vmem:[#allocation5 + $0x50] sm:$0xff]
    %v6106 = vld [vmem:[#allocation5 + $0x58] sm:$0xff]
    %v6107 = vld [vmem:[#allocation5 + $0x60] sm:$0xff]
    %v6108 = vld [vmem:[#allocation5 + $0x68] sm:$0xff]
    %v6109 = vld [vmem:[#allocation5 + $0x70] sm:$0xff]
    %v6110 = vld [vmem:[#allocation5 + $0x78] sm:$0xff]
    %v6111 = vld [vmem:[#allocation5 + $0x80] sm:$0xff]
    %v6112 = vld [vmem:[#allocation5 + $0x88] sm:$0xff]
    %v6113 = vld [vmem:[#allocation5 + $0x90] sm:$0xff]
    %v6114 = vld [vmem:[#allocation5 + $0x98] sm:$0xff]
    %v6115 = vld [vmem:[#allocation5 + $0xa0] sm:$0xff]
    %v6116 = vld [vmem:[#allocation5 + $0xa8] sm:$0xff]
    %v6117 = vld [vmem:[#allocation5 + $0xb0] sm:$0xff]
    %v6118 = vld [vmem:[#allocation5 + $0xb8] sm:$0xff]
    %v6119 = vld [vmem:[#allocation5 + $0xc0] sm:$0xff]
    %v6120 = vld [vmem:[#allocation5 + $0xc8] sm:$0xff]
    %v6121 = vld [vmem:[#allocation5 + $0xd0] sm:$0xff]
    %v6122 = vld [vmem:[#allocation5 + $0xd8] sm:$0xff]
    %v6123 = vld [vmem:[#allocation5 + $0xe0] sm:$0xff]
    %v6124 = vld [vmem:[#allocation5 + $0xe8] sm:$0xff]
    %v6125 = vld [vmem:[#allocation5 + $0xf0] sm:$0xff]
    %v6126 = vld [vmem:[#allocation5 + $0xf8] sm:$0xff]
    %v6127 = vld [vmem:[#allocation5 + $0x100] sm:$0xff]
    %v6128 = vld [vmem:[#allocation5 + $0x108] sm:$0xff]
    %v6129 = vld [vmem:[#allocation5 + $0x110] sm:$0xff]
    %v6130 = vld [vmem:[#allocation5 + $0x118] sm:$0xff]
    %v6131 = vld [vmem:[#allocation5 + $0x120] sm:$0xff]
    %v6132 = vld [vmem:[#allocation5 + $0x128] sm:$0xff]
    %v6133 = vld [vmem:[#allocation5 + $0x130] sm:$0xff]
    %v6134 = vld [vmem:[#allocation5 + $0x138] sm:$0xff]
    %v6135 = vld [vmem:[#allocation5 + $0x140] sm:$0xff]
    %v6136 = vld [vmem:[#allocation5 + $0x148] sm:$0xff]
    %v6137 = vld [vmem:[#allocation5 + $0x150] sm:$0xff]
    %v6138 = vld [vmem:[#allocation5 + $0x158] sm:$0xff]
    %v6139 = vld [vmem:[#allocation5 + $0x160] sm:$0xff]
    %v6140 = vld [vmem:[#allocation5 + $0x168] sm:$0xff]
    %v6141 = vld [vmem:[#allocation5 + $0x170] sm:$0xff]
    %v6142 = vld [vmem:[#allocation5 + $0x178] sm:$0xff]
    %v6143 = vld [vmem:[#allocation5 + $0x180] sm:$0xff]
    %v6144 = vld [vmem:[#allocation5 + $0x188] sm:$0xff]
    %v6145 = vld [vmem:[#allocation5 + $0x190] sm:$0xff]
    %v6146 = vld [vmem:[#allocation5 + $0x198] sm:$0xff]
    %v6147 = vld [vmem:[#allocation5 + $0x1a0] sm:$0xff]
    %v6148 = vld [vmem:[#allocation5 + $0x1a8] sm:$0xff]
    %v6149 = vld [vmem:[#allocation5 + $0x1b0] sm:$0xff]
    %v6150 = vld [vmem:[#allocation5 + $0x1b8] sm:$0xff]
    %v6151 = vld [vmem:[#allocation5 + $0x1c0] sm:$0xff]
    %v6152 = vld [vmem:[#allocation5 + $0x1c8] sm:$0xff]
    %v6153 = vld [vmem:[#allocation5 + $0x1d0] sm:$0xff]
    %v6154 = vld [vmem:[#allocation5 + $0x1d8] sm:$0xff]
    %v6155 = vld [vmem:[#allocation5 + $0x1e0] sm:$0xff]
    %v6156 = vld [vmem:[#allocation5 + $0x1e8] sm:$0xff]
    %v6157 = vld [vmem:[#allocation5 + $0x1f0] sm:$0xff]
    %v6158 = vld [vmem:[#allocation5 + $0x1f8] sm:$0xff]
    %v6160 = vunpack.c.l.b16 %v6094
    %v6161 = vunpack.c.h.b16 %v6094
    %v6162 = vpack.c.b16 %v6160, %v6160
    %v6163 = vpack.c.b16 %v6161, %v6161
    %v6230 = vunpack.c.l.b16 %v6095
    %v6231 = vunpack.c.h.b16 %v6095
    %v6232 = vunpack.c.l.b16 %v6096
    %v6233 = vunpack.c.h.b16 %v6096
    %v6234 = vunpack.c.l.b16 %v6097
    %v6235 = vunpack.c.h.b16 %v6097
    %v6236 = vunpack.c.l.b16 %v6098
    %v6237 = vunpack.c.h.b16 %v6098
    %v6238 = vunpack.c.l.b16 %v6099
    %v6239 = vunpack.c.h.b16 %v6099
    %v6240 = vunpack.c.l.b16 %v6100
    %v6241 = vunpack.c.h.b16 %v6100
    %v6242 = vunpack.c.l.b16 %v6101
    %v6243 = vunpack.c.h.b16 %v6101
    %v6244 = vunpack.c.l.b16 %v6102
    %v6245 = vunpack.c.h.b16 %v6102
    %v6246 = vunpack.c.l.b16 %v6103
    %v6247 = vunpack.c.h.b16 %v6103
    %v6248 = vunpack.c.l.b16 %v6104
    %v6249 = vunpack.c.h.b16 %v6104
    %v6250 = vunpack.c.l.b16 %v6105
    %v6251 = vunpack.c.h.b16 %v6105
    %v6252 = vunpack.c.l.b16 %v6106
    %v6253 = vunpack.c.h.b16 %v6106
    %v6254 = vunpack.c.l.b16 %v6107
    %v6255 = vunpack.c.h.b16 %v6107
    %v6256 = vunpack.c.l.b16 %v6108
    %v6257 = vunpack.c.h.b16 %v6108
    %v6258 = vunpack.c.l.b16 %v6109
    %v6259 = vunpack.c.h.b16 %v6109
    %v6260 = vunpack.c.l.b16 %v6110
    %v6261 = vunpack.c.h.b16 %v6110
    %v6262 = vunpack.c.l.b16 %v6111
    %v6263 = vunpack.c.h.b16 %v6111
    %v6264 = vunpack.c.l.b16 %v6112
    %v6265 = vunpack.c.h.b16 %v6112
    %v6266 = vunpack.c.l.b16 %v6113
    %v6267 = vunpack.c.h.b16 %v6113
    %v6268 = vunpack.c.l.b16 %v6114
    %v6269 = vunpack.c.h.b16 %v6114
    %v6270 = vunpack.c.l.b16 %v6115
    %v6271 = vunpack.c.h.b16 %v6115
    %v6272 = vunpack.c.l.b16 %v6116
    %v6273 = vunpack.c.h.b16 %v6116
    %v6274 = vunpack.c.l.b16 %v6117
    %v6275 = vunpack.c.h.b16 %v6117
    %v6276 = vunpack.c.l.b16 %v6118
    %v6277 = vunpack.c.h.b16 %v6118
    %v6278 = vunpack.c.l.b16 %v6119
    %v6279 = vunpack.c.h.b16 %v6119
    %v6280 = vunpack.c.l.b16 %v6120
    %v6281 = vunpack.c.h.b16 %v6120
    %v6282 = vunpack.c.l.b16 %v6121
    %v6283 = vunpack.c.h.b16 %v6121
    %v6284 = vunpack.c.l.b16 %v6122
    %v6285 = vunpack.c.h.b16 %v6122
    %v6286 = vunpack.c.l.b16 %v6123
    %v6287 = vunpack.c.h.b16 %v6123
    %v6288 = vunpack.c.l.b16 %v6124
    %v6289 = vunpack.c.h.b16 %v6124
    %v6290 = vunpack.c.l.b16 %v6125
    %v6291 = vunpack.c.h.b16 %v6125
    %v6292 = vunpack.c.l.b16 %v6126
    %v6293 = vunpack.c.h.b16 %v6126
    %v6294 = vunpack.c.l.b16 %v6127
    %v6295 = vunpack.c.h.b16 %v6127
    %v6296 = vunpack.c.l.b16 %v6128
    %v6297 = vunpack.c.h.b16 %v6128
    %v6298 = vunpack.c.l.b16 %v6129
    %v6299 = vunpack.c.h.b16 %v6129
    %v6300 = vunpack.c.l.b16 %v6130
    %v6301 = vunpack.c.h.b16 %v6130
    %v6302 = vunpack.c.l.b16 %v6131
    %v6303 = vunpack.c.h.b16 %v6131
    %v6304 = vunpack.c.l.b16 %v6132
    %v6305 = vunpack.c.h.b16 %v6132
    %v6306 = vunpack.c.l.b16 %v6133
    %v6307 = vunpack.c.h.b16 %v6133
    %v6308 = vunpack.c.l.b16 %v6134
    %v6309 = vunpack.c.h.b16 %v6134
    %v6310 = vunpack.c.l.b16 %v6135
    %v6311 = vunpack.c.h.b16 %v6135
    %v6312 = vunpack.c.l.b16 %v6136
    %v6313 = vunpack.c.h.b16 %v6136
    %v6314 = vunpack.c.l.b16 %v6137
    %v6315 = vunpack.c.h.b16 %v6137
    %v6316 = vunpack.c.l.b16 %v6138
    %v6317 = vunpack.c.h.b16 %v6138
    %v6318 = vunpack.c.l.b16 %v6139
    %v6319 = vunpack.c.h.b16 %v6139
    %v6320 = vunpack.c.l.b16 %v6140
    %v6321 = vunpack.c.h.b16 %v6140
    %v6322 = vunpack.c.l.b16 %v6141
    %v6323 = vunpack.c.h.b16 %v6141
    %v6324 = vunpack.c.l.b16 %v6142
    %v6325 = vunpack.c.h.b16 %v6142
    %v6326 = vunpack.c.l.b16 %v6143
    %v6327 = vunpack.c.h.b16 %v6143
    %v6328 = vunpack.c.l.b16 %v6144
    %v6329 = vunpack.c.h.b16 %v6144
    %v6330 = vunpack.c.l.b16 %v6145
    %v6331 = vunpack.c.h.b16 %v6145
    %v6332 = vunpack.c.l.b16 %v6146
    %v6333 = vunpack.c.h.b16 %v6146
    %v6334 = vunpack.c.l.b16 %v6147
    %v6335 = vunpack.c.h.b16 %v6147
    %v6336 = vunpack.c.l.b16 %v6148
    %v6337 = vunpack.c.h.b16 %v6148
    %v6338 = vunpack.c.l.b16 %v6149
    %v6339 = vunpack.c.h.b16 %v6149
    %v6340 = vunpack.c.l.b16 %v6150
    %v6341 = vunpack.c.h.b16 %v6150
    %v6342 = vunpack.c.l.b16 %v6151
    %v6343 = vunpack.c.h.b16 %v6151
    %v6344 = vunpack.c.l.b16 %v6152
    %v6345 = vunpack.c.h.b16 %v6152
    %v6346 = vunpack.c.l.b16 %v6153
    %v6347 = vunpack.c.h.b16 %v6153
    %v6348 = vunpack.c.l.b16 %v6154
    %v6349 = vunpack.c.h.b16 %v6154
    %v6350 = vunpack.c.l.b16 %v6155
    %v6351 = vunpack.c.h.b16 %v6155
    %v6352 = vunpack.c.l.b16 %v6156
    %v6353 = vunpack.c.h.b16 %v6156
    %v6354 = vunpack.c.l.b16 %v6157
    %v6355 = vunpack.c.h.b16 %v6157
    %v6356 = vunpack.c.l.b16 %v6158
    %v6357 = vunpack.c.h.b16 %v6158
    %v6358 = vpack.c.b16 %v6234, %v6230
    %v6359 = vpack.c.b16 %v6235, %v6231
    %v6360 = vpack.c.b16 %v6236, %v6232
    %v6361 = vpack.c.b16 %v6237, %v6233
    %v6362 = vpack.c.b16 %v6242, %v6238
    %v6363 = vpack.c.b16 %v6243, %v6239
    %v6364 = vpack.c.b16 %v6244, %v6240
    %v6365 = vpack.c.b16 %v6245, %v6241
    %v6366 = vpack.c.b16 %v6250, %v6246
    %v6367 = vpack.c.b16 %v6251, %v6247
    %v6368 = vpack.c.b16 %v6252, %v6248
    %v6369 = vpack.c.b16 %v6253, %v6249
    %v6370 = vpack.c.b16 %v6258, %v6254
    %v6371 = vpack.c.b16 %v6259, %v6255
    %v6372 = vpack.c.b16 %v6260, %v6256
    %v6373 = vpack.c.b16 %v6261, %v6257
    %v6374 = vpack.c.b16 %v6266, %v6262
    %v6375 = vpack.c.b16 %v6267, %v6263
    %v6376 = vpack.c.b16 %v6268, %v6264
    %v6377 = vpack.c.b16 %v6269, %v6265
    %v6378 = vpack.c.b16 %v6274, %v6270
    %v6379 = vpack.c.b16 %v6275, %v6271
    %v6380 = vpack.c.b16 %v6276, %v6272
    %v6381 = vpack.c.b16 %v6277, %v6273
    %v6382 = vpack.c.b16 %v6282, %v6278
    %v6383 = vpack.c.b16 %v6283, %v6279
    %v6384 = vpack.c.b16 %v6284, %v6280
    %v6385 = vpack.c.b16 %v6285, %v6281
    %v6386 = vpack.c.b16 %v6290, %v6286
    %v6387 = vpack.c.b16 %v6291, %v6287
    %v6388 = vpack.c.b16 %v6292, %v6288
    %v6389 = vpack.c.b16 %v6293, %v6289
    %v6390 = vpack.c.b16 %v6298, %v6294
    %v6391 = vpack.c.b16 %v6299, %v6295
    %v6392 = vpack.c.b16 %v6300, %v6296
    %v6393 = vpack.c.b16 %v6301, %v6297
    %v6394 = vpack.c.b16 %v6306, %v6302
    %v6395 = vpack.c.b16 %v6307, %v6303
    %v6396 = vpack.c.b16 %v6308, %v6304
    %v6397 = vpack.c.b16 %v6309, %v6305
    %v6398 = vpack.c.b16 %v6314, %v6310
    %v6399 = vpack.c.b16 %v6315, %v6311
    %v6400 = vpack.c.b16 %v6316, %v6312
    %v6401 = vpack.c.b16 %v6317, %v6313
    %v6402 = vpack.c.b16 %v6322, %v6318
    %v6403 = vpack.c.b16 %v6323, %v6319
    %v6404 = vpack.c.b16 %v6324, %v6320
    %v6405 = vpack.c.b16 %v6325, %v6321
    %v6406 = vpack.c.b16 %v6330, %v6326
    %v6407 = vpack.c.b16 %v6331, %v6327
    %v6408 = vpack.c.b16 %v6332, %v6328
    %v6409 = vpack.c.b16 %v6333, %v6329
    %v6410 = vpack.c.b16 %v6338, %v6334
    %v6411 = vpack.c.b16 %v6339, %v6335
    %v6412 = vpack.c.b16 %v6340, %v6336
    %v6413 = vpack.c.b16 %v6341, %v6337
    %v6414 = vpack.c.b16 %v6346, %v6342
    %v6415 = vpack.c.b16 %v6347, %v6343
    %v6416 = vpack.c.b16 %v6348, %v6344
    %v6417 = vpack.c.b16 %v6349, %v6345
    %v6418 = vpack.c.b16 %v6354, %v6350
    %v6419 = vpack.c.b16 %v6355, %v6351
    %v6420 = vpack.c.b16 %v6356, %v6352
    %v6421 = vpack.c.b16 %v6357, %v6353
    %6486 = vmatprep.subr.bf16.mxu0 %v6387
    %6487 = vmatpush1.bf16.msra.mxu0 %v6386
    %6488 = vmatprep.subr.bf16.mxu0 %v6383
    %6489 = vmatpush1.bf16.msra.mxu0 %v6382
    %6490 = vmatprep.subr.bf16.mxu0 %v6379
    %6491 = vmatpush1.bf16.msra.mxu0 %v6378
    %6492 = vmatprep.subr.bf16.mxu0 %v6375
    %6493 = vmatpush1.bf16.msra.mxu0 %v6374
    %6494 = vmatprep.subr.bf16.mxu0 %v6371
    %6495 = vmatpush1.bf16.msra.mxu0 %v6370
    %6496 = vmatprep.subr.bf16.mxu0 %v6367
    %6497 = vmatpush1.bf16.msra.mxu0 %v6366
    %6498 = vmatprep.subr.bf16.mxu0 %v6363
    %6499 = vmatpush1.bf16.msra.mxu0 %v6362
    %6500 = vmatprep.subr.bf16.mxu0 %v6359
    %6501 = vmatpush1.bf16.msra.mxu0 %v6358
    %6502 = vmatprep.subr.bf16.mxu0 %v6419
    %6503 = vmatpush2.bf16.msra.mxu0 %v6418
    %6504 = vmatprep.subr.bf16.mxu0 %v6415
    %6505 = vmatpush2.bf16.msra.mxu0 %v6414
    %6506 = vmatprep.subr.bf16.mxu0 %v6411
    %6507 = vmatpush2.bf16.msra.mxu0 %v6410
    %6508 = vmatprep.subr.bf16.mxu0 %v6407
    %6509 = vmatpush2.bf16.msra.mxu0 %v6406
    %6510 = vmatprep.subr.bf16.mxu0 %v6403
    %6511 = vmatpush2.bf16.msra.mxu0 %v6402
    %6512 = vmatprep.subr.bf16.mxu0 %v6399
    %6513 = vmatpush2.bf16.msra.mxu0 %v6398
    %6514 = vmatprep.subr.bf16.mxu0 %v6395
    %6515 = vmatpush2.bf16.msra.mxu0 %v6394
    %6516 = vmatprep.subr.bf16.mxu0 %v6391
    %6517 = vmatpush2.bf16.msra.mxu0 %v6390
    %6518 = vmatprep.mubr.bf16.mxu0 %v6163
    %6519 = vmatmul.mubr.bf16.gmra.mxu0 %v6162
    %v6520 = vpop.f32.mrf.mxu0
    %v6521 = vadd.f32 %v108, %v6520
    %v6522 = vpop.f32.mrf.mxu0
    %v6523 = vadd.f32 %v112, %v6522
    %v6524 = vpop.f32.mrf.mxu0
    %v6525 = vpop.f32.mrf.mxu0
    %6526 = vdwg.mxu0
    %6527 = vmatprep.subr.bf16.mxu0 %v6389
    %6528 = vmatpush1.bf16.msra.mxu0 %v6388
    %6529 = vmatprep.subr.bf16.mxu0 %v6385
    %6530 = vmatpush1.bf16.msra.mxu0 %v6384
    %6531 = vmatprep.subr.bf16.mxu0 %v6381
    %6532 = vmatpush1.bf16.msra.mxu0 %v6380
    %6533 = vmatprep.subr.bf16.mxu0 %v6377
    %6534 = vmatpush1.bf16.msra.mxu0 %v6376
    %6535 = vmatprep.subr.bf16.mxu0 %v6373
    %6536 = vmatpush1.bf16.msra.mxu0 %v6372
    %6537 = vmatprep.subr.bf16.mxu0 %v6369
    %6538 = vmatpush1.bf16.msra.mxu0 %v6368
    %6539 = vmatprep.subr.bf16.mxu0 %v6365
    %6540 = vmatpush1.bf16.msra.mxu0 %v6364
    %6541 = vmatprep.subr.bf16.mxu0 %v6361
    %6542 = vmatpush1.bf16.msra.mxu0 %v6360
    %6543 = vmatprep.subr.bf16.mxu0 %v6421
    %6544 = vmatpush2.bf16.msra.mxu0 %v6420
    %6545 = vmatprep.subr.bf16.mxu0 %v6417
    %6546 = vmatpush2.bf16.msra.mxu0 %v6416
    %6547 = vmatprep.subr.bf16.mxu0 %v6413
    %6548 = vmatpush2.bf16.msra.mxu0 %v6412
    %6549 = vmatprep.subr.bf16.mxu0 %v6409
    %6550 = vmatpush2.bf16.msra.mxu0 %v6408
    %6551 = vmatprep.subr.bf16.mxu0 %v6405
    %6552 = vmatpush2.bf16.msra.mxu0 %v6404
    %6553 = vmatprep.subr.bf16.mxu0 %v6401
    %6554 = vmatpush2.bf16.msra.mxu0 %v6400
    %6555 = vmatprep.subr.bf16.mxu0 %v6397
    %6556 = vmatpush2.bf16.msra.mxu0 %v6396
    %6557 = vmatprep.subr.bf16.mxu0 %v6393
    %6558 = vmatpush2.bf16.msra.mxu0 %v6392
    %6559 = vmatprep.mubr.bf16.mxu0 %v6163
    %6560 = vmatmul.mubr.bf16.gmra.mxu0 %v6162
    %v6561 = vpop.f32.mrf.mxu0
    %v6562 = vadd.f32 %v116, %v6561
    %v6563 = vpop.f32.mrf.mxu0
    %v6564 = vadd.f32 %v120, %v6563
    %v6565 = vpop.f32.mrf.mxu0
    %v6566 = vpop.f32.mrf.mxu0
    %6567 = vdwg.mxu0
    %v6568 = vmul.f32 %v6521, 0.5
    %v6569 = vmul.f32 %v6523, 0.5
    %v6570 = vmul.f32 %v6562, 0.5
    %v6571 = vtanh.pop %v6568
    %v6572 = vtanh.pop %v6569
    %v6573 = vtanh.pop %v6570
    %v6574 = vmul.f32 %v6571, 0.5
    %v6575 = vmul.f32 %v6572, 0.5
    %v6576 = vmul.f32 %v6573, 0.5
    %v6577 = vadd.f32 %v6574, 0.5
    %v6578 = vadd.f32 %v6575, 0.5
    %v6579 = vadd.f32 %v6576, 0.5
    %v6580 = vtanh.pop %v6564
    %v6581 = vmul.f32 %v6578, %v5775
    %v6582 = vmul.f32 %v6577, %v6580
    %v6583 = vadd.f32 %v6581, %v6582
    %v6584 = vtanh.pop %v6583
    %v6585 = vmul.f32 %v6579, %v6584
    %v6586 = vpack.c.bf16 %v6585, %v6585
    %6587 = vst [vmem:[#allocation2 + $0x4] sm:$0xf] %v6586
    %v6588 = vld [vmem:[%s6] sm:$0xf]
    %v6589 = vld [vmem:[%s6 + $0x4] sm:$0xf]
    %v6590 = vld [vmem:[%s6 + $0x8] sm:$0xf]
    %v6591 = vld [vmem:[%s6 + $0xc] sm:$0xf]
    %v6592 = vld [vmem:[%s6 + $0x10] sm:$0xf]
    %v6593 = vld [vmem:[%s6 + $0x14] sm:$0xf]
    %v6594 = vld [vmem:[%s6 + $0x18] sm:$0xf]
    %v6595 = vld [vmem:[%s6 + $0x1c] sm:$0xf]
    %v6596 = vld [vmem:[%s6 + $0x20] sm:$0xf]
    %v6597 = vld [vmem:[%s6 + $0x24] sm:$0xf]
    %v6598 = vld [vmem:[%s6 + $0x28] sm:$0xf]
    %v6599 = vld [vmem:[%s6 + $0x2c] sm:$0xf]
    %v6600 = vld [vmem:[%s6 + $0x30] sm:$0xf]
    %v6601 = vld [vmem:[%s6 + $0x34] sm:$0xf]
    %v6602 = vld [vmem:[%s6 + $0x38] sm:$0xf]
    %v6603 = vld [vmem:[%s6 + $0x3c] sm:$0xf]
    %v6604 = vld [vmem:[%s7] sm:$0x1]
    %v6606 = vlaneseq
    %v6607 = vshrl.u32 %v6606, 7
    %v6608 = vsub.s32 0, %v6607
    %v6609 = vrot.slane %v6604, %v6608
    %v6627 = vunpack.c.l.b16 %v6588
    %v6628 = vunpack.c.l.b16 %v6589
    %v6629 = vunpack.c.l.b16 %v6590
    %v6630 = vunpack.c.l.b16 %v6591
    %v6631 = vunpack.c.l.b16 %v6592
    %v6632 = vunpack.c.l.b16 %v6593
    %v6633 = vunpack.c.l.b16 %v6594
    %v6634 = vunpack.c.l.b16 %v6595
    %v6635 = vunpack.c.l.b16 %v6596
    %v6636 = vunpack.c.l.b16 %v6597
    %v6637 = vunpack.c.l.b16 %v6598
    %v6638 = vunpack.c.l.b16 %v6599
    %v6639 = vunpack.c.l.b16 %v6600
    %v6640 = vunpack.c.l.b16 %v6601
    %v6641 = vunpack.c.l.b16 %v6602
    %v6642 = vunpack.c.l.b16 %v6603
    %v6643 = vpack.c.b16 %v6628, %v6627
    %v6644 = vpack.c.b16 %v6630, %v6629
    %v6645 = vpack.c.b16 %v6632, %v6631
    %v6646 = vpack.c.b16 %v6634, %v6633
    %v6647 = vpack.c.b16 %v6636, %v6635
    %v6648 = vpack.c.b16 %v6638, %v6637
    %v6649 = vpack.c.b16 %v6640, %v6639
    %v6650 = vpack.c.b16 %v6642, %v6641
    %6659 = vmatprep.subr.bf16.mxu0 0
    %6660 = vmatpush1.bf16.msra.mxu0 %v6650
    %6661 = vmatprep.subr.bf16.mxu0 0
    %6662 = vmatpush1.bf16.msra.mxu0 %v6649
    %6663 = vmatprep.subr.bf16.mxu0 0
    %6664 = vmatpush1.bf16.msra.mxu0 %v6648
    %6665 = vmatprep.subr.bf16.mxu0 0
    %6666 = vmatpush1.bf16.msra.mxu0 %v6647
    %6667 = vmatprep.subr.bf16.mxu0 0
    %6668 = vmatpush1.bf16.msra.mxu0 %v6646
    %6669 = vmatprep.subr.bf16.mxu0 0
    %6670 = vmatpush1.bf16.msra.mxu0 %v6645
    %6671 = vmatprep.subr.bf16.mxu0 0
    %6672 = vmatpush1.bf16.msra.mxu0 %v6644
    %6673 = vmatprep.subr.bf16.mxu0 0
    %6674 = vmatpush1.bf16.msra.mxu0 %v6643
    %6675 = vmatprep.subr.bf16.mxu0 0
    %6676 = vmatpush2.bf16.msra.mxu0 0
    %6677 = vmatprep.subr.bf16.mxu0 0
    %6678 = vmatpush2.bf16.msra.mxu0 0
    %6679 = vmatprep.subr.bf16.mxu0 0
    %6680 = vmatpush2.bf16.msra.mxu0 0
    %6681 = vmatprep.subr.bf16.mxu0 0
    %6682 = vmatpush2.bf16.msra.mxu0 0
    %6683 = vmatprep.subr.bf16.mxu0 0
    %6684 = vmatpush2.bf16.msra.mxu0 0
    %6685 = vmatprep.subr.bf16.mxu0 0
    %6686 = vmatpush2.bf16.msra.mxu0 0
    %6687 = vmatprep.subr.bf16.mxu0 0
    %6688 = vmatpush2.bf16.msra.mxu0 0
    %6689 = vmatprep.subr.bf16.mxu0 0
    %6690 = vmatpush2.bf16.msra.mxu0 0
    %6691 = vmatprep.mubr.bf16.mxu0 0
    %6692 = vmatmul.mubr.bf16.gmra.mxu0 %v6586
    %v6693 = vpop.f32.mrf.mxu0
    %v6694 = vadd.f32 %v6609, %v6693
    %v6695 = vpop.f32.mrf.mxu0
    %v6696 = vpop.f32.mrf.mxu0
    %v6697 = vpop.f32.mrf.mxu0
    %6698 = vdwg.mxu0
    %6699 = vst [vmem:[%s8] sm:$0xff] %v6694
    // Predicated region
    $region42: #{lstm_forward.1} parent=1 // pred_check
      _
    $region43: #{lstm_forward.1} parent=1 // pred_check_branch
      %6701 = sbr.rel (0) target = $region45
    $region44: #{lstm_forward.1} parent=1 // pred_region
      _
    $region45: #{lstm_forward.1} parent=1 // pred_fallthru
      _
    // Predicated region
    $region46: #{lstm_forward.1} parent=1 // pred_check
      _
    $region47: #{lstm_forward.1} parent=1 // pred_check_branch
      %6703 = sbr.rel (0) target = $region49
    $region48: #{lstm_forward.1} parent=1 // pred_region
      _
    $region49: #{lstm_forward.1} parent=1 // pred_fallthru
      _
    %6704 = vsyncpa [#allocation4], 1
    %6705 = vsyncpa [#allocation6], 1

</llo_original>
